<compile_context>
chip_gen: v7x
topology: tpu7x:2x2x1
jax: 0.10.0
libtpu: 0.0.40
codegen_flags: <defaults>
</compile_context>

<pallas_src>
import functools

import jax
import jax.numpy as jnp
from jax.experimental import pallas as pl
from jax.experimental.pallas import tpu as pltpu


# ---------------------------------------------------------------------------
# Kernel A: stem conv -> head 1x1 conv -> global pool -> W_ih0 projection
# ---------------------------------------------------------------------------

def _feat_kernel(p_ref, sw_ref, sb_ref, hw_ref, hb_ref, wih_ref,
                 o_ref, acc_ref, *, hw_total, hw_tile, col_chunk, inv_hw):
    j = pl.program_id(1)

    @pl.when(j == 0)
    def _():
        acc_ref[...] = jnp.zeros_like(acc_ref)

    # --- stem 3x3/s2 conv (pre-unfolded to 27 taps, pixels lane-dense) ------
    p = p_ref[...]                                            # (27, hw_tile) bf16
    y = jnp.dot(sw_ref[...], p,
                preferred_element_type=jnp.float32)           # (Cs, hw_tile)
    y = y + sb_ref[...]                                       # folded-BN bias
    y = y * jax.nn.sigmoid(y)                                 # SiLU
    y16 = y.astype(jnp.bfloat16)

    # masked remainder for the ragged last hw tile (static no-op when aligned)
    ragged = (hw_total % hw_tile) != 0
    if ragged:
        valid = hw_total - j * hw_tile
        col_ok = jax.lax.broadcasted_iota(jnp.int32, (1, hw_tile), 1) < valid

    # --- head 1x1 conv + BN bias + SiLU + pool, chunked over 1536 features --
    # (chunking bounds the live f32 intermediate; K=40 is the MXU-depth
    #  ceiling of this kernel — int8/fp8 head weights would be the next lever)
    cf = hw_ref.shape[0]
    for c0 in range(0, cf, col_chunk):
        c1 = c0 + col_chunk
        z = jnp.dot(hw_ref[c0:c1, :], y16,
                    preferred_element_type=jnp.float32)       # (cc, hw_tile)
        z = z + hb_ref[c0:c1, :]
        z = z * jax.nn.sigmoid(z)                             # SiLU (f32: v5e-safe)
        if ragged:
            z = jnp.where(col_ok, z, 0.0)
        acc_ref[c0:c1, :] += z.sum(axis=1, keepdims=True)     # pool accumulate

    @pl.when(j == pl.num_programs(1) - 1)
    def _():
        pooled = (acc_ref[...] * inv_hw).astype(jnp.bfloat16)  # (Cf, 1)
        # hoisted LSTM layer-0 input projection: (4H, Cf) @ (Cf, 1) -> (4H, 1).
        # The per-frame output is a single 512-byte column (negligible volume);
        # keeping it column-shaped avoids an in-kernel cross-layout transpose.
        o_ref[...] = jnp.dot(wih_ref[...], pooled,
                             preferred_element_type=jnp.float32)


def _pick_hw_tile(hw, live_bytes_per_pixel, vmem_budget_bytes=4 << 20):
    """Lane-dense pixel tile: full extent when small, else a multiple of 128
    sized so the per-step live footprint stays inside a VMEM byte budget."""
    if hw <= 1024:
        return hw
    cap = (vmem_budget_bytes // max(1, live_bytes_per_pixel)) // 128 * 128
    return int(max(128, min(1024, cap)))


def feature_extract_project(patches, stem_w, stem_bias,
                            head_w, head_bias, w_ih0_t):
    """patches (N, 9C, HW) bf16 -> (N, 4H) f32 == global_pool(features) @ W_ih0."""
    n, kdim, hw = patches.shape
    cf, cs = head_w.shape
    g4h = w_ih0_t.shape[0]

    col_chunk = next((c for c in (256, 384, 512, 128) if cf % c == 0), cf)
    live_bytes_per_pixel = kdim * 2 + cs * 4 + col_chunk * 4 * 2
    hw_tile = _pick_hw_tile(hw, live_bytes_per_pixel)
    nh = pl.cdiv(hw, hw_tile)

    kernel = functools.partial(_feat_kernel, hw_total=hw, hw_tile=hw_tile,
                               col_chunk=col_chunk, inv_hw=1.0 / hw)

    # explicit scoped-VMEM budget sized from the tiles (v5e default is 16 MiB,
    # v7x physical VMEM is 64 MiB -> clamp the request to [32, 48] MiB)
    est = 2 * (32 * hw_tile * 2)                                   # patch block
    est += 2 * 2 * (stem_w.size + head_w.size + w_ih0_t.size)      # bf16 weights
    est += 3 * cf * 128 * 4                                        # (Cf,1) bias/pool
    est += 4 * hw_tile * col_chunk * 4                             # live chunk + spill
    vmem_limit = int(min(max(est + (8 << 20), 32 << 20), 48 << 20))

    out = pl.pallas_call(
        kernel,
        out_shape=jax.ShapeDtypeStruct((n, g4h, 1), jnp.float32),
        grid_spec=pltpu.PrefetchScalarGridSpec(
            num_scalar_prefetch=0,
            grid=(n, nh),
            in_specs=[
                pl.BlockSpec((None, kdim, hw_tile), lambda i, j: (i, 0, j)),
                pl.BlockSpec((cs, kdim), lambda i, j: (0, 0)),
                pl.BlockSpec((cs, 1), lambda i, j: (0, 0)),
                pl.BlockSpec((cf, cs), lambda i, j: (0, 0)),
                pl.BlockSpec((cf, 1), lambda i, j: (0, 0)),
                pl.BlockSpec((g4h, cf), lambda i, j: (0, 0)),
            ],
            out_specs=pl.BlockSpec((None, g4h, 1), lambda i, j: (i, 0, 0)),
            scratch_shapes=[pltpu.VMEM((cf, 1), jnp.float32)],
        ),
        compiler_params=pltpu.CompilerParams(
            dimension_semantics=("parallel", "arbitrary"),
            vmem_limit_bytes=vmem_limit),
    )(patches, stem_w, stem_bias, head_w, head_bias, w_ih0_t)
    return out.reshape(n, g4h)


# ---------------------------------------------------------------------------
# Kernel B: multi-layer LSTM recurrence + classifier, batch-split grid
# ---------------------------------------------------------------------------

def _make_lstm_cls_kernel(num_layers, hdim, seq_len):
    def kernel(*refs):
        gates_ref = refs[0]                      # (T, bb, 4H) f32: x_t @ W_ih0
        layers = [(None, refs[1], refs[2])]      # layer 0: only (w_hh, bias)
        pos = 3
        for _ in range(1, num_layers):
            layers.append((refs[pos], refs[pos + 1], refs[pos + 2]))
            pos += 3
        w1_ref, b1_ref, w2_ref, b2_ref, o_ref = refs[pos:pos + 5]

        bb = gates_ref.shape[1]

        # hoist weight loads out of the recurrence (weights stored bf16)
        layer_w = []
        for wih_r, whh_r, b_r in layers:
            wih = None if wih_r is None else wih_r[...]
            layer_w.append((wih, whh_r[...], b_r[...]))

        zeros = jnp.zeros((bb, hdim), jnp.float32)
        init = tuple([zeros] * (2 * num_layers))         # h0, c0, h1, c1, ...

        def step(t, carry):
            new = list(carry)
            inp = None
            for l, (wih, whh, bias) in enumerate(layer_w):
                h = carry[2 * l]
                c = carry[2 * l + 1]
                if l == 0:
                    g = gates_ref[t]                     # hoisted x projection
                else:
                    g = jnp.dot(inp.astype(jnp.bfloat16), wih,
                                preferred_element_type=jnp.float32)
                g = g + jnp.dot(h.astype(jnp.bfloat16), whh,
                                preferred_element_type=jnp.float32) + bias
                # gates pre-permuted offline to (i, f, o, g):
                # one sigmoid over 3H + one tanh per layer per timestep
                s = jax.nn.sigmoid(g[:, :3 * hdim])
                i_g = s[:, 0 * hdim:1 * hdim]
                f_g = s[:, 1 * hdim:2 * hdim]
                o_g = s[:, 2 * hdim:3 * hdim]
                g_g = jnp.tanh(g[:, 3 * hdim:])
                c_new = f_g * c + i_g * g_g
                h_new = o_g * jnp.tanh(c_new)
                new[2 * l] = h_new
                new[2 * l + 1] = c_new
                inp = h_new        # inter-layer dropout(0.1): identity in eval
            return tuple(new)

        carry = jax.lax.fori_loop(0, seq_len, step, init,
                                  unroll=min(seq_len, 8))
        h_top = carry[2 * (num_layers - 1)]              # lstm_out[:, -1, :]

        # classifier: Linear -> ReLU -> (Dropout: identity) -> Linear
        hid = jnp.dot(h_top, w1_ref[...],
                      preferred_element_type=jnp.float32) + b1_ref[...]
        hid = jnp.maximum(hid, 0.0)
        o_ref[...] = jnp.dot(hid, w2_ref[...],
                             preferred_element_type=jnp.float32) + b2_ref[...]
    return kernel


def lstm_classifier(gates, lstm_params, w1, b1, w2, b2):
    # gates: (nb, T, bb, 4H) f32; x_t @ W_ih0 precomputed by Kernel A.
    nb, t, bb, g4h = gates.shape
    hdim = g4h // 4
    num_layers = len(lstm_params)

    inputs = [gates, lstm_params[0][1], lstm_params[0][2]]
    for w_ih, w_hh, bias in lstm_params[1:]:
        inputs += [w_ih, w_hh, bias]
    inputs += [w1, b1, w2, b2]

    def const_spec(shape):
        nz = (0,) * len(shape)
        return pl.BlockSpec(shape, lambda i, _z=nz: _z)

    in_specs = [pl.BlockSpec((None, t, bb, g4h), lambda i: (i, 0, 0, 0))]
    in_specs += [const_spec(x.shape) for x in inputs[1:]]

    out = pl.pallas_call(
        _make_lstm_cls_kernel(num_layers, hdim, t),
        out_shape=jax.ShapeDtypeStruct((nb, bb, 1), jnp.float32),
        grid_spec=pltpu.PrefetchScalarGridSpec(
            num_scalar_prefetch=0,
            grid=(nb,),
            in_specs=in_specs,
            out_specs=pl.BlockSpec((None, bb, 1), lambda i: (i, 0, 0)),
        ),
        compiler_params=pltpu.CompilerParams(
            dimension_semantics=("parallel",)),
    )(*inputs)
    return out.reshape(nb * bb, 1)


# ---------------------------------------------------------------------------
# Glue (plain JAX): patch unfolding, BN folding, parameter setup
# ---------------------------------------------------------------------------

def im2col_3x3_s2_p1(x):
    """(N, C, H, W) -> (N, 9*C, Ho*Wo) bf16 patch matrix, pixels lane-dense.

    TODO(synk): the 3x3/s2 unfold itself stays in XLA glue (a full fusion would
    read a space-to-depth layout of the padded frames directly in Kernel A);
    the Pallas-facing layout puts the 27 taps on the slow axis so the kernel
    never sees a 27-wide minor dim.
    """
    n, c, h, w = x.shape
    ho, wo = (h - 1) // 2 + 1, (w - 1) // 2 + 1
    xp = jnp.pad(x, ((0, 0), (0, 0), (1, 1), (1, 1)))
    taps = []
    for ki in range(3):
        for kj in range(3):
            taps.append(xp[:, :, ki:ki + 2 * ho - 1:2, kj:kj + 2 * wo - 1:2])
    patches = jnp.stack(taps, axis=1)                 # (N, 9, C, Ho, Wo)
    return patches.reshape(n, 9 * c, ho * wo).astype(jnp.bfloat16)


def fold_bn(gamma, beta, mean, var, eps=1e-5):
    scale = gamma / jnp.sqrt(var + eps)
    bias = beta - mean * scale
    return scale, bias


def _permute_gates_ifog(w):
    # PyTorch LSTM gate order (i, f, g, o) -> (i, f, o, g) along the 4H axis.
    i, f, g, o = jnp.split(w, 4, axis=-1)
    return jnp.concatenate([i, f, o, g], axis=-1)


def init_params(key, *, in_ch=3, stem_ch=40, feat=1536,
                lstm_hidden=32, num_lstm_layers=2):
    ks = jax.random.split(key, 12 + 3 * num_lstm_layers)
    p = {}

    # stem 3x3/s2 conv: torch layout (Cout, Cin, 3, 3) -> (Cout, 9*Cin) with
    # (tap, channel) feature order; BN scale folded into the weight.
    w_stem = 0.1 * jax.random.normal(ks[0], (stem_ch, in_ch, 3, 3), jnp.float32)
    gamma = 1.0 + 0.05 * jax.random.normal(ks[1], (stem_ch,), jnp.float32)
    beta = 0.05 * jax.random.normal(ks[2], (stem_ch,), jnp.float32)
    scale, bias = fold_bn(gamma, beta, jnp.zeros((stem_ch,), jnp.float32),
                          jnp.ones((stem_ch,), jnp.float32))
    w_mat = w_stem.transpose(0, 2, 3, 1).reshape(stem_ch, 9 * in_ch)
    p["stem_w"] = (w_mat * scale[:, None]).astype(jnp.bfloat16)
    p["stem_bias"] = bias.reshape(stem_ch, 1)

    # head 1x1 conv: (Cf, Cs), BN scale folded in.
    w_head = 0.05 * jax.random.normal(ks[3], (feat, stem_ch), jnp.float32)
    gamma = 1.0 + 0.05 * jax.random.normal(ks[4], (feat,), jnp.float32)
    beta = 0.05 * jax.random.normal(ks[5], (feat,), jnp.float32)
    scale, bias = fold_bn(gamma, beta, jnp.zeros((feat,), jnp.float32),
                          jnp.ones((feat,), jnp.float32))
    p["head_w"] = (w_head * scale[:, None]).astype(jnp.bfloat16)
    p["head_bias"] = bias.reshape(feat, 1)

    # LSTM: gate columns pre-permuted to (i, f, o, g); weights bf16 for the MXU
    # (states/biases stay f32). Layer 0's W_ih is stored transposed (4H, Cf)
    # because Kernel A consumes it against the pooled feature column.
    p["lstm"] = []
    kidx = 6
    in_dim = feat
    for layer in range(num_lstm_layers):
        w_ih = 0.05 * jax.random.normal(ks[kidx], (in_dim, 4 * lstm_hidden),
                                        jnp.float32)
        w_hh = 0.05 * jax.random.normal(ks[kidx + 1],
                                        (lstm_hidden, 4 * lstm_hidden),
                                        jnp.float32)
        bias = 0.05 * jax.random.normal(ks[kidx + 2], (1, 4 * lstm_hidden),
                                        jnp.float32)      # b_ih + b_hh combined
        w_ih = _permute_gates_ifog(w_ih)
        w_hh = _permute_gates_ifog(w_hh).astype(jnp.bfloat16)
        bias = _permute_gates_ifog(bias)
        if layer == 0:
            w_ih = w_ih.T.astype(jnp.bfloat16)            # (4H, Cf) for Kernel A
        else:
            w_ih = w_ih.astype(jnp.bfloat16)              # (H, 4H) for Kernel B
        p["lstm"].append((w_ih, w_hh, bias))
        kidx += 3
        in_dim = lstm_hidden

    # classifier
    mid = lstm_hidden // 2
    p["cls_w1"] = 0.1 * jax.random.normal(ks[kidx], (lstm_hidden, mid),
                                          jnp.float32)
    p["cls_b1"] = 0.05 * jax.random.normal(ks[kidx + 1], (1, mid), jnp.float32)
    p["cls_w2"] = 0.1 * jax.random.normal(ks[kidx + 2], (mid, 1), jnp.float32)
    p["cls_b2"] = jnp.zeros((1, 1), jnp.float32)
    return p


@jax.jit
def eff_b3_lstm_forward(vid_frames, params):
    # vid_frames: (B, T, C, H, W) float32
    b, t, c, h, w = vid_frames.shape
    frames = vid_frames.reshape(b * t, c, h, w)

    # fused feature extractor + hoisted LSTM layer-0 input projection
    patches = im2col_3x3_s2_p1(frames)                    # (B*T, 9C, HW) bf16
    g0 = feature_extract_project(
        patches, params["stem_w"], params["stem_bias"],
        params["head_w"], params["head_bias"],
        params["lstm"][0][0])                             # (B*T, 4H) f32

    # batch-block layout for the recurrence: 2 blocks so v7x's two TensorCores
    # each run an independent LSTM over half the batch (harmless elsewhere).
    g4h = g0.shape[-1]
    nb = 2 if (b >= 2 and b % 2 == 0) else 1
    bb = b // nb
    gates = (g0.reshape(b, t, g4h)
               .reshape(nb, bb, t, g4h)
               .transpose(0, 2, 1, 3))                    # (nb, T, bb, 4H)

    return lstm_classifier(gates, params["lstm"],
                           params["cls_w1"], params["cls_b1"],
                           params["cls_w2"], params["cls_b2"])   # (B, 1)


if __name__ == "__main__":
    key = jax.random.PRNGKey(0)
    k_in, k_par = jax.random.split(key)

    B, T, C, H, W = 2, 4, 3, 16, 16
    vid_frames = jax.random.normal(k_in, (B, T, C, H, W), jnp.float32)
    params = init_params(k_par, in_ch=C, stem_ch=40, feat=1536,
                         lstm_hidden=32, num_lstm_layers=2)

    out = eff_b3_lstm_forward(vid_frames, params)
    out = jax.block_until_ready(out)
    assert out.shape == (B, 1) and out.dtype == jnp.float32
    print("KERNEL_OK")
</pallas_src>

<mosaic_0001>
module attributes {stable_mosaic.version = 11 : i64} {
  func.func @_feat_kernel(%arg0: i32, %arg1: i32, %arg2: memref<1x27x64xbf16, #tpu.memory_space<vmem>>, %arg3: memref<40x27xbf16, #tpu.memory_space<vmem>>, %arg4: memref<40x1xf32, #tpu.memory_space<vmem>>, %arg5: memref<1536x40xbf16, #tpu.memory_space<vmem>>, %arg6: memref<1536x1xf32, #tpu.memory_space<vmem>>, %arg7: memref<128x1536xbf16, #tpu.memory_space<vmem>>, %arg8: memref<1x128x1xf32, #tpu.memory_space<vmem>>, %arg9: memref<1536x1xf32, #tpu.memory_space<vmem>>) attributes {dimension_semantics = [#tpu.dimension_semantics<parallel>, #tpu.dimension_semantics<arbitrary>], iteration_bounds = array<i64: 8, 1>, scalar_prefetch = 0 : i64, scratch_operands = 1 : i64, tpu.core_type = #tpu.core_type<tc>, window_params = [{transform_indices = @transform_0, window_bounds = array<i64: 1, 27, 64>}, {pipeline_mode = #tpu.pipeline_mode<synchronous>, transform_indices = @transform_1, window_bounds = array<i64: 40, 27>}, {pipeline_mode = #tpu.pipeline_mode<synchronous>, transform_indices = @transform_2, window_bounds = array<i64: 40, 1>}, {pipeline_mode = #tpu.pipeline_mode<synchronous>, transform_indices = @transform_3, window_bounds = array<i64: 1536, 40>}, {pipeline_mode = #tpu.pipeline_mode<synchronous>, transform_indices = @transform_4, window_bounds = array<i64: 1536, 1>}, {pipeline_mode = #tpu.pipeline_mode<synchronous>, transform_indices = @transform_5, window_bounds = array<i64: 128, 1536>}, {transform_indices = @transform_6, window_bounds = array<i64: 1, 128, 1>}]} {
    %c0_i32 = arith.constant 0 : i32
    %0 = arith.cmpi eq, %arg1, %c0_i32 : i32
    %1 = arith.extui %0 : i1 to i32
    %c0_i32_0 = arith.constant 0 : i32
    %2 = arith.cmpi ne, %1, %c0_i32_0 : i32
    scf.if %2 {
      %cst_71 = arith.constant 0.000000e+00 : f32
      %116 = vector.broadcast %cst_71 : f32 to vector<1536x1xf32>
      %c0_72 = arith.constant 0 : index
      %c0_73 = arith.constant 0 : index
      %117 = vector.load %arg9[%c0_72, %c0_73] : memref<1536x1xf32, #tpu.memory_space<vmem>>, vector<1536x1xf32>
      tpu.vector_store %arg9[%c0_72, %c0_73], %116 {strides = array<i32>} : memref<1536x1xf32, #tpu.memory_space<vmem>>, vector<1536x1xf32>,
    } else {
    }
    %c0 = arith.constant 0 : index
    %c0_1 = arith.constant 0 : index
    %c0_2 = arith.constant 0 : index
    %3 = vector.load %arg2[%c0, %c0_1, %c0_2] : memref<1x27x64xbf16, #tpu.memory_space<vmem>>, vector<1x27x64xbf16>
    %4 = vector.shape_cast %3 : vector<1x27x64xbf16> to vector<27x64xbf16>
    %c0_3 = arith.constant 0 : index
    %c0_4 = arith.constant 0 : index
    %5 = vector.load %arg3[%c0_3, %c0_4] : memref<40x27xbf16, #tpu.memory_space<vmem>>, vector<40x27xbf16>
    %cst = arith.constant dense<0.000000e+00> : vector<40x64xf32>
    %6 = tpu.matmul %5, %4, %cst {dimension_numbers = #tpu.dot_dimension_numbers<[1], [0], [0], [1], [0, 0, 1, 1], [], []>} : vector<40x27xbf16>, vector<27x64xbf16>, vector<40x64xf32> -> vector<40x64xf32>
    %c0_5 = arith.constant 0 : index
    %c0_6 = arith.constant 0 : index
    %7 = vector.load %arg4[%c0_5, %c0_6] : memref<40x1xf32, #tpu.memory_space<vmem>>, vector<40x1xf32>
    %8 = vector.broadcast %7 : vector<40x1xf32> to vector<40x64xf32>
    %9 = arith.addf %6, %8 : vector<40x64xf32>
    %10 = arith.negf %9 : vector<40x64xf32>
    %11 = math.exp %10 : vector<40x64xf32>
    %cst_7 = arith.constant 1.000000e+00 : f32
    %12 = vector.broadcast %cst_7 : f32 to vector<40x64xf32>
    %13 = arith.addf %12, %11 : vector<40x64xf32>
    %14 = arith.divf %12, %13 : vector<40x64xf32>
    %15 = arith.mulf %9, %14 : vector<40x64xf32>
    %16 = arith.truncf %15 : vector<40x64xf32> to vector<40x64xbf16>
    %c0_8 = arith.constant 0 : index
    %c0_9 = arith.constant 0 : index
    %17 = vector.load %arg5[%c0_8, %c0_9] : memref<1536x40xbf16, #tpu.memory_space<vmem>>, vector<256x40xbf16>
    %cst_10 = arith.constant dense<0.000000e+00> : vector<256x64xf32>
    %18 = tpu.matmul %17, %16, %cst_10 {dimension_numbers = #tpu.dot_dimension_numbers<[1], [0], [0], [1], [0, 0, 1, 1], [], []>} : vector<256x40xbf16>, vector<40x64xbf16>, vector<256x64xf32> -> vector<256x64xf32>
    %c0_11 = arith.constant 0 : index
    %c0_12 = arith.constant 0 : index
    %19 = vector.load %arg6[%c0_11, %c0_12] : memref<1536x1xf32, #tpu.memory_space<vmem>>, vector<256x1xf32>
    %20 = vector.broadcast %19 : vector<256x1xf32> to vector<256x64xf32>
    %21 = arith.addf %18, %20 : vector<256x64xf32>
    %22 = arith.negf %21 : vector<256x64xf32>
    %23 = math.exp %22 : vector<256x64xf32>
    %cst_13 = arith.constant 1.000000e+00 : f32
    %24 = vector.broadcast %cst_13 : f32 to vector<256x64xf32>
    %25 = arith.addf %24, %23 : vector<256x64xf32>
    %26 = arith.divf %24, %25 : vector<256x64xf32>
    %27 = arith.mulf %21, %26 : vector<256x64xf32>
    %c0_14 = arith.constant 0 : index
    %c0_15 = arith.constant 0 : index
    %28 = vector.load %arg9[%c0_14, %c0_15] : memref<1536x1xf32, #tpu.memory_space<vmem>>, vector<256x1xf32>
    %cst_16 = arith.constant dense<0.000000e+00> : vector<256xf32>
    %29 = vector.multi_reduction <add>, %27, %cst_16 [1] : vector<256x64xf32> to vector<256xf32>
    %30 = vector.shape_cast %29 : vector<256xf32> to vector<256x1xf32>
    %31 = arith.addf %28, %30 : vector<256x1xf32>
    %c0_17 = arith.constant 0 : index
    %c0_18 = arith.constant 0 : index
    %32 = vector.load %arg9[%c0_17, %c0_18] : memref<1536x1xf32, #tpu.memory_space<vmem>>, vector<256x1xf32>
    tpu.vector_store %arg9[%c0_17, %c0_18], %31 {strides = array<i32>} : memref<1536x1xf32, #tpu.memory_space<vmem>>, vector<256x1xf32>,
    %c256 = arith.constant 256 : index
    %c0_19 = arith.constant 0 : index
    %33 = vector.load %arg5[%c256, %c0_19] : memref<1536x40xbf16, #tpu.memory_space<vmem>>, vector<256x40xbf16>
    %cst_20 = arith.constant dense<0.000000e+00> : vector<256x64xf32>
    %34 = tpu.matmul %33, %16, %cst_20 {dimension_numbers = #tpu.dot_dimension_numbers<[1], [0], [0], [1], [0, 0, 1, 1], [], []>} : vector<256x40xbf16>, vector<40x64xbf16>, vector<256x64xf32> -> vector<256x64xf32>
    %c256_21 = arith.constant 256 : index
    %c0_22 = arith.constant 0 : index
    %35 = vector.load %arg6[%c256_21, %c0_22] : memref<1536x1xf32, #tpu.memory_space<vmem>>, vector<256x1xf32>
    %36 = vector.broadcast %35 : vector<256x1xf32> to vector<256x64xf32>
    %37 = arith.addf %34, %36 : vector<256x64xf32>
    %38 = arith.negf %37 : vector<256x64xf32>
    %39 = math.exp %38 : vector<256x64xf32>
    %cst_23 = arith.constant 1.000000e+00 : f32
    %40 = vector.broadcast %cst_23 : f32 to vector<256x64xf32>
    %41 = arith.addf %40, %39 : vector<256x64xf32>
    %42 = arith.divf %40, %41 : vector<256x64xf32>
    %43 = arith.mulf %37, %42 : vector<256x64xf32>
    %c256_24 = arith.constant 256 : index
    %c0_25 = arith.constant 0 : index
    %44 = vector.load %arg9[%c256_24, %c0_25] : memref<1536x1xf32, #tpu.memory_space<vmem>>, vector<256x1xf32>
    %cst_26 = arith.constant dense<0.000000e+00> : vector<256xf32>
    %45 = vector.multi_reduction <add>, %43, %cst_26 [1] : vector<256x64xf32> to vector<256xf32>
    %46 = vector.shape_cast %45 : vector<256xf32> to vector<256x1xf32>
    %47 = arith.addf %44, %46 : vector<256x1xf32>
    %c256_27 = arith.constant 256 : index
    %c0_28 = arith.constant 0 : index
    %48 = vector.load %arg9[%c256_27, %c0_28] : memref<1536x1xf32, #tpu.memory_space<vmem>>, vector<256x1xf32>
    tpu.vector_store %arg9[%c256_27, %c0_28], %47 {strides = array<i32>} : memref<1536x1xf32, #tpu.memory_space<vmem>>, vector<256x1xf32>,
    %c512 = arith.constant 512 : index
    %c0_29 = arith.constant 0 : index
    %49 = vector.load %arg5[%c512, %c0_29] : memref<1536x40xbf16, #tpu.memory_space<vmem>>, vector<256x40xbf16>
    %cst_30 = arith.constant dense<0.000000e+00> : vector<256x64xf32>
    %50 = tpu.matmul %49, %16, %cst_30 {dimension_numbers = #tpu.dot_dimension_numbers<[1], [0], [0], [1], [0, 0, 1, 1], [], []>} : vector<256x40xbf16>, vector<40x64xbf16>, vector<256x64xf32> -> vector<256x64xf32>
    %c512_31 = arith.constant 512 : index
    %c0_32 = arith.constant 0 : index
    %51 = vector.load %arg6[%c512_31, %c0_32] : memref<1536x1xf32, #tpu.memory_space<vmem>>, vector<256x1xf32>
    %52 = vector.broadcast %51 : vector<256x1xf32> to vector<256x64xf32>
    %53 = arith.addf %50, %52 : vector<256x64xf32>
    %54 = arith.negf %53 : vector<256x64xf32>
    %55 = math.exp %54 : vector<256x64xf32>
    %cst_33 = arith.constant 1.000000e+00 : f32
    %56 = vector.broadcast %cst_33 : f32 to vector<256x64xf32>
    %57 = arith.addf %56, %55 : vector<256x64xf32>
    %58 = arith.divf %56, %57 : vector<256x64xf32>
    %59 = arith.mulf %53, %58 : vector<256x64xf32>
    %c512_34 = arith.constant 512 : index
    %c0_35 = arith.constant 0 : index
    %60 = vector.load %arg9[%c512_34, %c0_35] : memref<1536x1xf32, #tpu.memory_space<vmem>>, vector<256x1xf32>
    %cst_36 = arith.constant dense<0.000000e+00> : vector<256xf32>
    %61 = vector.multi_reduction <add>, %59, %cst_36 [1] : vector<256x64xf32> to vector<256xf32>
    %62 = vector.shape_cast %61 : vector<256xf32> to vector<256x1xf32>
    %63 = arith.addf %60, %62 : vector<256x1xf32>
    %c512_37 = arith.constant 512 : index
    %c0_38 = arith.constant 0 : index
    %64 = vector.load %arg9[%c512_37, %c0_38] : memref<1536x1xf32, #tpu.memory_space<vmem>>, vector<256x1xf32>
    tpu.vector_store %arg9[%c512_37, %c0_38], %63 {strides = array<i32>} : memref<1536x1xf32, #tpu.memory_space<vmem>>, vector<256x1xf32>,
    %c768 = arith.constant 768 : index
    %c0_39 = arith.constant 0 : index
    %65 = vector.load %arg5[%c768, %c0_39] : memref<1536x40xbf16, #tpu.memory_space<vmem>>, vector<256x40xbf16>
    %cst_40 = arith.constant dense<0.000000e+00> : vector<256x64xf32>
    %66 = tpu.matmul %65, %16, %cst_40 {dimension_numbers = #tpu.dot_dimension_numbers<[1], [0], [0], [1], [0, 0, 1, 1], [], []>} : vector<256x40xbf16>, vector<40x64xbf16>, vector<256x64xf32> -> vector<256x64xf32>
    %c768_41 = arith.constant 768 : index
    %c0_42 = arith.constant 0 : index
    %67 = vector.load %arg6[%c768_41, %c0_42] : memref<1536x1xf32, #tpu.memory_space<vmem>>, vector<256x1xf32>
    %68 = vector.broadcast %67 : vector<256x1xf32> to vector<256x64xf32>
    %69 = arith.addf %66, %68 : vector<256x64xf32>
    %70 = arith.negf %69 : vector<256x64xf32>
    %71 = math.exp %70 : vector<256x64xf32>
    %cst_43 = arith.constant 1.000000e+00 : f32
    %72 = vector.broadcast %cst_43 : f32 to vector<256x64xf32>
    %73 = arith.addf %72, %71 : vector<256x64xf32>
    %74 = arith.divf %72, %73 : vector<256x64xf32>
    %75 = arith.mulf %69, %74 : vector<256x64xf32>
    %c768_44 = arith.constant 768 : index
    %c0_45 = arith.constant 0 : index
    %76 = vector.load %arg9[%c768_44, %c0_45] : memref<1536x1xf32, #tpu.memory_space<vmem>>, vector<256x1xf32>
    %cst_46 = arith.constant dense<0.000000e+00> : vector<256xf32>
    %77 = vector.multi_reduction <add>, %75, %cst_46 [1] : vector<256x64xf32> to vector<256xf32>
    %78 = vector.shape_cast %77 : vector<256xf32> to vector<256x1xf32>
    %79 = arith.addf %76, %78 : vector<256x1xf32>
    %c768_47 = arith.constant 768 : index
    %c0_48 = arith.constant 0 : index
    %80 = vector.load %arg9[%c768_47, %c0_48] : memref<1536x1xf32, #tpu.memory_space<vmem>>, vector<256x1xf32>
    tpu.vector_store %arg9[%c768_47, %c0_48], %79 {strides = array<i32>} : memref<1536x1xf32, #tpu.memory_space<vmem>>, vector<256x1xf32>,
    %c1024 = arith.constant 1024 : index
    %c0_49 = arith.constant 0 : index
    %81 = vector.load %arg5[%c1024, %c0_49] : memref<1536x40xbf16, #tpu.memory_space<vmem>>, vector<256x40xbf16>
    %cst_50 = arith.constant dense<0.000000e+00> : vector<256x64xf32>
    %82 = tpu.matmul %81, %16, %cst_50 {dimension_numbers = #tpu.dot_dimension_numbers<[1], [0], [0], [1], [0, 0, 1, 1], [], []>} : vector<256x40xbf16>, vector<40x64xbf16>, vector<256x64xf32> -> vector<256x64xf32>
    %c1024_51 = arith.constant 1024 : index
    %c0_52 = arith.constant 0 : index
    %83 = vector.load %arg6[%c1024_51, %c0_52] : memref<1536x1xf32, #tpu.memory_space<vmem>>, vector<256x1xf32>
    %84 = vector.broadcast %83 : vector<256x1xf32> to vector<256x64xf32>
    %85 = arith.addf %82, %84 : vector<256x64xf32>
    %86 = arith.negf %85 : vector<256x64xf32>
    %87 = math.exp %86 : vector<256x64xf32>
    %cst_53 = arith.constant 1.000000e+00 : f32
    %88 = vector.broadcast %cst_53 : f32 to vector<256x64xf32>
    %89 = arith.addf %88, %87 : vector<256x64xf32>
    %90 = arith.divf %88, %89 : vector<256x64xf32>
    %91 = arith.mulf %85, %90 : vector<256x64xf32>
    %c1024_54 = arith.constant 1024 : index
    %c0_55 = arith.constant 0 : index
    %92 = vector.load %arg9[%c1024_54, %c0_55] : memref<1536x1xf32, #tpu.memory_space<vmem>>, vector<256x1xf32>
    %cst_56 = arith.constant dense<0.000000e+00> : vector<256xf32>
    %93 = vector.multi_reduction <add>, %91, %cst_56 [1] : vector<256x64xf32> to vector<256xf32>
    %94 = vector.shape_cast %93 : vector<256xf32> to vector<256x1xf32>
    %95 = arith.addf %92, %94 : vector<256x1xf32>
    %c1024_57 = arith.constant 1024 : index
    %c0_58 = arith.constant 0 : index
    %96 = vector.load %arg9[%c1024_57, %c0_58] : memref<1536x1xf32, #tpu.memory_space<vmem>>, vector<256x1xf32>
    tpu.vector_store %arg9[%c1024_57, %c0_58], %95 {strides = array<i32>} : memref<1536x1xf32, #tpu.memory_space<vmem>>, vector<256x1xf32>,
    %c1280 = arith.constant 1280 : index
    %c0_59 = arith.constant 0 : index
    %97 = vector.load %arg5[%c1280, %c0_59] : memref<1536x40xbf16, #tpu.memory_space<vmem>>, vector<256x40xbf16>
    %cst_60 = arith.constant dense<0.000000e+00> : vector<256x64xf32>
    %98 = tpu.matmul %97, %16, %cst_60 {dimension_numbers = #tpu.dot_dimension_numbers<[1], [0], [0], [1], [0, 0, 1, 1], [], []>} : vector<256x40xbf16>, vector<40x64xbf16>, vector<256x64xf32> -> vector<256x64xf32>
    %c1280_61 = arith.constant 1280 : index
    %c0_62 = arith.constant 0 : index
    %99 = vector.load %arg6[%c1280_61, %c0_62] : memref<1536x1xf32, #tpu.memory_space<vmem>>, vector<256x1xf32>
    %100 = vector.broadcast %99 : vector<256x1xf32> to vector<256x64xf32>
    %101 = arith.addf %98, %100 : vector<256x64xf32>
    %102 = arith.negf %101 : vector<256x64xf32>
    %103 = math.exp %102 : vector<256x64xf32>
    %cst_63 = arith.constant 1.000000e+00 : f32
    %104 = vector.broadcast %cst_63 : f32 to vector<256x64xf32>
    %105 = arith.addf %104, %103 : vector<256x64xf32>
    %106 = arith.divf %104, %105 : vector<256x64xf32>
    %107 = arith.mulf %101, %106 : vector<256x64xf32>
    %c1280_64 = arith.constant 1280 : index
    %c0_65 = arith.constant 0 : index
    %108 = vector.load %arg9[%c1280_64, %c0_65] : memref<1536x1xf32, #tpu.memory_space<vmem>>, vector<256x1xf32>
    %cst_66 = arith.constant dense<0.000000e+00> : vector<256xf32>
    %109 = vector.multi_reduction <add>, %107, %cst_66 [1] : vector<256x64xf32> to vector<256xf32>
    %110 = vector.shape_cast %109 : vector<256xf32> to vector<256x1xf32>
    %111 = arith.addf %108, %110 : vector<256x1xf32>
    %c1280_67 = arith.constant 1280 : index
    %c0_68 = arith.constant 0 : index
    %112 = vector.load %arg9[%c1280_67, %c0_68] : memref<1536x1xf32, #tpu.memory_space<vmem>>, vector<256x1xf32>
    tpu.vector_store %arg9[%c1280_67, %c0_68], %111 {strides = array<i32>} : memref<1536x1xf32, #tpu.memory_space<vmem>>, vector<256x1xf32>,
    %c0_i32_69 = arith.constant 0 : i32
    %113 = arith.cmpi eq, %arg1, %c0_i32_69 : i32
    %114 = arith.extui %113 : i1 to i32
    %c0_i32_70 = arith.constant 0 : i32
    %115 = arith.cmpi ne, %114, %c0_i32_70 : i32
    scf.if %115 {
      %c0_71 = arith.constant 0 : index
      %c0_72 = arith.constant 0 : index
      %116 = vector.load %arg9[%c0_71, %c0_72] : memref<1536x1xf32, #tpu.memory_space<vmem>>, vector<1536x1xf32>
      %cst_73 = arith.constant 1.562500e-02 : f32
      %117 = vector.broadcast %cst_73 : f32 to vector<1536x1xf32>
      %118 = arith.mulf %116, %117 : vector<1536x1xf32>
      %119 = arith.truncf %118 : vector<1536x1xf32> to vector<1536x1xbf16>
      %c0_74 = arith.constant 0 : index
      %c0_75 = arith.constant 0 : index
      %120 = vector.load %arg7[%c0_74, %c0_75] : memref<128x1536xbf16, #tpu.memory_space<vmem>>, vector<128x1536xbf16>
      %cst_76 = arith.constant dense<0.000000e+00> : vector<128x1xf32>
      %121 = tpu.matmul %120, %119, %cst_76 {dimension_numbers = #tpu.dot_dimension_numbers<[1], [0], [0], [1], [0, 0, 1, 1], [], []>} : vector<128x1536xbf16>, vector<1536x1xbf16>, vector<128x1xf32> -> vector<128x1xf32>
      %c0_77 = arith.constant 0 : index
      %c0_78 = arith.constant 0 : index
      %c0_79 = arith.constant 0 : index
      %122 = vector.load %arg8[%c0_77, %c0_78, %c0_79] : memref<1x128x1xf32, #tpu.memory_space<vmem>>, vector<1x128x1xf32>
      %123 = vector.shape_cast %122 : vector<1x128x1xf32> to vector<128x1xf32>
      %124 = vector.shape_cast %121 : vector<128x1xf32> to vector<1x128x1xf32>
      tpu.vector_store %arg8[%c0_77, %c0_78, %c0_79], %124 {strides = array<i32>} : memref<1x128x1xf32, #tpu.memory_space<vmem>>, vector<1x128x1xf32>,
    } else {
    }
    return
  }
  func.func @transform_0(%arg0: i32, %arg1: i32) -> (i32, i32, i32) {
    %c0_i32 = arith.constant 0 : i32
    %c0_i32_0 = arith.constant 0 : i32
    return %arg0, %c0_i32, %arg1 : i32, i32, i32
  }
  func.func @transform_1(%arg0: i32, %arg1: i32) -> (i32, i32) {
    %c0_i32 = arith.constant 0 : i32
    %c0_i32_0 = arith.constant 0 : i32
    %c0_i32_1 = arith.constant 0 : i32
    return %c0_i32, %c0_i32_0 : i32, i32
  }
  func.func @transform_2(%arg0: i32, %arg1: i32) -> (i32, i32) {
    %c0_i32 = arith.constant 0 : i32
    %c0_i32_0 = arith.constant 0 : i32
    %c0_i32_1 = arith.constant 0 : i32
    return %c0_i32, %c0_i32_0 : i32, i32
  }
  func.func @transform_3(%arg0: i32, %arg1: i32) -> (i32, i32) {
    %c0_i32 = arith.constant 0 : i32
    %c0_i32_0 = arith.constant 0 : i32
    %c0_i32_1 = arith.constant 0 : i32
    return %c0_i32, %c0_i32_0 : i32, i32
  }
  func.func @transform_4(%arg0: i32, %arg1: i32) -> (i32, i32) {
    %c0_i32 = arith.constant 0 : i32
    %c0_i32_0 = arith.constant 0 : i32
    %c0_i32_1 = arith.constant 0 : i32
    return %c0_i32, %c0_i32_0 : i32, i32
  }
  func.func @transform_5(%arg0: i32, %arg1: i32) -> (i32, i32) {
    %c0_i32 = arith.constant 0 : i32
    %c0_i32_0 = arith.constant 0 : i32
    %c0_i32_1 = arith.constant 0 : i32
    return %c0_i32, %c0_i32_0 : i32, i32
  }
  func.func @transform_6(%arg0: i32, %arg1: i32) -> (i32, i32, i32) {
    %c0_i32 = arith.constant 0 : i32
    %c0_i32_0 = arith.constant 0 : i32
    %c0_i32_1 = arith.constant 0 : i32
    return %arg0, %c0_i32, %c0_i32_0 : i32, i32, i32
  }
}

module attributes {stable_mosaic.version = 11 : i64} {
  func.func @kernel(%arg0: i32, %arg1: memref<1x4x1x128xf32, #tpu.memory_space<vmem>>, %arg2: memref<32x128xbf16, #tpu.memory_space<vmem>>, %arg3: memref<1x128xf32, #tpu.memory_space<vmem>>, %arg4: memref<32x128xbf16, #tpu.memory_space<vmem>>, %arg5: memref<32x128xbf16, #tpu.memory_space<vmem>>, %arg6: memref<1x128xf32, #tpu.memory_space<vmem>>, %arg7: memref<32x16xf32, #tpu.memory_space<vmem>>, %arg8: memref<1x16xf32, #tpu.memory_space<vmem>>, %arg9: memref<16x1xf32, #tpu.memory_space<vmem>>, %arg10: memref<1x1xf32, #tpu.memory_space<vmem>>, %arg11: memref<1x1x1xf32, #tpu.memory_space<vmem>>) attributes {dimension_semantics = [#tpu.dimension_semantics<parallel>], iteration_bounds = array<i64: 2>, scalar_prefetch = 0 : i64, scratch_operands = 0 : i64, tpu.core_type = #tpu.core_type<tc>, window_params = [{transform_indices = @transform_0, window_bounds = array<i64: 1, 4, 1, 128>}, {pipeline_mode = #tpu.pipeline_mode<synchronous>, transform_indices = @transform_1, window_bounds = array<i64: 32, 128>}, {pipeline_mode = #tpu.pipeline_mode<synchronous>, transform_indices = @transform_2, window_bounds = array<i64: 1, 128>}, {pipeline_mode = #tpu.pipeline_mode<synchronous>, transform_indices = @transform_3, window_bounds = array<i64: 32, 128>}, {pipeline_mode = #tpu.pipeline_mode<synchronous>, transform_indices = @transform_4, window_bounds = array<i64: 32, 128>}, {pipeline_mode = #tpu.pipeline_mode<synchronous>, transform_indices = @transform_5, window_bounds = array<i64: 1, 128>}, {pipeline_mode = #tpu.pipeline_mode<synchronous>, transform_indices = @transform_6, window_bounds = array<i64: 32, 16>}, {pipeline_mode = #tpu.pipeline_mode<synchronous>, transform_indices = @transform_7, window_bounds = array<i64: 1, 16>}, {pipeline_mode = #tpu.pipeline_mode<synchronous>, transform_indices = @transform_8, window_bounds = array<i64: 16, 1>}, {pipeline_mode = #tpu.pipeline_mode<synchronous>, transform_indices = @transform_9, window_bounds = array<i64: 1, 1>}, {transform_indices = @transform_10, window_bounds = array<i64: 1, 1, 1>}]} {
    %c0 = arith.constant 0 : index
    %c0_0 = arith.constant 0 : index
    %0 = vector.load %arg2[%c0, %c0_0] : memref<32x128xbf16, #tpu.memory_space<vmem>>, vector<32x128xbf16>
    %c0_1 = arith.constant 0 : index
    %c0_2 = arith.constant 0 : index
    %1 = vector.load %arg3[%c0_1, %c0_2] : memref<1x128xf32, #tpu.memory_space<vmem>>, vector<1x128xf32>
    %c0_3 = arith.constant 0 : index
    %c0_4 = arith.constant 0 : index
    %2 = vector.load %arg4[%c0_3, %c0_4] : memref<32x128xbf16, #tpu.memory_space<vmem>>, vector<32x128xbf16>
    %c0_5 = arith.constant 0 : index
    %c0_6 = arith.constant 0 : index
    %3 = vector.load %arg5[%c0_5, %c0_6] : memref<32x128xbf16, #tpu.memory_space<vmem>>, vector<32x128xbf16>
    %c0_7 = arith.constant 0 : index
    %c0_8 = arith.constant 0 : index
    %4 = vector.load %arg6[%c0_7, %c0_8] : memref<1x128xf32, #tpu.memory_space<vmem>>, vector<1x128xf32>
    %cst = arith.constant 0.000000e+00 : f32
    %5 = vector.broadcast %cst : f32 to vector<1x32xf32>
    %c0_i32 = arith.constant 0 : i32
    %c0_9 = arith.constant 0 : index
    %6 = arith.index_cast %c0_i32 : i32 to index
    %c0_10 = arith.constant 0 : index
    %c0_11 = arith.constant 0 : index
    %7 = vector.load %arg1[%c0_9, %6, %c0_10, %c0_11] : memref<1x4x1x128xf32, #tpu.memory_space<vmem>>, vector<1x1x1x128xf32>
    %8 = vector.shape_cast %7 : vector<1x1x1x128xf32> to vector<1x128xf32>
    %9 = arith.truncf %5 : vector<1x32xf32> to vector<1x32xbf16>
    %cst_12 = arith.constant dense<0.000000e+00> : vector<1x128xf32>
    %10 = tpu.matmul %9, %0, %cst_12 {dimension_numbers = #tpu.dot_dimension_numbers<[1], [0], [0], [1], [0, 0, 1, 1], [], []>} : vector<1x32xbf16>, vector<32x128xbf16>, vector<1x128xf32> -> vector<1x128xf32>
    %11 = arith.addf %8, %10 : vector<1x128xf32>
    %12 = arith.addf %11, %1 : vector<1x128xf32>
    %13 = vector.extract_strided_slice %12 {offsets = [0, 0], sizes = [1, 96], strides = [1, 1]} : vector<1x128xf32> to vector<1x96xf32>
    %14 = arith.negf %13 : vector<1x96xf32>
    %15 = math.exp %14 : vector<1x96xf32>
    %cst_13 = arith.constant 1.000000e+00 : f32
    %16 = vector.broadcast %cst_13 : f32 to vector<1x96xf32>
    %17 = arith.addf %16, %15 : vector<1x96xf32>
    %18 = arith.divf %16, %17 : vector<1x96xf32>
    %19 = vector.extract_strided_slice %18 {offsets = [0, 0], sizes = [1, 32], strides = [1, 1]} : vector<1x96xf32> to vector<1x32xf32>
    %20 = vector.extract_strided_slice %18 {offsets = [0, 32], sizes = [1, 32], strides = [1, 1]} : vector<1x96xf32> to vector<1x32xf32>
    %21 = vector.extract_strided_slice %18 {offsets = [0, 64], sizes = [1, 32], strides = [1, 1]} : vector<1x96xf32> to vector<1x32xf32>
    %22 = vector.extract_strided_slice %12 {offsets = [0, 96], sizes = [1, 32], strides = [1, 1]} : vector<1x128xf32> to vector<1x32xf32>
    %23 = math.tanh %22 : vector<1x32xf32>
    %24 = arith.mulf %20, %5 : vector<1x32xf32>
    %25 = arith.mulf %19, %23 : vector<1x32xf32>
    %26 = arith.addf %24, %25 : vector<1x32xf32>
    %27 = math.tanh %26 : vector<1x32xf32>
    %28 = arith.mulf %21, %27 : vector<1x32xf32>
    %29 = arith.truncf %28 : vector<1x32xf32> to vector<1x32xbf16>
    %cst_14 = arith.constant dense<0.000000e+00> : vector<1x128xf32>
    %30 = tpu.matmul %29, %2, %cst_14 {dimension_numbers = #tpu.dot_dimension_numbers<[1], [0], [0], [1], [0, 0, 1, 1], [], []>} : vector<1x32xbf16>, vector<32x128xbf16>, vector<1x128xf32> -> vector<1x128xf32>
    %31 = arith.truncf %5 : vector<1x32xf32> to vector<1x32xbf16>
    %cst_15 = arith.constant dense<0.000000e+00> : vector<1x128xf32>
    %32 = tpu.matmul %31, %3, %cst_15 {dimension_numbers = #tpu.dot_dimension_numbers<[1], [0], [0], [1], [0, 0, 1, 1], [], []>} : vector<1x32xbf16>, vector<32x128xbf16>, vector<1x128xf32> -> vector<1x128xf32>
    %33 = arith.addf %30, %32 : vector<1x128xf32>
    %34 = arith.addf %33, %4 : vector<1x128xf32>
    %35 = vector.extract_strided_slice %34 {offsets = [0, 0], sizes = [1, 96], strides = [1, 1]} : vector<1x128xf32> to vector<1x96xf32>
    %36 = arith.negf %35 : vector<1x96xf32>
    %37 = math.exp %36 : vector<1x96xf32>
    %cst_16 = arith.constant 1.000000e+00 : f32
    %38 = vector.broadcast %cst_16 : f32 to vector<1x96xf32>
    %39 = arith.addf %38, %37 : vector<1x96xf32>
    %40 = arith.divf %38, %39 : vector<1x96xf32>
    %41 = vector.extract_strided_slice %40 {offsets = [0, 0], sizes = [1, 32], strides = [1, 1]} : vector<1x96xf32> to vector<1x32xf32>
    %42 = vector.extract_strided_slice %40 {offsets = [0, 32], sizes = [1, 32], strides = [1, 1]} : vector<1x96xf32> to vector<1x32xf32>
    %43 = vector.extract_strided_slice %40 {offsets = [0, 64], sizes = [1, 32], strides = [1, 1]} : vector<1x96xf32> to vector<1x32xf32>
    %44 = vector.extract_strided_slice %34 {offsets = [0, 96], sizes = [1, 32], strides = [1, 1]} : vector<1x128xf32> to vector<1x32xf32>
    %45 = math.tanh %44 : vector<1x32xf32>
    %46 = arith.mulf %42, %5 : vector<1x32xf32>
    %47 = arith.mulf %41, %45 : vector<1x32xf32>
    %48 = arith.addf %46, %47 : vector<1x32xf32>
    %49 = math.tanh %48 : vector<1x32xf32>
    %50 = arith.mulf %43, %49 : vector<1x32xf32>
    %c1_i32 = arith.constant 1 : i32
    %c0_17 = arith.constant 0 : index
    %51 = arith.index_cast %c1_i32 : i32 to index
    %c0_18 = arith.constant 0 : index
    %c0_19 = arith.constant 0 : index
    %52 = vector.load %arg1[%c0_17, %51, %c0_18, %c0_19] : memref<1x4x1x128xf32, #tpu.memory_space<vmem>>, vector<1x1x1x128xf32>
    %53 = vector.shape_cast %52 : vector<1x1x1x128xf32> to vector<1x128xf32>
    %54 = arith.truncf %28 : vector<1x32xf32> to vector<1x32xbf16>
    %cst_20 = arith.constant dense<0.000000e+00> : vector<1x128xf32>
    %55 = tpu.matmul %54, %0, %cst_20 {dimension_numbers = #tpu.dot_dimension_numbers<[1], [0], [0], [1], [0, 0, 1, 1], [], []>} : vector<1x32xbf16>, vector<32x128xbf16>, vector<1x128xf32> -> vector<1x128xf32>
    %56 = arith.addf %53, %55 : vector<1x128xf32>
    %57 = arith.addf %56, %1 : vector<1x128xf32>
    %58 = vector.extract_strided_slice %57 {offsets = [0, 0], sizes = [1, 96], strides = [1, 1]} : vector<1x128xf32> to vector<1x96xf32>
    %59 = arith.negf %58 : vector<1x96xf32>
    %60 = math.exp %59 : vector<1x96xf32>
    %cst_21 = arith.constant 1.000000e+00 : f32
    %61 = vector.broadcast %cst_21 : f32 to vector<1x96xf32>
    %62 = arith.addf %61, %60 : vector<1x96xf32>
    %63 = arith.divf %61, %62 : vector<1x96xf32>
    %64 = vector.extract_strided_slice %63 {offsets = [0, 0], sizes = [1, 32], strides = [1, 1]} : vector<1x96xf32> to vector<1x32xf32>
    %65 = vector.extract_strided_slice %63 {offsets = [0, 32], sizes = [1, 32], strides = [1, 1]} : vector<1x96xf32> to vector<1x32xf32>
    %66 = vector.extract_strided_slice %63 {offsets = [0, 64], sizes = [1, 32], strides = [1, 1]} : vector<1x96xf32> to vector<1x32xf32>
    %67 = vector.extract_strided_slice %57 {offsets = [0, 96], sizes = [1, 32], strides = [1, 1]} : vector<1x128xf32> to vector<1x32xf32>
    %68 = math.tanh %67 : vector<1x32xf32>
    %69 = arith.mulf %65, %26 : vector<1x32xf32>
    %70 = arith.mulf %64, %68 : vector<1x32xf32>
    %71 = arith.addf %69, %70 : vector<1x32xf32>
    %72 = math.tanh %71 : vector<1x32xf32>
    %73 = arith.mulf %66, %72 : vector<1x32xf32>
    %74 = arith.truncf %73 : vector<1x32xf32> to vector<1x32xbf16>
    %cst_22 = arith.constant dense<0.000000e+00> : vector<1x128xf32>
    %75 = tpu.matmul %74, %2, %cst_22 {dimension_numbers = #tpu.dot_dimension_numbers<[1], [0], [0], [1], [0, 0, 1, 1], [], []>} : vector<1x32xbf16>, vector<32x128xbf16>, vector<1x128xf32> -> vector<1x128xf32>
    %76 = arith.truncf %50 : vector<1x32xf32> to vector<1x32xbf16>
    %cst_23 = arith.constant dense<0.000000e+00> : vector<1x128xf32>
    %77 = tpu.matmul %76, %3, %cst_23 {dimension_numbers = #tpu.dot_dimension_numbers<[1], [0], [0], [1], [0, 0, 1, 1], [], []>} : vector<1x32xbf16>, vector<32x128xbf16>, vector<1x128xf32> -> vector<1x128xf32>
    %78 = arith.addf %75, %77 : vector<1x128xf32>
    %79 = arith.addf %78, %4 : vector<1x128xf32>
    %80 = vector.extract_strided_slice %79 {offsets = [0, 0], sizes = [1, 96], strides = [1, 1]} : vector<1x128xf32> to vector<1x96xf32>
    %81 = arith.negf %80 : vector<1x96xf32>
    %82 = math.exp %81 : vector<1x96xf32>
    %cst_24 = arith.constant 1.000000e+00 : f32
    %83 = vector.broadcast %cst_24 : f32 to vector<1x96xf32>
    %84 = arith.addf %83, %82 : vector<1x96xf32>
    %85 = arith.divf %83, %84 : vector<1x96xf32>
    %86 = vector.extract_strided_slice %85 {offsets = [0, 0], sizes = [1, 32], strides = [1, 1]} : vector<1x96xf32> to vector<1x32xf32>
    %87 = vector.extract_strided_slice %85 {offsets = [0, 32], sizes = [1, 32], strides = [1, 1]} : vector<1x96xf32> to vector<1x32xf32>
    %88 = vector.extract_strided_slice %85 {offsets = [0, 64], sizes = [1, 32], strides = [1, 1]} : vector<1x96xf32> to vector<1x32xf32>
    %89 = vector.extract_strided_slice %79 {offsets = [0, 96], sizes = [1, 32], strides = [1, 1]} : vector<1x128xf32> to vector<1x32xf32>
    %90 = math.tanh %89 : vector<1x32xf32>
    %91 = arith.mulf %87, %48 : vector<1x32xf32>
    %92 = arith.mulf %86, %90 : vector<1x32xf32>
    %93 = arith.addf %91, %92 : vector<1x32xf32>
    %94 = math.tanh %93 : vector<1x32xf32>
    %95 = arith.mulf %88, %94 : vector<1x32xf32>
    %c2_i32 = arith.constant 2 : i32
    %c0_25 = arith.constant 0 : index
    %96 = arith.index_cast %c2_i32 : i32 to index
    %c0_26 = arith.constant 0 : index
    %c0_27 = arith.constant 0 : index
    %97 = vector.load %arg1[%c0_25, %96, %c0_26, %c0_27] : memref<1x4x1x128xf32, #tpu.memory_space<vmem>>, vector<1x1x1x128xf32>
    %98 = vector.shape_cast %97 : vector<1x1x1x128xf32> to vector<1x128xf32>
    %99 = arith.truncf %73 : vector<1x32xf32> to vector<1x32xbf16>
    %cst_28 = arith.constant dense<0.000000e+00> : vector<1x128xf32>
    %100 = tpu.matmul %99, %0, %cst_28 {dimension_numbers = #tpu.dot_dimension_numbers<[1], [0], [0], [1], [0, 0, 1, 1], [], []>} : vector<1x32xbf16>, vector<32x128xbf16>, vector<1x128xf32> -> vector<1x128xf32>
    %101 = arith.addf %98, %100 : vector<1x128xf32>
    %102 = arith.addf %101, %1 : vector<1x128xf32>
    %103 = vector.extract_strided_slice %102 {offsets = [0, 0], sizes = [1, 96], strides = [1, 1]} : vector<1x128xf32> to vector<1x96xf32>
    %104 = arith.negf %103 : vector<1x96xf32>
    %105 = math.exp %104 : vector<1x96xf32>
    %cst_29 = arith.constant 1.000000e+00 : f32
    %106 = vector.broadcast %cst_29 : f32 to vector<1x96xf32>
    %107 = arith.addf %106, %105 : vector<1x96xf32>
    %108 = arith.divf %106, %107 : vector<1x96xf32>
    %109 = vector.extract_strided_slice %108 {offsets = [0, 0], sizes = [1, 32], strides = [1, 1]} : vector<1x96xf32> to vector<1x32xf32>
    %110 = vector.extract_strided_slice %108 {offsets = [0, 32], sizes = [1, 32], strides = [1, 1]} : vector<1x96xf32> to vector<1x32xf32>
    %111 = vector.extract_strided_slice %108 {offsets = [0, 64], sizes = [1, 32], strides = [1, 1]} : vector<1x96xf32> to vector<1x32xf32>
    %112 = vector.extract_strided_slice %102 {offsets = [0, 96], sizes = [1, 32], strides = [1, 1]} : vector<1x128xf32> to vector<1x32xf32>
    %113 = math.tanh %112 : vector<1x32xf32>
    %114 = arith.mulf %110, %71 : vector<1x32xf32>
    %115 = arith.mulf %109, %113 : vector<1x32xf32>
    %116 = arith.addf %114, %115 : vector<1x32xf32>
    %117 = math.tanh %116 : vector<1x32xf32>
    %118 = arith.mulf %111, %117 : vector<1x32xf32>
    %119 = arith.truncf %118 : vector<1x32xf32> to vector<1x32xbf16>
    %cst_30 = arith.constant dense<0.000000e+00> : vector<1x128xf32>
    %120 = tpu.matmul %119, %2, %cst_30 {dimension_numbers = #tpu.dot_dimension_numbers<[1], [0], [0], [1], [0, 0, 1, 1], [], []>} : vector<1x32xbf16>, vector<32x128xbf16>, vector<1x128xf32> -> vector<1x128xf32>
    %121 = arith.truncf %95 : vector<1x32xf32> to vector<1x32xbf16>
    %cst_31 = arith.constant dense<0.000000e+00> : vector<1x128xf32>
    %122 = tpu.matmul %121, %3, %cst_31 {dimension_numbers = #tpu.dot_dimension_numbers<[1], [0], [0], [1], [0, 0, 1, 1], [], []>} : vector<1x32xbf16>, vector<32x128xbf16>, vector<1x128xf32> -> vector<1x128xf32>
    %123 = arith.addf %120, %122 : vector<1x128xf32>
    %124 = arith.addf %123, %4 : vector<1x128xf32>
    %125 = vector.extract_strided_slice %124 {offsets = [0, 0], sizes = [1, 96], strides = [1, 1]} : vector<1x128xf32> to vector<1x96xf32>
    %126 = arith.negf %125 : vector<1x96xf32>
    %127 = math.exp %126 : vector<1x96xf32>
    %cst_32 = arith.constant 1.000000e+00 : f32
    %128 = vector.broadcast %cst_32 : f32 to vector<1x96xf32>
    %129 = arith.addf %128, %127 : vector<1x96xf32>
    %130 = arith.divf %128, %129 : vector<1x96xf32>
    %131 = vector.extract_strided_slice %130 {offsets = [0, 0], sizes = [1, 32], strides = [1, 1]} : vector<1x96xf32> to vector<1x32xf32>
    %132 = vector.extract_strided_slice %130 {offsets = [0, 32], sizes = [1, 32], strides = [1, 1]} : vector<1x96xf32> to vector<1x32xf32>
    %133 = vector.extract_strided_slice %130 {offsets = [0, 64], sizes = [1, 32], strides = [1, 1]} : vector<1x96xf32> to vector<1x32xf32>
    %134 = vector.extract_strided_slice %124 {offsets = [0, 96], sizes = [1, 32], strides = [1, 1]} : vector<1x128xf32> to vector<1x32xf32>
    %135 = math.tanh %134 : vector<1x32xf32>
    %136 = arith.mulf %132, %93 : vector<1x32xf32>
    %137 = arith.mulf %131, %135 : vector<1x32xf32>
    %138 = arith.addf %136, %137 : vector<1x32xf32>
    %139 = math.tanh %138 : vector<1x32xf32>
    %140 = arith.mulf %133, %139 : vector<1x32xf32>
    %c3_i32 = arith.constant 3 : i32
    %c0_33 = arith.constant 0 : index
    %141 = arith.index_cast %c3_i32 : i32 to index
    %c0_34 = arith.constant 0 : index
    %c0_35 = arith.constant 0 : index
    %142 = vector.load %arg1[%c0_33, %141, %c0_34, %c0_35] : memref<1x4x1x128xf32, #tpu.memory_space<vmem>>, vector<1x1x1x128xf32>
    %143 = vector.shape_cast %142 : vector<1x1x1x128xf32> to vector<1x128xf32>
    %144 = arith.truncf %118 : vector<1x32xf32> to vector<1x32xbf16>
    %cst_36 = arith.constant dense<0.000000e+00> : vector<1x128xf32>
    %145 = tpu.matmul %144, %0, %cst_36 {dimension_numbers = #tpu.dot_dimension_numbers<[1], [0], [0], [1], [0, 0, 1, 1], [], []>} : vector<1x32xbf16>, vector<32x128xbf16>, vector<1x128xf32> -> vector<1x128xf32>
    %146 = arith.addf %143, %145 : vector<1x128xf32>
    %147 = arith.addf %146, %1 : vector<1x128xf32>
    %148 = vector.extract_strided_slice %147 {offsets = [0, 0], sizes = [1, 96], strides = [1, 1]} : vector<1x128xf32> to vector<1x96xf32>
    %149 = arith.negf %148 : vector<1x96xf32>
    %150 = math.exp %149 : vector<1x96xf32>
    %cst_37 = arith.constant 1.000000e+00 : f32
    %151 = vector.broadcast %cst_37 : f32 to vector<1x96xf32>
    %152 = arith.addf %151, %150 : vector<1x96xf32>
    %153 = arith.divf %151, %152 : vector<1x96xf32>
    %154 = vector.extract_strided_slice %153 {offsets = [0, 0], sizes = [1, 32], strides = [1, 1]} : vector<1x96xf32> to vector<1x32xf32>
    %155 = vector.extract_strided_slice %153 {offsets = [0, 32], sizes = [1, 32], strides = [1, 1]} : vector<1x96xf32> to vector<1x32xf32>
    %156 = vector.extract_strided_slice %153 {offsets = [0, 64], sizes = [1, 32], strides = [1, 1]} : vector<1x96xf32> to vector<1x32xf32>
    %157 = vector.extract_strided_slice %147 {offsets = [0, 96], sizes = [1, 32], strides = [1, 1]} : vector<1x128xf32> to vector<1x32xf32>
    %158 = math.tanh %157 : vector<1x32xf32>
    %159 = arith.mulf %155, %116 : vector<1x32xf32>
    %160 = arith.mulf %154, %158 : vector<1x32xf32>
    %161 = arith.addf %159, %160 : vector<1x32xf32>
    %162 = math.tanh %161 : vector<1x32xf32>
    %163 = arith.mulf %156, %162 : vector<1x32xf32>
    %164 = arith.truncf %163 : vector<1x32xf32> to vector<1x32xbf16>
    %cst_38 = arith.constant dense<0.000000e+00> : vector<1x128xf32>
    %165 = tpu.matmul %164, %2, %cst_38 {dimension_numbers = #tpu.dot_dimension_numbers<[1], [0], [0], [1], [0, 0, 1, 1], [], []>} : vector<1x32xbf16>, vector<32x128xbf16>, vector<1x128xf32> -> vector<1x128xf32>
    %166 = arith.truncf %140 : vector<1x32xf32> to vector<1x32xbf16>
    %cst_39 = arith.constant dense<0.000000e+00> : vector<1x128xf32>
    %167 = tpu.matmul %166, %3, %cst_39 {dimension_numbers = #tpu.dot_dimension_numbers<[1], [0], [0], [1], [0, 0, 1, 1], [], []>} : vector<1x32xbf16>, vector<32x128xbf16>, vector<1x128xf32> -> vector<1x128xf32>
    %168 = arith.addf %165, %167 : vector<1x128xf32>
    %169 = arith.addf %168, %4 : vector<1x128xf32>
    %170 = vector.extract_strided_slice %169 {offsets = [0, 0], sizes = [1, 96], strides = [1, 1]} : vector<1x128xf32> to vector<1x96xf32>
    %171 = arith.negf %170 : vector<1x96xf32>
    %172 = math.exp %171 : vector<1x96xf32>
    %cst_40 = arith.constant 1.000000e+00 : f32
    %173 = vector.broadcast %cst_40 : f32 to vector<1x96xf32>
    %174 = arith.addf %173, %172 : vector<1x96xf32>
    %175 = arith.divf %173, %174 : vector<1x96xf32>
    %176 = vector.extract_strided_slice %175 {offsets = [0, 0], sizes = [1, 32], strides = [1, 1]} : vector<1x96xf32> to vector<1x32xf32>
    %177 = vector.extract_strided_slice %175 {offsets = [0, 32], sizes = [1, 32], strides = [1, 1]} : vector<1x96xf32> to vector<1x32xf32>
    %178 = vector.extract_strided_slice %175 {offsets = [0, 64], sizes = [1, 32], strides = [1, 1]} : vector<1x96xf32> to vector<1x32xf32>
    %179 = vector.extract_strided_slice %169 {offsets = [0, 96], sizes = [1, 32], strides = [1, 1]} : vector<1x128xf32> to vector<1x32xf32>
    %180 = math.tanh %179 : vector<1x32xf32>
    %181 = arith.mulf %177, %138 : vector<1x32xf32>
    %182 = arith.mulf %176, %180 : vector<1x32xf32>
    %183 = arith.addf %181, %182 : vector<1x32xf32>
    %184 = math.tanh %183 : vector<1x32xf32>
    %185 = arith.mulf %178, %184 : vector<1x32xf32>
    %c4_i32 = arith.constant 4 : i32
    %c0_41 = arith.constant 0 : index
    %c0_42 = arith.constant 0 : index
    %186 = vector.load %arg7[%c0_41, %c0_42] : memref<32x16xf32, #tpu.memory_space<vmem>>, vector<32x16xf32>
    %cst_43 = arith.constant dense<0.000000e+00> : vector<1x16xf32>
    %187 = tpu.matmul %185, %186, %cst_43 {dimension_numbers = #tpu.dot_dimension_numbers<[1], [0], [0], [1], [0, 0, 1, 1], [], []>} : vector<1x32xf32>, vector<32x16xf32>, vector<1x16xf32> -> vector<1x16xf32>
    %c0_44 = arith.constant 0 : index
    %c0_45 = arith.constant 0 : index
    %188 = vector.load %arg8[%c0_44, %c0_45] : memref<1x16xf32, #tpu.memory_space<vmem>>, vector<1x16xf32>
    %189 = arith.addf %187, %188 : vector<1x16xf32>
    %cst_46 = arith.constant 0.000000e+00 : f32
    %190 = vector.broadcast %cst_46 : f32 to vector<1x16xf32>
    %191 = arith.maximumf %189, %190 : vector<1x16xf32>
    %c0_47 = arith.constant 0 : index
    %c0_48 = arith.constant 0 : index
    %192 = vector.load %arg9[%c0_47, %c0_48] : memref<16x1xf32, #tpu.memory_space<vmem>>, vector<16x1xf32>
    %cst_49 = arith.constant dense<0.000000e+00> : vector<1x1xf32>
    %193 = tpu.matmul %191, %192, %cst_49 {dimension_numbers = #tpu.dot_dimension_numbers<[1], [0], [0], [1], [0, 0, 1, 1], [], []>} : vector<1x16xf32>, vector<16x1xf32>, vector<1x1xf32> -> vector<1x1xf32>
    %c0_50 = arith.constant 0 : index
    %c0_51 = arith.constant 0 : index
    %194 = vector.load %arg10[%c0_50, %c0_51] : memref<1x1xf32, #tpu.memory_space<vmem>>, vector<1x1xf32>
    %195 = arith.addf %193, %194 : vector<1x1xf32>
    %c0_52 = arith.constant 0 : index
    %c0_53 = arith.constant 0 : index
    %c0_54 = arith.constant 0 : index
    %196 = vector.load %arg11[%c0_52, %c0_53, %c0_54] : memref<1x1x1xf32, #tpu.memory_space<vmem>>, vector<1x1x1xf32>
    %197 = vector.shape_cast %196 : vector<1x1x1xf32> to vector<1x1xf32>
    %198 = vector.shape_cast %195 : vector<1x1xf32> to vector<1x1x1xf32>
    tpu.vector_store %arg11[%c0_52, %c0_53, %c0_54], %198 {strides = array<i32>} : memref<1x1x1xf32, #tpu.memory_space<vmem>>, vector<1x1x1xf32>,
    return
  }
  func.func @transform_0(%arg0: i32) -> (i32, i32, i32, i32) {
    %c0_i32 = arith.constant 0 : i32
    %c0_i32_0 = arith.constant 0 : i32
    %c0_i32_1 = arith.constant 0 : i32
    %c0_i32_2 = arith.constant 0 : i32
    return %arg0, %c0_i32, %c0_i32_0, %c0_i32_1 : i32, i32, i32, i32
  }
  func.func @transform_1(%arg0: i32) -> (i32, i32) {
    %c0_i32 = arith.constant 0 : i32
    %c0_i32_0 = arith.constant 0 : i32
    %c0_i32_1 = arith.constant 0 : i32
    return %c0_i32, %c0_i32_0 : i32, i32
  }
  func.func @transform_2(%arg0: i32) -> (i32, i32) {
    %c0_i32 = arith.constant 0 : i32
    %c0_i32_0 = arith.constant 0 : i32
    %c0_i32_1 = arith.constant 0 : i32
    return %c0_i32, %c0_i32_0 : i32, i32
  }
  func.func @transform_3(%arg0: i32) -> (i32, i32) {
    %c0_i32 = arith.constant 0 : i32
    %c0_i32_0 = arith.constant 0 : i32
    %c0_i32_1 = arith.constant 0 : i32
    return %c0_i32, %c0_i32_0 : i32, i32
  }
  func.func @transform_4(%arg0: i32) -> (i32, i32) {
    %c0_i32 = arith.constant 0 : i32
    %c0_i32_0 = arith.constant 0 : i32
    %c0_i32_1 = arith.constant 0 : i32
    return %c0_i32, %c0_i32_0 : i32, i32
  }
  func.func @transform_5(%arg0: i32) -> (i32, i32) {
    %c0_i32 = arith.constant 0 : i32
    %c0_i32_0 = arith.constant 0 : i32
    %c0_i32_1 = arith.constant 0 : i32
    return %c0_i32, %c0_i32_0 : i32, i32
  }
  func.func @transform_6(%arg0: i32) -> (i32, i32) {
    %c0_i32 = arith.constant 0 : i32
    %c0_i32_0 = arith.constant 0 : i32
    %c0_i32_1 = arith.constant 0 : i32
    return %c0_i32, %c0_i32_0 : i32, i32
  }
  func.func @transform_7(%arg0: i32) -> (i32, i32) {
    %c0_i32 = arith.constant 0 : i32
    %c0_i32_0 = arith.constant 0 : i32
    %c0_i32_1 = arith.constant 0 : i32
    return %c0_i32, %c0_i32_0 : i32, i32
  }
  func.func @transform_8(%arg0: i32) -> (i32, i32) {
    %c0_i32 = arith.constant 0 : i32
    %c0_i32_0 = arith.constant 0 : i32
    %c0_i32_1 = arith.constant 0 : i32
    return %c0_i32, %c0_i32_0 : i32, i32
  }
  func.func @transform_9(%arg0: i32) -> (i32, i32) {
    %c0_i32 = arith.constant 0 : i32
    %c0_i32_0 = arith.constant 0 : i32
    %c0_i32_1 = arith.constant 0 : i32
    return %c0_i32, %c0_i32_0 : i32, i32
  }
  func.func @transform_10(%arg0: i32) -> (i32, i32, i32) {
    %c0_i32 = arith.constant 0 : i32
    %c0_i32_0 = arith.constant 0 : i32
    %c0_i32_1 = arith.constant 0 : i32
    return %arg0, %c0_i32, %c0_i32_0 : i32, i32, i32
  }
}

</mosaic_0001>

<llo_original>
// kernel: eff_b3_lstm_forward.3
$region0: #{eff_b3_lstm_forward.3}
  #allocation0 [shape = 'u32[]', space=smem, size = 0x4, offset = 0x4, fixed_abs, tag = 'smem constant byte address 0x4 - core index']
  #allocation1 [shape = 'u32[144,128]{1,0:T(1,128)}', space=vmem, size = 0x12000, scoped, tag = 'internal scratch']
  #allocation2 [shape = 'f32[1,1]{1,0:T(1,128)S(1)}', space=vmem, size = 0x200, scoped, tag = 'scoped memory for eff_b3_lstm_forward.3']
  %s0 = inlined_call_operand.vmem [shape: f32[2,4,1,128], index: 0, kind: input, shape index: {}]
  %s1 = inlined_call_operand.vmem [shape: bf16[32,128], index: 1, kind: input, shape index: {}]
  %s2 = inlined_call_operand.vmem [shape: f32[1,128], index: 2, kind: input, shape index: {}]
  %s3 = inlined_call_operand.vmem [shape: bf16[32,128], index: 3, kind: input, shape index: {}]
  %s4 = inlined_call_operand.vmem [shape: bf16[32,128], index: 4, kind: input, shape index: {}]
  %s5 = inlined_call_operand.vmem [shape: f32[1,128], index: 5, kind: input, shape index: {}]
  %s6 = inlined_call_operand.vmem [shape: f32[32,16], index: 6, kind: input, shape index: {}]
  %s7 = inlined_call_operand.vmem [shape: f32[1,16], index: 7, kind: input, shape index: {}]
  %s8 = inlined_call_operand.vmem [shape: f32[16,1], index: 8, kind: input, shape index: {}]
  %s9 = inlined_call_operand.<no memory space> [shape: f32[1,1], index: 9, kind: input, shape index: {}]
  %s10 = inlined_call_operand.vmem [shape: f32[2,1,1], index: 10, kind: output, shape index: {}]
  %s11 = sld [smem:[#allocation0]]
  $region73: #{eff_b3_lstm_forward.3} parent=0
    _
  %s13 = ssub.s32 1, %s11
  %s14 = scalar_select 0, %s13, %s11
  %v15 = vstv %s9
  %16 = vst [vmem:[#allocation2] sm:$0x1] %v15
  loop: start=0, step=1, limit=4
  $region2: #{eff_b3_lstm_forward.3} parent=0 // loop_pre_header
    _
  $region3: #{eff_b3_lstm_forward.3} parent=0 // loop_header
    %s18 = sphi 0, %s22
    %p19 = scmp.ge.s32.totalorder %s18, 4
    %s28 = sphi 0, %s30
    %s31 = sphi 0, %s28
    %s32 = sphi 0, %s31
    %s48 = sphi 0, %s32
    %s52 = sphi 0, %s52
    %s54 = sphi 0, %s52
    %s55 = sphi 0, %s54
    %s69 = sphi 0, %s55
    %s73 = sphi 0, %s73
    %s75 = sphi 0, %s73
    %s76 = sphi 0, %s75
    %s90 = sphi 0, %s76
    %s94 = sphi 0, %s94
    %s96 = sphi 0, %s94
    %s97 = sphi 0, %s96
    %s111 = sphi 0, %s97
    %s115 = sphi 0, %s115
    %s117 = sphi 0, %s115
    %s118 = sphi 0, %s117
    %s132 = sphi 0, %s118
    %s136 = sphi 0, %s136
    %s138 = sphi 0, %s136
    %s139 = sphi 0, %s138
    %s153 = sphi 0, %s139
    %s157 = sphi 0, %s157
    %s159 = sphi 0, %s157
    %s160 = sphi 0, %s159
    %s174 = sphi 0, %s160
    %s178 = sphi 0, %s178
    %s180 = sphi 0, %s178
    %s181 = sphi 0, %s180
    %s195 = sphi 0, %s181
    %s199 = sphi 0, %s199
    %s201 = sphi 0, %s199
    %s202 = sphi 0, %s201
    %s216 = sphi 0, %s202
    %s220 = sphi 0, %s220
    %s222 = sphi 0, %s220
    %s223 = sphi 0, %s222
    %s237 = sphi 0, %s223
    %s243 = sphi 0, %s245
    %s246 = sphi 0, %s243
    %s247 = sphi 0, %s246
    %s263 = sphi 0, %s247
  $region4: #{eff_b3_lstm_forward.3} parent=0 // loop_header_branch
    %21 = sbr.rel (%p19) target = $region8
  $region5: #{eff_b3_lstm_forward.3} parent=0 // loop_body
    %s23 = ssub.s32 %s18, 1
    %s24 = ssub.s32 %s18, 2
    %s25 = sadd.s32 %s18, 1
    %s26 = ssub.s32 %s18, %s25
    %p27 = scmp.eq.s32.totalorder %s26, 0
    %s29 = sadd.s32 %s28, 1
    %s30 = scalar_select %p27, %s28, %s29
    %p33 = pneg %p27
    %p34 = scmp.eq.s32.totalorder %s18, 1
    %p35 = por %p33, %p34
    %p36 = scmp.ne.s32.totalorder %s28, %s31
    %p37 = scmp.eq.s32.totalorder %s18, 0
    %p38 = por %p36, %p37
    %p39 = scmp.ne.s32.totalorder %s28, %s31
    %p40 = scmp.eq.s32.totalorder %s23, 1
    %p41 = por %p39, %p40
    %p42 = scmp.ne.s32.totalorder %s31, %s32
    %p43 = scmp.eq.s32.totalorder %s23, 0
    %p44 = por %p42, %p43
    %p45 = scmp.ne.s32.totalorder %s31, %s32
    %p46 = scmp.eq.s32.totalorder %s24, 1
    %p47 = por %p45, %p46
    %p49 = scmp.ne.s32.totalorder %s32, %s48
    %p50 = scmp.eq.s32.totalorder %s24, 0
    %p51 = por %p49, %p50
    %s53 = sadd.s32 %s52, 1
    %p56 = scmp.eq.s32.totalorder %s18, 1
    %p57 = scmp.ne.s32.totalorder %s52, %s54
    %p58 = scmp.eq.s32.totalorder %s18, 0
    %p59 = por %p57, %p58
    %p60 = scmp.ne.s32.totalorder %s52, %s54
    %p61 = scmp.eq.s32.totalorder %s23, 1
    %p62 = por %p60, %p61
    %p63 = scmp.ne.s32.totalorder %s54, %s55
    %p64 = scmp.eq.s32.totalorder %s23, 0
    %p65 = por %p63, %p64
    %p66 = scmp.ne.s32.totalorder %s54, %s55
    %p67 = scmp.eq.s32.totalorder %s24, 1
    %p68 = por %p66, %p67
    %p70 = scmp.ne.s32.totalorder %s55, %s69
    %p71 = scmp.eq.s32.totalorder %s24, 0
    %p72 = por %p70, %p71
    %s74 = sadd.s32 %s73, 1
    %p77 = scmp.eq.s32.totalorder %s18, 1
    %p78 = scmp.ne.s32.totalorder %s73, %s75
    %p79 = scmp.eq.s32.totalorder %s18, 0
    %p80 = por %p78, %p79
    %p81 = scmp.ne.s32.totalorder %s73, %s75
    %p82 = scmp.eq.s32.totalorder %s23, 1
    %p83 = por %p81, %p82
    %p84 = scmp.ne.s32.totalorder %s75, %s76
    %p85 = scmp.eq.s32.totalorder %s23, 0
    %p86 = por %p84, %p85
    %p87 = scmp.ne.s32.totalorder %s75, %s76
    %p88 = scmp.eq.s32.totalorder %s24, 1
    %p89 = por %p87, %p88
    %p91 = scmp.ne.s32.totalorder %s76, %s90
    %p92 = scmp.eq.s32.totalorder %s24, 0
    %p93 = por %p91, %p92
    %s95 = sadd.s32 %s94, 1
    %p98 = scmp.eq.s32.totalorder %s18, 1
    %p99 = scmp.ne.s32.totalorder %s94, %s96
    %p100 = scmp.eq.s32.totalorder %s18, 0
    %p101 = por %p99, %p100
    %p102 = scmp.ne.s32.totalorder %s94, %s96
    %p103 = scmp.eq.s32.totalorder %s23, 1
    %p104 = por %p102, %p103
    %p105 = scmp.ne.s32.totalorder %s96, %s97
    %p106 = scmp.eq.s32.totalorder %s23, 0
    %p107 = por %p105, %p106
    %p108 = scmp.ne.s32.totalorder %s96, %s97
    %p109 = scmp.eq.s32.totalorder %s24, 1
    %p110 = por %p108, %p109
    %p112 = scmp.ne.s32.totalorder %s97, %s111
    %p113 = scmp.eq.s32.totalorder %s24, 0
    %p114 = por %p112, %p113
    %s116 = sadd.s32 %s115, 1
    %p119 = scmp.eq.s32.totalorder %s18, 1
    %p120 = scmp.ne.s32.totalorder %s115, %s117
    %p121 = scmp.eq.s32.totalorder %s18, 0
    %p122 = por %p120, %p121
    %p123 = scmp.ne.s32.totalorder %s115, %s117
    %p124 = scmp.eq.s32.totalorder %s23, 1
    %p125 = por %p123, %p124
    %p126 = scmp.ne.s32.totalorder %s117, %s118
    %p127 = scmp.eq.s32.totalorder %s23, 0
    %p128 = por %p126, %p127
    %p129 = scmp.ne.s32.totalorder %s117, %s118
    %p130 = scmp.eq.s32.totalorder %s24, 1
    %p131 = por %p129, %p130
    %p133 = scmp.ne.s32.totalorder %s118, %s132
    %p134 = scmp.eq.s32.totalorder %s24, 0
    %p135 = por %p133, %p134
    %s137 = sadd.s32 %s136, 1
    %p140 = scmp.eq.s32.totalorder %s18, 1
    %p141 = scmp.ne.s32.totalorder %s136, %s138
    %p142 = scmp.eq.s32.totalorder %s18, 0
    %p143 = por %p141, %p142
    %p144 = scmp.ne.s32.totalorder %s136, %s138
    %p145 = scmp.eq.s32.totalorder %s23, 1
    %p146 = por %p144, %p145
    %p147 = scmp.ne.s32.totalorder %s138, %s139
    %p148 = scmp.eq.s32.totalorder %s23, 0
    %p149 = por %p147, %p148
    %p150 = scmp.ne.s32.totalorder %s138, %s139
    %p151 = scmp.eq.s32.totalorder %s24, 1
    %p152 = por %p150, %p151
    %p154 = scmp.ne.s32.totalorder %s139, %s153
    %p155 = scmp.eq.s32.totalorder %s24, 0
    %p156 = por %p154, %p155
    %s158 = sadd.s32 %s157, 1
    %p161 = scmp.eq.s32.totalorder %s18, 1
    %p162 = scmp.ne.s32.totalorder %s157, %s159
    %p163 = scmp.eq.s32.totalorder %s18, 0
    %p164 = por %p162, %p163
    %p165 = scmp.ne.s32.totalorder %s157, %s159
    %p166 = scmp.eq.s32.totalorder %s23, 1
    %p167 = por %p165, %p166
    %p168 = scmp.ne.s32.totalorder %s159, %s160
    %p169 = scmp.eq.s32.totalorder %s23, 0
    %p170 = por %p168, %p169
    %p171 = scmp.ne.s32.totalorder %s159, %s160
    %p172 = scmp.eq.s32.totalorder %s24, 1
    %p173 = por %p171, %p172
    %p175 = scmp.ne.s32.totalorder %s160, %s174
    %p176 = scmp.eq.s32.totalorder %s24, 0
    %p177 = por %p175, %p176
    %s179 = sadd.s32 %s178, 1
    %p182 = scmp.eq.s32.totalorder %s18, 1
    %p183 = scmp.ne.s32.totalorder %s178, %s180
    %p184 = scmp.eq.s32.totalorder %s18, 0
    %p185 = por %p183, %p184
    %p186 = scmp.ne.s32.totalorder %s178, %s180
    %p187 = scmp.eq.s32.totalorder %s23, 1
    %p188 = por %p186, %p187
    %p189 = scmp.ne.s32.totalorder %s180, %s181
    %p190 = scmp.eq.s32.totalorder %s23, 0
    %p191 = por %p189, %p190
    %p192 = scmp.ne.s32.totalorder %s180, %s181
    %p193 = scmp.eq.s32.totalorder %s24, 1
    %p194 = por %p192, %p193
    %p196 = scmp.ne.s32.totalorder %s181, %s195
    %p197 = scmp.eq.s32.totalorder %s24, 0
    %p198 = por %p196, %p197
    %s200 = sadd.s32 %s199, 1
    %p203 = scmp.eq.s32.totalorder %s18, 1
    %p204 = scmp.ne.s32.totalorder %s199, %s201
    %p205 = scmp.eq.s32.totalorder %s18, 0
    %p206 = por %p204, %p205
    %p207 = scmp.ne.s32.totalorder %s199, %s201
    %p208 = scmp.eq.s32.totalorder %s23, 1
    %p209 = por %p207, %p208
    %p210 = scmp.ne.s32.totalorder %s201, %s202
    %p211 = scmp.eq.s32.totalorder %s23, 0
    %p212 = por %p210, %p211
    %p213 = scmp.ne.s32.totalorder %s201, %s202
    %p214 = scmp.eq.s32.totalorder %s24, 1
    %p215 = por %p213, %p214
    %p217 = scmp.ne.s32.totalorder %s202, %s216
    %p218 = scmp.eq.s32.totalorder %s24, 0
    %p219 = por %p217, %p218
    %s221 = sadd.s32 %s220, 1
    %p224 = scmp.eq.s32.totalorder %s18, 1
    %p225 = scmp.ne.s32.totalorder %s220, %s222
    %p226 = scmp.eq.s32.totalorder %s18, 0
    %p227 = por %p225, %p226
    %p228 = scmp.ne.s32.totalorder %s220, %s222
    %p229 = scmp.eq.s32.totalorder %s23, 1
    %p230 = por %p228, %p229
    %p231 = scmp.ne.s32.totalorder %s222, %s223
    %p232 = scmp.eq.s32.totalorder %s23, 0
    %p233 = por %p231, %p232
    %p234 = scmp.ne.s32.totalorder %s222, %s223
    %p235 = scmp.eq.s32.totalorder %s24, 1
    %p236 = por %p234, %p235
    %p238 = scmp.ne.s32.totalorder %s223, %s237
    %p239 = scmp.eq.s32.totalorder %s24, 0
    %p240 = por %p238, %p239
    %s241 = ssub.s32 %s18, %s25
    %p242 = scmp.eq.s32.totalorder %s241, 0
    %s244 = sadd.s32 %s243, 1
    %s245 = scalar_select %p242, %s243, %s244
    %p248 = pneg %p242
    %p249 = scmp.eq.s32.totalorder %s18, 1
    %p250 = por %p248, %p249
    %p251 = scmp.ne.s32.totalorder %s243, %s246
    %p252 = scmp.eq.s32.totalorder %s18, 0
    %p253 = por %p251, %p252
    %p254 = scmp.ne.s32.totalorder %s243, %s246
    %p255 = scmp.eq.s32.totalorder %s23, 1
    %p256 = por %p254, %p255
    %p257 = scmp.ne.s32.totalorder %s246, %s247
    %p258 = scmp.eq.s32.totalorder %s23, 0
    %p259 = por %p257, %p258
    %p260 = scmp.ne.s32.totalorder %s246, %s247
    %p261 = scmp.eq.s32.totalorder %s24, 1
    %p262 = por %p260, %p261
    %p264 = scmp.ne.s32.totalorder %s247, %s263
    %p265 = scmp.eq.s32.totalorder %s24, 0
    %p266 = por %p264, %p265
    %p267 = scmp.le.s32.totalorder 1, %s18
    %p268 = scmp.lt.s32.totalorder %s18, 3
    %p269 = pnand %p267, %p268
    %p270 = pneg %p269
    // Predicated region
    $region9: #{eff_b3_lstm_forward.3} parent=5 // pred_check
      _
    $region10: #{eff_b3_lstm_forward.3} parent=5 // pred_check_branch
      %272 = sbr.rel (%p269) target = $region12
    $region11: #{eff_b3_lstm_forward.3} parent=5 // pred_region
      %s273 = ssub.s32 %s18, 1
      // Predicated region
      $region13: #{eff_b3_lstm_forward.3} parent=11 // pred_check
        %p274 = pneg %p65
      $region14: #{eff_b3_lstm_forward.3} parent=11 // pred_check_branch
        %276 = sbr.rel (%p274) target = $region16
      $region15: #{eff_b3_lstm_forward.3} parent=11 // pred_region
        _
      $region16: #{eff_b3_lstm_forward.3} parent=11 // pred_fallthru
        _
      // Predicated region
      $region17: #{eff_b3_lstm_forward.3} parent=11 // pred_check
        %p277 = pneg %p86
      $region18: #{eff_b3_lstm_forward.3} parent=11 // pred_check_branch
        %279 = sbr.rel (%p277) target = $region20
      $region19: #{eff_b3_lstm_forward.3} parent=11 // pred_region
        _
      $region20: #{eff_b3_lstm_forward.3} parent=11 // pred_fallthru
        _
      // Predicated region
      $region21: #{eff_b3_lstm_forward.3} parent=11 // pred_check
        %p280 = pneg %p107
      $region22: #{eff_b3_lstm_forward.3} parent=11 // pred_check_branch
        %282 = sbr.rel (%p280) target = $region24
      $region23: #{eff_b3_lstm_forward.3} parent=11 // pred_region
        _
      $region24: #{eff_b3_lstm_forward.3} parent=11 // pred_fallthru
        _
      // Predicated region
      $region25: #{eff_b3_lstm_forward.3} parent=11 // pred_check
        %p283 = pneg %p128
      $region26: #{eff_b3_lstm_forward.3} parent=11 // pred_check_branch
        %285 = sbr.rel (%p283) target = $region28
      $region27: #{eff_b3_lstm_forward.3} parent=11 // pred_region
        _
      $region28: #{eff_b3_lstm_forward.3} parent=11 // pred_fallthru
        _
      // Predicated region
      $region29: #{eff_b3_lstm_forward.3} parent=11 // pred_check
        %p286 = pneg %p149
      $region30: #{eff_b3_lstm_forward.3} parent=11 // pred_check_branch
        %288 = sbr.rel (%p286) target = $region32
      $region31: #{eff_b3_lstm_forward.3} parent=11 // pred_region
        _
      $region32: #{eff_b3_lstm_forward.3} parent=11 // pred_fallthru
        _
      // Predicated region
      $region33: #{eff_b3_lstm_forward.3} parent=11 // pred_check
        %p289 = pneg %p170
      $region34: #{eff_b3_lstm_forward.3} parent=11 // pred_check_branch
        %291 = sbr.rel (%p289) target = $region36
      $region35: #{eff_b3_lstm_forward.3} parent=11 // pred_region
        _
      $region36: #{eff_b3_lstm_forward.3} parent=11 // pred_fallthru
        _
      // Predicated region
      $region37: #{eff_b3_lstm_forward.3} parent=11 // pred_check
        %p292 = pneg %p191
      $region38: #{eff_b3_lstm_forward.3} parent=11 // pred_check_branch
        %294 = sbr.rel (%p292) target = $region40
      $region39: #{eff_b3_lstm_forward.3} parent=11 // pred_region
        _
      $region40: #{eff_b3_lstm_forward.3} parent=11 // pred_fallthru
        _
      // Predicated region
      $region41: #{eff_b3_lstm_forward.3} parent=11 // pred_check
        %p295 = pneg %p212
      $region42: #{eff_b3_lstm_forward.3} parent=11 // pred_check_branch
        %297 = sbr.rel (%p295) target = $region44
      $region43: #{eff_b3_lstm_forward.3} parent=11 // pred_region
        _
      $region44: #{eff_b3_lstm_forward.3} parent=11 // pred_fallthru
        _
      // Predicated region
      $region45: #{eff_b3_lstm_forward.3} parent=11 // pred_check
        %p298 = pneg %p233
      $region46: #{eff_b3_lstm_forward.3} parent=11 // pred_check_branch
        %300 = sbr.rel (%p298) target = $region48
      $region47: #{eff_b3_lstm_forward.3} parent=11 // pred_region
        _
      $region48: #{eff_b3_lstm_forward.3} parent=11 // pred_fallthru
        _
    $region12: #{eff_b3_lstm_forward.3} parent=5 // pred_fallthru
      _
    %p301 = scmp.lt.s32.totalorder %s18, 2
    // Predicated region
    $region49: #{eff_b3_lstm_forward.3} parent=5 // pred_check
      %p302 = pneg %p301
    $region50: #{eff_b3_lstm_forward.3} parent=5 // pred_check_branch
      %304 = sbr.rel (%p302) target = $region52
    $region51: #{eff_b3_lstm_forward.3} parent=5 // pred_region
      // Predicated region
      $region53: #{eff_b3_lstm_forward.3} parent=51 // pred_check
        %p305 = pneg %p38
      $region54: #{eff_b3_lstm_forward.3} parent=51 // pred_check_branch
        %307 = sbr.rel (%p305) target = $region56
      $region55: #{eff_b3_lstm_forward.3} parent=51 // pred_region
        %p308 = scmp.lt.s32.totalorder %s18, 1
        %s309 = scalar_select %p308, %s18, 1
        %s310 = smul.addr %s309, 4
        %s311 = scalar_lea.vmem %s0, %s310
      $region56: #{eff_b3_lstm_forward.3} parent=51 // pred_fallthru
        _
    $region52: #{eff_b3_lstm_forward.3} parent=5 // pred_fallthru
      _
    %p312 = scmp.le.s32.totalorder 1, %s18
    %p313 = scmp.lt.s32.totalorder %s18, 3
    %p314 = pnand %p312, %p313
    %p315 = pneg %p314
    // Predicated region
    $region57: #{eff_b3_lstm_forward.3} parent=5 // pred_check
      _
    $region58: #{eff_b3_lstm_forward.3} parent=5 // pred_check_branch
      %317 = sbr.rel (%p314) target = $region60
    $region59: #{eff_b3_lstm_forward.3} parent=5 // pred_region
      %s318 = ssub.s32 %s18, 1
      %p319 = scmp.lt.s32.totalorder %s23, 1
      %s320 = scalar_select %p319, %s23, 1
      %s321 = smul.addr %s320, 4
      %s322 = scalar_lea.vmem %s0, %s321
      %p323 = pneg %p44
      %p324 = pneg %p41
      %p325 = pneg %p65
      %p326 = pneg %p62
      %p327 = pneg %p86
      %p328 = pneg %p83
      %p329 = pneg %p107
      %p330 = pneg %p104
      %p331 = pneg %p128
      %p332 = pneg %p125
      %p333 = pneg %p149
      %p334 = pneg %p146
      %p335 = pneg %p170
      %p336 = pneg %p167
      %p337 = pneg %p191
      %p338 = pneg %p188
      %p339 = pneg %p212
      %p340 = pneg %p209
      %p341 = pneg %p233
      %p342 = pneg %p230
      %p343 = pneg %p259
      %p344 = pneg %p256
      %p345 = scmp.lt.s32.totalorder %s23, 1
      %s346 = scalar_select %p345, %s23, 1
      %s347 = scalar_lea.vmem %s10, %s346
      %p348 = scmp.lt.s32.totalorder %s23, 1
      %s349 = scalar_select %p348, %s23, 1
      %s350 = smul.addr %s349, 4
      %s351 = scalar_lea.vmem %s0, %s350
      %p352 = scmp.lt.s32.totalorder %s23, 1
      %s353 = scalar_select %p352, %s23, 1
      %s354 = scalar_lea.vmem %s10, %s353
      %v356 = vld [vmem:[%s1] sm:$0xf]
      %v357 = vld [vmem:[%s1 + $0x4] sm:$0xf]
      %v358 = vld [vmem:[%s1 + $0x8] sm:$0xf]
      %v359 = vld [vmem:[%s1 + $0xc] sm:$0xf]
      %v360 = vld [vmem:[%s2] sm:$0x1]
      %v361 = vld [vmem:[%s3] sm:$0xf]
      %v362 = vld [vmem:[%s3 + $0x4] sm:$0xf]
      %v363 = vld [vmem:[%s3 + $0x8] sm:$0xf]
      %v364 = vld [vmem:[%s3 + $0xc] sm:$0xf]
      %v365 = vld [vmem:[%s4] sm:$0xf]
      %v366 = vld [vmem:[%s4 + $0x4] sm:$0xf]
      %v367 = vld [vmem:[%s4 + $0x8] sm:$0xf]
      %v368 = vld [vmem:[%s4 + $0xc] sm:$0xf]
      %v369 = vld [vmem:[%s5] sm:$0x1]
      %v370 = vld [vmem:[%s351] sm:$0x1]
      %v375 = vunpack.c.l.b16 %v356
      %v376 = vunpack.c.l.b16 %v357
      %v377 = vunpack.c.l.b16 %v358
      %v378 = vunpack.c.l.b16 %v359
      %v379 = vpack.c.b16 %v376, %v375
      %v380 = vpack.c.b16 %v378, %v377
      %vm383 = vcmask 261120
      %v385 = vsel %vm383, 0, 0
      %387 = vmatprep.subr.bf16.mxu0 0
      %388 = vmatpush1.bf16.msra.mxu0 %v379
      %389 = vmatprep.subr.bf16.mxu0 0
      %390 = vmatpush1.bf16.msra.mxu0 %v380
      %391 = vmatprep.subr.bf16.mxu0 0
      %392 = vmatpush1.bf16.msra.mxu0 0
      %393 = vmatprep.subr.bf16.mxu0 0
      %394 = vmatpush1.bf16.msra.mxu0 0
      %395 = vmatprep.subr.bf16.mxu0 0
      %396 = vmatpush1.bf16.msra.mxu0 0
      %397 = vmatprep.subr.bf16.mxu0 0
      %398 = vmatpush1.bf16.msra.mxu0 0
      %399 = vmatprep.subr.bf16.mxu0 0
      %400 = vmatpush1.bf16.msra.mxu0 0
      %401 = vmatprep.subr.bf16.mxu0 0
      %402 = vmatpush1.bf16.msra.mxu0 0
      %403 = vmatprep.subr.bf16.mxu0 0
      %404 = vmatpush1.bf16.msra.mxu0 0
      %405 = vmatprep.subr.bf16.mxu0 0
      %406 = vmatpush1.bf16.msra.mxu0 0
      %407 = vmatprep.subr.bf16.mxu0 0
      %408 = vmatpush1.bf16.msra.mxu0 0
      %409 = vmatprep.subr.bf16.mxu0 0
      %410 = vmatpush1.bf16.msra.mxu0 0
      %411 = vmatprep.subr.bf16.mxu0 0
      %412 = vmatpush1.bf16.msra.mxu0 0
      %413 = vmatprep.subr.bf16.mxu0 0
      %414 = vmatpush1.bf16.msra.mxu0 0
      %415 = vmatprep.subr.bf16.mxu0 0
      %416 = vmatpush1.bf16.msra.mxu0 0
      %417 = vmatprep.subr.bf16.mxu0 0
      %418 = vmatpush1.bf16.msra.mxu0 0
      %419 = vmatprep.mubr.bf16.mxu0 0
      %420 = vmatmul.mubr.bf16.gmra.mrb[0].mxu0 %v385
      %v421 = vpop.f32.mrb[0].mxu0
      %v422 = vadd.f32 0.0, %v421
      %v423 = vpop.f32.mrb[0].mxu0
      %v424 = vpop.f32.mrb[0].mxu0
      %v425 = vpop.f32.mrb[0].mxu0
      %426 = vdwg.mxu0
      %v427 = vadd.f32 %v370, %v422
      %v428 = vadd.f32 %v427, %v360
      %v429 = vxor.u32 %v428, 2147483648
      %v430 = vmul.f32 %v429, 1.442695
      %v431 = vpow.pop %v430
      %v432 = vadd.f32 %v431, 1.0
      %v433 = vrcp.pop %v432
      %v434 = vmul.f32 1.0, %v433
      %v435 = vtanh.pop %v428
      %v436 = vmul.f32 %v434, 0.0
      %438 = vrot.lane.b32.xlu0 %v435, 32
      %v439 = vpop.permute.xlu0 %438
      %v441 = vmul.f32 %v434, %v439
      %443 = vrot.lane.b32.xlu0 %v441, 32
      %v444 = vpop.permute.xlu0 %443
      %v446 = vadd.f32 %v436, %v444
      %v447 = vtanh.pop %v446
      %449 = vrot.lane.b32.xlu0 %v447, 32
      %v450 = vpop.permute.xlu0 %449
      %v452 = vmul.f32 %v434, %v450
      %v453 = vpack.c.bf16 %v452, %v452
      %v458 = vunpack.c.l.b16 %v365
      %v459 = vunpack.c.l.b16 %v366
      %v460 = vunpack.c.l.b16 %v367
      %v461 = vunpack.c.l.b16 %v368
      %v462 = vpack.c.b16 %v459, %v458
      %v463 = vpack.c.b16 %v461, %v460
      %466 = vmatprep.subr.bf16.mxu0 0
      %467 = vmatpush1.bf16.msra.mxu0 %v462
      %468 = vmatprep.subr.bf16.mxu0 0
      %469 = vmatpush1.bf16.msra.mxu0 %v463
      %470 = vmatprep.subr.bf16.mxu0 0
      %471 = vmatpush1.bf16.msra.mxu0 0
      %472 = vmatprep.subr.bf16.mxu0 0
      %473 = vmatpush1.bf16.msra.mxu0 0
      %474 = vmatprep.subr.bf16.mxu0 0
      %475 = vmatpush1.bf16.msra.mxu0 0
      %476 = vmatprep.subr.bf16.mxu0 0
      %477 = vmatpush1.bf16.msra.mxu0 0
      %478 = vmatprep.subr.bf16.mxu0 0
      %479 = vmatpush1.bf16.msra.mxu0 0
      %480 = vmatprep.subr.bf16.mxu0 0
      %481 = vmatpush1.bf16.msra.mxu0 0
      %482 = vmatprep.subr.bf16.mxu0 0
      %483 = vmatpush1.bf16.msra.mxu0 0
      %484 = vmatprep.subr.bf16.mxu0 0
      %485 = vmatpush1.bf16.msra.mxu0 0
      %486 = vmatprep.subr.bf16.mxu0 0
      %487 = vmatpush1.bf16.msra.mxu0 0
      %488 = vmatprep.subr.bf16.mxu0 0
      %489 = vmatpush1.bf16.msra.mxu0 0
      %490 = vmatprep.subr.bf16.mxu0 0
      %491 = vmatpush1.bf16.msra.mxu0 0
      %492 = vmatprep.subr.bf16.mxu0 0
      %493 = vmatpush1.bf16.msra.mxu0 0
      %494 = vmatprep.subr.bf16.mxu0 0
      %495 = vmatpush1.bf16.msra.mxu0 0
      %496 = vmatprep.subr.bf16.mxu0 0
      %497 = vmatpush1.bf16.msra.mxu0 0
      %498 = vmatprep.mubr.bf16.mxu0 0
      %499 = vmatmul.mubr.bf16.gmra.mrb[0].mxu0 %v385
      %v500 = vpop.f32.mrb[0].mxu0
      %v501 = vadd.f32 0.0, %v500
      %v502 = vpop.f32.mrb[0].mxu0
      %v503 = vpop.f32.mrb[0].mxu0
      %v504 = vpop.f32.mrb[0].mxu0
      %505 = vdwg.mxu0
      %507 = vrot.lane.b32.xlu0 %v453, 64
      %v508 = vpop.permute.xlu0 %507
      %v513 = vunpack.c.l.b16 %v361
      %v514 = vunpack.c.l.b16 %v362
      %v515 = vunpack.c.l.b16 %v363
      %v516 = vunpack.c.l.b16 %v364
      %v517 = vpack.c.b16 %v514, %v513
      %v518 = vpack.c.b16 %v516, %v515
      %v522 = vsel %vm383, %v508, 0
      %524 = vmatprep.subr.bf16.mxu0 0
      %525 = vmatpush1.bf16.msra.mxu0 %v517
      %526 = vmatprep.subr.bf16.mxu0 0
      %527 = vmatpush1.bf16.msra.mxu0 %v518
      %528 = vmatprep.subr.bf16.mxu0 0
      %529 = vmatpush1.bf16.msra.mxu0 0
      %530 = vmatprep.subr.bf16.mxu0 0
      %531 = vmatpush1.bf16.msra.mxu0 0
      %532 = vmatprep.subr.bf16.mxu0 0
      %533 = vmatpush1.bf16.msra.mxu0 0
      %534 = vmatprep.subr.bf16.mxu0 0
      %535 = vmatpush1.bf16.msra.mxu0 0
      %536 = vmatprep.subr.bf16.mxu0 0
      %537 = vmatpush1.bf16.msra.mxu0 0
      %538 = vmatprep.subr.bf16.mxu0 0
      %539 = vmatpush1.bf16.msra.mxu0 0
      %540 = vmatprep.subr.bf16.mxu0 0
      %541 = vmatpush1.bf16.msra.mxu0 0
      %542 = vmatprep.subr.bf16.mxu0 0
      %543 = vmatpush1.bf16.msra.mxu0 0
      %544 = vmatprep.subr.bf16.mxu0 0
      %545 = vmatpush1.bf16.msra.mxu0 0
      %546 = vmatprep.subr.bf16.mxu0 0
      %547 = vmatpush1.bf16.msra.mxu0 0
      %548 = vmatprep.subr.bf16.mxu0 0
      %549 = vmatpush1.bf16.msra.mxu0 0
      %550 = vmatprep.subr.bf16.mxu0 0
      %551 = vmatpush1.bf16.msra.mxu0 0
      %552 = vmatprep.subr.bf16.mxu0 0
      %553 = vmatpush1.bf16.msra.mxu0 0
      %554 = vmatprep.subr.bf16.mxu0 0
      %555 = vmatpush1.bf16.msra.mxu0 0
      %556 = vmatprep.mubr.bf16.mxu0 0
      %557 = vmatmul.mubr.bf16.gmra.mrb[0].mxu0 %v522
      %v558 = vpop.f32.mrb[0].mxu0
      %v559 = vadd.f32 %v501, %v558
      %v560 = vpop.f32.mrb[0].mxu0
      %v561 = vpop.f32.mrb[0].mxu0
      %v562 = vpop.f32.mrb[0].mxu0
      %563 = vdwg.mxu0
      %v564 = vadd.f32 %v559, %v369
      %v565 = vxor.u32 %v564, 2147483648
      %v566 = vmul.f32 %v565, 1.442695
      %v567 = vpow.pop %v566
      %v568 = vadd.f32 %v567, 1.0
      %v569 = vrcp.pop %v568
      %v570 = vmul.f32 1.0, %v569
      %v571 = vtanh.pop %v564
      %v572 = vmul.f32 %v570, 0.0
      %574 = vrot.lane.b32.xlu0 %v571, 32
      %v575 = vpop.permute.xlu0 %574
      %v577 = vmul.f32 %v570, %v575
      %579 = vrot.lane.b32.xlu0 %v577, 32
      %v580 = vpop.permute.xlu0 %579
      %v582 = vadd.f32 %v572, %v580
      %v583 = vtanh.pop %v582
      %585 = vrot.lane.b32.xlu0 %v583, 32
      %v586 = vpop.permute.xlu0 %585
      %v588 = vmul.f32 %v570, %v586
      %s589 = scalar_lea.vmem %s351, 1
      %v590 = vld [vmem:[%s589] sm:$0x1]
      %591 = vmatprep.subr.bf16.mxu0 0
      %592 = vmatpush1.bf16.msra.mxu0 %v379
      %593 = vmatprep.subr.bf16.mxu0 0
      %594 = vmatpush1.bf16.msra.mxu0 %v380
      %595 = vmatprep.subr.bf16.mxu0 0
      %596 = vmatpush1.bf16.msra.mxu0 0
      %597 = vmatprep.subr.bf16.mxu0 0
      %598 = vmatpush1.bf16.msra.mxu0 0
      %599 = vmatprep.subr.bf16.mxu0 0
      %600 = vmatpush1.bf16.msra.mxu0 0
      %601 = vmatprep.subr.bf16.mxu0 0
      %602 = vmatpush1.bf16.msra.mxu0 0
      %603 = vmatprep.subr.bf16.mxu0 0
      %604 = vmatpush1.bf16.msra.mxu0 0
      %605 = vmatprep.subr.bf16.mxu0 0
      %606 = vmatpush1.bf16.msra.mxu0 0
      %607 = vmatprep.subr.bf16.mxu0 0
      %608 = vmatpush1.bf16.msra.mxu0 0
      %609 = vmatprep.subr.bf16.mxu0 0
      %610 = vmatpush1.bf16.msra.mxu0 0
      %611 = vmatprep.subr.bf16.mxu0 0
      %612 = vmatpush1.bf16.msra.mxu0 0
      %613 = vmatprep.subr.bf16.mxu0 0
      %614 = vmatpush1.bf16.msra.mxu0 0
      %615 = vmatprep.subr.bf16.mxu0 0
      %616 = vmatpush1.bf16.msra.mxu0 0
      %617 = vmatprep.subr.bf16.mxu0 0
      %618 = vmatpush1.bf16.msra.mxu0 0
      %619 = vmatprep.subr.bf16.mxu0 0
      %620 = vmatpush1.bf16.msra.mxu0 0
      %621 = vmatprep.subr.bf16.mxu0 0
      %622 = vmatpush1.bf16.msra.mxu0 0
      %623 = vmatprep.mubr.bf16.mxu0 0
      %624 = vmatmul.mubr.bf16.gmra.mrb[0].mxu0 %v522
      %v625 = vpop.f32.mrb[0].mxu0
      %v626 = vadd.f32 0.0, %v625
      %v627 = vpop.f32.mrb[0].mxu0
      %v628 = vpop.f32.mrb[0].mxu0
      %v629 = vpop.f32.mrb[0].mxu0
      %630 = vdwg.mxu0
      %v631 = vadd.f32 %v590, %v626
      %v632 = vadd.f32 %v631, %v360
      %v633 = vxor.u32 %v632, 2147483648
      %v634 = vmul.f32 %v633, 1.442695
      %v635 = vpow.pop %v634
      %v636 = vadd.f32 %v635, 1.0
      %v637 = vrcp.pop %v636
      %v638 = vmul.f32 1.0, %v637
      %v639 = vtanh.pop %v632
      %v640 = vmul.f32 %v638, %v446
      %642 = vrot.lane.b32.xlu0 %v639, 32
      %v643 = vpop.permute.xlu0 %642
      %v645 = vmul.f32 %v638, %v643
      %647 = vrot.lane.b32.xlu0 %v645, 32
      %v648 = vpop.permute.xlu0 %647
      %v650 = vadd.f32 %v640, %v648
      %v651 = vtanh.pop %v650
      %653 = vrot.lane.b32.xlu0 %v651, 32
      %v654 = vpop.permute.xlu0 %653
      %v656 = vmul.f32 %v638, %v654
      %v657 = vpack.c.bf16 %v656, %v656
      %v658 = vpack.c.bf16 %v588, %v588
      %660 = vrot.lane.b32.xlu0 %v658, 64
      %v661 = vpop.permute.xlu0 %660
      %v663 = vsel %vm383, %v661, 0
      %665 = vmatprep.subr.bf16.mxu0 0
      %666 = vmatpush1.bf16.msra.mxu0 %v462
      %667 = vmatprep.subr.bf16.mxu0 0
      %668 = vmatpush1.bf16.msra.mxu0 %v463
      %669 = vmatprep.subr.bf16.mxu0 0
      %670 = vmatpush1.bf16.msra.mxu0 0
      %671 = vmatprep.subr.bf16.mxu0 0
      %672 = vmatpush1.bf16.msra.mxu0 0
      %673 = vmatprep.subr.bf16.mxu0 0
      %674 = vmatpush1.bf16.msra.mxu0 0
      %675 = vmatprep.subr.bf16.mxu0 0
      %676 = vmatpush1.bf16.msra.mxu0 0
      %677 = vmatprep.subr.bf16.mxu0 0
      %678 = vmatpush1.bf16.msra.mxu0 0
      %679 = vmatprep.subr.bf16.mxu0 0
      %680 = vmatpush1.bf16.msra.mxu0 0
      %681 = vmatprep.subr.bf16.mxu0 0
      %682 = vmatpush1.bf16.msra.mxu0 0
      %683 = vmatprep.subr.bf16.mxu0 0
      %684 = vmatpush1.bf16.msra.mxu0 0
      %685 = vmatprep.subr.bf16.mxu0 0
      %686 = vmatpush1.bf16.msra.mxu0 0
      %687 = vmatprep.subr.bf16.mxu0 0
      %688 = vmatpush1.bf16.msra.mxu0 0
      %689 = vmatprep.subr.bf16.mxu0 0
      %690 = vmatpush1.bf16.msra.mxu0 0
      %691 = vmatprep.subr.bf16.mxu0 0
      %692 = vmatpush1.bf16.msra.mxu0 0
      %693 = vmatprep.subr.bf16.mxu0 0
      %694 = vmatpush1.bf16.msra.mxu0 0
      %695 = vmatprep.subr.bf16.mxu0 0
      %696 = vmatpush1.bf16.msra.mxu0 0
      %697 = vmatprep.mubr.bf16.mxu0 0
      %698 = vmatmul.mubr.bf16.gmra.mrb[0].mxu0 %v663
      %v699 = vpop.f32.mrb[0].mxu0
      %v700 = vadd.f32 0.0, %v699
      %v701 = vpop.f32.mrb[0].mxu0
      %v702 = vpop.f32.mrb[0].mxu0
      %v703 = vpop.f32.mrb[0].mxu0
      %704 = vdwg.mxu0
      %706 = vrot.lane.b32.xlu0 %v657, 64
      %v707 = vpop.permute.xlu0 %706
      %v709 = vsel %vm383, %v707, 0
      %711 = vmatprep.subr.bf16.mxu0 0
      %712 = vmatpush1.bf16.msra.mxu0 %v517
      %713 = vmatprep.subr.bf16.mxu0 0
      %714 = vmatpush1.bf16.msra.mxu0 %v518
      %715 = vmatprep.subr.bf16.mxu0 0
      %716 = vmatpush1.bf16.msra.mxu0 0
      %717 = vmatprep.subr.bf16.mxu0 0
      %718 = vmatpush1.bf16.msra.mxu0 0
      %719 = vmatprep.subr.bf16.mxu0 0
      %720 = vmatpush1.bf16.msra.mxu0 0
      %721 = vmatprep.subr.bf16.mxu0 0
      %722 = vmatpush1.bf16.msra.mxu0 0
      %723 = vmatprep.subr.bf16.mxu0 0
      %724 = vmatpush1.bf16.msra.mxu0 0
      %725 = vmatprep.subr.bf16.mxu0 0
      %726 = vmatpush1.bf16.msra.mxu0 0
      %727 = vmatprep.subr.bf16.mxu0 0
      %728 = vmatpush1.bf16.msra.mxu0 0
      %729 = vmatprep.subr.bf16.mxu0 0
      %730 = vmatpush1.bf16.msra.mxu0 0
      %731 = vmatprep.subr.bf16.mxu0 0
      %732 = vmatpush1.bf16.msra.mxu0 0
      %733 = vmatprep.subr.bf16.mxu0 0
      %734 = vmatpush1.bf16.msra.mxu0 0
      %735 = vmatprep.subr.bf16.mxu0 0
      %736 = vmatpush1.bf16.msra.mxu0 0
      %737 = vmatprep.subr.bf16.mxu0 0
      %738 = vmatpush1.bf16.msra.mxu0 0
      %739 = vmatprep.subr.bf16.mxu0 0
      %740 = vmatpush1.bf16.msra.mxu0 0
      %741 = vmatprep.subr.bf16.mxu0 0
      %742 = vmatpush1.bf16.msra.mxu0 0
      %743 = vmatprep.mubr.bf16.mxu0 0
      %744 = vmatmul.mubr.bf16.gmra.mrb[0].mxu0 %v709
      %v745 = vpop.f32.mrb[0].mxu0
      %v746 = vadd.f32 %v700, %v745
      %v747 = vpop.f32.mrb[0].mxu0
      %v748 = vpop.f32.mrb[0].mxu0
      %v749 = vpop.f32.mrb[0].mxu0
      %750 = vdwg.mxu0
      %v751 = vadd.f32 %v746, %v369
      %v752 = vxor.u32 %v751, 2147483648
      %v753 = vmul.f32 %v752, 1.442695
      %v754 = vpow.pop %v753
      %v755 = vadd.f32 %v754, 1.0
      %v756 = vrcp.pop %v755
      %v757 = vmul.f32 1.0, %v756
      %v758 = vtanh.pop %v751
      %v759 = vmul.f32 %v757, %v582
      %761 = vrot.lane.b32.xlu0 %v758, 32
      %v762 = vpop.permute.xlu0 %761
      %v764 = vmul.f32 %v757, %v762
      %766 = vrot.lane.b32.xlu0 %v764, 32
      %v767 = vpop.permute.xlu0 %766
      %v769 = vadd.f32 %v759, %v767
      %v770 = vtanh.pop %v769
      %772 = vrot.lane.b32.xlu0 %v770, 32
      %v773 = vpop.permute.xlu0 %772
      %v775 = vmul.f32 %v757, %v773
      %s776 = scalar_lea.vmem %s351, 2
      %v777 = vld [vmem:[%s776] sm:$0x1]
      %778 = vmatprep.subr.bf16.mxu0 0
      %779 = vmatpush1.bf16.msra.mxu0 %v379
      %780 = vmatprep.subr.bf16.mxu0 0
      %781 = vmatpush1.bf16.msra.mxu0 %v380
      %782 = vmatprep.subr.bf16.mxu0 0
      %783 = vmatpush1.bf16.msra.mxu0 0
      %784 = vmatprep.subr.bf16.mxu0 0
      %785 = vmatpush1.bf16.msra.mxu0 0
      %786 = vmatprep.subr.bf16.mxu0 0
      %787 = vmatpush1.bf16.msra.mxu0 0
      %788 = vmatprep.subr.bf16.mxu0 0
      %789 = vmatpush1.bf16.msra.mxu0 0
      %790 = vmatprep.subr.bf16.mxu0 0
      %791 = vmatpush1.bf16.msra.mxu0 0
      %792 = vmatprep.subr.bf16.mxu0 0
      %793 = vmatpush1.bf16.msra.mxu0 0
      %794 = vmatprep.subr.bf16.mxu0 0
      %795 = vmatpush1.bf16.msra.mxu0 0
      %796 = vmatprep.subr.bf16.mxu0 0
      %797 = vmatpush1.bf16.msra.mxu0 0
      %798 = vmatprep.subr.bf16.mxu0 0
      %799 = vmatpush1.bf16.msra.mxu0 0
      %800 = vmatprep.subr.bf16.mxu0 0
      %801 = vmatpush1.bf16.msra.mxu0 0
      %802 = vmatprep.subr.bf16.mxu0 0
      %803 = vmatpush1.bf16.msra.mxu0 0
      %804 = vmatprep.subr.bf16.mxu0 0
      %805 = vmatpush1.bf16.msra.mxu0 0
      %806 = vmatprep.subr.bf16.mxu0 0
      %807 = vmatpush1.bf16.msra.mxu0 0
      %808 = vmatprep.subr.bf16.mxu0 0
      %809 = vmatpush1.bf16.msra.mxu0 0
      %810 = vmatprep.mubr.bf16.mxu0 0
      %811 = vmatmul.mubr.bf16.gmra.mrb[0].mxu0 %v709
      %v812 = vpop.f32.mrb[0].mxu0
      %v813 = vadd.f32 0.0, %v812
      %v814 = vpop.f32.mrb[0].mxu0
      %v815 = vpop.f32.mrb[0].mxu0
      %v816 = vpop.f32.mrb[0].mxu0
      %817 = vdwg.mxu0
      %v818 = vadd.f32 %v777, %v813
      %v819 = vadd.f32 %v818, %v360
      %v820 = vxor.u32 %v819, 2147483648
      %v821 = vmul.f32 %v820, 1.442695
      %v822 = vpow.pop %v821
      %v823 = vadd.f32 %v822, 1.0
      %v824 = vrcp.pop %v823
      %v825 = vmul.f32 1.0, %v824
      %v826 = vtanh.pop %v819
      %v827 = vmul.f32 %v825, %v650
      %829 = vrot.lane.b32.xlu0 %v826, 32
      %v830 = vpop.permute.xlu0 %829
      %v832 = vmul.f32 %v825, %v830
      %834 = vrot.lane.b32.xlu0 %v832, 32
      %v835 = vpop.permute.xlu0 %834
      %v837 = vadd.f32 %v827, %v835
      %v838 = vtanh.pop %v837
      %840 = vrot.lane.b32.xlu0 %v838, 32
      %v841 = vpop.permute.xlu0 %840
      %v843 = vmul.f32 %v825, %v841
      %v844 = vpack.c.bf16 %v843, %v843
      %v845 = vpack.c.bf16 %v775, %v775
      %847 = vrot.lane.b32.xlu0 %v845, 64
      %v848 = vpop.permute.xlu0 %847
      %v850 = vsel %vm383, %v848, 0
      %852 = vmatprep.subr.bf16.mxu0 0
      %853 = vmatpush1.bf16.msra.mxu0 %v462
      %854 = vmatprep.subr.bf16.mxu0 0
      %855 = vmatpush1.bf16.msra.mxu0 %v463
      %856 = vmatprep.subr.bf16.mxu0 0
      %857 = vmatpush1.bf16.msra.mxu0 0
      %858 = vmatprep.subr.bf16.mxu0 0
      %859 = vmatpush1.bf16.msra.mxu0 0
      %860 = vmatprep.subr.bf16.mxu0 0
      %861 = vmatpush1.bf16.msra.mxu0 0
      %862 = vmatprep.subr.bf16.mxu0 0
      %863 = vmatpush1.bf16.msra.mxu0 0
      %864 = vmatprep.subr.bf16.mxu0 0
      %865 = vmatpush1.bf16.msra.mxu0 0
      %866 = vmatprep.subr.bf16.mxu0 0
      %867 = vmatpush1.bf16.msra.mxu0 0
      %868 = vmatprep.subr.bf16.mxu0 0
      %869 = vmatpush1.bf16.msra.mxu0 0
      %870 = vmatprep.subr.bf16.mxu0 0
      %871 = vmatpush1.bf16.msra.mxu0 0
      %872 = vmatprep.subr.bf16.mxu0 0
      %873 = vmatpush1.bf16.msra.mxu0 0
      %874 = vmatprep.subr.bf16.mxu0 0
      %875 = vmatpush1.bf16.msra.mxu0 0
      %876 = vmatprep.subr.bf16.mxu0 0
      %877 = vmatpush1.bf16.msra.mxu0 0
      %878 = vmatprep.subr.bf16.mxu0 0
      %879 = vmatpush1.bf16.msra.mxu0 0
      %880 = vmatprep.subr.bf16.mxu0 0
      %881 = vmatpush1.bf16.msra.mxu0 0
      %882 = vmatprep.subr.bf16.mxu0 0
      %883 = vmatpush1.bf16.msra.mxu0 0
      %884 = vmatprep.mubr.bf16.mxu0 0
      %885 = vmatmul.mubr.bf16.gmra.mrb[0].mxu0 %v850
      %v886 = vpop.f32.mrb[0].mxu0
      %v887 = vadd.f32 0.0, %v886
      %v888 = vpop.f32.mrb[0].mxu0
      %v889 = vpop.f32.mrb[0].mxu0
      %v890 = vpop.f32.mrb[0].mxu0
      %891 = vdwg.mxu0
      %893 = vrot.lane.b32.xlu0 %v844, 64
      %v894 = vpop.permute.xlu0 %893
      %v896 = vsel %vm383, %v894, 0
      %898 = vmatprep.subr.bf16.mxu0 0
      %899 = vmatpush1.bf16.msra.mxu0 %v517
      %900 = vmatprep.subr.bf16.mxu0 0
      %901 = vmatpush1.bf16.msra.mxu0 %v518
      %902 = vmatprep.subr.bf16.mxu0 0
      %903 = vmatpush1.bf16.msra.mxu0 0
      %904 = vmatprep.subr.bf16.mxu0 0
      %905 = vmatpush1.bf16.msra.mxu0 0
      %906 = vmatprep.subr.bf16.mxu0 0
      %907 = vmatpush1.bf16.msra.mxu0 0
      %908 = vmatprep.subr.bf16.mxu0 0
      %909 = vmatpush1.bf16.msra.mxu0 0
      %910 = vmatprep.subr.bf16.mxu0 0
      %911 = vmatpush1.bf16.msra.mxu0 0
      %912 = vmatprep.subr.bf16.mxu0 0
      %913 = vmatpush1.bf16.msra.mxu0 0
      %914 = vmatprep.subr.bf16.mxu0 0
      %915 = vmatpush1.bf16.msra.mxu0 0
      %916 = vmatprep.subr.bf16.mxu0 0
      %917 = vmatpush1.bf16.msra.mxu0 0
      %918 = vmatprep.subr.bf16.mxu0 0
      %919 = vmatpush1.bf16.msra.mxu0 0
      %920 = vmatprep.subr.bf16.mxu0 0
      %921 = vmatpush1.bf16.msra.mxu0 0
      %922 = vmatprep.subr.bf16.mxu0 0
      %923 = vmatpush1.bf16.msra.mxu0 0
      %924 = vmatprep.subr.bf16.mxu0 0
      %925 = vmatpush1.bf16.msra.mxu0 0
      %926 = vmatprep.subr.bf16.mxu0 0
      %927 = vmatpush1.bf16.msra.mxu0 0
      %928 = vmatprep.subr.bf16.mxu0 0
      %929 = vmatpush1.bf16.msra.mxu0 0
      %930 = vmatprep.mubr.bf16.mxu0 0
      %931 = vmatmul.mubr.bf16.gmra.mrb[0].mxu0 %v896
      %v932 = vpop.f32.mrb[0].mxu0
      %v933 = vadd.f32 %v887, %v932
      %v934 = vpop.f32.mrb[0].mxu0
      %v935 = vpop.f32.mrb[0].mxu0
      %v936 = vpop.f32.mrb[0].mxu0
      %937 = vdwg.mxu0
      %v938 = vadd.f32 %v933, %v369
      %v939 = vxor.u32 %v938, 2147483648
      %v940 = vmul.f32 %v939, 1.442695
      %v941 = vpow.pop %v940
      %v942 = vadd.f32 %v941, 1.0
      %v943 = vrcp.pop %v942
      %v944 = vmul.f32 1.0, %v943
      %v945 = vtanh.pop %v938
      %v946 = vmul.f32 %v944, %v769
      %948 = vrot.lane.b32.xlu0 %v945, 32
      %v949 = vpop.permute.xlu0 %948
      %v951 = vmul.f32 %v944, %v949
      %953 = vrot.lane.b32.xlu0 %v951, 32
      %v954 = vpop.permute.xlu0 %953
      %v956 = vadd.f32 %v946, %v954
      %v957 = vtanh.pop %v956
      %959 = vrot.lane.b32.xlu0 %v957, 32
      %v960 = vpop.permute.xlu0 %959
      %v962 = vmul.f32 %v944, %v960
      %s963 = scalar_lea.vmem %s351, 3
      %v964 = vld [vmem:[%s963] sm:$0x1]
      %965 = vmatprep.subr.bf16.mxu0 0
      %966 = vmatpush1.bf16.msra.mxu0 %v379
      %967 = vmatprep.subr.bf16.mxu0 0
      %968 = vmatpush1.bf16.msra.mxu0 %v380
      %969 = vmatprep.subr.bf16.mxu0 0
      %970 = vmatpush1.bf16.msra.mxu0 0
      %971 = vmatprep.subr.bf16.mxu0 0
      %972 = vmatpush1.bf16.msra.mxu0 0
      %973 = vmatprep.subr.bf16.mxu0 0
      %974 = vmatpush1.bf16.msra.mxu0 0
      %975 = vmatprep.subr.bf16.mxu0 0
      %976 = vmatpush1.bf16.msra.mxu0 0
      %977 = vmatprep.subr.bf16.mxu0 0
      %978 = vmatpush1.bf16.msra.mxu0 0
      %979 = vmatprep.subr.bf16.mxu0 0
      %980 = vmatpush1.bf16.msra.mxu0 0
      %981 = vmatprep.subr.bf16.mxu0 0
      %982 = vmatpush1.bf16.msra.mxu0 0
      %983 = vmatprep.subr.bf16.mxu0 0
      %984 = vmatpush1.bf16.msra.mxu0 0
      %985 = vmatprep.subr.bf16.mxu0 0
      %986 = vmatpush1.bf16.msra.mxu0 0
      %987 = vmatprep.subr.bf16.mxu0 0
      %988 = vmatpush1.bf16.msra.mxu0 0
      %989 = vmatprep.subr.bf16.mxu0 0
      %990 = vmatpush1.bf16.msra.mxu0 0
      %991 = vmatprep.subr.bf16.mxu0 0
      %992 = vmatpush1.bf16.msra.mxu0 0
      %993 = vmatprep.subr.bf16.mxu0 0
      %994 = vmatpush1.bf16.msra.mxu0 0
      %995 = vmatprep.subr.bf16.mxu0 0
      %996 = vmatpush1.bf16.msra.mxu0 0
      %997 = vmatprep.mubr.bf16.mxu0 0
      %998 = vmatmul.mubr.bf16.gmra.mrb[0].mxu0 %v896
      %v999 = vpop.f32.mrb[0].mxu0
      %v1000 = vadd.f32 0.0, %v999
      %v1001 = vpop.f32.mrb[0].mxu0
      %v1002 = vpop.f32.mrb[0].mxu0
      %v1003 = vpop.f32.mrb[0].mxu0
      %1004 = vdwg.mxu0
      %v1005 = vadd.f32 %v964, %v1000
      %v1006 = vadd.f32 %v1005, %v360
      %v1007 = vxor.u32 %v1006, 2147483648
      %v1008 = vmul.f32 %v1007, 1.442695
      %v1009 = vpow.pop %v1008
      %v1010 = vadd.f32 %v1009, 1.0
      %v1011 = vrcp.pop %v1010
      %v1012 = vmul.f32 1.0, %v1011
      %v1013 = vtanh.pop %v1006
      %v1014 = vmul.f32 %v1012, %v837
      %1016 = vrot.lane.b32.xlu0 %v1013, 32
      %v1017 = vpop.permute.xlu0 %1016
      %v1019 = vmul.f32 %v1012, %v1017
      %1021 = vrot.lane.b32.xlu0 %v1019, 32
      %v1022 = vpop.permute.xlu0 %1021
      %v1024 = vadd.f32 %v1014, %v1022
      %v1025 = vtanh.pop %v1024
      %1027 = vrot.lane.b32.xlu0 %v1025, 32
      %v1028 = vpop.permute.xlu0 %1027
      %v1030 = vmul.f32 %v1012, %v1028
      %v1031 = vpack.c.bf16 %v1030, %v1030
      %v1032 = vpack.c.bf16 %v962, %v962
      %1034 = vrot.lane.b32.xlu0 %v1032, 64
      %v1035 = vpop.permute.xlu0 %1034
      %v1037 = vsel %vm383, %v1035, 0
      %1039 = vmatprep.subr.bf16.mxu0 0
      %1040 = vmatpush1.bf16.msra.mxu0 %v462
      %1041 = vmatprep.subr.bf16.mxu0 0
      %1042 = vmatpush1.bf16.msra.mxu0 %v463
      %1043 = vmatprep.subr.bf16.mxu0 0
      %1044 = vmatpush1.bf16.msra.mxu0 0
      %1045 = vmatprep.subr.bf16.mxu0 0
      %1046 = vmatpush1.bf16.msra.mxu0 0
      %1047 = vmatprep.subr.bf16.mxu0 0
      %1048 = vmatpush1.bf16.msra.mxu0 0
      %1049 = vmatprep.subr.bf16.mxu0 0
      %1050 = vmatpush1.bf16.msra.mxu0 0
      %1051 = vmatprep.subr.bf16.mxu0 0
      %1052 = vmatpush1.bf16.msra.mxu0 0
      %1053 = vmatprep.subr.bf16.mxu0 0
      %1054 = vmatpush1.bf16.msra.mxu0 0
      %1055 = vmatprep.subr.bf16.mxu0 0
      %1056 = vmatpush1.bf16.msra.mxu0 0
      %1057 = vmatprep.subr.bf16.mxu0 0
      %1058 = vmatpush1.bf16.msra.mxu0 0
      %1059 = vmatprep.subr.bf16.mxu0 0
      %1060 = vmatpush1.bf16.msra.mxu0 0
      %1061 = vmatprep.subr.bf16.mxu0 0
      %1062 = vmatpush1.bf16.msra.mxu0 0
      %1063 = vmatprep.subr.bf16.mxu0 0
      %1064 = vmatpush1.bf16.msra.mxu0 0
      %1065 = vmatprep.subr.bf16.mxu0 0
      %1066 = vmatpush1.bf16.msra.mxu0 0
      %1067 = vmatprep.subr.bf16.mxu0 0
      %1068 = vmatpush1.bf16.msra.mxu0 0
      %1069 = vmatprep.subr.bf16.mxu0 0
      %1070 = vmatpush1.bf16.msra.mxu0 0
      %1071 = vmatprep.mubr.bf16.mxu0 0
      %1072 = vmatmul.mubr.bf16.gmra.mrb[0].mxu0 %v1037
      %v1073 = vpop.f32.mrb[0].mxu0
      %v1074 = vadd.f32 0.0, %v1073
      %v1075 = vpop.f32.mrb[0].mxu0
      %v1076 = vpop.f32.mrb[0].mxu0
      %v1077 = vpop.f32.mrb[0].mxu0
      %1078 = vdwg.mxu0
      %1080 = vrot.lane.b32.xlu0 %v1031, 64
      %v1081 = vpop.permute.xlu0 %1080
      %v1083 = vsel %vm383, %v1081, 0
      %1085 = vmatprep.subr.bf16.mxu0 0
      %1086 = vmatpush1.bf16.msra.mxu0 %v517
      %1087 = vmatprep.subr.bf16.mxu0 0
      %1088 = vmatpush1.bf16.msra.mxu0 %v518
      %1089 = vmatprep.subr.bf16.mxu0 0
      %1090 = vmatpush1.bf16.msra.mxu0 0
      %1091 = vmatprep.subr.bf16.mxu0 0
      %1092 = vmatpush1.bf16.msra.mxu0 0
      %1093 = vmatprep.subr.bf16.mxu0 0
      %1094 = vmatpush1.bf16.msra.mxu0 0
      %1095 = vmatprep.subr.bf16.mxu0 0
      %1096 = vmatpush1.bf16.msra.mxu0 0
      %1097 = vmatprep.subr.bf16.mxu0 0
      %1098 = vmatpush1.bf16.msra.mxu0 0
      %1099 = vmatprep.subr.bf16.mxu0 0
      %1100 = vmatpush1.bf16.msra.mxu0 0
      %1101 = vmatprep.subr.bf16.mxu0 0
      %1102 = vmatpush1.bf16.msra.mxu0 0
      %1103 = vmatprep.subr.bf16.mxu0 0
      %1104 = vmatpush1.bf16.msra.mxu0 0
      %1105 = vmatprep.subr.bf16.mxu0 0
      %1106 = vmatpush1.bf16.msra.mxu0 0
      %1107 = vmatprep.subr.bf16.mxu0 0
      %1108 = vmatpush1.bf16.msra.mxu0 0
      %1109 = vmatprep.subr.bf16.mxu0 0
      %1110 = vmatpush1.bf16.msra.mxu0 0
      %1111 = vmatprep.subr.bf16.mxu0 0
      %1112 = vmatpush1.bf16.msra.mxu0 0
      %1113 = vmatprep.subr.bf16.mxu0 0
      %1114 = vmatpush1.bf16.msra.mxu0 0
      %1115 = vmatprep.subr.bf16.mxu0 0
      %1116 = vmatpush1.bf16.msra.mxu0 0
      %1117 = vmatprep.mubr.bf16.mxu0 0
      %1118 = vmatmul.mubr.bf16.gmra.mrb[0].mxu0 %v1083
      %v1119 = vpop.f32.mrb[0].mxu0
      %v1120 = vadd.f32 %v1074, %v1119
      %v1121 = vpop.f32.mrb[0].mxu0
      %v1122 = vpop.f32.mrb[0].mxu0
      %v1123 = vpop.f32.mrb[0].mxu0
      %1124 = vdwg.mxu0
      %v1125 = vadd.f32 %v1120, %v369
      %v1126 = vxor.u32 %v1125, 2147483648
      %v1127 = vmul.f32 %v1126, 1.442695
      %v1128 = vpow.pop %v1127
      %v1129 = vadd.f32 %v1128, 1.0
      %v1130 = vrcp.pop %v1129
      %v1131 = vmul.f32 1.0, %v1130
      %v1132 = vtanh.pop %v1125
      %v1133 = vmul.f32 %v1131, %v956
      %1135 = vrot.lane.b32.xlu0 %v1132, 32
      %v1136 = vpop.permute.xlu0 %1135
      %v1138 = vmul.f32 %v1131, %v1136
      %1140 = vrot.lane.b32.xlu0 %v1138, 32
      %v1141 = vpop.permute.xlu0 %1140
      %v1143 = vadd.f32 %v1133, %v1141
      %v1144 = vtanh.pop %v1143
      %1146 = vrot.lane.b32.xlu0 %v1144, 32
      %v1147 = vpop.permute.xlu0 %1146
      %v1149 = vmul.f32 %v1131, %v1147
      %v1150 = vld [vmem:[%s6] sm:$0xff]
      %v1151 = vld [vmem:[%s6 + $0x8] sm:$0xff]
      %v1152 = vld [vmem:[%s6 + $0x10] sm:$0xff]
      %v1153 = vld [vmem:[%s6 + $0x18] sm:$0xff]
      %v1154 = vld [vmem:[%s7] sm:$0x1]
      %1156 = vrot.lane.b32.xlu0 %v1149, 64
      %v1157 = vpop.permute.xlu0 %1156
      %v1158 = vsel %vm383, %v1157, 0
      %1160 = vmatprep.subr.mxu0 0.0
      %1161 = vmatpush1.msra.mxu0 %v1150
      %1162 = vmatprep.subr.mxu0 0.0
      %1163 = vmatpush1.msra.mxu0 %v1151
      %1164 = vmatprep.subr.mxu0 0.0
      %1165 = vmatpush1.msra.mxu0 %v1152
      %1166 = vmatprep.subr.mxu0 0.0
      %1167 = vmatpush1.msra.mxu0 %v1153
      %1168 = vmatprep.subr.mxu0 0.0
      %1169 = vmatpush1.msra.mxu0 0.0
      %1170 = vmatprep.subr.mxu0 0.0
      %1171 = vmatpush1.msra.mxu0 0.0
      %1172 = vmatprep.subr.mxu0 0.0
      %1173 = vmatpush1.msra.mxu0 0.0
      %1174 = vmatprep.subr.mxu0 0.0
      %1175 = vmatpush1.msra.mxu0 0.0
      %1176 = vmatprep.subr.mxu0 0.0
      %1177 = vmatpush1.msra.mxu0 0.0
      %1178 = vmatprep.subr.mxu0 0.0
      %1179 = vmatpush1.msra.mxu0 0.0
      %1180 = vmatprep.subr.mxu0 0.0
      %1181 = vmatpush1.msra.mxu0 0.0
      %1182 = vmatprep.subr.mxu0 0.0
      %1183 = vmatpush1.msra.mxu0 0.0
      %1184 = vmatprep.subr.mxu0 0.0
      %1185 = vmatpush1.msra.mxu0 0.0
      %1186 = vmatprep.subr.mxu0 0.0
      %1187 = vmatpush1.msra.mxu0 0.0
      %1188 = vmatprep.subr.mxu0 0.0
      %1189 = vmatpush1.msra.mxu0 0.0
      %1190 = vmatprep.subr.mxu0 0.0
      %1191 = vmatpush1.msra.mxu0 0.0
      %1192 = vmatprep.subr.mxu0 0.0
      %1193 = vmatpush1.msra.mxu0 0.0
      %1194 = vmatprep.subr.mxu0 0.0
      %1195 = vmatpush1.msra.mxu0 0.0
      %1196 = vmatprep.subr.mxu0 0.0
      %1197 = vmatpush1.msra.mxu0 0.0
      %1198 = vmatprep.subr.mxu0 0.0
      %1199 = vmatpush1.msra.mxu0 0.0
      %1200 = vmatprep.subr.mxu0 0.0
      %1201 = vmatpush1.msra.mxu0 0.0
      %1202 = vmatprep.subr.mxu0 0.0
      %1203 = vmatpush1.msra.mxu0 0.0
      %1204 = vmatprep.subr.mxu0 0.0
      %1205 = vmatpush1.msra.mxu0 0.0
      %1206 = vmatprep.subr.mxu0 0.0
      %1207 = vmatpush1.msra.mxu0 0.0
      %1208 = vmatprep.subr.mxu0 0.0
      %1209 = vmatpush1.msra.mxu0 0.0
      %1210 = vmatprep.subr.mxu0 0.0
      %1211 = vmatpush1.msra.mxu0 0.0
      %1212 = vmatprep.subr.mxu0 0.0
      %1213 = vmatpush1.msra.mxu0 0.0
      %1214 = vmatprep.subr.mxu0 0.0
      %1215 = vmatpush1.msra.mxu0 0.0
      %1216 = vmatprep.subr.mxu0 0.0
      %1217 = vmatpush1.msra.mxu0 0.0
      %1218 = vmatprep.subr.mxu0 0.0
      %1219 = vmatpush1.msra.mxu0 0.0
      %1220 = vmatprep.subr.mxu0 0.0
      %1221 = vmatpush1.msra.mxu0 0.0
      %1222 = vmatprep.subr.mxu0 0.0
      %1223 = vmatpush1.msra.mxu0 0.0
      %1224 = vmatprep.mubr.f32.mxu0 0.0
      %1225 = vmatmul.mubr.f32.gmra.mrb[0].mxu0 %v1158
      %v1226 = vpop.f32.mrb[0].mxu0
      %v1227 = vadd.f32 %v1154, %v1226
      %v1228 = vpop.f32.mrb[0].mxu0
      %1229 = vdwg.mxu0
      %v1230 = vmax.f32 %v1227, 0.0
      %v1231 = vld [vmem:[%s8] sm:$0xff]
      %v1232 = vld [vmem:[%s8 + $0x8] sm:$0xff]
      %v1233 = vld [vmem:[#allocation2] sm:$0x1]
      %vm1234 = vcmask 130048
      %v1236 = vsel %vm1234, %v1230, 0
      %1238 = vmatprep.subr.mxu0 0.0
      %1239 = vmatpush1.msra.mxu0 %v1231
      %1240 = vmatprep.subr.mxu0 0.0
      %1241 = vmatpush1.msra.mxu0 %v1232
      %1242 = vmatprep.subr.mxu0 0.0
      %1243 = vmatpush1.msra.mxu0 0.0
      %1244 = vmatprep.subr.mxu0 0.0
      %1245 = vmatpush1.msra.mxu0 0.0
      %1246 = vmatprep.subr.mxu0 0.0
      %1247 = vmatpush1.msra.mxu0 0.0
      %1248 = vmatprep.subr.mxu0 0.0
      %1249 = vmatpush1.msra.mxu0 0.0
      %1250 = vmatprep.subr.mxu0 0.0
      %1251 = vmatpush1.msra.mxu0 0.0
      %1252 = vmatprep.subr.mxu0 0.0
      %1253 = vmatpush1.msra.mxu0 0.0
      %1254 = vmatprep.subr.mxu0 0.0
      %1255 = vmatpush1.msra.mxu0 0.0
      %1256 = vmatprep.subr.mxu0 0.0
      %1257 = vmatpush1.msra.mxu0 0.0
      %1258 = vmatprep.subr.mxu0 0.0
      %1259 = vmatpush1.msra.mxu0 0.0
      %1260 = vmatprep.subr.mxu0 0.0
      %1261 = vmatpush1.msra.mxu0 0.0
      %1262 = vmatprep.subr.mxu0 0.0
      %1263 = vmatpush1.msra.mxu0 0.0
      %1264 = vmatprep.subr.mxu0 0.0
      %1265 = vmatpush1.msra.mxu0 0.0
      %1266 = vmatprep.subr.mxu0 0.0
      %1267 = vmatpush1.msra.mxu0 0.0
      %1268 = vmatprep.subr.mxu0 0.0
      %1269 = vmatpush1.msra.mxu0 0.0
      %1270 = vmatprep.subr.mxu0 0.0
      %1271 = vmatpush1.msra.mxu0 0.0
      %1272 = vmatprep.subr.mxu0 0.0
      %1273 = vmatpush1.msra.mxu0 0.0
      %1274 = vmatprep.subr.mxu0 0.0
      %1275 = vmatpush1.msra.mxu0 0.0
      %1276 = vmatprep.subr.mxu0 0.0
      %1277 = vmatpush1.msra.mxu0 0.0
      %1278 = vmatprep.subr.mxu0 0.0
      %1279 = vmatpush1.msra.mxu0 0.0
      %1280 = vmatprep.subr.mxu0 0.0
      %1281 = vmatpush1.msra.mxu0 0.0
      %1282 = vmatprep.subr.mxu0 0.0
      %1283 = vmatpush1.msra.mxu0 0.0
      %1284 = vmatprep.subr.mxu0 0.0
      %1285 = vmatpush1.msra.mxu0 0.0
      %1286 = vmatprep.subr.mxu0 0.0
      %1287 = vmatpush1.msra.mxu0 0.0
      %1288 = vmatprep.subr.mxu0 0.0
      %1289 = vmatpush1.msra.mxu0 0.0
      %1290 = vmatprep.subr.mxu0 0.0
      %1291 = vmatpush1.msra.mxu0 0.0
      %1292 = vmatprep.subr.mxu0 0.0
      %1293 = vmatpush1.msra.mxu0 0.0
      %1294 = vmatprep.subr.mxu0 0.0
      %1295 = vmatpush1.msra.mxu0 0.0
      %1296 = vmatprep.subr.mxu0 0.0
      %1297 = vmatpush1.msra.mxu0 0.0
      %1298 = vmatprep.subr.mxu0 0.0
      %1299 = vmatpush1.msra.mxu0 0.0
      %1300 = vmatprep.subr.mxu0 0.0
      %1301 = vmatpush1.msra.mxu0 0.0
      %1302 = vmatprep.mubr.f32.mxu0 0.0
      %1303 = vmatmul.mubr.f32.gmra.mrb[0].mxu0 %v1236
      %v1304 = vpop.f32.mrb[0].mxu0
      %v1305 = vadd.f32 %v1233, %v1304
      %v1306 = vpop.f32.mrb[0].mxu0
      %1307 = vdwg.mxu0
      %vm1308 = vcmask 0
      %1309 = vst.msk [vmem:[%s354] sm:$0x1] %vm1308, %v1305
      %p1310 = scmp.lt.s32.totalorder %s23, 1
      %s1311 = scalar_select %p1310, %s23, 1
      %s1312 = scalar_lea.vmem %s10, %s1311
      // Predicated region
      $region61: #{eff_b3_lstm_forward.3} parent=59 // pred_check
        %p1313 = pneg %p256
      $region62: #{eff_b3_lstm_forward.3} parent=59 // pred_check_branch
        %1315 = sbr.rel (%p1313) target = $region64
      $region63: #{eff_b3_lstm_forward.3} parent=59 // pred_region
        _
      $region64: #{eff_b3_lstm_forward.3} parent=59 // pred_fallthru
        _
    $region60: #{eff_b3_lstm_forward.3} parent=5 // pred_fallthru
      _
    %p1316 = scmp.le.s32.totalorder 2, %s18
    // Predicated region
    $region65: #{eff_b3_lstm_forward.3} parent=5 // pred_check
      %p1317 = pneg %p1316
    $region66: #{eff_b3_lstm_forward.3} parent=5 // pred_check_branch
      %1319 = sbr.rel (%p1317) target = $region68
    $region67: #{eff_b3_lstm_forward.3} parent=5 // pred_region
      %s1320 = ssub.s32 %s18, 2
      // Predicated region
      $region69: #{eff_b3_lstm_forward.3} parent=67 // pred_check
        %p1321 = pneg %p262
      $region70: #{eff_b3_lstm_forward.3} parent=67 // pred_check_branch
        %1323 = sbr.rel (%p1321) target = $region72
      $region71: #{eff_b3_lstm_forward.3} parent=67 // pred_region
        %p1324 = scmp.lt.s32.totalorder %s24, 1
        %s1325 = scalar_select %p1324, %s24, 1
        %s1326 = scalar_lea.vmem %s10, %s1325
      $region72: #{eff_b3_lstm_forward.3} parent=67 // pred_fallthru
        _
    $region68: #{eff_b3_lstm_forward.3} parent=5 // pred_fallthru
      _
  $region6: #{eff_b3_lstm_forward.3} parent=0 // loop_footer
    %s22 = sadd.s32 1, %s18
  $region7: #{eff_b3_lstm_forward.3} parent=0 // loop_footer_branch
    %17 = sbr.rel target = $region3
  $region8: #{eff_b3_lstm_forward.3} parent=0 // loop_exit
    _

// kernel: eff_b3_lstm_forward.2
$region0: #{eff_b3_lstm_forward.2}
  #allocation0 [shape = 'u32[]', space=smem, size = 0x4, offset = 0x4, fixed_abs, tag = 'smem constant byte address 0x4 - core index']
  #allocation1 [shape = 'u32[144,128]{1,0:T(1,128)}', space=vmem, size = 0x12000, scoped, tag = 'internal scratch']
  #allocation2 [shape = 'f32[1536,1]{1,0:T(8,128)}', space=vmem, size = 0xc0000, scoped, tag = 'scratch operand']
  %s0 = inlined_call_operand.vmem [shape: bf16[8,27,64], index: 0, kind: input, shape index: {}]
  %s1 = inlined_call_operand.vmem [shape: bf16[40,27], index: 1, kind: input, shape index: {}]
  %s2 = inlined_call_operand.vmem [shape: f32[40,1], index: 2, kind: input, shape index: {}]
  %s3 = inlined_call_operand.vmem [shape: bf16[1536,40], index: 3, kind: input, shape index: {}]
  %s4 = inlined_call_operand.vmem [shape: f32[1536,1], index: 4, kind: input, shape index: {}]
  %s5 = inlined_call_operand.vmem [shape: bf16[128,1536], index: 5, kind: input, shape index: {}]
  %s6 = inlined_call_operand.vmem [shape: f32[8,128,1], index: 6, kind: output, shape index: {}]
  %s7 = sld [smem:[#allocation0]]
  $region65: #{eff_b3_lstm_forward.2} parent=0
    _
  %s9 = ssub.s32 1, %s7
  %s10 = scalar_select 0, %s9, %s7
  loop: start=0, step=1, limit=10
  $region2: #{eff_b3_lstm_forward.2} parent=0 // loop_pre_header
    _
  $region3: #{eff_b3_lstm_forward.2} parent=0 // loop_header
    %s12 = sphi 0, %s16
    %p13 = scmp.ge.s32.totalorder %s12, 10
    %s19 = sphi 0, %s31
    %s20 = sphi 0, %s27
    %s21 = sphi 0, %s19
    %s22 = sphi 0, %s20
    %s23 = sphi 0, %s21
    %s24 = sphi 0, %s22
    %s36 = sphi 0, %s38
    %s39 = sphi 0, %s36
    %s40 = sphi 0, %s39
    %s56 = sphi 0, %s40
    %s60 = sphi 0, %s60
    %s62 = sphi 0, %s60
    %s63 = sphi 0, %s62
    %s77 = sphi 0, %s63
    %s81 = sphi 0, %s81
    %s83 = sphi 0, %s81
    %s84 = sphi 0, %s83
    %s98 = sphi 0, %s84
    %s102 = sphi 0, %s102
    %s104 = sphi 0, %s102
    %s105 = sphi 0, %s104
    %s119 = sphi 0, %s105
    %s123 = sphi 0, %s123
    %s125 = sphi 0, %s123
    %s126 = sphi 0, %s125
    %s140 = sphi 0, %s126
    %s144 = sphi 0, %s144
    %s146 = sphi 0, %s144
    %s147 = sphi 0, %s146
    %s161 = sphi 0, %s147
    %s167 = sphi 0, %s169
    %s170 = sphi 0, %s167
    %s171 = sphi 0, %s170
    %s187 = sphi 0, %s171
  $region4: #{eff_b3_lstm_forward.2} parent=0 // loop_header_branch
    %15 = sbr.rel (%p13) target = $region8
  $region5: #{eff_b3_lstm_forward.2} parent=0 // loop_body
    %s17 = ssub.s32 %s12, 1
    %s18 = ssub.s32 %s12, 2
    %s25 = sadd.s32 1, %s20
    %p26 = scmp.ge.s32.totalorder %s25, 1
    %s27 = scalar_select %p26, 0, %s25
    %s28 = sadd.s32 1, %s19
    %s29 = scalar_select %p26, %s28, %s19
    %p30 = scmp.ge.s32.totalorder %s29, 8
    %s31 = scalar_select %p30, 0, %s29
    %s32 = ssub.s32 %s19, %s31
    %s33 = ssub.s32 %s20, %s27
    %s34 = sor.u32 %s32, %s33
    %p35 = scmp.eq.s32.totalorder %s34, 0
    %s37 = sadd.s32 %s36, 1
    %s38 = scalar_select %p35, %s36, %s37
    %p41 = pneg %p35
    %p42 = scmp.eq.s32.totalorder %s12, 7
    %p43 = por %p41, %p42
    %p44 = scmp.ne.s32.totalorder %s36, %s39
    %p45 = scmp.eq.s32.totalorder %s12, 0
    %p46 = por %p44, %p45
    %p47 = scmp.ne.s32.totalorder %s36, %s39
    %p48 = scmp.eq.s32.totalorder %s17, 7
    %p49 = por %p47, %p48
    %p50 = scmp.ne.s32.totalorder %s39, %s40
    %p51 = scmp.eq.s32.totalorder %s17, 0
    %p52 = por %p50, %p51
    %p53 = scmp.ne.s32.totalorder %s39, %s40
    %p54 = scmp.eq.s32.totalorder %s18, 7
    %p55 = por %p53, %p54
    %p57 = scmp.ne.s32.totalorder %s40, %s56
    %p58 = scmp.eq.s32.totalorder %s18, 0
    %p59 = por %p57, %p58
    %s61 = sadd.s32 %s60, 1
    %p64 = scmp.eq.s32.totalorder %s12, 7
    %p65 = scmp.ne.s32.totalorder %s60, %s62
    %p66 = scmp.eq.s32.totalorder %s12, 0
    %p67 = por %p65, %p66
    %p68 = scmp.ne.s32.totalorder %s60, %s62
    %p69 = scmp.eq.s32.totalorder %s17, 7
    %p70 = por %p68, %p69
    %p71 = scmp.ne.s32.totalorder %s62, %s63
    %p72 = scmp.eq.s32.totalorder %s17, 0
    %p73 = por %p71, %p72
    %p74 = scmp.ne.s32.totalorder %s62, %s63
    %p75 = scmp.eq.s32.totalorder %s18, 7
    %p76 = por %p74, %p75
    %p78 = scmp.ne.s32.totalorder %s63, %s77
    %p79 = scmp.eq.s32.totalorder %s18, 0
    %p80 = por %p78, %p79
    %s82 = sadd.s32 %s81, 1
    %p85 = scmp.eq.s32.totalorder %s12, 7
    %p86 = scmp.ne.s32.totalorder %s81, %s83
    %p87 = scmp.eq.s32.totalorder %s12, 0
    %p88 = por %p86, %p87
    %p89 = scmp.ne.s32.totalorder %s81, %s83
    %p90 = scmp.eq.s32.totalorder %s17, 7
    %p91 = por %p89, %p90
    %p92 = scmp.ne.s32.totalorder %s83, %s84
    %p93 = scmp.eq.s32.totalorder %s17, 0
    %p94 = por %p92, %p93
    %p95 = scmp.ne.s32.totalorder %s83, %s84
    %p96 = scmp.eq.s32.totalorder %s18, 7
    %p97 = por %p95, %p96
    %p99 = scmp.ne.s32.totalorder %s84, %s98
    %p100 = scmp.eq.s32.totalorder %s18, 0
    %p101 = por %p99, %p100
    %s103 = sadd.s32 %s102, 1
    %p106 = scmp.eq.s32.totalorder %s12, 7
    %p107 = scmp.ne.s32.totalorder %s102, %s104
    %p108 = scmp.eq.s32.totalorder %s12, 0
    %p109 = por %p107, %p108
    %p110 = scmp.ne.s32.totalorder %s102, %s104
    %p111 = scmp.eq.s32.totalorder %s17, 7
    %p112 = por %p110, %p111
    %p113 = scmp.ne.s32.totalorder %s104, %s105
    %p114 = scmp.eq.s32.totalorder %s17, 0
    %p115 = por %p113, %p114
    %p116 = scmp.ne.s32.totalorder %s104, %s105
    %p117 = scmp.eq.s32.totalorder %s18, 7
    %p118 = por %p116, %p117
    %p120 = scmp.ne.s32.totalorder %s105, %s119
    %p121 = scmp.eq.s32.totalorder %s18, 0
    %p122 = por %p120, %p121
    %s124 = sadd.s32 %s123, 1
    %p127 = scmp.eq.s32.totalorder %s12, 7
    %p128 = scmp.ne.s32.totalorder %s123, %s125
    %p129 = scmp.eq.s32.totalorder %s12, 0
    %p130 = por %p128, %p129
    %p131 = scmp.ne.s32.totalorder %s123, %s125
    %p132 = scmp.eq.s32.totalorder %s17, 7
    %p133 = por %p131, %p132
    %p134 = scmp.ne.s32.totalorder %s125, %s126
    %p135 = scmp.eq.s32.totalorder %s17, 0
    %p136 = por %p134, %p135
    %p137 = scmp.ne.s32.totalorder %s125, %s126
    %p138 = scmp.eq.s32.totalorder %s18, 7
    %p139 = por %p137, %p138
    %p141 = scmp.ne.s32.totalorder %s126, %s140
    %p142 = scmp.eq.s32.totalorder %s18, 0
    %p143 = por %p141, %p142
    %s145 = sadd.s32 %s144, 1
    %p148 = scmp.eq.s32.totalorder %s12, 7
    %p149 = scmp.ne.s32.totalorder %s144, %s146
    %p150 = scmp.eq.s32.totalorder %s12, 0
    %p151 = por %p149, %p150
    %p152 = scmp.ne.s32.totalorder %s144, %s146
    %p153 = scmp.eq.s32.totalorder %s17, 7
    %p154 = por %p152, %p153
    %p155 = scmp.ne.s32.totalorder %s146, %s147
    %p156 = scmp.eq.s32.totalorder %s17, 0
    %p157 = por %p155, %p156
    %p158 = scmp.ne.s32.totalorder %s146, %s147
    %p159 = scmp.eq.s32.totalorder %s18, 7
    %p160 = por %p158, %p159
    %p162 = scmp.ne.s32.totalorder %s147, %s161
    %p163 = scmp.eq.s32.totalorder %s18, 0
    %p164 = por %p162, %p163
    %s165 = ssub.s32 %s19, %s31
    %p166 = scmp.eq.s32.totalorder %s165, 0
    %s168 = sadd.s32 %s167, 1
    %s169 = scalar_select %p166, %s167, %s168
    %p172 = pneg %p166
    %p173 = scmp.eq.s32.totalorder %s12, 7
    %p174 = por %p172, %p173
    %p175 = scmp.ne.s32.totalorder %s167, %s170
    %p176 = scmp.eq.s32.totalorder %s12, 0
    %p177 = por %p175, %p176
    %p178 = scmp.ne.s32.totalorder %s167, %s170
    %p179 = scmp.eq.s32.totalorder %s17, 7
    %p180 = por %p178, %p179
    %p181 = scmp.ne.s32.totalorder %s170, %s171
    %p182 = scmp.eq.s32.totalorder %s17, 0
    %p183 = por %p181, %p182
    %p184 = scmp.ne.s32.totalorder %s170, %s171
    %p185 = scmp.eq.s32.totalorder %s18, 7
    %p186 = por %p184, %p185
    %p188 = scmp.ne.s32.totalorder %s171, %s187
    %p189 = scmp.eq.s32.totalorder %s18, 0
    %p190 = por %p188, %p189
    %p191 = scmp.le.s32.totalorder 1, %s12
    %p192 = scmp.lt.s32.totalorder %s12, 9
    %p193 = pnand %p191, %p192
    %p194 = pneg %p193
    // Predicated region
    $region9: #{eff_b3_lstm_forward.2} parent=5 // pred_check
      _
    $region10: #{eff_b3_lstm_forward.2} parent=5 // pred_check_branch
      %196 = sbr.rel (%p193) target = $region12
    $region11: #{eff_b3_lstm_forward.2} parent=5 // pred_region
      %s197 = ssub.s32 %s12, 1
      // Predicated region
      $region13: #{eff_b3_lstm_forward.2} parent=11 // pred_check
        %p198 = pneg %p73
      $region14: #{eff_b3_lstm_forward.2} parent=11 // pred_check_branch
        %200 = sbr.rel (%p198) target = $region16
      $region15: #{eff_b3_lstm_forward.2} parent=11 // pred_region
        _
      $region16: #{eff_b3_lstm_forward.2} parent=11 // pred_fallthru
        _
      // Predicated region
      $region17: #{eff_b3_lstm_forward.2} parent=11 // pred_check
        %p201 = pneg %p94
      $region18: #{eff_b3_lstm_forward.2} parent=11 // pred_check_branch
        %203 = sbr.rel (%p201) target = $region20
      $region19: #{eff_b3_lstm_forward.2} parent=11 // pred_region
        _
      $region20: #{eff_b3_lstm_forward.2} parent=11 // pred_fallthru
        _
      // Predicated region
      $region21: #{eff_b3_lstm_forward.2} parent=11 // pred_check
        %p204 = pneg %p115
      $region22: #{eff_b3_lstm_forward.2} parent=11 // pred_check_branch
        %206 = sbr.rel (%p204) target = $region24
      $region23: #{eff_b3_lstm_forward.2} parent=11 // pred_region
        _
      $region24: #{eff_b3_lstm_forward.2} parent=11 // pred_fallthru
        _
      // Predicated region
      $region25: #{eff_b3_lstm_forward.2} parent=11 // pred_check
        %p207 = pneg %p136
      $region26: #{eff_b3_lstm_forward.2} parent=11 // pred_check_branch
        %209 = sbr.rel (%p207) target = $region28
      $region27: #{eff_b3_lstm_forward.2} parent=11 // pred_region
        _
      $region28: #{eff_b3_lstm_forward.2} parent=11 // pred_fallthru
        _
      // Predicated region
      $region29: #{eff_b3_lstm_forward.2} parent=11 // pred_check
        %p210 = pneg %p157
      $region30: #{eff_b3_lstm_forward.2} parent=11 // pred_check_branch
        %212 = sbr.rel (%p210) target = $region32
      $region31: #{eff_b3_lstm_forward.2} parent=11 // pred_region
        _
      $region32: #{eff_b3_lstm_forward.2} parent=11 // pred_fallthru
        _
    $region12: #{eff_b3_lstm_forward.2} parent=5 // pred_fallthru
      _
    %p213 = scmp.lt.s32.totalorder %s12, 8
    // Predicated region
    $region33: #{eff_b3_lstm_forward.2} parent=5 // pred_check
      %p214 = pneg %p213
    $region34: #{eff_b3_lstm_forward.2} parent=5 // pred_check_branch
      %216 = sbr.rel (%p214) target = $region36
    $region35: #{eff_b3_lstm_forward.2} parent=5 // pred_region
      // Predicated region
      $region37: #{eff_b3_lstm_forward.2} parent=35 // pred_check
        %p217 = pneg %p46
      $region38: #{eff_b3_lstm_forward.2} parent=35 // pred_check_branch
        %219 = sbr.rel (%p217) target = $region40
      $region39: #{eff_b3_lstm_forward.2} parent=35 // pred_region
        %p220 = scmp.lt.s32.totalorder %s19, 7
        %s221 = scalar_select %p220, %s19, 7
        %p222 = scmp.lt.s32.totalorder %s20, 0
        %s223 = scalar_select %p222, %s20, 0
        %s224 = smul.addr %s221, 4
        %s225 = sadd.s32 %s223, %s224
        %s226 = smul.addr %s225, 4
        %s227 = scalar_lea.vmem %s0, %s226
      $region40: #{eff_b3_lstm_forward.2} parent=35 // pred_fallthru
        _
    $region36: #{eff_b3_lstm_forward.2} parent=5 // pred_fallthru
      _
    %p228 = scmp.le.s32.totalorder 1, %s12
    %p229 = scmp.lt.s32.totalorder %s12, 9
    %p230 = pnand %p228, %p229
    %p231 = pneg %p230
    // Predicated region
    $region41: #{eff_b3_lstm_forward.2} parent=5 // pred_check
      _
    $region42: #{eff_b3_lstm_forward.2} parent=5 // pred_check_branch
      %233 = sbr.rel (%p230) target = $region44
    $region43: #{eff_b3_lstm_forward.2} parent=5 // pred_region
      %s234 = ssub.s32 %s12, 1
      %p235 = scmp.lt.s32.totalorder %s21, 7
      %s236 = scalar_select %p235, %s21, 7
      %p237 = scmp.lt.s32.totalorder %s22, 0
      %s238 = scalar_select %p237, %s22, 0
      %s239 = smul.addr %s236, 4
      %s240 = sadd.s32 %s238, %s239
      %s241 = smul.addr %s240, 4
      %s242 = scalar_lea.vmem %s0, %s241
      %p243 = pneg %p52
      %p244 = pneg %p49
      %p245 = pneg %p73
      %p246 = pneg %p70
      %p247 = pneg %p94
      %p248 = pneg %p91
      %p249 = pneg %p115
      %p250 = pneg %p112
      %p251 = pneg %p136
      %p252 = pneg %p133
      %p253 = pneg %p157
      %p254 = pneg %p154
      %p255 = pneg %p183
      %p256 = pneg %p180
      %p257 = scmp.lt.s32.totalorder %s21, 7
      %s258 = scalar_select %p257, %s21, 7
      %s259 = smul.addr %s258, 16
      %s260 = smul.addr %s259, 8
      %s261 = scalar_lea.vmem %s6, %s260
      %p262 = scmp.lt.s32.totalorder %s21, 7
      %s263 = scalar_select %p262, %s21, 7
      %p264 = scmp.lt.s32.totalorder %s22, 0
      %s265 = scalar_select %p264, %s22, 0
      %s266 = smul.addr %s263, 4
      %s267 = sadd.s32 %s265, %s266
      %s268 = smul.addr %s267, 4
      %s269 = scalar_lea.vmem %s0, %s268
      %p270 = scmp.lt.s32.totalorder %s21, 7
      %s271 = scalar_select %p270, %s21, 7
      %s272 = smul.addr %s271, 16
      %s273 = smul.addr %s272, 8
      %s274 = scalar_lea.vmem %s6, %s273
      %p276 = scmp.eq.s32.totalorder %s22, 0
      // Predicated region
      $region45: #{eff_b3_lstm_forward.2} parent=43 // pred_check
        %p277 = pneg %p276
      $region46: #{eff_b3_lstm_forward.2} parent=43 // pred_check_branch
        %279 = sbr.rel (%p277) target = $region48
      $region47: #{eff_b3_lstm_forward.2} parent=43 // pred_region
        %vm280 = vcmask 7168
        %281 = vst.msk [vmem:[#allocation2] sm:$0xff] %vm280, 0.0
        %282 = vst.msk [vmem:[#allocation2 + $0x8] sm:$0xff] %vm280, 0.0
        %283 = vst.msk [vmem:[#allocation2 + $0x10] sm:$0xff] %vm280, 0.0
        %284 = vst.msk [vmem:[#allocation2 + $0x18] sm:$0xff] %vm280, 0.0
        %285 = vst.msk [vmem:[#allocation2 + $0x20] sm:$0xff] %vm280, 0.0
        %286 = vst.msk [vmem:[#allocation2 + $0x28] sm:$0xff] %vm280, 0.0
        %287 = vst.msk [vmem:[#allocation2 + $0x30] sm:$0xff] %vm280, 0.0
        %288 = vst.msk [vmem:[#allocation2 + $0x38] sm:$0xff] %vm280, 0.0
        %289 = vst.msk [vmem:[#allocation2 + $0x40] sm:$0xff] %vm280, 0.0
        %290 = vst.msk [vmem:[#allocation2 + $0x48] sm:$0xff] %vm280, 0.0
        %291 = vst.msk [vmem:[#allocation2 + $0x50] sm:$0xff] %vm280, 0.0
        %292 = vst.msk [vmem:[#allocation2 + $0x58] sm:$0xff] %vm280, 0.0
        %293 = vst.msk [vmem:[#allocation2 + $0x60] sm:$0xff] %vm280, 0.0
        %294 = vst.msk [vmem:[#allocation2 + $0x68] sm:$0xff] %vm280, 0.0
        %295 = vst.msk [vmem:[#allocation2 + $0x70] sm:$0xff] %vm280, 0.0
        %296 = vst.msk [vmem:[#allocation2 + $0x78] sm:$0xff] %vm280, 0.0
        %297 = vst.msk [vmem:[#allocation2 + $0x80] sm:$0xff] %vm280, 0.0
        %298 = vst.msk [vmem:[#allocation2 + $0x88] sm:$0xff] %vm280, 0.0
        %299 = vst.msk [vmem:[#allocation2 + $0x90] sm:$0xff] %vm280, 0.0
        %300 = vst.msk [vmem:[#allocation2 + $0x98] sm:$0xff] %vm280, 0.0
        %301 = vst.msk [vmem:[#allocation2 + $0xa0] sm:$0xff] %vm280, 0.0
        %302 = vst.msk [vmem:[#allocation2 + $0xa8] sm:$0xff] %vm280, 0.0
        %303 = vst.msk [vmem:[#allocation2 + $0xb0] sm:$0xff] %vm280, 0.0
        %304 = vst.msk [vmem:[#allocation2 + $0xb8] sm:$0xff] %vm280, 0.0
        %305 = vst.msk [vmem:[#allocation2 + $0xc0] sm:$0xff] %vm280, 0.0
        %306 = vst.msk [vmem:[#allocation2 + $0xc8] sm:$0xff] %vm280, 0.0
        %307 = vst.msk [vmem:[#allocation2 + $0xd0] sm:$0xff] %vm280, 0.0
        %308 = vst.msk [vmem:[#allocation2 + $0xd8] sm:$0xff] %vm280, 0.0
        %309 = vst.msk [vmem:[#allocation2 + $0xe0] sm:$0xff] %vm280, 0.0
        %310 = vst.msk [vmem:[#allocation2 + $0xe8] sm:$0xff] %vm280, 0.0
        %311 = vst.msk [vmem:[#allocation2 + $0xf0] sm:$0xff] %vm280, 0.0
        %312 = vst.msk [vmem:[#allocation2 + $0xf8] sm:$0xff] %vm280, 0.0
        %313 = vst.msk [vmem:[#allocation2 + $0x100] sm:$0xff] %vm280, 0.0
        %314 = vst.msk [vmem:[#allocation2 + $0x108] sm:$0xff] %vm280, 0.0
        %315 = vst.msk [vmem:[#allocation2 + $0x110] sm:$0xff] %vm280, 0.0
        %316 = vst.msk [vmem:[#allocation2 + $0x118] sm:$0xff] %vm280, 0.0
        %317 = vst.msk [vmem:[#allocation2 + $0x120] sm:$0xff] %vm280, 0.0
        %318 = vst.msk [vmem:[#allocation2 + $0x128] sm:$0xff] %vm280, 0.0
        %319 = vst.msk [vmem:[#allocation2 + $0x130] sm:$0xff] %vm280, 0.0
        %320 = vst.msk [vmem:[#allocation2 + $0x138] sm:$0xff] %vm280, 0.0
        %321 = vst.msk [vmem:[#allocation2 + $0x140] sm:$0xff] %vm280, 0.0
        %322 = vst.msk [vmem:[#allocation2 + $0x148] sm:$0xff] %vm280, 0.0
        %323 = vst.msk [vmem:[#allocation2 + $0x150] sm:$0xff] %vm280, 0.0
        %324 = vst.msk [vmem:[#allocation2 + $0x158] sm:$0xff] %vm280, 0.0
        %325 = vst.msk [vmem:[#allocation2 + $0x160] sm:$0xff] %vm280, 0.0
        %326 = vst.msk [vmem:[#allocation2 + $0x168] sm:$0xff] %vm280, 0.0
        %327 = vst.msk [vmem:[#allocation2 + $0x170] sm:$0xff] %vm280, 0.0
        %328 = vst.msk [vmem:[#allocation2 + $0x178] sm:$0xff] %vm280, 0.0
        %329 = vst.msk [vmem:[#allocation2 + $0x180] sm:$0xff] %vm280, 0.0
        %330 = vst.msk [vmem:[#allocation2 + $0x188] sm:$0xff] %vm280, 0.0
        %331 = vst.msk [vmem:[#allocation2 + $0x190] sm:$0xff] %vm280, 0.0
        %332 = vst.msk [vmem:[#allocation2 + $0x198] sm:$0xff] %vm280, 0.0
        %333 = vst.msk [vmem:[#allocation2 + $0x1a0] sm:$0xff] %vm280, 0.0
        %334 = vst.msk [vmem:[#allocation2 + $0x1a8] sm:$0xff] %vm280, 0.0
        %335 = vst.msk [vmem:[#allocation2 + $0x1b0] sm:$0xff] %vm280, 0.0
        %336 = vst.msk [vmem:[#allocation2 + $0x1b8] sm:$0xff] %vm280, 0.0
        %337 = vst.msk [vmem:[#allocation2 + $0x1c0] sm:$0xff] %vm280, 0.0
        %338 = vst.msk [vmem:[#allocation2 + $0x1c8] sm:$0xff] %vm280, 0.0
        %339 = vst.msk [vmem:[#allocation2 + $0x1d0] sm:$0xff] %vm280, 0.0
        %340 = vst.msk [vmem:[#allocation2 + $0x1d8] sm:$0xff] %vm280, 0.0
        %341 = vst.msk [vmem:[#allocation2 + $0x1e0] sm:$0xff] %vm280, 0.0
        %342 = vst.msk [vmem:[#allocation2 + $0x1e8] sm:$0xff] %vm280, 0.0
        %343 = vst.msk [vmem:[#allocation2 + $0x1f0] sm:$0xff] %vm280, 0.0
        %344 = vst.msk [vmem:[#allocation2 + $0x1f8] sm:$0xff] %vm280, 0.0
        %345 = vst.msk [vmem:[#allocation2 + $0x200] sm:$0xff] %vm280, 0.0
        %346 = vst.msk [vmem:[#allocation2 + $0x208] sm:$0xff] %vm280, 0.0
        %347 = vst.msk [vmem:[#allocation2 + $0x210] sm:$0xff] %vm280, 0.0
        %348 = vst.msk [vmem:[#allocation2 + $0x218] sm:$0xff] %vm280, 0.0
        %349 = vst.msk [vmem:[#allocation2 + $0x220] sm:$0xff] %vm280, 0.0
        %350 = vst.msk [vmem:[#allocation2 + $0x228] sm:$0xff] %vm280, 0.0
        %351 = vst.msk [vmem:[#allocation2 + $0x230] sm:$0xff] %vm280, 0.0
        %352 = vst.msk [vmem:[#allocation2 + $0x238] sm:$0xff] %vm280, 0.0
        %353 = vst.msk [vmem:[#allocation2 + $0x240] sm:$0xff] %vm280, 0.0
        %354 = vst.msk [vmem:[#allocation2 + $0x248] sm:$0xff] %vm280, 0.0
        %355 = vst.msk [vmem:[#allocation2 + $0x250] sm:$0xff] %vm280, 0.0
        %356 = vst.msk [vmem:[#allocation2 + $0x258] sm:$0xff] %vm280, 0.0
        %357 = vst.msk [vmem:[#allocation2 + $0x260] sm:$0xff] %vm280, 0.0
        %358 = vst.msk [vmem:[#allocation2 + $0x268] sm:$0xff] %vm280, 0.0
        %359 = vst.msk [vmem:[#allocation2 + $0x270] sm:$0xff] %vm280, 0.0
        %360 = vst.msk [vmem:[#allocation2 + $0x278] sm:$0xff] %vm280, 0.0
        %361 = vst.msk [vmem:[#allocation2 + $0x280] sm:$0xff] %vm280, 0.0
        %362 = vst.msk [vmem:[#allocation2 + $0x288] sm:$0xff] %vm280, 0.0
        %363 = vst.msk [vmem:[#allocation2 + $0x290] sm:$0xff] %vm280, 0.0
        %364 = vst.msk [vmem:[#allocation2 + $0x298] sm:$0xff] %vm280, 0.0
        %365 = vst.msk [vmem:[#allocation2 + $0x2a0] sm:$0xff] %vm280, 0.0
        %366 = vst.msk [vmem:[#allocation2 + $0x2a8] sm:$0xff] %vm280, 0.0
        %367 = vst.msk [vmem:[#allocation2 + $0x2b0] sm:$0xff] %vm280, 0.0
        %368 = vst.msk [vmem:[#allocation2 + $0x2b8] sm:$0xff] %vm280, 0.0
        %369 = vst.msk [vmem:[#allocation2 + $0x2c0] sm:$0xff] %vm280, 0.0
        %370 = vst.msk [vmem:[#allocation2 + $0x2c8] sm:$0xff] %vm280, 0.0
        %371 = vst.msk [vmem:[#allocation2 + $0x2d0] sm:$0xff] %vm280, 0.0
        %372 = vst.msk [vmem:[#allocation2 + $0x2d8] sm:$0xff] %vm280, 0.0
        %373 = vst.msk [vmem:[#allocation2 + $0x2e0] sm:$0xff] %vm280, 0.0
        %374 = vst.msk [vmem:[#allocation2 + $0x2e8] sm:$0xff] %vm280, 0.0
        %375 = vst.msk [vmem:[#allocation2 + $0x2f0] sm:$0xff] %vm280, 0.0
        %376 = vst.msk [vmem:[#allocation2 + $0x2f8] sm:$0xff] %vm280, 0.0
        %377 = vst.msk [vmem:[#allocation2 + $0x300] sm:$0xff] %vm280, 0.0
        %378 = vst.msk [vmem:[#allocation2 + $0x308] sm:$0xff] %vm280, 0.0
        %379 = vst.msk [vmem:[#allocation2 + $0x310] sm:$0xff] %vm280, 0.0
        %380 = vst.msk [vmem:[#allocation2 + $0x318] sm:$0xff] %vm280, 0.0
        %381 = vst.msk [vmem:[#allocation2 + $0x320] sm:$0xff] %vm280, 0.0
        %382 = vst.msk [vmem:[#allocation2 + $0x328] sm:$0xff] %vm280, 0.0
        %383 = vst.msk [vmem:[#allocation2 + $0x330] sm:$0xff] %vm280, 0.0
        %384 = vst.msk [vmem:[#allocation2 + $0x338] sm:$0xff] %vm280, 0.0
        %385 = vst.msk [vmem:[#allocation2 + $0x340] sm:$0xff] %vm280, 0.0
        %386 = vst.msk [vmem:[#allocation2 + $0x348] sm:$0xff] %vm280, 0.0
        %387 = vst.msk [vmem:[#allocation2 + $0x350] sm:$0xff] %vm280, 0.0
        %388 = vst.msk [vmem:[#allocation2 + $0x358] sm:$0xff] %vm280, 0.0
        %389 = vst.msk [vmem:[#allocation2 + $0x360] sm:$0xff] %vm280, 0.0
        %390 = vst.msk [vmem:[#allocation2 + $0x368] sm:$0xff] %vm280, 0.0
        %391 = vst.msk [vmem:[#allocation2 + $0x370] sm:$0xff] %vm280, 0.0
        %392 = vst.msk [vmem:[#allocation2 + $0x378] sm:$0xff] %vm280, 0.0
        %393 = vst.msk [vmem:[#allocation2 + $0x380] sm:$0xff] %vm280, 0.0
        %394 = vst.msk [vmem:[#allocation2 + $0x388] sm:$0xff] %vm280, 0.0
        %395 = vst.msk [vmem:[#allocation2 + $0x390] sm:$0xff] %vm280, 0.0
        %396 = vst.msk [vmem:[#allocation2 + $0x398] sm:$0xff] %vm280, 0.0
        %397 = vst.msk [vmem:[#allocation2 + $0x3a0] sm:$0xff] %vm280, 0.0
        %398 = vst.msk [vmem:[#allocation2 + $0x3a8] sm:$0xff] %vm280, 0.0
        %399 = vst.msk [vmem:[#allocation2 + $0x3b0] sm:$0xff] %vm280, 0.0
        %400 = vst.msk [vmem:[#allocation2 + $0x3b8] sm:$0xff] %vm280, 0.0
        %401 = vst.msk [vmem:[#allocation2 + $0x3c0] sm:$0xff] %vm280, 0.0
        %402 = vst.msk [vmem:[#allocation2 + $0x3c8] sm:$0xff] %vm280, 0.0
        %403 = vst.msk [vmem:[#allocation2 + $0x3d0] sm:$0xff] %vm280, 0.0
        %404 = vst.msk [vmem:[#allocation2 + $0x3d8] sm:$0xff] %vm280, 0.0
        %405 = vst.msk [vmem:[#allocation2 + $0x3e0] sm:$0xff] %vm280, 0.0
        %406 = vst.msk [vmem:[#allocation2 + $0x3e8] sm:$0xff] %vm280, 0.0
        %407 = vst.msk [vmem:[#allocation2 + $0x3f0] sm:$0xff] %vm280, 0.0
        %408 = vst.msk [vmem:[#allocation2 + $0x3f8] sm:$0xff] %vm280, 0.0
        %409 = vst.msk [vmem:[#allocation2 + $0x400] sm:$0xff] %vm280, 0.0
        %410 = vst.msk [vmem:[#allocation2 + $0x408] sm:$0xff] %vm280, 0.0
        %411 = vst.msk [vmem:[#allocation2 + $0x410] sm:$0xff] %vm280, 0.0
        %412 = vst.msk [vmem:[#allocation2 + $0x418] sm:$0xff] %vm280, 0.0
        %413 = vst.msk [vmem:[#allocation2 + $0x420] sm:$0xff] %vm280, 0.0
        %414 = vst.msk [vmem:[#allocation2 + $0x428] sm:$0xff] %vm280, 0.0
        %415 = vst.msk [vmem:[#allocation2 + $0x430] sm:$0xff] %vm280, 0.0
        %416 = vst.msk [vmem:[#allocation2 + $0x438] sm:$0xff] %vm280, 0.0
        %417 = vst.msk [vmem:[#allocation2 + $0x440] sm:$0xff] %vm280, 0.0
        %418 = vst.msk [vmem:[#allocation2 + $0x448] sm:$0xff] %vm280, 0.0
        %419 = vst.msk [vmem:[#allocation2 + $0x450] sm:$0xff] %vm280, 0.0
        %420 = vst.msk [vmem:[#allocation2 + $0x458] sm:$0xff] %vm280, 0.0
        %421 = vst.msk [vmem:[#allocation2 + $0x460] sm:$0xff] %vm280, 0.0
        %422 = vst.msk [vmem:[#allocation2 + $0x468] sm:$0xff] %vm280, 0.0
        %423 = vst.msk [vmem:[#allocation2 + $0x470] sm:$0xff] %vm280, 0.0
        %424 = vst.msk [vmem:[#allocation2 + $0x478] sm:$0xff] %vm280, 0.0
        %425 = vst.msk [vmem:[#allocation2 + $0x480] sm:$0xff] %vm280, 0.0
        %426 = vst.msk [vmem:[#allocation2 + $0x488] sm:$0xff] %vm280, 0.0
        %427 = vst.msk [vmem:[#allocation2 + $0x490] sm:$0xff] %vm280, 0.0
        %428 = vst.msk [vmem:[#allocation2 + $0x498] sm:$0xff] %vm280, 0.0
        %429 = vst.msk [vmem:[#allocation2 + $0x4a0] sm:$0xff] %vm280, 0.0
        %430 = vst.msk [vmem:[#allocation2 + $0x4a8] sm:$0xff] %vm280, 0.0
        %431 = vst.msk [vmem:[#allocation2 + $0x4b0] sm:$0xff] %vm280, 0.0
        %432 = vst.msk [vmem:[#allocation2 + $0x4b8] sm:$0xff] %vm280, 0.0
        %433 = vst.msk [vmem:[#allocation2 + $0x4c0] sm:$0xff] %vm280, 0.0
        %434 = vst.msk [vmem:[#allocation2 + $0x4c8] sm:$0xff] %vm280, 0.0
        %435 = vst.msk [vmem:[#allocation2 + $0x4d0] sm:$0xff] %vm280, 0.0
        %436 = vst.msk [vmem:[#allocation2 + $0x4d8] sm:$0xff] %vm280, 0.0
        %437 = vst.msk [vmem:[#allocation2 + $0x4e0] sm:$0xff] %vm280, 0.0
        %438 = vst.msk [vmem:[#allocation2 + $0x4e8] sm:$0xff] %vm280, 0.0
        %439 = vst.msk [vmem:[#allocation2 + $0x4f0] sm:$0xff] %vm280, 0.0
        %440 = vst.msk [vmem:[#allocation2 + $0x4f8] sm:$0xff] %vm280, 0.0
        %441 = vst.msk [vmem:[#allocation2 + $0x500] sm:$0xff] %vm280, 0.0
        %442 = vst.msk [vmem:[#allocation2 + $0x508] sm:$0xff] %vm280, 0.0
        %443 = vst.msk [vmem:[#allocation2 + $0x510] sm:$0xff] %vm280, 0.0
        %444 = vst.msk [vmem:[#allocation2 + $0x518] sm:$0xff] %vm280, 0.0
        %445 = vst.msk [vmem:[#allocation2 + $0x520] sm:$0xff] %vm280, 0.0
        %446 = vst.msk [vmem:[#allocation2 + $0x528] sm:$0xff] %vm280, 0.0
        %447 = vst.msk [vmem:[#allocation2 + $0x530] sm:$0xff] %vm280, 0.0
        %448 = vst.msk [vmem:[#allocation2 + $0x538] sm:$0xff] %vm280, 0.0
        %449 = vst.msk [vmem:[#allocation2 + $0x540] sm:$0xff] %vm280, 0.0
        %450 = vst.msk [vmem:[#allocation2 + $0x548] sm:$0xff] %vm280, 0.0
        %451 = vst.msk [vmem:[#allocation2 + $0x550] sm:$0xff] %vm280, 0.0
        %452 = vst.msk [vmem:[#allocation2 + $0x558] sm:$0xff] %vm280, 0.0
        %453 = vst.msk [vmem:[#allocation2 + $0x560] sm:$0xff] %vm280, 0.0
        %454 = vst.msk [vmem:[#allocation2 + $0x568] sm:$0xff] %vm280, 0.0
        %455 = vst.msk [vmem:[#allocation2 + $0x570] sm:$0xff] %vm280, 0.0
        %456 = vst.msk [vmem:[#allocation2 + $0x578] sm:$0xff] %vm280, 0.0
        %457 = vst.msk [vmem:[#allocation2 + $0x580] sm:$0xff] %vm280, 0.0
        %458 = vst.msk [vmem:[#allocation2 + $0x588] sm:$0xff] %vm280, 0.0
        %459 = vst.msk [vmem:[#allocation2 + $0x590] sm:$0xff] %vm280, 0.0
        %460 = vst.msk [vmem:[#allocation2 + $0x598] sm:$0xff] %vm280, 0.0
        %461 = vst.msk [vmem:[#allocation2 + $0x5a0] sm:$0xff] %vm280, 0.0
        %462 = vst.msk [vmem:[#allocation2 + $0x5a8] sm:$0xff] %vm280, 0.0
        %463 = vst.msk [vmem:[#allocation2 + $0x5b0] sm:$0xff] %vm280, 0.0
        %464 = vst.msk [vmem:[#allocation2 + $0x5b8] sm:$0xff] %vm280, 0.0
        %465 = vst.msk [vmem:[#allocation2 + $0x5c0] sm:$0xff] %vm280, 0.0
        %466 = vst.msk [vmem:[#allocation2 + $0x5c8] sm:$0xff] %vm280, 0.0
        %467 = vst.msk [vmem:[#allocation2 + $0x5d0] sm:$0xff] %vm280, 0.0
        %468 = vst.msk [vmem:[#allocation2 + $0x5d8] sm:$0xff] %vm280, 0.0
        %469 = vst.msk [vmem:[#allocation2 + $0x5e0] sm:$0xff] %vm280, 0.0
        %470 = vst.msk [vmem:[#allocation2 + $0x5e8] sm:$0xff] %vm280, 0.0
        %471 = vst.msk [vmem:[#allocation2 + $0x5f0] sm:$0xff] %vm280, 0.0
        %472 = vst.msk [vmem:[#allocation2 + $0x5f8] sm:$0xff] %vm280, 0.0
      $region48: #{eff_b3_lstm_forward.2} parent=43 // pred_fallthru
        _
      %v473 = vld [vmem:[%s269] sm:$0xf]
      %v474 = vld [vmem:[%s269 + $0x4] sm:$0xf]
      %v475 = vld [vmem:[%s269 + $0x8] sm:$0xf]
      %v476 = vld [vmem:[%s269 + $0xc] sm:$0x3]
      %v477 = vld [vmem:[%s1] sm:$0xf]
      %v478 = vld [vmem:[%s1 + $0x4] sm:$0xf]
      %v479 = vld [vmem:[%s1 + $0x8] sm:$0xf]
      %v480 = vld [vmem:[%s1 + $0xc] sm:$0xf]
      %v481 = vld [vmem:[%s1 + $0x10] sm:$0xf]
      %v482 = vld [vmem:[%s2] sm:$0xff]
      %v483 = vld [vmem:[%s2 + $0x8] sm:$0xff]
      %v484 = vld [vmem:[%s2 + $0x10] sm:$0xff]
      %v485 = vld [vmem:[%s2 + $0x18] sm:$0xff]
      %v486 = vld [vmem:[%s2 + $0x20] sm:$0xff]
      %488 = vset.pattern.permute.xlu0 0
      %489 = vperm.xlu0 %488, %v482
      %v490 = vpop.permute.xlu0 %489
      %493 = vset.pattern.permute.xlu0 0
      %494 = vperm.xlu0 %493, %v483
      %v495 = vpop.permute.xlu0 %494
      %498 = vset.pattern.permute.xlu0 0
      %499 = vperm.xlu0 %498, %v484
      %v500 = vpop.permute.xlu0 %499
      %503 = vset.pattern.permute.xlu0 0
      %504 = vperm.xlu0 %503, %v485
      %v505 = vpop.permute.xlu0 %504
      %508 = vset.pattern.permute.xlu0 0
      %509 = vperm.xlu0 %508, %v486
      %v510 = vpop.permute.xlu0 %509
      %v517 = vunpack.c.l.b16 %v477
      %v518 = vunpack.c.l.b16 %v478
      %v519 = vunpack.c.l.b16 %v479
      %v520 = vunpack.c.l.b16 %v480
      %v521 = vunpack.c.l.b16 %v481
      %v522 = vpack.c.b16 %v518, %v517
      %v523 = vpack.c.b16 %v520, %v519
      %v524 = vpack.c.b16 %v521, %v521
      %v529 = vunpack.c.l.b16 %v473
      %v530 = vunpack.c.l.b16 %v474
      %v531 = vunpack.c.l.b16 %v475
      %v532 = vunpack.c.l.b16 %v476
      %v533 = vpack.c.b16 %v530, %v529
      %v534 = vpack.c.b16 %v532, %v531
      %vm536 = vcmask 220160
      %v538 = vsel %vm536, %v522, 0
      %v541 = vsel %vm536, %v523, 0
      %v544 = vsel %vm536, %v524, 0
      %vm546 = vcmask 1044480
      %vm547 = vcmask 1045504
      %v548 = vsel %vm546, 4294967295, 65535
      %v549 = vsel %vm547, %v548, 0
      %v551 = vand.u32 %v534, %v549
      %553 = vmatprep.subr.bf16.mxu0 0
      %554 = vmatpush1.bf16.msra.mxu0 %v533
      %555 = vmatprep.subr.bf16.mxu0 0
      %556 = vmatpush1.bf16.msra.mxu0 %v551
      %557 = vmatprep.subr.bf16.mxu0 0
      %558 = vmatpush1.bf16.msra.mxu0 0
      %559 = vmatprep.subr.bf16.mxu0 0
      %560 = vmatpush1.bf16.msra.mxu0 0
      %561 = vmatprep.subr.bf16.mxu0 0
      %562 = vmatpush1.bf16.msra.mxu0 0
      %563 = vmatprep.subr.bf16.mxu0 0
      %564 = vmatpush1.bf16.msra.mxu0 0
      %565 = vmatprep.subr.bf16.mxu0 0
      %566 = vmatpush1.bf16.msra.mxu0 0
      %567 = vmatprep.subr.bf16.mxu0 0
      %568 = vmatpush1.bf16.msra.mxu0 0
      %569 = vmatprep.subr.bf16.mxu0 0
      %570 = vmatpush1.bf16.msra.mxu0 0
      %571 = vmatprep.subr.bf16.mxu0 0
      %572 = vmatpush1.bf16.msra.mxu0 0
      %573 = vmatprep.subr.bf16.mxu0 0
      %574 = vmatpush1.bf16.msra.mxu0 0
      %575 = vmatprep.subr.bf16.mxu0 0
      %576 = vmatpush1.bf16.msra.mxu0 0
      %577 = vmatprep.subr.bf16.mxu0 0
      %578 = vmatpush1.bf16.msra.mxu0 0
      %579 = vmatprep.subr.bf16.mxu0 0
      %580 = vmatpush1.bf16.msra.mxu0 0
      %581 = vmatprep.subr.bf16.mxu0 0
      %582 = vmatpush1.bf16.msra.mxu0 0
      %583 = vmatprep.subr.bf16.mxu0 0
      %584 = vmatpush1.bf16.msra.mxu0 0
      %585 = vmatprep.mubr.bf16.mxu0 0
      %586 = vmatmul.mubr.bf16.gmra.mrb[0].mxu0 %v538
      %v587 = vpop.f32.mrb[0].mxu0
      %v588 = vadd.f32 %v490, %v587
      %v589 = vpop.f32.mrb[0].mxu0
      %v590 = vpop.f32.mrb[0].mxu0
      %v591 = vadd.f32 %v495, %v590
      %v592 = vpop.f32.mrb[0].mxu0
      %593 = vmatprep.mubr.bf16.mxu0 0
      %594 = vmatmul.mubr.bf16.gmra.mrb[0].mxu0 %v541
      %v595 = vpop.f32.mrb[0].mxu0
      %v596 = vadd.f32 %v500, %v595
      %v597 = vpop.f32.mrb[0].mxu0
      %v598 = vpop.f32.mrb[0].mxu0
      %v599 = vadd.f32 %v505, %v598
      %v600 = vpop.f32.mrb[0].mxu0
      %601 = vmatprep.mubr.bf16.mxu0 0
      %602 = vmatmul.mubr.bf16.gmra.mrb[0].mxu0 %v544
      %v603 = vpop.f32.mrb[0].mxu0
      %v604 = vadd.f32 %v510, %v603
      %v605 = vpop.f32.mrb[0].mxu0
      %v606 = vpop.f32.mrb[0].mxu0
      %v607 = vpop.f32.mrb[0].mxu0
      %608 = vdwg.mxu0
      %v609 = vxor.u32 %v588, 2147483648
      %v610 = vxor.u32 %v591, 2147483648
      %v611 = vxor.u32 %v596, 2147483648
      %v612 = vxor.u32 %v599, 2147483648
      %v613 = vxor.u32 %v604, 2147483648
      %v614 = vmul.f32 %v609, 1.442695
      %v615 = vpow.pop %v614
      %v616 = vmul.f32 %v610, 1.442695
      %v617 = vpow.pop %v616
      %v618 = vmul.f32 %v611, 1.442695
      %v619 = vpow.pop %v618
      %v620 = vmul.f32 %v612, 1.442695
      %v621 = vpow.pop %v620
      %v622 = vmul.f32 %v613, 1.442695
      %v623 = vpow.pop %v622
      %v624 = vadd.f32 %v615, 1.0
      %v625 = vadd.f32 %v617, 1.0
      %v626 = vadd.f32 %v619, 1.0
      %v627 = vadd.f32 %v621, 1.0
      %v628 = vadd.f32 %v623, 1.0
      %v629 = vrcp.pop %v624
      %v630 = vmul.f32 1.0, %v629
      %v631 = vrcp.pop %v625
      %v632 = vmul.f32 1.0, %v631
      %v633 = vrcp.pop %v626
      %v634 = vmul.f32 1.0, %v633
      %v635 = vrcp.pop %v627
      %v636 = vmul.f32 1.0, %v635
      %v637 = vrcp.pop %v628
      %v638 = vmul.f32 1.0, %v637
      %v639 = vmul.f32 %v588, %v630
      %v640 = vmul.f32 %v591, %v632
      %v641 = vmul.f32 %v596, %v634
      %v642 = vmul.f32 %v599, %v636
      %v643 = vmul.f32 %v604, %v638
      %v644 = vpack.c.bf16 %v640, %v639
      %v645 = vpack.c.bf16 %v642, %v641
      %v646 = vpack.c.bf16 %v643, %v643
      %v647 = vld [vmem:[%s3] sm:$0xf]
      %v648 = vld [vmem:[%s3 + $0x4] sm:$0xf]
      %v649 = vld [vmem:[%s3 + $0x8] sm:$0xf]
      %v650 = vld [vmem:[%s3 + $0xc] sm:$0xf]
      %v651 = vld [vmem:[%s3 + $0x10] sm:$0xf]
      %v652 = vld [vmem:[%s3 + $0x14] sm:$0xf]
      %v653 = vld [vmem:[%s3 + $0x18] sm:$0xf]
      %v654 = vld [vmem:[%s3 + $0x1c] sm:$0xf]
      %v655 = vld [vmem:[%s3 + $0x20] sm:$0xf]
      %v656 = vld [vmem:[%s3 + $0x24] sm:$0xf]
      %v657 = vld [vmem:[%s3 + $0x28] sm:$0xf]
      %v658 = vld [vmem:[%s3 + $0x2c] sm:$0xf]
      %v659 = vld [vmem:[%s3 + $0x30] sm:$0xf]
      %v660 = vld [vmem:[%s3 + $0x34] sm:$0xf]
      %v661 = vld [vmem:[%s3 + $0x38] sm:$0xf]
      %v662 = vld [vmem:[%s3 + $0x3c] sm:$0xf]
      %v663 = vld [vmem:[%s3 + $0x40] sm:$0xf]
      %v664 = vld [vmem:[%s3 + $0x44] sm:$0xf]
      %v665 = vld [vmem:[%s3 + $0x48] sm:$0xf]
      %v666 = vld [vmem:[%s3 + $0x4c] sm:$0xf]
      %v667 = vld [vmem:[%s3 + $0x50] sm:$0xf]
      %v668 = vld [vmem:[%s3 + $0x54] sm:$0xf]
      %v669 = vld [vmem:[%s3 + $0x58] sm:$0xf]
      %v670 = vld [vmem:[%s3 + $0x5c] sm:$0xf]
      %v671 = vld [vmem:[%s3 + $0x60] sm:$0xf]
      %v672 = vld [vmem:[%s3 + $0x64] sm:$0xf]
      %v673 = vld [vmem:[%s3 + $0x68] sm:$0xf]
      %v674 = vld [vmem:[%s3 + $0x6c] sm:$0xf]
      %v675 = vld [vmem:[%s3 + $0x70] sm:$0xf]
      %v676 = vld [vmem:[%s3 + $0x74] sm:$0xf]
      %v677 = vld [vmem:[%s3 + $0x78] sm:$0xf]
      %v678 = vld [vmem:[%s3 + $0x7c] sm:$0xf]
      %v679 = vld [vmem:[%s4] sm:$0xff]
      %v680 = vld [vmem:[%s4 + $0x8] sm:$0xff]
      %v681 = vld [vmem:[%s4 + $0x10] sm:$0xff]
      %v682 = vld [vmem:[%s4 + $0x18] sm:$0xff]
      %v683 = vld [vmem:[%s4 + $0x20] sm:$0xff]
      %v684 = vld [vmem:[%s4 + $0x28] sm:$0xff]
      %v685 = vld [vmem:[%s4 + $0x30] sm:$0xff]
      %v686 = vld [vmem:[%s4 + $0x38] sm:$0xff]
      %v687 = vld [vmem:[%s4 + $0x40] sm:$0xff]
      %v688 = vld [vmem:[%s4 + $0x48] sm:$0xff]
      %v689 = vld [vmem:[%s4 + $0x50] sm:$0xff]
      %v690 = vld [vmem:[%s4 + $0x58] sm:$0xff]
      %v691 = vld [vmem:[%s4 + $0x60] sm:$0xff]
      %v692 = vld [vmem:[%s4 + $0x68] sm:$0xff]
      %v693 = vld [vmem:[%s4 + $0x70] sm:$0xff]
      %v694 = vld [vmem:[%s4 + $0x78] sm:$0xff]
      %v695 = vld [vmem:[%s4 + $0x80] sm:$0xff]
      %v696 = vld [vmem:[%s4 + $0x88] sm:$0xff]
      %v697 = vld [vmem:[%s4 + $0x90] sm:$0xff]
      %v698 = vld [vmem:[%s4 + $0x98] sm:$0xff]
      %v699 = vld [vmem:[%s4 + $0xa0] sm:$0xff]
      %v700 = vld [vmem:[%s4 + $0xa8] sm:$0xff]
      %v701 = vld [vmem:[%s4 + $0xb0] sm:$0xff]
      %v702 = vld [vmem:[%s4 + $0xb8] sm:$0xff]
      %v703 = vld [vmem:[%s4 + $0xc0] sm:$0xff]
      %v704 = vld [vmem:[%s4 + $0xc8] sm:$0xff]
      %v705 = vld [vmem:[%s4 + $0xd0] sm:$0xff]
      %v706 = vld [vmem:[%s4 + $0xd8] sm:$0xff]
      %v707 = vld [vmem:[%s4 + $0xe0] sm:$0xff]
      %v708 = vld [vmem:[%s4 + $0xe8] sm:$0xff]
      %v709 = vld [vmem:[%s4 + $0xf0] sm:$0xff]
      %v710 = vld [vmem:[%s4 + $0xf8] sm:$0xff]
      %712 = vset.pattern.permute.xlu0 0
      %713 = vperm.xlu0 %712, %v679
      %v714 = vpop.permute.xlu0 %713
      %717 = vset.pattern.permute.xlu0 0
      %718 = vperm.xlu0 %717, %v680
      %v719 = vpop.permute.xlu0 %718
      %722 = vset.pattern.permute.xlu0 0
      %723 = vperm.xlu0 %722, %v681
      %v724 = vpop.permute.xlu0 %723
      %727 = vset.pattern.permute.xlu0 0
      %728 = vperm.xlu0 %727, %v682
      %v729 = vpop.permute.xlu0 %728
      %732 = vset.pattern.permute.xlu0 0
      %733 = vperm.xlu0 %732, %v683
      %v734 = vpop.permute.xlu0 %733
      %737 = vset.pattern.permute.xlu0 0
      %738 = vperm.xlu0 %737, %v684
      %v739 = vpop.permute.xlu0 %738
      %742 = vset.pattern.permute.xlu0 0
      %743 = vperm.xlu0 %742, %v685
      %v744 = vpop.permute.xlu0 %743
      %747 = vset.pattern.permute.xlu0 0
      %748 = vperm.xlu0 %747, %v686
      %v749 = vpop.permute.xlu0 %748
      %752 = vset.pattern.permute.xlu0 0
      %753 = vperm.xlu0 %752, %v687
      %v754 = vpop.permute.xlu0 %753
      %757 = vset.pattern.permute.xlu0 0
      %758 = vperm.xlu0 %757, %v688
      %v759 = vpop.permute.xlu0 %758
      %762 = vset.pattern.permute.xlu0 0
      %763 = vperm.xlu0 %762, %v689
      %v764 = vpop.permute.xlu0 %763
      %767 = vset.pattern.permute.xlu0 0
      %768 = vperm.xlu0 %767, %v690
      %v769 = vpop.permute.xlu0 %768
      %772 = vset.pattern.permute.xlu0 0
      %773 = vperm.xlu0 %772, %v691
      %v774 = vpop.permute.xlu0 %773
      %777 = vset.pattern.permute.xlu0 0
      %778 = vperm.xlu0 %777, %v692
      %v779 = vpop.permute.xlu0 %778
      %782 = vset.pattern.permute.xlu0 0
      %783 = vperm.xlu0 %782, %v693
      %v784 = vpop.permute.xlu0 %783
      %787 = vset.pattern.permute.xlu0 0
      %788 = vperm.xlu0 %787, %v694
      %v789 = vpop.permute.xlu0 %788
      %792 = vset.pattern.permute.xlu0 0
      %793 = vperm.xlu0 %792, %v695
      %v794 = vpop.permute.xlu0 %793
      %797 = vset.pattern.permute.xlu0 0
      %798 = vperm.xlu0 %797, %v696
      %v799 = vpop.permute.xlu0 %798
      %802 = vset.pattern.permute.xlu0 0
      %803 = vperm.xlu0 %802, %v697
      %v804 = vpop.permute.xlu0 %803
      %807 = vset.pattern.permute.xlu0 0
      %808 = vperm.xlu0 %807, %v698
      %v809 = vpop.permute.xlu0 %808
      %812 = vset.pattern.permute.xlu0 0
      %813 = vperm.xlu0 %812, %v699
      %v814 = vpop.permute.xlu0 %813
      %817 = vset.pattern.permute.xlu0 0
      %818 = vperm.xlu0 %817, %v700
      %v819 = vpop.permute.xlu0 %818
      %822 = vset.pattern.permute.xlu0 0
      %823 = vperm.xlu0 %822, %v701
      %v824 = vpop.permute.xlu0 %823
      %827 = vset.pattern.permute.xlu0 0
      %828 = vperm.xlu0 %827, %v702
      %v829 = vpop.permute.xlu0 %828
      %832 = vset.pattern.permute.xlu0 0
      %833 = vperm.xlu0 %832, %v703
      %v834 = vpop.permute.xlu0 %833
      %837 = vset.pattern.permute.xlu0 0
      %838 = vperm.xlu0 %837, %v704
      %v839 = vpop.permute.xlu0 %838
      %842 = vset.pattern.permute.xlu0 0
      %843 = vperm.xlu0 %842, %v705
      %v844 = vpop.permute.xlu0 %843
      %847 = vset.pattern.permute.xlu0 0
      %848 = vperm.xlu0 %847, %v706
      %v849 = vpop.permute.xlu0 %848
      %852 = vset.pattern.permute.xlu0 0
      %853 = vperm.xlu0 %852, %v707
      %v854 = vpop.permute.xlu0 %853
      %857 = vset.pattern.permute.xlu0 0
      %858 = vperm.xlu0 %857, %v708
      %v859 = vpop.permute.xlu0 %858
      %862 = vset.pattern.permute.xlu0 0
      %863 = vperm.xlu0 %862, %v709
      %v864 = vpop.permute.xlu0 %863
      %867 = vset.pattern.permute.xlu0 0
      %868 = vperm.xlu0 %867, %v710
      %v869 = vpop.permute.xlu0 %868
      %v903 = vunpack.c.l.b16 %v647
      %v904 = vunpack.c.l.b16 %v648
      %v905 = vunpack.c.l.b16 %v649
      %v906 = vunpack.c.l.b16 %v650
      %v907 = vunpack.c.l.b16 %v651
      %v908 = vunpack.c.l.b16 %v652
      %v909 = vunpack.c.l.b16 %v653
      %v910 = vunpack.c.l.b16 %v654
      %v911 = vunpack.c.l.b16 %v655
      %v912 = vunpack.c.l.b16 %v656
      %v913 = vunpack.c.l.b16 %v657
      %v914 = vunpack.c.l.b16 %v658
      %v915 = vunpack.c.l.b16 %v659
      %v916 = vunpack.c.l.b16 %v660
      %v917 = vunpack.c.l.b16 %v661
      %v918 = vunpack.c.l.b16 %v662
      %v919 = vunpack.c.l.b16 %v663
      %v920 = vunpack.c.l.b16 %v664
      %v921 = vunpack.c.l.b16 %v665
      %v922 = vunpack.c.l.b16 %v666
      %v923 = vunpack.c.l.b16 %v667
      %v924 = vunpack.c.l.b16 %v668
      %v925 = vunpack.c.l.b16 %v669
      %v926 = vunpack.c.l.b16 %v670
      %v927 = vunpack.c.l.b16 %v671
      %v928 = vunpack.c.l.b16 %v672
      %v929 = vunpack.c.l.b16 %v673
      %v930 = vunpack.c.l.b16 %v674
      %v931 = vunpack.c.l.b16 %v675
      %v932 = vunpack.c.l.b16 %v676
      %v933 = vunpack.c.l.b16 %v677
      %v934 = vunpack.c.l.b16 %v678
      %v935 = vpack.c.b16 %v904, %v903
      %v936 = vpack.c.b16 %v906, %v905
      %v937 = vpack.c.b16 %v908, %v907
      %v938 = vpack.c.b16 %v910, %v909
      %v939 = vpack.c.b16 %v912, %v911
      %v940 = vpack.c.b16 %v914, %v913
      %v941 = vpack.c.b16 %v916, %v915
      %v942 = vpack.c.b16 %v918, %v917
      %v943 = vpack.c.b16 %v920, %v919
      %v944 = vpack.c.b16 %v922, %v921
      %v945 = vpack.c.b16 %v924, %v923
      %v946 = vpack.c.b16 %v926, %v925
      %v947 = vpack.c.b16 %v928, %v927
      %v948 = vpack.c.b16 %v930, %v929
      %v949 = vpack.c.b16 %v932, %v931
      %v950 = vpack.c.b16 %v934, %v933
      %vm951 = vcmask 326656
      %v953 = vsel %vm951, %v935, 0
      %v956 = vsel %vm951, %v936, 0
      %v959 = vsel %vm951, %v937, 0
      %v962 = vsel %vm951, %v938, 0
      %v965 = vsel %vm951, %v939, 0
      %v968 = vsel %vm951, %v940, 0
      %v971 = vsel %vm951, %v941, 0
      %v974 = vsel %vm951, %v942, 0
      %v977 = vsel %vm951, %v943, 0
      %v980 = vsel %vm951, %v944, 0
      %v983 = vsel %vm951, %v945, 0
      %v986 = vsel %vm951, %v946, 0
      %v989 = vsel %vm951, %v947, 0
      %v992 = vsel %vm951, %v948, 0
      %v995 = vsel %vm951, %v949, 0
      %v998 = vsel %vm951, %v950, 0
      %vm1000 = vcmask 1043456
      %v1002 = vsel %vm1000, %v646, 0
      %1004 = vmatprep.subr.bf16.mxu0 0
      %1005 = vmatpush1.bf16.msra.mxu0 %v644
      %1006 = vmatprep.subr.bf16.mxu0 0
      %1007 = vmatpush1.bf16.msra.mxu0 %v645
      %1008 = vmatprep.subr.bf16.mxu0 0
      %1009 = vmatpush1.bf16.msra.mxu0 %v1002
      %1010 = vmatprep.subr.bf16.mxu0 0
      %1011 = vmatpush1.bf16.msra.mxu0 0
      %1012 = vmatprep.subr.bf16.mxu0 0
      %1013 = vmatpush1.bf16.msra.mxu0 0
      %1014 = vmatprep.subr.bf16.mxu0 0
      %1015 = vmatpush1.bf16.msra.mxu0 0
      %1016 = vmatprep.subr.bf16.mxu0 0
      %1017 = vmatpush1.bf16.msra.mxu0 0
      %1018 = vmatprep.subr.bf16.mxu0 0
      %1019 = vmatpush1.bf16.msra.mxu0 0
      %1020 = vmatprep.subr.bf16.mxu0 0
      %1021 = vmatpush1.bf16.msra.mxu0 0
      %1022 = vmatprep.subr.bf16.mxu0 0
      %1023 = vmatpush1.bf16.msra.mxu0 0
      %1024 = vmatprep.subr.bf16.mxu0 0
      %1025 = vmatpush1.bf16.msra.mxu0 0
      %1026 = vmatprep.subr.bf16.mxu0 0
      %1027 = vmatpush1.bf16.msra.mxu0 0
      %1028 = vmatprep.subr.bf16.mxu0 0
      %1029 = vmatpush1.bf16.msra.mxu0 0
      %1030 = vmatprep.subr.bf16.mxu0 0
      %1031 = vmatpush1.bf16.msra.mxu0 0
      %1032 = vmatprep.subr.bf16.mxu0 0
      %1033 = vmatpush1.bf16.msra.mxu0 0
      %1034 = vmatprep.subr.bf16.mxu0 0
      %1035 = vmatpush1.bf16.msra.mxu0 0
      %1036 = vmatprep.mubr.bf16.mxu0 0
      %1037 = vmatmul.mubr.bf16.gmra.mrb[0].mxu0 %v953
      %v1038 = vpop.f32.mrb[0].mxu0
      %v1039 = vadd.f32 %v714, %v1038
      %v1040 = vpop.f32.mrb[0].mxu0
      %v1041 = vpop.f32.mrb[0].mxu0
      %v1042 = vadd.f32 %v719, %v1041
      %v1043 = vpop.f32.mrb[0].mxu0
      %1044 = vmatprep.mubr.bf16.mxu0 0
      %1045 = vmatmul.mubr.bf16.gmra.mrb[0].mxu0 %v956
      %v1046 = vpop.f32.mrb[0].mxu0
      %v1047 = vadd.f32 %v724, %v1046
      %v1048 = vpop.f32.mrb[0].mxu0
      %v1049 = vpop.f32.mrb[0].mxu0
      %v1050 = vadd.f32 %v729, %v1049
      %v1051 = vpop.f32.mrb[0].mxu0
      %1052 = vmatprep.mubr.bf16.mxu0 0
      %1053 = vmatmul.mubr.bf16.gmra.mrb[0].mxu0 %v959
      %v1054 = vpop.f32.mrb[0].mxu0
      %v1055 = vadd.f32 %v734, %v1054
      %v1056 = vpop.f32.mrb[0].mxu0
      %v1057 = vpop.f32.mrb[0].mxu0
      %v1058 = vadd.f32 %v739, %v1057
      %v1059 = vpop.f32.mrb[0].mxu0
      %1060 = vmatprep.mubr.bf16.mxu0 0
      %1061 = vmatmul.mubr.bf16.gmra.mrb[0].mxu0 %v962
      %v1062 = vpop.f32.mrb[0].mxu0
      %v1063 = vadd.f32 %v744, %v1062
      %v1064 = vpop.f32.mrb[0].mxu0
      %v1065 = vpop.f32.mrb[0].mxu0
      %v1066 = vadd.f32 %v749, %v1065
      %v1067 = vpop.f32.mrb[0].mxu0
      %1068 = vmatprep.mubr.bf16.mxu0 0
      %1069 = vmatmul.mubr.bf16.gmra.mrb[0].mxu0 %v965
      %v1070 = vpop.f32.mrb[0].mxu0
      %v1071 = vadd.f32 %v754, %v1070
      %v1072 = vpop.f32.mrb[0].mxu0
      %v1073 = vpop.f32.mrb[0].mxu0
      %v1074 = vadd.f32 %v759, %v1073
      %v1075 = vpop.f32.mrb[0].mxu0
      %1076 = vmatprep.mubr.bf16.mxu0 0
      %1077 = vmatmul.mubr.bf16.gmra.mrb[0].mxu0 %v968
      %v1078 = vpop.f32.mrb[0].mxu0
      %v1079 = vadd.f32 %v764, %v1078
      %v1080 = vpop.f32.mrb[0].mxu0
      %v1081 = vpop.f32.mrb[0].mxu0
      %v1082 = vadd.f32 %v769, %v1081
      %v1083 = vpop.f32.mrb[0].mxu0
      %1084 = vmatprep.mubr.bf16.mxu0 0
      %1085 = vmatmul.mubr.bf16.gmra.mrb[0].mxu0 %v971
      %v1086 = vpop.f32.mrb[0].mxu0
      %v1087 = vadd.f32 %v774, %v1086
      %v1088 = vpop.f32.mrb[0].mxu0
      %v1089 = vpop.f32.mrb[0].mxu0
      %v1090 = vadd.f32 %v779, %v1089
      %v1091 = vpop.f32.mrb[0].mxu0
      %1092 = vmatprep.mubr.bf16.mxu0 0
      %1093 = vmatmul.mubr.bf16.gmra.mrb[0].mxu0 %v974
      %v1094 = vpop.f32.mrb[0].mxu0
      %v1095 = vadd.f32 %v784, %v1094
      %v1096 = vpop.f32.mrb[0].mxu0
      %v1097 = vpop.f32.mrb[0].mxu0
      %v1098 = vadd.f32 %v789, %v1097
      %v1099 = vpop.f32.mrb[0].mxu0
      %1100 = vmatprep.mubr.bf16.mxu0 0
      %1101 = vmatmul.mubr.bf16.gmra.mrb[0].mxu0 %v977
      %v1102 = vpop.f32.mrb[0].mxu0
      %v1103 = vadd.f32 %v794, %v1102
      %v1104 = vpop.f32.mrb[0].mxu0
      %v1105 = vpop.f32.mrb[0].mxu0
      %v1106 = vadd.f32 %v799, %v1105
      %v1107 = vpop.f32.mrb[0].mxu0
      %1108 = vmatprep.mubr.bf16.mxu0 0
      %1109 = vmatmul.mubr.bf16.gmra.mrb[0].mxu0 %v980
      %v1110 = vpop.f32.mrb[0].mxu0
      %v1111 = vadd.f32 %v804, %v1110
      %v1112 = vpop.f32.mrb[0].mxu0
      %v1113 = vpop.f32.mrb[0].mxu0
      %v1114 = vadd.f32 %v809, %v1113
      %v1115 = vpop.f32.mrb[0].mxu0
      %1116 = vmatprep.mubr.bf16.mxu0 0
      %1117 = vmatmul.mubr.bf16.gmra.mrb[0].mxu0 %v983
      %v1118 = vpop.f32.mrb[0].mxu0
      %v1119 = vadd.f32 %v814, %v1118
      %v1120 = vpop.f32.mrb[0].mxu0
      %v1121 = vpop.f32.mrb[0].mxu0
      %v1122 = vadd.f32 %v819, %v1121
      %v1123 = vpop.f32.mrb[0].mxu0
      %1124 = vmatprep.mubr.bf16.mxu0 0
      %1125 = vmatmul.mubr.bf16.gmra.mrb[0].mxu0 %v986
      %v1126 = vpop.f32.mrb[0].mxu0
      %v1127 = vadd.f32 %v824, %v1126
      %v1128 = vpop.f32.mrb[0].mxu0
      %v1129 = vpop.f32.mrb[0].mxu0
      %v1130 = vadd.f32 %v829, %v1129
      %v1131 = vpop.f32.mrb[0].mxu0
      %1132 = vmatprep.mubr.bf16.mxu0 0
      %1133 = vmatmul.mubr.bf16.gmra.mrb[0].mxu0 %v989
      %v1134 = vpop.f32.mrb[0].mxu0
      %v1135 = vadd.f32 %v834, %v1134
      %v1136 = vpop.f32.mrb[0].mxu0
      %v1137 = vpop.f32.mrb[0].mxu0
      %v1138 = vadd.f32 %v839, %v1137
      %v1139 = vpop.f32.mrb[0].mxu0
      %1140 = vmatprep.mubr.bf16.mxu0 0
      %1141 = vmatmul.mubr.bf16.gmra.mrb[0].mxu0 %v992
      %v1142 = vpop.f32.mrb[0].mxu0
      %v1143 = vadd.f32 %v844, %v1142
      %v1144 = vpop.f32.mrb[0].mxu0
      %v1145 = vpop.f32.mrb[0].mxu0
      %v1146 = vadd.f32 %v849, %v1145
      %v1147 = vpop.f32.mrb[0].mxu0
      %1148 = vmatprep.mubr.bf16.mxu0 0
      %1149 = vmatmul.mubr.bf16.gmra.mrb[0].mxu0 %v995
      %v1150 = vpop.f32.mrb[0].mxu0
      %v1151 = vadd.f32 %v854, %v1150
      %v1152 = vpop.f32.mrb[0].mxu0
      %v1153 = vpop.f32.mrb[0].mxu0
      %v1154 = vadd.f32 %v859, %v1153
      %v1155 = vpop.f32.mrb[0].mxu0
      %1156 = vmatprep.mubr.bf16.mxu0 0
      %1157 = vmatmul.mubr.bf16.gmra.mrb[0].mxu0 %v998
      %v1158 = vpop.f32.mrb[0].mxu0
      %v1159 = vadd.f32 %v864, %v1158
      %v1160 = vpop.f32.mrb[0].mxu0
      %v1161 = vpop.f32.mrb[0].mxu0
      %v1162 = vadd.f32 %v869, %v1161
      %v1163 = vpop.f32.mrb[0].mxu0
      %1164 = vdwg.mxu0
      %v1165 = vxor.u32 %v1039, 2147483648
      %v1166 = vxor.u32 %v1042, 2147483648
      %v1167 = vxor.u32 %v1047, 2147483648
      %v1168 = vxor.u32 %v1050, 2147483648
      %v1169 = vxor.u32 %v1055, 2147483648
      %v1170 = vxor.u32 %v1058, 2147483648
      %v1171 = vxor.u32 %v1063, 2147483648
      %v1172 = vxor.u32 %v1066, 2147483648
      %v1173 = vxor.u32 %v1071, 2147483648
      %v1174 = vxor.u32 %v1074, 2147483648
      %v1175 = vxor.u32 %v1079, 2147483648
      %v1176 = vxor.u32 %v1082, 2147483648
      %v1177 = vxor.u32 %v1087, 2147483648
      %v1178 = vxor.u32 %v1090, 2147483648
      %v1179 = vxor.u32 %v1095, 2147483648
      %v1180 = vxor.u32 %v1098, 2147483648
      %v1181 = vxor.u32 %v1103, 2147483648
      %v1182 = vxor.u32 %v1106, 2147483648
      %v1183 = vxor.u32 %v1111, 2147483648
      %v1184 = vxor.u32 %v1114, 2147483648
      %v1185 = vxor.u32 %v1119, 2147483648
      %v1186 = vxor.u32 %v1122, 2147483648
      %v1187 = vxor.u32 %v1127, 2147483648
      %v1188 = vxor.u32 %v1130, 2147483648
      %v1189 = vxor.u32 %v1135, 2147483648
      %v1190 = vxor.u32 %v1138, 2147483648
      %v1191 = vxor.u32 %v1143, 2147483648
      %v1192 = vxor.u32 %v1146, 2147483648
      %v1193 = vxor.u32 %v1151, 2147483648
      %v1194 = vxor.u32 %v1154, 2147483648
      %v1195 = vxor.u32 %v1159, 2147483648
      %v1196 = vxor.u32 %v1162, 2147483648
      %v1197 = vmul.f32 %v1165, 1.442695
      %v1198 = vpow.pop %v1197
      %v1199 = vmul.f32 %v1166, 1.442695
      %v1200 = vpow.pop %v1199
      %v1201 = vmul.f32 %v1167, 1.442695
      %v1202 = vpow.pop %v1201
      %v1203 = vmul.f32 %v1168, 1.442695
      %v1204 = vpow.pop %v1203
      %v1205 = vmul.f32 %v1169, 1.442695
      %v1206 = vpow.pop %v1205
      %v1207 = vmul.f32 %v1170, 1.442695
      %v1208 = vpow.pop %v1207
      %v1209 = vmul.f32 %v1171, 1.442695
      %v1210 = vpow.pop %v1209
      %v1211 = vmul.f32 %v1172, 1.442695
      %v1212 = vpow.pop %v1211
      %v1213 = vmul.f32 %v1173, 1.442695
      %v1214 = vpow.pop %v1213
      %v1215 = vmul.f32 %v1174, 1.442695
      %v1216 = vpow.pop %v1215
      %v1217 = vmul.f32 %v1175, 1.442695
      %v1218 = vpow.pop %v1217
      %v1219 = vmul.f32 %v1176, 1.442695
      %v1220 = vpow.pop %v1219
      %v1221 = vmul.f32 %v1177, 1.442695
      %v1222 = vpow.pop %v1221
      %v1223 = vmul.f32 %v1178, 1.442695
      %v1224 = vpow.pop %v1223
      %v1225 = vmul.f32 %v1179, 1.442695
      %v1226 = vpow.pop %v1225
      %v1227 = vmul.f32 %v1180, 1.442695
      %v1228 = vpow.pop %v1227
      %v1229 = vmul.f32 %v1181, 1.442695
      %v1230 = vpow.pop %v1229
      %v1231 = vmul.f32 %v1182, 1.442695
      %v1232 = vpow.pop %v1231
      %v1233 = vmul.f32 %v1183, 1.442695
      %v1234 = vpow.pop %v1233
      %v1235 = vmul.f32 %v1184, 1.442695
      %v1236 = vpow.pop %v1235
      %v1237 = vmul.f32 %v1185, 1.442695
      %v1238 = vpow.pop %v1237
      %v1239 = vmul.f32 %v1186, 1.442695
      %v1240 = vpow.pop %v1239
      %v1241 = vmul.f32 %v1187, 1.442695
      %v1242 = vpow.pop %v1241
      %v1243 = vmul.f32 %v1188, 1.442695
      %v1244 = vpow.pop %v1243
      %v1245 = vmul.f32 %v1189, 1.442695
      %v1246 = vpow.pop %v1245
      %v1247 = vmul.f32 %v1190, 1.442695
      %v1248 = vpow.pop %v1247
      %v1249 = vmul.f32 %v1191, 1.442695
      %v1250 = vpow.pop %v1249
      %v1251 = vmul.f32 %v1192, 1.442695
      %v1252 = vpow.pop %v1251
      %v1253 = vmul.f32 %v1193, 1.442695
      %v1254 = vpow.pop %v1253
      %v1255 = vmul.f32 %v1194, 1.442695
      %v1256 = vpow.pop %v1255
      %v1257 = vmul.f32 %v1195, 1.442695
      %v1258 = vpow.pop %v1257
      %v1259 = vmul.f32 %v1196, 1.442695
      %v1260 = vpow.pop %v1259
      %v1261 = vadd.f32 %v1198, 1.0
      %v1262 = vadd.f32 %v1200, 1.0
      %v1263 = vadd.f32 %v1202, 1.0
      %v1264 = vadd.f32 %v1204, 1.0
      %v1265 = vadd.f32 %v1206, 1.0
      %v1266 = vadd.f32 %v1208, 1.0
      %v1267 = vadd.f32 %v1210, 1.0
      %v1268 = vadd.f32 %v1212, 1.0
      %v1269 = vadd.f32 %v1214, 1.0
      %v1270 = vadd.f32 %v1216, 1.0
      %v1271 = vadd.f32 %v1218, 1.0
      %v1272 = vadd.f32 %v1220, 1.0
      %v1273 = vadd.f32 %v1222, 1.0
      %v1274 = vadd.f32 %v1224, 1.0
      %v1275 = vadd.f32 %v1226, 1.0
      %v1276 = vadd.f32 %v1228, 1.0
      %v1277 = vadd.f32 %v1230, 1.0
      %v1278 = vadd.f32 %v1232, 1.0
      %v1279 = vadd.f32 %v1234, 1.0
      %v1280 = vadd.f32 %v1236, 1.0
      %v1281 = vadd.f32 %v1238, 1.0
      %v1282 = vadd.f32 %v1240, 1.0
      %v1283 = vadd.f32 %v1242, 1.0
      %v1284 = vadd.f32 %v1244, 1.0
      %v1285 = vadd.f32 %v1246, 1.0
      %v1286 = vadd.f32 %v1248, 1.0
      %v1287 = vadd.f32 %v1250, 1.0
      %v1288 = vadd.f32 %v1252, 1.0
      %v1289 = vadd.f32 %v1254, 1.0
      %v1290 = vadd.f32 %v1256, 1.0
      %v1291 = vadd.f32 %v1258, 1.0
      %v1292 = vadd.f32 %v1260, 1.0
      %v1293 = vrcp.pop %v1261
      %v1294 = vmul.f32 1.0, %v1293
      %v1295 = vrcp.pop %v1262
      %v1296 = vmul.f32 1.0, %v1295
      %v1297 = vrcp.pop %v1263
      %v1298 = vmul.f32 1.0, %v1297
      %v1299 = vrcp.pop %v1264
      %v1300 = vmul.f32 1.0, %v1299
      %v1301 = vrcp.pop %v1265
      %v1302 = vmul.f32 1.0, %v1301
      %v1303 = vrcp.pop %v1266
      %v1304 = vmul.f32 1.0, %v1303
      %v1305 = vrcp.pop %v1267
      %v1306 = vmul.f32 1.0, %v1305
      %v1307 = vrcp.pop %v1268
      %v1308 = vmul.f32 1.0, %v1307
      %v1309 = vrcp.pop %v1269
      %v1310 = vmul.f32 1.0, %v1309
      %v1311 = vrcp.pop %v1270
      %v1312 = vmul.f32 1.0, %v1311
      %v1313 = vrcp.pop %v1271
      %v1314 = vmul.f32 1.0, %v1313
      %v1315 = vrcp.pop %v1272
      %v1316 = vmul.f32 1.0, %v1315
      %v1317 = vrcp.pop %v1273
      %v1318 = vmul.f32 1.0, %v1317
      %v1319 = vrcp.pop %v1274
      %v1320 = vmul.f32 1.0, %v1319
      %v1321 = vrcp.pop %v1275
      %v1322 = vmul.f32 1.0, %v1321
      %v1323 = vrcp.pop %v1276
      %v1324 = vmul.f32 1.0, %v1323
      %v1325 = vrcp.pop %v1277
      %v1326 = vmul.f32 1.0, %v1325
      %v1327 = vrcp.pop %v1278
      %v1328 = vmul.f32 1.0, %v1327
      %v1329 = vrcp.pop %v1279
      %v1330 = vmul.f32 1.0, %v1329
      %v1331 = vrcp.pop %v1280
      %v1332 = vmul.f32 1.0, %v1331
      %v1333 = vrcp.pop %v1281
      %v1334 = vmul.f32 1.0, %v1333
      %v1335 = vrcp.pop %v1282
      %v1336 = vmul.f32 1.0, %v1335
      %v1337 = vrcp.pop %v1283
      %v1338 = vmul.f32 1.0, %v1337
      %v1339 = vrcp.pop %v1284
      %v1340 = vmul.f32 1.0, %v1339
      %v1341 = vrcp.pop %v1285
      %v1342 = vmul.f32 1.0, %v1341
      %v1343 = vrcp.pop %v1286
      %v1344 = vmul.f32 1.0, %v1343
      %v1345 = vrcp.pop %v1287
      %v1346 = vmul.f32 1.0, %v1345
      %v1347 = vrcp.pop %v1288
      %v1348 = vmul.f32 1.0, %v1347
      %v1349 = vrcp.pop %v1289
      %v1350 = vmul.f32 1.0, %v1349
      %v1351 = vrcp.pop %v1290
      %v1352 = vmul.f32 1.0, %v1351
      %v1353 = vrcp.pop %v1291
      %v1354 = vmul.f32 1.0, %v1353
      %v1355 = vrcp.pop %v1292
      %v1356 = vmul.f32 1.0, %v1355
      %v1357 = vmul.f32 %v1039, %v1294
      %v1358 = vmul.f32 %v1042, %v1296
      %v1359 = vmul.f32 %v1047, %v1298
      %v1360 = vmul.f32 %v1050, %v1300
      %v1361 = vmul.f32 %v1055, %v1302
      %v1362 = vmul.f32 %v1058, %v1304
      %v1363 = vmul.f32 %v1063, %v1306
      %v1364 = vmul.f32 %v1066, %v1308
      %v1365 = vmul.f32 %v1071, %v1310
      %v1366 = vmul.f32 %v1074, %v1312
      %v1367 = vmul.f32 %v1079, %v1314
      %v1368 = vmul.f32 %v1082, %v1316
      %v1369 = vmul.f32 %v1087, %v1318
      %v1370 = vmul.f32 %v1090, %v1320
      %v1371 = vmul.f32 %v1095, %v1322
      %v1372 = vmul.f32 %v1098, %v1324
      %v1373 = vmul.f32 %v1103, %v1326
      %v1374 = vmul.f32 %v1106, %v1328
      %v1375 = vmul.f32 %v1111, %v1330
      %v1376 = vmul.f32 %v1114, %v1332
      %v1377 = vmul.f32 %v1119, %v1334
      %v1378 = vmul.f32 %v1122, %v1336
      %v1379 = vmul.f32 %v1127, %v1338
      %v1380 = vmul.f32 %v1130, %v1340
      %v1381 = vmul.f32 %v1135, %v1342
      %v1382 = vmul.f32 %v1138, %v1344
      %v1383 = vmul.f32 %v1143, %v1346
      %v1384 = vmul.f32 %v1146, %v1348
      %v1385 = vmul.f32 %v1151, %v1350
      %v1386 = vmul.f32 %v1154, %v1352
      %v1387 = vmul.f32 %v1159, %v1354
      %v1388 = vmul.f32 %v1162, %v1356
      %v1389 = vld [vmem:[#allocation2] sm:$0xff]
      %v1390 = vld [vmem:[#allocation2 + $0x8] sm:$0xff]
      %v1391 = vld [vmem:[#allocation2 + $0x10] sm:$0xff]
      %v1392 = vld [vmem:[#allocation2 + $0x18] sm:$0xff]
      %v1393 = vld [vmem:[#allocation2 + $0x20] sm:$0xff]
      %v1394 = vld [vmem:[#allocation2 + $0x28] sm:$0xff]
      %v1395 = vld [vmem:[#allocation2 + $0x30] sm:$0xff]
      %v1396 = vld [vmem:[#allocation2 + $0x38] sm:$0xff]
      %v1397 = vld [vmem:[#allocation2 + $0x40] sm:$0xff]
      %v1398 = vld [vmem:[#allocation2 + $0x48] sm:$0xff]
      %v1399 = vld [vmem:[#allocation2 + $0x50] sm:$0xff]
      %v1400 = vld [vmem:[#allocation2 + $0x58] sm:$0xff]
      %v1401 = vld [vmem:[#allocation2 + $0x60] sm:$0xff]
      %v1402 = vld [vmem:[#allocation2 + $0x68] sm:$0xff]
      %v1403 = vld [vmem:[#allocation2 + $0x70] sm:$0xff]
      %v1404 = vld [vmem:[#allocation2 + $0x78] sm:$0xff]
      %v1405 = vld [vmem:[#allocation2 + $0x80] sm:$0xff]
      %v1406 = vld [vmem:[#allocation2 + $0x88] sm:$0xff]
      %v1407 = vld [vmem:[#allocation2 + $0x90] sm:$0xff]
      %v1408 = vld [vmem:[#allocation2 + $0x98] sm:$0xff]
      %v1409 = vld [vmem:[#allocation2 + $0xa0] sm:$0xff]
      %v1410 = vld [vmem:[#allocation2 + $0xa8] sm:$0xff]
      %v1411 = vld [vmem:[#allocation2 + $0xb0] sm:$0xff]
      %v1412 = vld [vmem:[#allocation2 + $0xb8] sm:$0xff]
      %v1413 = vld [vmem:[#allocation2 + $0xc0] sm:$0xff]
      %v1414 = vld [vmem:[#allocation2 + $0xc8] sm:$0xff]
      %v1415 = vld [vmem:[#allocation2 + $0xd0] sm:$0xff]
      %v1416 = vld [vmem:[#allocation2 + $0xd8] sm:$0xff]
      %v1417 = vld [vmem:[#allocation2 + $0xe0] sm:$0xff]
      %v1418 = vld [vmem:[#allocation2 + $0xe8] sm:$0xff]
      %v1419 = vld [vmem:[#allocation2 + $0xf0] sm:$0xff]
      %v1420 = vld [vmem:[#allocation2 + $0xf8] sm:$0xff]
      %vm1421 = vcmask 523264
      %v1422 = vsel %vm1421, %v1357, 0.0
      %1423 = vadd.xlane.f32.xlu0 %v1422
      %v1424 = vpop.xlane.xlu0 %1423
      %v1425 = vsel %vm1421, %v1358, 0.0
      %1426 = vadd.xlane.f32.xlu0 %v1425
      %v1427 = vpop.xlane.xlu0 %1426
      %v1428 = vsel %vm1421, %v1359, 0.0
      %1429 = vadd.xlane.f32.xlu0 %v1428
      %v1430 = vpop.xlane.xlu0 %1429
      %v1431 = vsel %vm1421, %v1360, 0.0
      %1432 = vadd.xlane.f32.xlu0 %v1431
      %v1433 = vpop.xlane.xlu0 %1432
      %v1434 = vsel %vm1421, %v1361, 0.0
      %1435 = vadd.xlane.f32.xlu0 %v1434
      %v1436 = vpop.xlane.xlu0 %1435
      %v1437 = vsel %vm1421, %v1362, 0.0
      %1438 = vadd.xlane.f32.xlu0 %v1437
      %v1439 = vpop.xlane.xlu0 %1438
      %v1440 = vsel %vm1421, %v1363, 0.0
      %1441 = vadd.xlane.f32.xlu0 %v1440
      %v1442 = vpop.xlane.xlu0 %1441
      %v1443 = vsel %vm1421, %v1364, 0.0
      %1444 = vadd.xlane.f32.xlu0 %v1443
      %v1445 = vpop.xlane.xlu0 %1444
      %v1446 = vsel %vm1421, %v1365, 0.0
      %1447 = vadd.xlane.f32.xlu0 %v1446
      %v1448 = vpop.xlane.xlu0 %1447
      %v1449 = vsel %vm1421, %v1366, 0.0
      %1450 = vadd.xlane.f32.xlu0 %v1449
      %v1451 = vpop.xlane.xlu0 %1450
      %v1452 = vsel %vm1421, %v1367, 0.0
      %1453 = vadd.xlane.f32.xlu0 %v1452
      %v1454 = vpop.xlane.xlu0 %1453
      %v1455 = vsel %vm1421, %v1368, 0.0
      %1456 = vadd.xlane.f32.xlu0 %v1455
      %v1457 = vpop.xlane.xlu0 %1456
      %v1458 = vsel %vm1421, %v1369, 0.0
      %1459 = vadd.xlane.f32.xlu0 %v1458
      %v1460 = vpop.xlane.xlu0 %1459
      %v1461 = vsel %vm1421, %v1370, 0.0
      %1462 = vadd.xlane.f32.xlu0 %v1461
      %v1463 = vpop.xlane.xlu0 %1462
      %v1464 = vsel %vm1421, %v1371, 0.0
      %1465 = vadd.xlane.f32.xlu0 %v1464
      %v1466 = vpop.xlane.xlu0 %1465
      %v1467 = vsel %vm1421, %v1372, 0.0
      %1468 = vadd.xlane.f32.xlu0 %v1467
      %v1469 = vpop.xlane.xlu0 %1468
      %v1470 = vsel %vm1421, %v1373, 0.0
      %1471 = vadd.xlane.f32.xlu0 %v1470
      %v1472 = vpop.xlane.xlu0 %1471
      %v1473 = vsel %vm1421, %v1374, 0.0
      %1474 = vadd.xlane.f32.xlu0 %v1473
      %v1475 = vpop.xlane.xlu0 %1474
      %v1476 = vsel %vm1421, %v1375, 0.0
      %1477 = vadd.xlane.f32.xlu0 %v1476
      %v1478 = vpop.xlane.xlu0 %1477
      %v1479 = vsel %vm1421, %v1376, 0.0
      %1480 = vadd.xlane.f32.xlu0 %v1479
      %v1481 = vpop.xlane.xlu0 %1480
      %v1482 = vsel %vm1421, %v1377, 0.0
      %1483 = vadd.xlane.f32.xlu0 %v1482
      %v1484 = vpop.xlane.xlu0 %1483
      %v1485 = vsel %vm1421, %v1378, 0.0
      %1486 = vadd.xlane.f32.xlu0 %v1485
      %v1487 = vpop.xlane.xlu0 %1486
      %v1488 = vsel %vm1421, %v1379, 0.0
      %1489 = vadd.xlane.f32.xlu0 %v1488
      %v1490 = vpop.xlane.xlu0 %1489
      %v1491 = vsel %vm1421, %v1380, 0.0
      %1492 = vadd.xlane.f32.xlu0 %v1491
      %v1493 = vpop.xlane.xlu0 %1492
      %v1494 = vsel %vm1421, %v1381, 0.0
      %1495 = vadd.xlane.f32.xlu0 %v1494
      %v1496 = vpop.xlane.xlu0 %1495
      %v1497 = vsel %vm1421, %v1382, 0.0
      %1498 = vadd.xlane.f32.xlu0 %v1497
      %v1499 = vpop.xlane.xlu0 %1498
      %v1500 = vsel %vm1421, %v1383, 0.0
      %1501 = vadd.xlane.f32.xlu0 %v1500
      %v1502 = vpop.xlane.xlu0 %1501
      %v1503 = vsel %vm1421, %v1384, 0.0
      %1504 = vadd.xlane.f32.xlu0 %v1503
      %v1505 = vpop.xlane.xlu0 %1504
      %v1506 = vsel %vm1421, %v1385, 0.0
      %1507 = vadd.xlane.f32.xlu0 %v1506
      %v1508 = vpop.xlane.xlu0 %1507
      %v1509 = vsel %vm1421, %v1386, 0.0
      %1510 = vadd.xlane.f32.xlu0 %v1509
      %v1511 = vpop.xlane.xlu0 %1510
      %v1512 = vsel %vm1421, %v1387, 0.0
      %1513 = vadd.xlane.f32.xlu0 %v1512
      %v1514 = vpop.xlane.xlu0 %1513
      %v1515 = vsel %vm1421, %v1388, 0.0
      %1516 = vadd.xlane.f32.xlu0 %v1515
      %v1517 = vpop.xlane.xlu0 %1516
      %v1518 = vadd.f32 %v1389, %v1424
      %v1519 = vadd.f32 %v1390, %v1427
      %v1520 = vadd.f32 %v1391, %v1430
      %v1521 = vadd.f32 %v1392, %v1433
      %v1522 = vadd.f32 %v1393, %v1436
      %v1523 = vadd.f32 %v1394, %v1439
      %v1524 = vadd.f32 %v1395, %v1442
      %v1525 = vadd.f32 %v1396, %v1445
      %v1526 = vadd.f32 %v1397, %v1448
      %v1527 = vadd.f32 %v1398, %v1451
      %v1528 = vadd.f32 %v1399, %v1454
      %v1529 = vadd.f32 %v1400, %v1457
      %v1530 = vadd.f32 %v1401, %v1460
      %v1531 = vadd.f32 %v1402, %v1463
      %v1532 = vadd.f32 %v1403, %v1466
      %v1533 = vadd.f32 %v1404, %v1469
      %v1534 = vadd.f32 %v1405, %v1472
      %v1535 = vadd.f32 %v1406, %v1475
      %v1536 = vadd.f32 %v1407, %v1478
      %v1537 = vadd.f32 %v1408, %v1481
      %v1538 = vadd.f32 %v1409, %v1484
      %v1539 = vadd.f32 %v1410, %v1487
      %v1540 = vadd.f32 %v1411, %v1490
      %v1541 = vadd.f32 %v1412, %v1493
      %v1542 = vadd.f32 %v1413, %v1496
      %v1543 = vadd.f32 %v1414, %v1499
      %v1544 = vadd.f32 %v1415, %v1502
      %v1545 = vadd.f32 %v1416, %v1505
      %v1546 = vadd.f32 %v1417, %v1508
      %v1547 = vadd.f32 %v1418, %v1511
      %v1548 = vadd.f32 %v1419, %v1514
      %v1549 = vadd.f32 %v1420, %v1517
      %vm1550 = vcmask 7168
      %1551 = vst.msk [vmem:[#allocation2] sm:$0xff] %vm1550, %v1518
      %1552 = vst.msk [vmem:[#allocation2 + $0x8] sm:$0xff] %vm1550, %v1519
      %1553 = vst.msk [vmem:[#allocation2 + $0x10] sm:$0xff] %vm1550, %v1520
      %1554 = vst.msk [vmem:[#allocation2 + $0x18] sm:$0xff] %vm1550, %v1521
      %1555 = vst.msk [vmem:[#allocation2 + $0x20] sm:$0xff] %vm1550, %v1522
      %1556 = vst.msk [vmem:[#allocation2 + $0x28] sm:$0xff] %vm1550, %v1523
      %1557 = vst.msk [vmem:[#allocation2 + $0x30] sm:$0xff] %vm1550, %v1524
      %1558 = vst.msk [vmem:[#allocation2 + $0x38] sm:$0xff] %vm1550, %v1525
      %1559 = vst.msk [vmem:[#allocation2 + $0x40] sm:$0xff] %vm1550, %v1526
      %1560 = vst.msk [vmem:[#allocation2 + $0x48] sm:$0xff] %vm1550, %v1527
      %1561 = vst.msk [vmem:[#allocation2 + $0x50] sm:$0xff] %vm1550, %v1528
      %1562 = vst.msk [vmem:[#allocation2 + $0x58] sm:$0xff] %vm1550, %v1529
      %1563 = vst.msk [vmem:[#allocation2 + $0x60] sm:$0xff] %vm1550, %v1530
      %1564 = vst.msk [vmem:[#allocation2 + $0x68] sm:$0xff] %vm1550, %v1531
      %1565 = vst.msk [vmem:[#allocation2 + $0x70] sm:$0xff] %vm1550, %v1532
      %1566 = vst.msk [vmem:[#allocation2 + $0x78] sm:$0xff] %vm1550, %v1533
      %1567 = vst.msk [vmem:[#allocation2 + $0x80] sm:$0xff] %vm1550, %v1534
      %1568 = vst.msk [vmem:[#allocation2 + $0x88] sm:$0xff] %vm1550, %v1535
      %1569 = vst.msk [vmem:[#allocation2 + $0x90] sm:$0xff] %vm1550, %v1536
      %1570 = vst.msk [vmem:[#allocation2 + $0x98] sm:$0xff] %vm1550, %v1537
      %1571 = vst.msk [vmem:[#allocation2 + $0xa0] sm:$0xff] %vm1550, %v1538
      %1572 = vst.msk [vmem:[#allocation2 + $0xa8] sm:$0xff] %vm1550, %v1539
      %1573 = vst.msk [vmem:[#allocation2 + $0xb0] sm:$0xff] %vm1550, %v1540
      %1574 = vst.msk [vmem:[#allocation2 + $0xb8] sm:$0xff] %vm1550, %v1541
      %1575 = vst.msk [vmem:[#allocation2 + $0xc0] sm:$0xff] %vm1550, %v1542
      %1576 = vst.msk [vmem:[#allocation2 + $0xc8] sm:$0xff] %vm1550, %v1543
      %1577 = vst.msk [vmem:[#allocation2 + $0xd0] sm:$0xff] %vm1550, %v1544
      %1578 = vst.msk [vmem:[#allocation2 + $0xd8] sm:$0xff] %vm1550, %v1545
      %1579 = vst.msk [vmem:[#allocation2 + $0xe0] sm:$0xff] %vm1550, %v1546
      %1580 = vst.msk [vmem:[#allocation2 + $0xe8] sm:$0xff] %vm1550, %v1547
      %1581 = vst.msk [vmem:[#allocation2 + $0xf0] sm:$0xff] %vm1550, %v1548
      %1582 = vst.msk [vmem:[#allocation2 + $0xf8] sm:$0xff] %vm1550, %v1549
      %v1583 = vld [vmem:[%s3 + $0x80] sm:$0xf]
      %v1584 = vld [vmem:[%s3 + $0x84] sm:$0xf]
      %v1585 = vld [vmem:[%s3 + $0x88] sm:$0xf]
      %v1586 = vld [vmem:[%s3 + $0x8c] sm:$0xf]
      %v1587 = vld [vmem:[%s3 + $0x90] sm:$0xf]
      %v1588 = vld [vmem:[%s3 + $0x94] sm:$0xf]
      %v1589 = vld [vmem:[%s3 + $0x98] sm:$0xf]
      %v1590 = vld [vmem:[%s3 + $0x9c] sm:$0xf]
      %v1591 = vld [vmem:[%s3 + $0xa0] sm:$0xf]
      %v1592 = vld [vmem:[%s3 + $0xa4] sm:$0xf]
      %v1593 = vld [vmem:[%s3 + $0xa8] sm:$0xf]
      %v1594 = vld [vmem:[%s3 + $0xac] sm:$0xf]
      %v1595 = vld [vmem:[%s3 + $0xb0] sm:$0xf]
      %v1596 = vld [vmem:[%s3 + $0xb4] sm:$0xf]
      %v1597 = vld [vmem:[%s3 + $0xb8] sm:$0xf]
      %v1598 = vld [vmem:[%s3 + $0xbc] sm:$0xf]
      %v1599 = vld [vmem:[%s3 + $0xc0] sm:$0xf]
      %v1600 = vld [vmem:[%s3 + $0xc4] sm:$0xf]
      %v1601 = vld [vmem:[%s3 + $0xc8] sm:$0xf]
      %v1602 = vld [vmem:[%s3 + $0xcc] sm:$0xf]
      %v1603 = vld [vmem:[%s3 + $0xd0] sm:$0xf]
      %v1604 = vld [vmem:[%s3 + $0xd4] sm:$0xf]
      %v1605 = vld [vmem:[%s3 + $0xd8] sm:$0xf]
      %v1606 = vld [vmem:[%s3 + $0xdc] sm:$0xf]
      %v1607 = vld [vmem:[%s3 + $0xe0] sm:$0xf]
      %v1608 = vld [vmem:[%s3 + $0xe4] sm:$0xf]
      %v1609 = vld [vmem:[%s3 + $0xe8] sm:$0xf]
      %v1610 = vld [vmem:[%s3 + $0xec] sm:$0xf]
      %v1611 = vld [vmem:[%s3 + $0xf0] sm:$0xf]
      %v1612 = vld [vmem:[%s3 + $0xf4] sm:$0xf]
      %v1613 = vld [vmem:[%s3 + $0xf8] sm:$0xf]
      %v1614 = vld [vmem:[%s3 + $0xfc] sm:$0xf]
      %v1615 = vld [vmem:[%s4 + $0x100] sm:$0xff]
      %v1616 = vld [vmem:[%s4 + $0x108] sm:$0xff]
      %v1617 = vld [vmem:[%s4 + $0x110] sm:$0xff]
      %v1618 = vld [vmem:[%s4 + $0x118] sm:$0xff]
      %v1619 = vld [vmem:[%s4 + $0x120] sm:$0xff]
      %v1620 = vld [vmem:[%s4 + $0x128] sm:$0xff]
      %v1621 = vld [vmem:[%s4 + $0x130] sm:$0xff]
      %v1622 = vld [vmem:[%s4 + $0x138] sm:$0xff]
      %v1623 = vld [vmem:[%s4 + $0x140] sm:$0xff]
      %v1624 = vld [vmem:[%s4 + $0x148] sm:$0xff]
      %v1625 = vld [vmem:[%s4 + $0x150] sm:$0xff]
      %v1626 = vld [vmem:[%s4 + $0x158] sm:$0xff]
      %v1627 = vld [vmem:[%s4 + $0x160] sm:$0xff]
      %v1628 = vld [vmem:[%s4 + $0x168] sm:$0xff]
      %v1629 = vld [vmem:[%s4 + $0x170] sm:$0xff]
      %v1630 = vld [vmem:[%s4 + $0x178] sm:$0xff]
      %v1631 = vld [vmem:[%s4 + $0x180] sm:$0xff]
      %v1632 = vld [vmem:[%s4 + $0x188] sm:$0xff]
      %v1633 = vld [vmem:[%s4 + $0x190] sm:$0xff]
      %v1634 = vld [vmem:[%s4 + $0x198] sm:$0xff]
      %v1635 = vld [vmem:[%s4 + $0x1a0] sm:$0xff]
      %v1636 = vld [vmem:[%s4 + $0x1a8] sm:$0xff]
      %v1637 = vld [vmem:[%s4 + $0x1b0] sm:$0xff]
      %v1638 = vld [vmem:[%s4 + $0x1b8] sm:$0xff]
      %v1639 = vld [vmem:[%s4 + $0x1c0] sm:$0xff]
      %v1640 = vld [vmem:[%s4 + $0x1c8] sm:$0xff]
      %v1641 = vld [vmem:[%s4 + $0x1d0] sm:$0xff]
      %v1642 = vld [vmem:[%s4 + $0x1d8] sm:$0xff]
      %v1643 = vld [vmem:[%s4 + $0x1e0] sm:$0xff]
      %v1644 = vld [vmem:[%s4 + $0x1e8] sm:$0xff]
      %v1645 = vld [vmem:[%s4 + $0x1f0] sm:$0xff]
      %v1646 = vld [vmem:[%s4 + $0x1f8] sm:$0xff]
      %1648 = vset.pattern.permute.xlu0 0
      %1649 = vperm.xlu0 %1648, %v1615
      %v1650 = vpop.permute.xlu0 %1649
      %1653 = vset.pattern.permute.xlu0 0
      %1654 = vperm.xlu0 %1653, %v1616
      %v1655 = vpop.permute.xlu0 %1654
      %1658 = vset.pattern.permute.xlu0 0
      %1659 = vperm.xlu0 %1658, %v1617
      %v1660 = vpop.permute.xlu0 %1659
      %1663 = vset.pattern.permute.xlu0 0
      %1664 = vperm.xlu0 %1663, %v1618
      %v1665 = vpop.permute.xlu0 %1664
      %1668 = vset.pattern.permute.xlu0 0
      %1669 = vperm.xlu0 %1668, %v1619
      %v1670 = vpop.permute.xlu0 %1669
      %1673 = vset.pattern.permute.xlu0 0
      %1674 = vperm.xlu0 %1673, %v1620
      %v1675 = vpop.permute.xlu0 %1674
      %1678 = vset.pattern.permute.xlu0 0
      %1679 = vperm.xlu0 %1678, %v1621
      %v1680 = vpop.permute.xlu0 %1679
      %1683 = vset.pattern.permute.xlu0 0
      %1684 = vperm.xlu0 %1683, %v1622
      %v1685 = vpop.permute.xlu0 %1684
      %1688 = vset.pattern.permute.xlu0 0
      %1689 = vperm.xlu0 %1688, %v1623
      %v1690 = vpop.permute.xlu0 %1689
      %1693 = vset.pattern.permute.xlu0 0
      %1694 = vperm.xlu0 %1693, %v1624
      %v1695 = vpop.permute.xlu0 %1694
      %1698 = vset.pattern.permute.xlu0 0
      %1699 = vperm.xlu0 %1698, %v1625
      %v1700 = vpop.permute.xlu0 %1699
      %1703 = vset.pattern.permute.xlu0 0
      %1704 = vperm.xlu0 %1703, %v1626
      %v1705 = vpop.permute.xlu0 %1704
      %1708 = vset.pattern.permute.xlu0 0
      %1709 = vperm.xlu0 %1708, %v1627
      %v1710 = vpop.permute.xlu0 %1709
      %1713 = vset.pattern.permute.xlu0 0
      %1714 = vperm.xlu0 %1713, %v1628
      %v1715 = vpop.permute.xlu0 %1714
      %1718 = vset.pattern.permute.xlu0 0
      %1719 = vperm.xlu0 %1718, %v1629
      %v1720 = vpop.permute.xlu0 %1719
      %1723 = vset.pattern.permute.xlu0 0
      %1724 = vperm.xlu0 %1723, %v1630
      %v1725 = vpop.permute.xlu0 %1724
      %1728 = vset.pattern.permute.xlu0 0
      %1729 = vperm.xlu0 %1728, %v1631
      %v1730 = vpop.permute.xlu0 %1729
      %1733 = vset.pattern.permute.xlu0 0
      %1734 = vperm.xlu0 %1733, %v1632
      %v1735 = vpop.permute.xlu0 %1734
      %1738 = vset.pattern.permute.xlu0 0
      %1739 = vperm.xlu0 %1738, %v1633
      %v1740 = vpop.permute.xlu0 %1739
      %1743 = vset.pattern.permute.xlu0 0
      %1744 = vperm.xlu0 %1743, %v1634
      %v1745 = vpop.permute.xlu0 %1744
      %1748 = vset.pattern.permute.xlu0 0
      %1749 = vperm.xlu0 %1748, %v1635
      %v1750 = vpop.permute.xlu0 %1749
      %1753 = vset.pattern.permute.xlu0 0
      %1754 = vperm.xlu0 %1753, %v1636
      %v1755 = vpop.permute.xlu0 %1754
      %1758 = vset.pattern.permute.xlu0 0
      %1759 = vperm.xlu0 %1758, %v1637
      %v1760 = vpop.permute.xlu0 %1759
      %1763 = vset.pattern.permute.xlu0 0
      %1764 = vperm.xlu0 %1763, %v1638
      %v1765 = vpop.permute.xlu0 %1764
      %1768 = vset.pattern.permute.xlu0 0
      %1769 = vperm.xlu0 %1768, %v1639
      %v1770 = vpop.permute.xlu0 %1769
      %1773 = vset.pattern.permute.xlu0 0
      %1774 = vperm.xlu0 %1773, %v1640
      %v1775 = vpop.permute.xlu0 %1774
      %1778 = vset.pattern.permute.xlu0 0
      %1779 = vperm.xlu0 %1778, %v1641
      %v1780 = vpop.permute.xlu0 %1779
      %1783 = vset.pattern.permute.xlu0 0
      %1784 = vperm.xlu0 %1783, %v1642
      %v1785 = vpop.permute.xlu0 %1784
      %1788 = vset.pattern.permute.xlu0 0
      %1789 = vperm.xlu0 %1788, %v1643
      %v1790 = vpop.permute.xlu0 %1789
      %1793 = vset.pattern.permute.xlu0 0
      %1794 = vperm.xlu0 %1793, %v1644
      %v1795 = vpop.permute.xlu0 %1794
      %1798 = vset.pattern.permute.xlu0 0
      %1799 = vperm.xlu0 %1798, %v1645
      %v1800 = vpop.permute.xlu0 %1799
      %1803 = vset.pattern.permute.xlu0 0
      %1804 = vperm.xlu0 %1803, %v1646
      %v1805 = vpop.permute.xlu0 %1804
      %v1839 = vunpack.c.l.b16 %v1583
      %v1840 = vunpack.c.l.b16 %v1584
      %v1841 = vunpack.c.l.b16 %v1585
      %v1842 = vunpack.c.l.b16 %v1586
      %v1843 = vunpack.c.l.b16 %v1587
      %v1844 = vunpack.c.l.b16 %v1588
      %v1845 = vunpack.c.l.b16 %v1589
      %v1846 = vunpack.c.l.b16 %v1590
      %v1847 = vunpack.c.l.b16 %v1591
      %v1848 = vunpack.c.l.b16 %v1592
      %v1849 = vunpack.c.l.b16 %v1593
      %v1850 = vunpack.c.l.b16 %v1594
      %v1851 = vunpack.c.l.b16 %v1595
      %v1852 = vunpack.c.l.b16 %v1596
      %v1853 = vunpack.c.l.b16 %v1597
      %v1854 = vunpack.c.l.b16 %v1598
      %v1855 = vunpack.c.l.b16 %v1599
      %v1856 = vunpack.c.l.b16 %v1600
      %v1857 = vunpack.c.l.b16 %v1601
      %v1858 = vunpack.c.l.b16 %v1602
      %v1859 = vunpack.c.l.b16 %v1603
      %v1860 = vunpack.c.l.b16 %v1604
      %v1861 = vunpack.c.l.b16 %v1605
      %v1862 = vunpack.c.l.b16 %v1606
      %v1863 = vunpack.c.l.b16 %v1607
      %v1864 = vunpack.c.l.b16 %v1608
      %v1865 = vunpack.c.l.b16 %v1609
      %v1866 = vunpack.c.l.b16 %v1610
      %v1867 = vunpack.c.l.b16 %v1611
      %v1868 = vunpack.c.l.b16 %v1612
      %v1869 = vunpack.c.l.b16 %v1613
      %v1870 = vunpack.c.l.b16 %v1614
      %v1871 = vpack.c.b16 %v1840, %v1839
      %v1872 = vpack.c.b16 %v1842, %v1841
      %v1873 = vpack.c.b16 %v1844, %v1843
      %v1874 = vpack.c.b16 %v1846, %v1845
      %v1875 = vpack.c.b16 %v1848, %v1847
      %v1876 = vpack.c.b16 %v1850, %v1849
      %v1877 = vpack.c.b16 %v1852, %v1851
      %v1878 = vpack.c.b16 %v1854, %v1853
      %v1879 = vpack.c.b16 %v1856, %v1855
      %v1880 = vpack.c.b16 %v1858, %v1857
      %v1881 = vpack.c.b16 %v1860, %v1859
      %v1882 = vpack.c.b16 %v1862, %v1861
      %v1883 = vpack.c.b16 %v1864, %v1863
      %v1884 = vpack.c.b16 %v1866, %v1865
      %v1885 = vpack.c.b16 %v1868, %v1867
      %v1886 = vpack.c.b16 %v1870, %v1869
      %v1888 = vsel %vm951, %v1871, 0
      %v1891 = vsel %vm951, %v1872, 0
      %v1894 = vsel %vm951, %v1873, 0
      %v1897 = vsel %vm951, %v1874, 0
      %v1900 = vsel %vm951, %v1875, 0
      %v1903 = vsel %vm951, %v1876, 0
      %v1906 = vsel %vm951, %v1877, 0
      %v1909 = vsel %vm951, %v1878, 0
      %v1912 = vsel %vm951, %v1879, 0
      %v1915 = vsel %vm951, %v1880, 0
      %v1918 = vsel %vm951, %v1881, 0
      %v1921 = vsel %vm951, %v1882, 0
      %v1924 = vsel %vm951, %v1883, 0
      %v1927 = vsel %vm951, %v1884, 0
      %v1930 = vsel %vm951, %v1885, 0
      %v1933 = vsel %vm951, %v1886, 0
      %1935 = vmatprep.subr.bf16.mxu0 0
      %1936 = vmatpush1.bf16.msra.mxu0 %v644
      %1937 = vmatprep.subr.bf16.mxu0 0
      %1938 = vmatpush1.bf16.msra.mxu0 %v645
      %1939 = vmatprep.subr.bf16.mxu0 0
      %1940 = vmatpush1.bf16.msra.mxu0 %v1002
      %1941 = vmatprep.subr.bf16.mxu0 0
      %1942 = vmatpush1.bf16.msra.mxu0 0
      %1943 = vmatprep.subr.bf16.mxu0 0
      %1944 = vmatpush1.bf16.msra.mxu0 0
      %1945 = vmatprep.subr.bf16.mxu0 0
      %1946 = vmatpush1.bf16.msra.mxu0 0
      %1947 = vmatprep.subr.bf16.mxu0 0
      %1948 = vmatpush1.bf16.msra.mxu0 0
      %1949 = vmatprep.subr.bf16.mxu0 0
      %1950 = vmatpush1.bf16.msra.mxu0 0
      %1951 = vmatprep.subr.bf16.mxu0 0
      %1952 = vmatpush1.bf16.msra.mxu0 0
      %1953 = vmatprep.subr.bf16.mxu0 0
      %1954 = vmatpush1.bf16.msra.mxu0 0
      %1955 = vmatprep.subr.bf16.mxu0 0
      %1956 = vmatpush1.bf16.msra.mxu0 0
      %1957 = vmatprep.subr.bf16.mxu0 0
      %1958 = vmatpush1.bf16.msra.mxu0 0
      %1959 = vmatprep.subr.bf16.mxu0 0
      %1960 = vmatpush1.bf16.msra.mxu0 0
      %1961 = vmatprep.subr.bf16.mxu0 0
      %1962 = vmatpush1.bf16.msra.mxu0 0
      %1963 = vmatprep.subr.bf16.mxu0 0
      %1964 = vmatpush1.bf16.msra.mxu0 0
      %1965 = vmatprep.subr.bf16.mxu0 0
      %1966 = vmatpush1.bf16.msra.mxu0 0
      %1967 = vmatprep.mubr.bf16.mxu0 0
      %1968 = vmatmul.mubr.bf16.gmra.mrb[0].mxu0 %v1888
      %v1969 = vpop.f32.mrb[0].mxu0
      %v1970 = vadd.f32 %v1650, %v1969
      %v1971 = vpop.f32.mrb[0].mxu0
      %v1972 = vpop.f32.mrb[0].mxu0
      %v1973 = vadd.f32 %v1655, %v1972
      %v1974 = vpop.f32.mrb[0].mxu0
      %1975 = vmatprep.mubr.bf16.mxu0 0
      %1976 = vmatmul.mubr.bf16.gmra.mrb[0].mxu0 %v1891
      %v1977 = vpop.f32.mrb[0].mxu0
      %v1978 = vadd.f32 %v1660, %v1977
      %v1979 = vpop.f32.mrb[0].mxu0
      %v1980 = vpop.f32.mrb[0].mxu0
      %v1981 = vadd.f32 %v1665, %v1980
      %v1982 = vpop.f32.mrb[0].mxu0
      %1983 = vmatprep.mubr.bf16.mxu0 0
      %1984 = vmatmul.mubr.bf16.gmra.mrb[0].mxu0 %v1894
      %v1985 = vpop.f32.mrb[0].mxu0
      %v1986 = vadd.f32 %v1670, %v1985
      %v1987 = vpop.f32.mrb[0].mxu0
      %v1988 = vpop.f32.mrb[0].mxu0
      %v1989 = vadd.f32 %v1675, %v1988
      %v1990 = vpop.f32.mrb[0].mxu0
      %1991 = vmatprep.mubr.bf16.mxu0 0
      %1992 = vmatmul.mubr.bf16.gmra.mrb[0].mxu0 %v1897
      %v1993 = vpop.f32.mrb[0].mxu0
      %v1994 = vadd.f32 %v1680, %v1993
      %v1995 = vpop.f32.mrb[0].mxu0
      %v1996 = vpop.f32.mrb[0].mxu0
      %v1997 = vadd.f32 %v1685, %v1996
      %v1998 = vpop.f32.mrb[0].mxu0
      %1999 = vmatprep.mubr.bf16.mxu0 0
      %2000 = vmatmul.mubr.bf16.gmra.mrb[0].mxu0 %v1900
      %v2001 = vpop.f32.mrb[0].mxu0
      %v2002 = vadd.f32 %v1690, %v2001
      %v2003 = vpop.f32.mrb[0].mxu0
      %v2004 = vpop.f32.mrb[0].mxu0
      %v2005 = vadd.f32 %v1695, %v2004
      %v2006 = vpop.f32.mrb[0].mxu0
      %2007 = vmatprep.mubr.bf16.mxu0 0
      %2008 = vmatmul.mubr.bf16.gmra.mrb[0].mxu0 %v1903
      %v2009 = vpop.f32.mrb[0].mxu0
      %v2010 = vadd.f32 %v1700, %v2009
      %v2011 = vpop.f32.mrb[0].mxu0
      %v2012 = vpop.f32.mrb[0].mxu0
      %v2013 = vadd.f32 %v1705, %v2012
      %v2014 = vpop.f32.mrb[0].mxu0
      %2015 = vmatprep.mubr.bf16.mxu0 0
      %2016 = vmatmul.mubr.bf16.gmra.mrb[0].mxu0 %v1906
      %v2017 = vpop.f32.mrb[0].mxu0
      %v2018 = vadd.f32 %v1710, %v2017
      %v2019 = vpop.f32.mrb[0].mxu0
      %v2020 = vpop.f32.mrb[0].mxu0
      %v2021 = vadd.f32 %v1715, %v2020
      %v2022 = vpop.f32.mrb[0].mxu0
      %2023 = vmatprep.mubr.bf16.mxu0 0
      %2024 = vmatmul.mubr.bf16.gmra.mrb[0].mxu0 %v1909
      %v2025 = vpop.f32.mrb[0].mxu0
      %v2026 = vadd.f32 %v1720, %v2025
      %v2027 = vpop.f32.mrb[0].mxu0
      %v2028 = vpop.f32.mrb[0].mxu0
      %v2029 = vadd.f32 %v1725, %v2028
      %v2030 = vpop.f32.mrb[0].mxu0
      %2031 = vmatprep.mubr.bf16.mxu0 0
      %2032 = vmatmul.mubr.bf16.gmra.mrb[0].mxu0 %v1912
      %v2033 = vpop.f32.mrb[0].mxu0
      %v2034 = vadd.f32 %v1730, %v2033
      %v2035 = vpop.f32.mrb[0].mxu0
      %v2036 = vpop.f32.mrb[0].mxu0
      %v2037 = vadd.f32 %v1735, %v2036
      %v2038 = vpop.f32.mrb[0].mxu0
      %2039 = vmatprep.mubr.bf16.mxu0 0
      %2040 = vmatmul.mubr.bf16.gmra.mrb[0].mxu0 %v1915
      %v2041 = vpop.f32.mrb[0].mxu0
      %v2042 = vadd.f32 %v1740, %v2041
      %v2043 = vpop.f32.mrb[0].mxu0
      %v2044 = vpop.f32.mrb[0].mxu0
      %v2045 = vadd.f32 %v1745, %v2044
      %v2046 = vpop.f32.mrb[0].mxu0
      %2047 = vmatprep.mubr.bf16.mxu0 0
      %2048 = vmatmul.mubr.bf16.gmra.mrb[0].mxu0 %v1918
      %v2049 = vpop.f32.mrb[0].mxu0
      %v2050 = vadd.f32 %v1750, %v2049
      %v2051 = vpop.f32.mrb[0].mxu0
      %v2052 = vpop.f32.mrb[0].mxu0
      %v2053 = vadd.f32 %v1755, %v2052
      %v2054 = vpop.f32.mrb[0].mxu0
      %2055 = vmatprep.mubr.bf16.mxu0 0
      %2056 = vmatmul.mubr.bf16.gmra.mrb[0].mxu0 %v1921
      %v2057 = vpop.f32.mrb[0].mxu0
      %v2058 = vadd.f32 %v1760, %v2057
      %v2059 = vpop.f32.mrb[0].mxu0
      %v2060 = vpop.f32.mrb[0].mxu0
      %v2061 = vadd.f32 %v1765, %v2060
      %v2062 = vpop.f32.mrb[0].mxu0
      %2063 = vmatprep.mubr.bf16.mxu0 0
      %2064 = vmatmul.mubr.bf16.gmra.mrb[0].mxu0 %v1924
      %v2065 = vpop.f32.mrb[0].mxu0
      %v2066 = vadd.f32 %v1770, %v2065
      %v2067 = vpop.f32.mrb[0].mxu0
      %v2068 = vpop.f32.mrb[0].mxu0
      %v2069 = vadd.f32 %v1775, %v2068
      %v2070 = vpop.f32.mrb[0].mxu0
      %2071 = vmatprep.mubr.bf16.mxu0 0
      %2072 = vmatmul.mubr.bf16.gmra.mrb[0].mxu0 %v1927
      %v2073 = vpop.f32.mrb[0].mxu0
      %v2074 = vadd.f32 %v1780, %v2073
      %v2075 = vpop.f32.mrb[0].mxu0
      %v2076 = vpop.f32.mrb[0].mxu0
      %v2077 = vadd.f32 %v1785, %v2076
      %v2078 = vpop.f32.mrb[0].mxu0
      %2079 = vmatprep.mubr.bf16.mxu0 0
      %2080 = vmatmul.mubr.bf16.gmra.mrb[0].mxu0 %v1930
      %v2081 = vpop.f32.mrb[0].mxu0
      %v2082 = vadd.f32 %v1790, %v2081
      %v2083 = vpop.f32.mrb[0].mxu0
      %v2084 = vpop.f32.mrb[0].mxu0
      %v2085 = vadd.f32 %v1795, %v2084
      %v2086 = vpop.f32.mrb[0].mxu0
      %2087 = vmatprep.mubr.bf16.mxu0 0
      %2088 = vmatmul.mubr.bf16.gmra.mrb[0].mxu0 %v1933
      %v2089 = vpop.f32.mrb[0].mxu0
      %v2090 = vadd.f32 %v1800, %v2089
      %v2091 = vpop.f32.mrb[0].mxu0
      %v2092 = vpop.f32.mrb[0].mxu0
      %v2093 = vadd.f32 %v1805, %v2092
      %v2094 = vpop.f32.mrb[0].mxu0
      %2095 = vdwg.mxu0
      %v2096 = vxor.u32 %v1970, 2147483648
      %v2097 = vxor.u32 %v1973, 2147483648
      %v2098 = vxor.u32 %v1978, 2147483648
      %v2099 = vxor.u32 %v1981, 2147483648
      %v2100 = vxor.u32 %v1986, 2147483648
      %v2101 = vxor.u32 %v1989, 2147483648
      %v2102 = vxor.u32 %v1994, 2147483648
      %v2103 = vxor.u32 %v1997, 2147483648
      %v2104 = vxor.u32 %v2002, 2147483648
      %v2105 = vxor.u32 %v2005, 2147483648
      %v2106 = vxor.u32 %v2010, 2147483648
      %v2107 = vxor.u32 %v2013, 2147483648
      %v2108 = vxor.u32 %v2018, 2147483648
      %v2109 = vxor.u32 %v2021, 2147483648
      %v2110 = vxor.u32 %v2026, 2147483648
      %v2111 = vxor.u32 %v2029, 2147483648
      %v2112 = vxor.u32 %v2034, 2147483648
      %v2113 = vxor.u32 %v2037, 2147483648
      %v2114 = vxor.u32 %v2042, 2147483648
      %v2115 = vxor.u32 %v2045, 2147483648
      %v2116 = vxor.u32 %v2050, 2147483648
      %v2117 = vxor.u32 %v2053, 2147483648
      %v2118 = vxor.u32 %v2058, 2147483648
      %v2119 = vxor.u32 %v2061, 2147483648
      %v2120 = vxor.u32 %v2066, 2147483648
      %v2121 = vxor.u32 %v2069, 2147483648
      %v2122 = vxor.u32 %v2074, 2147483648
      %v2123 = vxor.u32 %v2077, 2147483648
      %v2124 = vxor.u32 %v2082, 2147483648
      %v2125 = vxor.u32 %v2085, 2147483648
      %v2126 = vxor.u32 %v2090, 2147483648
      %v2127 = vxor.u32 %v2093, 2147483648
      %v2128 = vmul.f32 %v2096, 1.442695
      %v2129 = vpow.pop %v2128
      %v2130 = vmul.f32 %v2097, 1.442695
      %v2131 = vpow.pop %v2130
      %v2132 = vmul.f32 %v2098, 1.442695
      %v2133 = vpow.pop %v2132
      %v2134 = vmul.f32 %v2099, 1.442695
      %v2135 = vpow.pop %v2134
      %v2136 = vmul.f32 %v2100, 1.442695
      %v2137 = vpow.pop %v2136
      %v2138 = vmul.f32 %v2101, 1.442695
      %v2139 = vpow.pop %v2138
      %v2140 = vmul.f32 %v2102, 1.442695
      %v2141 = vpow.pop %v2140
      %v2142 = vmul.f32 %v2103, 1.442695
      %v2143 = vpow.pop %v2142
      %v2144 = vmul.f32 %v2104, 1.442695
      %v2145 = vpow.pop %v2144
      %v2146 = vmul.f32 %v2105, 1.442695
      %v2147 = vpow.pop %v2146
      %v2148 = vmul.f32 %v2106, 1.442695
      %v2149 = vpow.pop %v2148
      %v2150 = vmul.f32 %v2107, 1.442695
      %v2151 = vpow.pop %v2150
      %v2152 = vmul.f32 %v2108, 1.442695
      %v2153 = vpow.pop %v2152
      %v2154 = vmul.f32 %v2109, 1.442695
      %v2155 = vpow.pop %v2154
      %v2156 = vmul.f32 %v2110, 1.442695
      %v2157 = vpow.pop %v2156
      %v2158 = vmul.f32 %v2111, 1.442695
      %v2159 = vpow.pop %v2158
      %v2160 = vmul.f32 %v2112, 1.442695
      %v2161 = vpow.pop %v2160
      %v2162 = vmul.f32 %v2113, 1.442695
      %v2163 = vpow.pop %v2162
      %v2164 = vmul.f32 %v2114, 1.442695
      %v2165 = vpow.pop %v2164
      %v2166 = vmul.f32 %v2115, 1.442695
      %v2167 = vpow.pop %v2166
      %v2168 = vmul.f32 %v2116, 1.442695
      %v2169 = vpow.pop %v2168
      %v2170 = vmul.f32 %v2117, 1.442695
      %v2171 = vpow.pop %v2170
      %v2172 = vmul.f32 %v2118, 1.442695
      %v2173 = vpow.pop %v2172
      %v2174 = vmul.f32 %v2119, 1.442695
      %v2175 = vpow.pop %v2174
      %v2176 = vmul.f32 %v2120, 1.442695
      %v2177 = vpow.pop %v2176
      %v2178 = vmul.f32 %v2121, 1.442695
      %v2179 = vpow.pop %v2178
      %v2180 = vmul.f32 %v2122, 1.442695
      %v2181 = vpow.pop %v2180
      %v2182 = vmul.f32 %v2123, 1.442695
      %v2183 = vpow.pop %v2182
      %v2184 = vmul.f32 %v2124, 1.442695
      %v2185 = vpow.pop %v2184
      %v2186 = vmul.f32 %v2125, 1.442695
      %v2187 = vpow.pop %v2186
      %v2188 = vmul.f32 %v2126, 1.442695
      %v2189 = vpow.pop %v2188
      %v2190 = vmul.f32 %v2127, 1.442695
      %v2191 = vpow.pop %v2190
      %v2192 = vadd.f32 %v2129, 1.0
      %v2193 = vadd.f32 %v2131, 1.0
      %v2194 = vadd.f32 %v2133, 1.0
      %v2195 = vadd.f32 %v2135, 1.0
      %v2196 = vadd.f32 %v2137, 1.0
      %v2197 = vadd.f32 %v2139, 1.0
      %v2198 = vadd.f32 %v2141, 1.0
      %v2199 = vadd.f32 %v2143, 1.0
      %v2200 = vadd.f32 %v2145, 1.0
      %v2201 = vadd.f32 %v2147, 1.0
      %v2202 = vadd.f32 %v2149, 1.0
      %v2203 = vadd.f32 %v2151, 1.0
      %v2204 = vadd.f32 %v2153, 1.0
      %v2205 = vadd.f32 %v2155, 1.0
      %v2206 = vadd.f32 %v2157, 1.0
      %v2207 = vadd.f32 %v2159, 1.0
      %v2208 = vadd.f32 %v2161, 1.0
      %v2209 = vadd.f32 %v2163, 1.0
      %v2210 = vadd.f32 %v2165, 1.0
      %v2211 = vadd.f32 %v2167, 1.0
      %v2212 = vadd.f32 %v2169, 1.0
      %v2213 = vadd.f32 %v2171, 1.0
      %v2214 = vadd.f32 %v2173, 1.0
      %v2215 = vadd.f32 %v2175, 1.0
      %v2216 = vadd.f32 %v2177, 1.0
      %v2217 = vadd.f32 %v2179, 1.0
      %v2218 = vadd.f32 %v2181, 1.0
      %v2219 = vadd.f32 %v2183, 1.0
      %v2220 = vadd.f32 %v2185, 1.0
      %v2221 = vadd.f32 %v2187, 1.0
      %v2222 = vadd.f32 %v2189, 1.0
      %v2223 = vadd.f32 %v2191, 1.0
      %v2224 = vrcp.pop %v2192
      %v2225 = vmul.f32 1.0, %v2224
      %v2226 = vrcp.pop %v2193
      %v2227 = vmul.f32 1.0, %v2226
      %v2228 = vrcp.pop %v2194
      %v2229 = vmul.f32 1.0, %v2228
      %v2230 = vrcp.pop %v2195
      %v2231 = vmul.f32 1.0, %v2230
      %v2232 = vrcp.pop %v2196
      %v2233 = vmul.f32 1.0, %v2232
      %v2234 = vrcp.pop %v2197
      %v2235 = vmul.f32 1.0, %v2234
      %v2236 = vrcp.pop %v2198
      %v2237 = vmul.f32 1.0, %v2236
      %v2238 = vrcp.pop %v2199
      %v2239 = vmul.f32 1.0, %v2238
      %v2240 = vrcp.pop %v2200
      %v2241 = vmul.f32 1.0, %v2240
      %v2242 = vrcp.pop %v2201
      %v2243 = vmul.f32 1.0, %v2242
      %v2244 = vrcp.pop %v2202
      %v2245 = vmul.f32 1.0, %v2244
      %v2246 = vrcp.pop %v2203
      %v2247 = vmul.f32 1.0, %v2246
      %v2248 = vrcp.pop %v2204
      %v2249 = vmul.f32 1.0, %v2248
      %v2250 = vrcp.pop %v2205
      %v2251 = vmul.f32 1.0, %v2250
      %v2252 = vrcp.pop %v2206
      %v2253 = vmul.f32 1.0, %v2252
      %v2254 = vrcp.pop %v2207
      %v2255 = vmul.f32 1.0, %v2254
      %v2256 = vrcp.pop %v2208
      %v2257 = vmul.f32 1.0, %v2256
      %v2258 = vrcp.pop %v2209
      %v2259 = vmul.f32 1.0, %v2258
      %v2260 = vrcp.pop %v2210
      %v2261 = vmul.f32 1.0, %v2260
      %v2262 = vrcp.pop %v2211
      %v2263 = vmul.f32 1.0, %v2262
      %v2264 = vrcp.pop %v2212
      %v2265 = vmul.f32 1.0, %v2264
      %v2266 = vrcp.pop %v2213
      %v2267 = vmul.f32 1.0, %v2266
      %v2268 = vrcp.pop %v2214
      %v2269 = vmul.f32 1.0, %v2268
      %v2270 = vrcp.pop %v2215
      %v2271 = vmul.f32 1.0, %v2270
      %v2272 = vrcp.pop %v2216
      %v2273 = vmul.f32 1.0, %v2272
      %v2274 = vrcp.pop %v2217
      %v2275 = vmul.f32 1.0, %v2274
      %v2276 = vrcp.pop %v2218
      %v2277 = vmul.f32 1.0, %v2276
      %v2278 = vrcp.pop %v2219
      %v2279 = vmul.f32 1.0, %v2278
      %v2280 = vrcp.pop %v2220
      %v2281 = vmul.f32 1.0, %v2280
      %v2282 = vrcp.pop %v2221
      %v2283 = vmul.f32 1.0, %v2282
      %v2284 = vrcp.pop %v2222
      %v2285 = vmul.f32 1.0, %v2284
      %v2286 = vrcp.pop %v2223
      %v2287 = vmul.f32 1.0, %v2286
      %v2288 = vmul.f32 %v1970, %v2225
      %v2289 = vmul.f32 %v1973, %v2227
      %v2290 = vmul.f32 %v1978, %v2229
      %v2291 = vmul.f32 %v1981, %v2231
      %v2292 = vmul.f32 %v1986, %v2233
      %v2293 = vmul.f32 %v1989, %v2235
      %v2294 = vmul.f32 %v1994, %v2237
      %v2295 = vmul.f32 %v1997, %v2239
      %v2296 = vmul.f32 %v2002, %v2241
      %v2297 = vmul.f32 %v2005, %v2243
      %v2298 = vmul.f32 %v2010, %v2245
      %v2299 = vmul.f32 %v2013, %v2247
      %v2300 = vmul.f32 %v2018, %v2249
      %v2301 = vmul.f32 %v2021, %v2251
      %v2302 = vmul.f32 %v2026, %v2253
      %v2303 = vmul.f32 %v2029, %v2255
      %v2304 = vmul.f32 %v2034, %v2257
      %v2305 = vmul.f32 %v2037, %v2259
      %v2306 = vmul.f32 %v2042, %v2261
      %v2307 = vmul.f32 %v2045, %v2263
      %v2308 = vmul.f32 %v2050, %v2265
      %v2309 = vmul.f32 %v2053, %v2267
      %v2310 = vmul.f32 %v2058, %v2269
      %v2311 = vmul.f32 %v2061, %v2271
      %v2312 = vmul.f32 %v2066, %v2273
      %v2313 = vmul.f32 %v2069, %v2275
      %v2314 = vmul.f32 %v2074, %v2277
      %v2315 = vmul.f32 %v2077, %v2279
      %v2316 = vmul.f32 %v2082, %v2281
      %v2317 = vmul.f32 %v2085, %v2283
      %v2318 = vmul.f32 %v2090, %v2285
      %v2319 = vmul.f32 %v2093, %v2287
      %v2320 = vld [vmem:[#allocation2 + $0x100] sm:$0xff]
      %v2321 = vld [vmem:[#allocation2 + $0x108] sm:$0xff]
      %v2322 = vld [vmem:[#allocation2 + $0x110] sm:$0xff]
      %v2323 = vld [vmem:[#allocation2 + $0x118] sm:$0xff]
      %v2324 = vld [vmem:[#allocation2 + $0x120] sm:$0xff]
      %v2325 = vld [vmem:[#allocation2 + $0x128] sm:$0xff]
      %v2326 = vld [vmem:[#allocation2 + $0x130] sm:$0xff]
      %v2327 = vld [vmem:[#allocation2 + $0x138] sm:$0xff]
      %v2328 = vld [vmem:[#allocation2 + $0x140] sm:$0xff]
      %v2329 = vld [vmem:[#allocation2 + $0x148] sm:$0xff]
      %v2330 = vld [vmem:[#allocation2 + $0x150] sm:$0xff]
      %v2331 = vld [vmem:[#allocation2 + $0x158] sm:$0xff]
      %v2332 = vld [vmem:[#allocation2 + $0x160] sm:$0xff]
      %v2333 = vld [vmem:[#allocation2 + $0x168] sm:$0xff]
      %v2334 = vld [vmem:[#allocation2 + $0x170] sm:$0xff]
      %v2335 = vld [vmem:[#allocation2 + $0x178] sm:$0xff]
      %v2336 = vld [vmem:[#allocation2 + $0x180] sm:$0xff]
      %v2337 = vld [vmem:[#allocation2 + $0x188] sm:$0xff]
      %v2338 = vld [vmem:[#allocation2 + $0x190] sm:$0xff]
      %v2339 = vld [vmem:[#allocation2 + $0x198] sm:$0xff]
      %v2340 = vld [vmem:[#allocation2 + $0x1a0] sm:$0xff]
      %v2341 = vld [vmem:[#allocation2 + $0x1a8] sm:$0xff]
      %v2342 = vld [vmem:[#allocation2 + $0x1b0] sm:$0xff]
      %v2343 = vld [vmem:[#allocation2 + $0x1b8] sm:$0xff]
      %v2344 = vld [vmem:[#allocation2 + $0x1c0] sm:$0xff]
      %v2345 = vld [vmem:[#allocation2 + $0x1c8] sm:$0xff]
      %v2346 = vld [vmem:[#allocation2 + $0x1d0] sm:$0xff]
      %v2347 = vld [vmem:[#allocation2 + $0x1d8] sm:$0xff]
      %v2348 = vld [vmem:[#allocation2 + $0x1e0] sm:$0xff]
      %v2349 = vld [vmem:[#allocation2 + $0x1e8] sm:$0xff]
      %v2350 = vld [vmem:[#allocation2 + $0x1f0] sm:$0xff]
      %v2351 = vld [vmem:[#allocation2 + $0x1f8] sm:$0xff]
      %v2352 = vsel %vm1421, %v2288, 0.0
      %2353 = vadd.xlane.f32.xlu0 %v2352
      %v2354 = vpop.xlane.xlu0 %2353
      %v2355 = vsel %vm1421, %v2289, 0.0
      %2356 = vadd.xlane.f32.xlu0 %v2355
      %v2357 = vpop.xlane.xlu0 %2356
      %v2358 = vsel %vm1421, %v2290, 0.0
      %2359 = vadd.xlane.f32.xlu0 %v2358
      %v2360 = vpop.xlane.xlu0 %2359
      %v2361 = vsel %vm1421, %v2291, 0.0
      %2362 = vadd.xlane.f32.xlu0 %v2361
      %v2363 = vpop.xlane.xlu0 %2362
      %v2364 = vsel %vm1421, %v2292, 0.0
      %2365 = vadd.xlane.f32.xlu0 %v2364
      %v2366 = vpop.xlane.xlu0 %2365
      %v2367 = vsel %vm1421, %v2293, 0.0
      %2368 = vadd.xlane.f32.xlu0 %v2367
      %v2369 = vpop.xlane.xlu0 %2368
      %v2370 = vsel %vm1421, %v2294, 0.0
      %2371 = vadd.xlane.f32.xlu0 %v2370
      %v2372 = vpop.xlane.xlu0 %2371
      %v2373 = vsel %vm1421, %v2295, 0.0
      %2374 = vadd.xlane.f32.xlu0 %v2373
      %v2375 = vpop.xlane.xlu0 %2374
      %v2376 = vsel %vm1421, %v2296, 0.0
      %2377 = vadd.xlane.f32.xlu0 %v2376
      %v2378 = vpop.xlane.xlu0 %2377
      %v2379 = vsel %vm1421, %v2297, 0.0
      %2380 = vadd.xlane.f32.xlu0 %v2379
      %v2381 = vpop.xlane.xlu0 %2380
      %v2382 = vsel %vm1421, %v2298, 0.0
      %2383 = vadd.xlane.f32.xlu0 %v2382
      %v2384 = vpop.xlane.xlu0 %2383
      %v2385 = vsel %vm1421, %v2299, 0.0
      %2386 = vadd.xlane.f32.xlu0 %v2385
      %v2387 = vpop.xlane.xlu0 %2386
      %v2388 = vsel %vm1421, %v2300, 0.0
      %2389 = vadd.xlane.f32.xlu0 %v2388
      %v2390 = vpop.xlane.xlu0 %2389
      %v2391 = vsel %vm1421, %v2301, 0.0
      %2392 = vadd.xlane.f32.xlu0 %v2391
      %v2393 = vpop.xlane.xlu0 %2392
      %v2394 = vsel %vm1421, %v2302, 0.0
      %2395 = vadd.xlane.f32.xlu0 %v2394
      %v2396 = vpop.xlane.xlu0 %2395
      %v2397 = vsel %vm1421, %v2303, 0.0
      %2398 = vadd.xlane.f32.xlu0 %v2397
      %v2399 = vpop.xlane.xlu0 %2398
      %v2400 = vsel %vm1421, %v2304, 0.0
      %2401 = vadd.xlane.f32.xlu0 %v2400
      %v2402 = vpop.xlane.xlu0 %2401
      %v2403 = vsel %vm1421, %v2305, 0.0
      %2404 = vadd.xlane.f32.xlu0 %v2403
      %v2405 = vpop.xlane.xlu0 %2404
      %v2406 = vsel %vm1421, %v2306, 0.0
      %2407 = vadd.xlane.f32.xlu0 %v2406
      %v2408 = vpop.xlane.xlu0 %2407
      %v2409 = vsel %vm1421, %v2307, 0.0
      %2410 = vadd.xlane.f32.xlu0 %v2409
      %v2411 = vpop.xlane.xlu0 %2410
      %v2412 = vsel %vm1421, %v2308, 0.0
      %2413 = vadd.xlane.f32.xlu0 %v2412
      %v2414 = vpop.xlane.xlu0 %2413
      %v2415 = vsel %vm1421, %v2309, 0.0
      %2416 = vadd.xlane.f32.xlu0 %v2415
      %v2417 = vpop.xlane.xlu0 %2416
      %v2418 = vsel %vm1421, %v2310, 0.0
      %2419 = vadd.xlane.f32.xlu0 %v2418
      %v2420 = vpop.xlane.xlu0 %2419
      %v2421 = vsel %vm1421, %v2311, 0.0
      %2422 = vadd.xlane.f32.xlu0 %v2421
      %v2423 = vpop.xlane.xlu0 %2422
      %v2424 = vsel %vm1421, %v2312, 0.0
      %2425 = vadd.xlane.f32.xlu0 %v2424
      %v2426 = vpop.xlane.xlu0 %2425
      %v2427 = vsel %vm1421, %v2313, 0.0
      %2428 = vadd.xlane.f32.xlu0 %v2427
      %v2429 = vpop.xlane.xlu0 %2428
      %v2430 = vsel %vm1421, %v2314, 0.0
      %2431 = vadd.xlane.f32.xlu0 %v2430
      %v2432 = vpop.xlane.xlu0 %2431
      %v2433 = vsel %vm1421, %v2315, 0.0
      %2434 = vadd.xlane.f32.xlu0 %v2433
      %v2435 = vpop.xlane.xlu0 %2434
      %v2436 = vsel %vm1421, %v2316, 0.0
      %2437 = vadd.xlane.f32.xlu0 %v2436
      %v2438 = vpop.xlane.xlu0 %2437
      %v2439 = vsel %vm1421, %v2317, 0.0
      %2440 = vadd.xlane.f32.xlu0 %v2439
      %v2441 = vpop.xlane.xlu0 %2440
      %v2442 = vsel %vm1421, %v2318, 0.0
      %2443 = vadd.xlane.f32.xlu0 %v2442
      %v2444 = vpop.xlane.xlu0 %2443
      %v2445 = vsel %vm1421, %v2319, 0.0
      %2446 = vadd.xlane.f32.xlu0 %v2445
      %v2447 = vpop.xlane.xlu0 %2446
      %v2448 = vadd.f32 %v2320, %v2354
      %v2449 = vadd.f32 %v2321, %v2357
      %v2450 = vadd.f32 %v2322, %v2360
      %v2451 = vadd.f32 %v2323, %v2363
      %v2452 = vadd.f32 %v2324, %v2366
      %v2453 = vadd.f32 %v2325, %v2369
      %v2454 = vadd.f32 %v2326, %v2372
      %v2455 = vadd.f32 %v2327, %v2375
      %v2456 = vadd.f32 %v2328, %v2378
      %v2457 = vadd.f32 %v2329, %v2381
      %v2458 = vadd.f32 %v2330, %v2384
      %v2459 = vadd.f32 %v2331, %v2387
      %v2460 = vadd.f32 %v2332, %v2390
      %v2461 = vadd.f32 %v2333, %v2393
      %v2462 = vadd.f32 %v2334, %v2396
      %v2463 = vadd.f32 %v2335, %v2399
      %v2464 = vadd.f32 %v2336, %v2402
      %v2465 = vadd.f32 %v2337, %v2405
      %v2466 = vadd.f32 %v2338, %v2408
      %v2467 = vadd.f32 %v2339, %v2411
      %v2468 = vadd.f32 %v2340, %v2414
      %v2469 = vadd.f32 %v2341, %v2417
      %v2470 = vadd.f32 %v2342, %v2420
      %v2471 = vadd.f32 %v2343, %v2423
      %v2472 = vadd.f32 %v2344, %v2426
      %v2473 = vadd.f32 %v2345, %v2429
      %v2474 = vadd.f32 %v2346, %v2432
      %v2475 = vadd.f32 %v2347, %v2435
      %v2476 = vadd.f32 %v2348, %v2438
      %v2477 = vadd.f32 %v2349, %v2441
      %v2478 = vadd.f32 %v2350, %v2444
      %v2479 = vadd.f32 %v2351, %v2447
      %2480 = vst.msk [vmem:[#allocation2 + $0x100] sm:$0xff] %vm1550, %v2448
      %2481 = vst.msk [vmem:[#allocation2 + $0x108] sm:$0xff] %vm1550, %v2449
      %2482 = vst.msk [vmem:[#allocation2 + $0x110] sm:$0xff] %vm1550, %v2450
      %2483 = vst.msk [vmem:[#allocation2 + $0x118] sm:$0xff] %vm1550, %v2451
      %2484 = vst.msk [vmem:[#allocation2 + $0x120] sm:$0xff] %vm1550, %v2452
      %2485 = vst.msk [vmem:[#allocation2 + $0x128] sm:$0xff] %vm1550, %v2453
      %2486 = vst.msk [vmem:[#allocation2 + $0x130] sm:$0xff] %vm1550, %v2454
      %2487 = vst.msk [vmem:[#allocation2 + $0x138] sm:$0xff] %vm1550, %v2455
      %2488 = vst.msk [vmem:[#allocation2 + $0x140] sm:$0xff] %vm1550, %v2456
      %2489 = vst.msk [vmem:[#allocation2 + $0x148] sm:$0xff] %vm1550, %v2457
      %2490 = vst.msk [vmem:[#allocation2 + $0x150] sm:$0xff] %vm1550, %v2458
      %2491 = vst.msk [vmem:[#allocation2 + $0x158] sm:$0xff] %vm1550, %v2459
      %2492 = vst.msk [vmem:[#allocation2 + $0x160] sm:$0xff] %vm1550, %v2460
      %2493 = vst.msk [vmem:[#allocation2 + $0x168] sm:$0xff] %vm1550, %v2461
      %2494 = vst.msk [vmem:[#allocation2 + $0x170] sm:$0xff] %vm1550, %v2462
      %2495 = vst.msk [vmem:[#allocation2 + $0x178] sm:$0xff] %vm1550, %v2463
      %2496 = vst.msk [vmem:[#allocation2 + $0x180] sm:$0xff] %vm1550, %v2464
      %2497 = vst.msk [vmem:[#allocation2 + $0x188] sm:$0xff] %vm1550, %v2465
      %2498 = vst.msk [vmem:[#allocation2 + $0x190] sm:$0xff] %vm1550, %v2466
      %2499 = vst.msk [vmem:[#allocation2 + $0x198] sm:$0xff] %vm1550, %v2467
      %2500 = vst.msk [vmem:[#allocation2 + $0x1a0] sm:$0xff] %vm1550, %v2468
      %2501 = vst.msk [vmem:[#allocation2 + $0x1a8] sm:$0xff] %vm1550, %v2469
      %2502 = vst.msk [vmem:[#allocation2 + $0x1b0] sm:$0xff] %vm1550, %v2470
      %2503 = vst.msk [vmem:[#allocation2 + $0x1b8] sm:$0xff] %vm1550, %v2471
      %2504 = vst.msk [vmem:[#allocation2 + $0x1c0] sm:$0xff] %vm1550, %v2472
      %2505 = vst.msk [vmem:[#allocation2 + $0x1c8] sm:$0xff] %vm1550, %v2473
      %2506 = vst.msk [vmem:[#allocation2 + $0x1d0] sm:$0xff] %vm1550, %v2474
      %2507 = vst.msk [vmem:[#allocation2 + $0x1d8] sm:$0xff] %vm1550, %v2475
      %2508 = vst.msk [vmem:[#allocation2 + $0x1e0] sm:$0xff] %vm1550, %v2476
      %2509 = vst.msk [vmem:[#allocation2 + $0x1e8] sm:$0xff] %vm1550, %v2477
      %2510 = vst.msk [vmem:[#allocation2 + $0x1f0] sm:$0xff] %vm1550, %v2478
      %2511 = vst.msk [vmem:[#allocation2 + $0x1f8] sm:$0xff] %vm1550, %v2479
      %v2512 = vld [vmem:[%s3 + $0x100] sm:$0xf]
      %v2513 = vld [vmem:[%s3 + $0x104] sm:$0xf]
      %v2514 = vld [vmem:[%s3 + $0x108] sm:$0xf]
      %v2515 = vld [vmem:[%s3 + $0x10c] sm:$0xf]
      %v2516 = vld [vmem:[%s3 + $0x110] sm:$0xf]
      %v2517 = vld [vmem:[%s3 + $0x114] sm:$0xf]
      %v2518 = vld [vmem:[%s3 + $0x118] sm:$0xf]
      %v2519 = vld [vmem:[%s3 + $0x11c] sm:$0xf]
      %v2520 = vld [vmem:[%s3 + $0x120] sm:$0xf]
      %v2521 = vld [vmem:[%s3 + $0x124] sm:$0xf]
      %v2522 = vld [vmem:[%s3 + $0x128] sm:$0xf]
      %v2523 = vld [vmem:[%s3 + $0x12c] sm:$0xf]
      %v2524 = vld [vmem:[%s3 + $0x130] sm:$0xf]
      %v2525 = vld [vmem:[%s3 + $0x134] sm:$0xf]
      %v2526 = vld [vmem:[%s3 + $0x138] sm:$0xf]
      %v2527 = vld [vmem:[%s3 + $0x13c] sm:$0xf]
      %v2528 = vld [vmem:[%s3 + $0x140] sm:$0xf]
      %v2529 = vld [vmem:[%s3 + $0x144] sm:$0xf]
      %v2530 = vld [vmem:[%s3 + $0x148] sm:$0xf]
      %v2531 = vld [vmem:[%s3 + $0x14c] sm:$0xf]
      %v2532 = vld [vmem:[%s3 + $0x150] sm:$0xf]
      %v2533 = vld [vmem:[%s3 + $0x154] sm:$0xf]
      %v2534 = vld [vmem:[%s3 + $0x158] sm:$0xf]
      %v2535 = vld [vmem:[%s3 + $0x15c] sm:$0xf]
      %v2536 = vld [vmem:[%s3 + $0x160] sm:$0xf]
      %v2537 = vld [vmem:[%s3 + $0x164] sm:$0xf]
      %v2538 = vld [vmem:[%s3 + $0x168] sm:$0xf]
      %v2539 = vld [vmem:[%s3 + $0x16c] sm:$0xf]
      %v2540 = vld [vmem:[%s3 + $0x170] sm:$0xf]
      %v2541 = vld [vmem:[%s3 + $0x174] sm:$0xf]
      %v2542 = vld [vmem:[%s3 + $0x178] sm:$0xf]
      %v2543 = vld [vmem:[%s3 + $0x17c] sm:$0xf]
      %v2544 = vld [vmem:[%s4 + $0x200] sm:$0xff]
      %v2545 = vld [vmem:[%s4 + $0x208] sm:$0xff]
      %v2546 = vld [vmem:[%s4 + $0x210] sm:$0xff]
      %v2547 = vld [vmem:[%s4 + $0x218] sm:$0xff]
      %v2548 = vld [vmem:[%s4 + $0x220] sm:$0xff]
      %v2549 = vld [vmem:[%s4 + $0x228] sm:$0xff]
      %v2550 = vld [vmem:[%s4 + $0x230] sm:$0xff]
      %v2551 = vld [vmem:[%s4 + $0x238] sm:$0xff]
      %v2552 = vld [vmem:[%s4 + $0x240] sm:$0xff]
      %v2553 = vld [vmem:[%s4 + $0x248] sm:$0xff]
      %v2554 = vld [vmem:[%s4 + $0x250] sm:$0xff]
      %v2555 = vld [vmem:[%s4 + $0x258] sm:$0xff]
      %v2556 = vld [vmem:[%s4 + $0x260] sm:$0xff]
      %v2557 = vld [vmem:[%s4 + $0x268] sm:$0xff]
      %v2558 = vld [vmem:[%s4 + $0x270] sm:$0xff]
      %v2559 = vld [vmem:[%s4 + $0x278] sm:$0xff]
      %v2560 = vld [vmem:[%s4 + $0x280] sm:$0xff]
      %v2561 = vld [vmem:[%s4 + $0x288] sm:$0xff]
      %v2562 = vld [vmem:[%s4 + $0x290] sm:$0xff]
      %v2563 = vld [vmem:[%s4 + $0x298] sm:$0xff]
      %v2564 = vld [vmem:[%s4 + $0x2a0] sm:$0xff]
      %v2565 = vld [vmem:[%s4 + $0x2a8] sm:$0xff]
      %v2566 = vld [vmem:[%s4 + $0x2b0] sm:$0xff]
      %v2567 = vld [vmem:[%s4 + $0x2b8] sm:$0xff]
      %v2568 = vld [vmem:[%s4 + $0x2c0] sm:$0xff]
      %v2569 = vld [vmem:[%s4 + $0x2c8] sm:$0xff]
      %v2570 = vld [vmem:[%s4 + $0x2d0] sm:$0xff]
      %v2571 = vld [vmem:[%s4 + $0x2d8] sm:$0xff]
      %v2572 = vld [vmem:[%s4 + $0x2e0] sm:$0xff]
      %v2573 = vld [vmem:[%s4 + $0x2e8] sm:$0xff]
      %v2574 = vld [vmem:[%s4 + $0x2f0] sm:$0xff]
      %v2575 = vld [vmem:[%s4 + $0x2f8] sm:$0xff]
      %2577 = vset.pattern.permute.xlu0 0
      %2578 = vperm.xlu0 %2577, %v2544
      %v2579 = vpop.permute.xlu0 %2578
      %2582 = vset.pattern.permute.xlu0 0
      %2583 = vperm.xlu0 %2582, %v2545
      %v2584 = vpop.permute.xlu0 %2583
      %2587 = vset.pattern.permute.xlu0 0
      %2588 = vperm.xlu0 %2587, %v2546
      %v2589 = vpop.permute.xlu0 %2588
      %2592 = vset.pattern.permute.xlu0 0
      %2593 = vperm.xlu0 %2592, %v2547
      %v2594 = vpop.permute.xlu0 %2593
      %2597 = vset.pattern.permute.xlu0 0
      %2598 = vperm.xlu0 %2597, %v2548
      %v2599 = vpop.permute.xlu0 %2598
      %2602 = vset.pattern.permute.xlu0 0
      %2603 = vperm.xlu0 %2602, %v2549
      %v2604 = vpop.permute.xlu0 %2603
      %2607 = vset.pattern.permute.xlu0 0
      %2608 = vperm.xlu0 %2607, %v2550
      %v2609 = vpop.permute.xlu0 %2608
      %2612 = vset.pattern.permute.xlu0 0
      %2613 = vperm.xlu0 %2612, %v2551
      %v2614 = vpop.permute.xlu0 %2613
      %2617 = vset.pattern.permute.xlu0 0
      %2618 = vperm.xlu0 %2617, %v2552
      %v2619 = vpop.permute.xlu0 %2618
      %2622 = vset.pattern.permute.xlu0 0
      %2623 = vperm.xlu0 %2622, %v2553
      %v2624 = vpop.permute.xlu0 %2623
      %2627 = vset.pattern.permute.xlu0 0
      %2628 = vperm.xlu0 %2627, %v2554
      %v2629 = vpop.permute.xlu0 %2628
      %2632 = vset.pattern.permute.xlu0 0
      %2633 = vperm.xlu0 %2632, %v2555
      %v2634 = vpop.permute.xlu0 %2633
      %2637 = vset.pattern.permute.xlu0 0
      %2638 = vperm.xlu0 %2637, %v2556
      %v2639 = vpop.permute.xlu0 %2638
      %2642 = vset.pattern.permute.xlu0 0
      %2643 = vperm.xlu0 %2642, %v2557
      %v2644 = vpop.permute.xlu0 %2643
      %2647 = vset.pattern.permute.xlu0 0
      %2648 = vperm.xlu0 %2647, %v2558
      %v2649 = vpop.permute.xlu0 %2648
      %2652 = vset.pattern.permute.xlu0 0
      %2653 = vperm.xlu0 %2652, %v2559
      %v2654 = vpop.permute.xlu0 %2653
      %2657 = vset.pattern.permute.xlu0 0
      %2658 = vperm.xlu0 %2657, %v2560
      %v2659 = vpop.permute.xlu0 %2658
      %2662 = vset.pattern.permute.xlu0 0
      %2663 = vperm.xlu0 %2662, %v2561
      %v2664 = vpop.permute.xlu0 %2663
      %2667 = vset.pattern.permute.xlu0 0
      %2668 = vperm.xlu0 %2667, %v2562
      %v2669 = vpop.permute.xlu0 %2668
      %2672 = vset.pattern.permute.xlu0 0
      %2673 = vperm.xlu0 %2672, %v2563
      %v2674 = vpop.permute.xlu0 %2673
      %2677 = vset.pattern.permute.xlu0 0
      %2678 = vperm.xlu0 %2677, %v2564
      %v2679 = vpop.permute.xlu0 %2678
      %2682 = vset.pattern.permute.xlu0 0
      %2683 = vperm.xlu0 %2682, %v2565
      %v2684 = vpop.permute.xlu0 %2683
      %2687 = vset.pattern.permute.xlu0 0
      %2688 = vperm.xlu0 %2687, %v2566
      %v2689 = vpop.permute.xlu0 %2688
      %2692 = vset.pattern.permute.xlu0 0
      %2693 = vperm.xlu0 %2692, %v2567
      %v2694 = vpop.permute.xlu0 %2693
      %2697 = vset.pattern.permute.xlu0 0
      %2698 = vperm.xlu0 %2697, %v2568
      %v2699 = vpop.permute.xlu0 %2698
      %2702 = vset.pattern.permute.xlu0 0
      %2703 = vperm.xlu0 %2702, %v2569
      %v2704 = vpop.permute.xlu0 %2703
      %2707 = vset.pattern.permute.xlu0 0
      %2708 = vperm.xlu0 %2707, %v2570
      %v2709 = vpop.permute.xlu0 %2708
      %2712 = vset.pattern.permute.xlu0 0
      %2713 = vperm.xlu0 %2712, %v2571
      %v2714 = vpop.permute.xlu0 %2713
      %2717 = vset.pattern.permute.xlu0 0
      %2718 = vperm.xlu0 %2717, %v2572
      %v2719 = vpop.permute.xlu0 %2718
      %2722 = vset.pattern.permute.xlu0 0
      %2723 = vperm.xlu0 %2722, %v2573
      %v2724 = vpop.permute.xlu0 %2723
      %2727 = vset.pattern.permute.xlu0 0
      %2728 = vperm.xlu0 %2727, %v2574
      %v2729 = vpop.permute.xlu0 %2728
      %2732 = vset.pattern.permute.xlu0 0
      %2733 = vperm.xlu0 %2732, %v2575
      %v2734 = vpop.permute.xlu0 %2733
      %v2768 = vunpack.c.l.b16 %v2512
      %v2769 = vunpack.c.l.b16 %v2513
      %v2770 = vunpack.c.l.b16 %v2514
      %v2771 = vunpack.c.l.b16 %v2515
      %v2772 = vunpack.c.l.b16 %v2516
      %v2773 = vunpack.c.l.b16 %v2517
      %v2774 = vunpack.c.l.b16 %v2518
      %v2775 = vunpack.c.l.b16 %v2519
      %v2776 = vunpack.c.l.b16 %v2520
      %v2777 = vunpack.c.l.b16 %v2521
      %v2778 = vunpack.c.l.b16 %v2522
      %v2779 = vunpack.c.l.b16 %v2523
      %v2780 = vunpack.c.l.b16 %v2524
      %v2781 = vunpack.c.l.b16 %v2525
      %v2782 = vunpack.c.l.b16 %v2526
      %v2783 = vunpack.c.l.b16 %v2527
      %v2784 = vunpack.c.l.b16 %v2528
      %v2785 = vunpack.c.l.b16 %v2529
      %v2786 = vunpack.c.l.b16 %v2530
      %v2787 = vunpack.c.l.b16 %v2531
      %v2788 = vunpack.c.l.b16 %v2532
      %v2789 = vunpack.c.l.b16 %v2533
      %v2790 = vunpack.c.l.b16 %v2534
      %v2791 = vunpack.c.l.b16 %v2535
      %v2792 = vunpack.c.l.b16 %v2536
      %v2793 = vunpack.c.l.b16 %v2537
      %v2794 = vunpack.c.l.b16 %v2538
      %v2795 = vunpack.c.l.b16 %v2539
      %v2796 = vunpack.c.l.b16 %v2540
      %v2797 = vunpack.c.l.b16 %v2541
      %v2798 = vunpack.c.l.b16 %v2542
      %v2799 = vunpack.c.l.b16 %v2543
      %v2800 = vpack.c.b16 %v2769, %v2768
      %v2801 = vpack.c.b16 %v2771, %v2770
      %v2802 = vpack.c.b16 %v2773, %v2772
      %v2803 = vpack.c.b16 %v2775, %v2774
      %v2804 = vpack.c.b16 %v2777, %v2776
      %v2805 = vpack.c.b16 %v2779, %v2778
      %v2806 = vpack.c.b16 %v2781, %v2780
      %v2807 = vpack.c.b16 %v2783, %v2782
      %v2808 = vpack.c.b16 %v2785, %v2784
      %v2809 = vpack.c.b16 %v2787, %v2786
      %v2810 = vpack.c.b16 %v2789, %v2788
      %v2811 = vpack.c.b16 %v2791, %v2790
      %v2812 = vpack.c.b16 %v2793, %v2792
      %v2813 = vpack.c.b16 %v2795, %v2794
      %v2814 = vpack.c.b16 %v2797, %v2796
      %v2815 = vpack.c.b16 %v2799, %v2798
      %v2817 = vsel %vm951, %v2800, 0
      %v2820 = vsel %vm951, %v2801, 0
      %v2823 = vsel %vm951, %v2802, 0
      %v2826 = vsel %vm951, %v2803, 0
      %v2829 = vsel %vm951, %v2804, 0
      %v2832 = vsel %vm951, %v2805, 0
      %v2835 = vsel %vm951, %v2806, 0
      %v2838 = vsel %vm951, %v2807, 0
      %v2841 = vsel %vm951, %v2808, 0
      %v2844 = vsel %vm951, %v2809, 0
      %v2847 = vsel %vm951, %v2810, 0
      %v2850 = vsel %vm951, %v2811, 0
      %v2853 = vsel %vm951, %v2812, 0
      %v2856 = vsel %vm951, %v2813, 0
      %v2859 = vsel %vm951, %v2814, 0
      %v2862 = vsel %vm951, %v2815, 0
      %2864 = vmatprep.subr.bf16.mxu0 0
      %2865 = vmatpush1.bf16.msra.mxu0 %v644
      %2866 = vmatprep.subr.bf16.mxu0 0
      %2867 = vmatpush1.bf16.msra.mxu0 %v645
      %2868 = vmatprep.subr.bf16.mxu0 0
      %2869 = vmatpush1.bf16.msra.mxu0 %v1002
      %2870 = vmatprep.subr.bf16.mxu0 0
      %2871 = vmatpush1.bf16.msra.mxu0 0
      %2872 = vmatprep.subr.bf16.mxu0 0
      %2873 = vmatpush1.bf16.msra.mxu0 0
      %2874 = vmatprep.subr.bf16.mxu0 0
      %2875 = vmatpush1.bf16.msra.mxu0 0
      %2876 = vmatprep.subr.bf16.mxu0 0
      %2877 = vmatpush1.bf16.msra.mxu0 0
      %2878 = vmatprep.subr.bf16.mxu0 0
      %2879 = vmatpush1.bf16.msra.mxu0 0
      %2880 = vmatprep.subr.bf16.mxu0 0
      %2881 = vmatpush1.bf16.msra.mxu0 0
      %2882 = vmatprep.subr.bf16.mxu0 0
      %2883 = vmatpush1.bf16.msra.mxu0 0
      %2884 = vmatprep.subr.bf16.mxu0 0
      %2885 = vmatpush1.bf16.msra.mxu0 0
      %2886 = vmatprep.subr.bf16.mxu0 0
      %2887 = vmatpush1.bf16.msra.mxu0 0
      %2888 = vmatprep.subr.bf16.mxu0 0
      %2889 = vmatpush1.bf16.msra.mxu0 0
      %2890 = vmatprep.subr.bf16.mxu0 0
      %2891 = vmatpush1.bf16.msra.mxu0 0
      %2892 = vmatprep.subr.bf16.mxu0 0
      %2893 = vmatpush1.bf16.msra.mxu0 0
      %2894 = vmatprep.subr.bf16.mxu0 0
      %2895 = vmatpush1.bf16.msra.mxu0 0
      %2896 = vmatprep.mubr.bf16.mxu0 0
      %2897 = vmatmul.mubr.bf16.gmra.mrb[0].mxu0 %v2817
      %v2898 = vpop.f32.mrb[0].mxu0
      %v2899 = vadd.f32 %v2579, %v2898
      %v2900 = vpop.f32.mrb[0].mxu0
      %v2901 = vpop.f32.mrb[0].mxu0
      %v2902 = vadd.f32 %v2584, %v2901
      %v2903 = vpop.f32.mrb[0].mxu0
      %2904 = vmatprep.mubr.bf16.mxu0 0
      %2905 = vmatmul.mubr.bf16.gmra.mrb[0].mxu0 %v2820
      %v2906 = vpop.f32.mrb[0].mxu0
      %v2907 = vadd.f32 %v2589, %v2906
      %v2908 = vpop.f32.mrb[0].mxu0
      %v2909 = vpop.f32.mrb[0].mxu0
      %v2910 = vadd.f32 %v2594, %v2909
      %v2911 = vpop.f32.mrb[0].mxu0
      %2912 = vmatprep.mubr.bf16.mxu0 0
      %2913 = vmatmul.mubr.bf16.gmra.mrb[0].mxu0 %v2823
      %v2914 = vpop.f32.mrb[0].mxu0
      %v2915 = vadd.f32 %v2599, %v2914
      %v2916 = vpop.f32.mrb[0].mxu0
      %v2917 = vpop.f32.mrb[0].mxu0
      %v2918 = vadd.f32 %v2604, %v2917
      %v2919 = vpop.f32.mrb[0].mxu0
      %2920 = vmatprep.mubr.bf16.mxu0 0
      %2921 = vmatmul.mubr.bf16.gmra.mrb[0].mxu0 %v2826
      %v2922 = vpop.f32.mrb[0].mxu0
      %v2923 = vadd.f32 %v2609, %v2922
      %v2924 = vpop.f32.mrb[0].mxu0
      %v2925 = vpop.f32.mrb[0].mxu0
      %v2926 = vadd.f32 %v2614, %v2925
      %v2927 = vpop.f32.mrb[0].mxu0
      %2928 = vmatprep.mubr.bf16.mxu0 0
      %2929 = vmatmul.mubr.bf16.gmra.mrb[0].mxu0 %v2829
      %v2930 = vpop.f32.mrb[0].mxu0
      %v2931 = vadd.f32 %v2619, %v2930
      %v2932 = vpop.f32.mrb[0].mxu0
      %v2933 = vpop.f32.mrb[0].mxu0
      %v2934 = vadd.f32 %v2624, %v2933
      %v2935 = vpop.f32.mrb[0].mxu0
      %2936 = vmatprep.mubr.bf16.mxu0 0
      %2937 = vmatmul.mubr.bf16.gmra.mrb[0].mxu0 %v2832
      %v2938 = vpop.f32.mrb[0].mxu0
      %v2939 = vadd.f32 %v2629, %v2938
      %v2940 = vpop.f32.mrb[0].mxu0
      %v2941 = vpop.f32.mrb[0].mxu0
      %v2942 = vadd.f32 %v2634, %v2941
      %v2943 = vpop.f32.mrb[0].mxu0
      %2944 = vmatprep.mubr.bf16.mxu0 0
      %2945 = vmatmul.mubr.bf16.gmra.mrb[0].mxu0 %v2835
      %v2946 = vpop.f32.mrb[0].mxu0
      %v2947 = vadd.f32 %v2639, %v2946
      %v2948 = vpop.f32.mrb[0].mxu0
      %v2949 = vpop.f32.mrb[0].mxu0
      %v2950 = vadd.f32 %v2644, %v2949
      %v2951 = vpop.f32.mrb[0].mxu0
      %2952 = vmatprep.mubr.bf16.mxu0 0
      %2953 = vmatmul.mubr.bf16.gmra.mrb[0].mxu0 %v2838
      %v2954 = vpop.f32.mrb[0].mxu0
      %v2955 = vadd.f32 %v2649, %v2954
      %v2956 = vpop.f32.mrb[0].mxu0
      %v2957 = vpop.f32.mrb[0].mxu0
      %v2958 = vadd.f32 %v2654, %v2957
      %v2959 = vpop.f32.mrb[0].mxu0
      %2960 = vmatprep.mubr.bf16.mxu0 0
      %2961 = vmatmul.mubr.bf16.gmra.mrb[0].mxu0 %v2841
      %v2962 = vpop.f32.mrb[0].mxu0
      %v2963 = vadd.f32 %v2659, %v2962
      %v2964 = vpop.f32.mrb[0].mxu0
      %v2965 = vpop.f32.mrb[0].mxu0
      %v2966 = vadd.f32 %v2664, %v2965
      %v2967 = vpop.f32.mrb[0].mxu0
      %2968 = vmatprep.mubr.bf16.mxu0 0
      %2969 = vmatmul.mubr.bf16.gmra.mrb[0].mxu0 %v2844
      %v2970 = vpop.f32.mrb[0].mxu0
      %v2971 = vadd.f32 %v2669, %v2970
      %v2972 = vpop.f32.mrb[0].mxu0
      %v2973 = vpop.f32.mrb[0].mxu0
      %v2974 = vadd.f32 %v2674, %v2973
      %v2975 = vpop.f32.mrb[0].mxu0
      %2976 = vmatprep.mubr.bf16.mxu0 0
      %2977 = vmatmul.mubr.bf16.gmra.mrb[0].mxu0 %v2847
      %v2978 = vpop.f32.mrb[0].mxu0
      %v2979 = vadd.f32 %v2679, %v2978
      %v2980 = vpop.f32.mrb[0].mxu0
      %v2981 = vpop.f32.mrb[0].mxu0
      %v2982 = vadd.f32 %v2684, %v2981
      %v2983 = vpop.f32.mrb[0].mxu0
      %2984 = vmatprep.mubr.bf16.mxu0 0
      %2985 = vmatmul.mubr.bf16.gmra.mrb[0].mxu0 %v2850
      %v2986 = vpop.f32.mrb[0].mxu0
      %v2987 = vadd.f32 %v2689, %v2986
      %v2988 = vpop.f32.mrb[0].mxu0
      %v2989 = vpop.f32.mrb[0].mxu0
      %v2990 = vadd.f32 %v2694, %v2989
      %v2991 = vpop.f32.mrb[0].mxu0
      %2992 = vmatprep.mubr.bf16.mxu0 0
      %2993 = vmatmul.mubr.bf16.gmra.mrb[0].mxu0 %v2853
      %v2994 = vpop.f32.mrb[0].mxu0
      %v2995 = vadd.f32 %v2699, %v2994
      %v2996 = vpop.f32.mrb[0].mxu0
      %v2997 = vpop.f32.mrb[0].mxu0
      %v2998 = vadd.f32 %v2704, %v2997
      %v2999 = vpop.f32.mrb[0].mxu0
      %3000 = vmatprep.mubr.bf16.mxu0 0
      %3001 = vmatmul.mubr.bf16.gmra.mrb[0].mxu0 %v2856
      %v3002 = vpop.f32.mrb[0].mxu0
      %v3003 = vadd.f32 %v2709, %v3002
      %v3004 = vpop.f32.mrb[0].mxu0
      %v3005 = vpop.f32.mrb[0].mxu0
      %v3006 = vadd.f32 %v2714, %v3005
      %v3007 = vpop.f32.mrb[0].mxu0
      %3008 = vmatprep.mubr.bf16.mxu0 0
      %3009 = vmatmul.mubr.bf16.gmra.mrb[0].mxu0 %v2859
      %v3010 = vpop.f32.mrb[0].mxu0
      %v3011 = vadd.f32 %v2719, %v3010
      %v3012 = vpop.f32.mrb[0].mxu0
      %v3013 = vpop.f32.mrb[0].mxu0
      %v3014 = vadd.f32 %v2724, %v3013
      %v3015 = vpop.f32.mrb[0].mxu0
      %3016 = vmatprep.mubr.bf16.mxu0 0
      %3017 = vmatmul.mubr.bf16.gmra.mrb[0].mxu0 %v2862
      %v3018 = vpop.f32.mrb[0].mxu0
      %v3019 = vadd.f32 %v2729, %v3018
      %v3020 = vpop.f32.mrb[0].mxu0
      %v3021 = vpop.f32.mrb[0].mxu0
      %v3022 = vadd.f32 %v2734, %v3021
      %v3023 = vpop.f32.mrb[0].mxu0
      %3024 = vdwg.mxu0
      %v3025 = vxor.u32 %v2899, 2147483648
      %v3026 = vxor.u32 %v2902, 2147483648
      %v3027 = vxor.u32 %v2907, 2147483648
      %v3028 = vxor.u32 %v2910, 2147483648
      %v3029 = vxor.u32 %v2915, 2147483648
      %v3030 = vxor.u32 %v2918, 2147483648
      %v3031 = vxor.u32 %v2923, 2147483648
      %v3032 = vxor.u32 %v2926, 2147483648
      %v3033 = vxor.u32 %v2931, 2147483648
      %v3034 = vxor.u32 %v2934, 2147483648
      %v3035 = vxor.u32 %v2939, 2147483648
      %v3036 = vxor.u32 %v2942, 2147483648
      %v3037 = vxor.u32 %v2947, 2147483648
      %v3038 = vxor.u32 %v2950, 2147483648
      %v3039 = vxor.u32 %v2955, 2147483648
      %v3040 = vxor.u32 %v2958, 2147483648
      %v3041 = vxor.u32 %v2963, 2147483648
      %v3042 = vxor.u32 %v2966, 2147483648
      %v3043 = vxor.u32 %v2971, 2147483648
      %v3044 = vxor.u32 %v2974, 2147483648
      %v3045 = vxor.u32 %v2979, 2147483648
      %v3046 = vxor.u32 %v2982, 2147483648
      %v3047 = vxor.u32 %v2987, 2147483648
      %v3048 = vxor.u32 %v2990, 2147483648
      %v3049 = vxor.u32 %v2995, 2147483648
      %v3050 = vxor.u32 %v2998, 2147483648
      %v3051 = vxor.u32 %v3003, 2147483648
      %v3052 = vxor.u32 %v3006, 2147483648
      %v3053 = vxor.u32 %v3011, 2147483648
      %v3054 = vxor.u32 %v3014, 2147483648
      %v3055 = vxor.u32 %v3019, 2147483648
      %v3056 = vxor.u32 %v3022, 2147483648
      %v3057 = vmul.f32 %v3025, 1.442695
      %v3058 = vpow.pop %v3057
      %v3059 = vmul.f32 %v3026, 1.442695
      %v3060 = vpow.pop %v3059
      %v3061 = vmul.f32 %v3027, 1.442695
      %v3062 = vpow.pop %v3061
      %v3063 = vmul.f32 %v3028, 1.442695
      %v3064 = vpow.pop %v3063
      %v3065 = vmul.f32 %v3029, 1.442695
      %v3066 = vpow.pop %v3065
      %v3067 = vmul.f32 %v3030, 1.442695
      %v3068 = vpow.pop %v3067
      %v3069 = vmul.f32 %v3031, 1.442695
      %v3070 = vpow.pop %v3069
      %v3071 = vmul.f32 %v3032, 1.442695
      %v3072 = vpow.pop %v3071
      %v3073 = vmul.f32 %v3033, 1.442695
      %v3074 = vpow.pop %v3073
      %v3075 = vmul.f32 %v3034, 1.442695
      %v3076 = vpow.pop %v3075
      %v3077 = vmul.f32 %v3035, 1.442695
      %v3078 = vpow.pop %v3077
      %v3079 = vmul.f32 %v3036, 1.442695
      %v3080 = vpow.pop %v3079
      %v3081 = vmul.f32 %v3037, 1.442695
      %v3082 = vpow.pop %v3081
      %v3083 = vmul.f32 %v3038, 1.442695
      %v3084 = vpow.pop %v3083
      %v3085 = vmul.f32 %v3039, 1.442695
      %v3086 = vpow.pop %v3085
      %v3087 = vmul.f32 %v3040, 1.442695
      %v3088 = vpow.pop %v3087
      %v3089 = vmul.f32 %v3041, 1.442695
      %v3090 = vpow.pop %v3089
      %v3091 = vmul.f32 %v3042, 1.442695
      %v3092 = vpow.pop %v3091
      %v3093 = vmul.f32 %v3043, 1.442695
      %v3094 = vpow.pop %v3093
      %v3095 = vmul.f32 %v3044, 1.442695
      %v3096 = vpow.pop %v3095
      %v3097 = vmul.f32 %v3045, 1.442695
      %v3098 = vpow.pop %v3097
      %v3099 = vmul.f32 %v3046, 1.442695
      %v3100 = vpow.pop %v3099
      %v3101 = vmul.f32 %v3047, 1.442695
      %v3102 = vpow.pop %v3101
      %v3103 = vmul.f32 %v3048, 1.442695
      %v3104 = vpow.pop %v3103
      %v3105 = vmul.f32 %v3049, 1.442695
      %v3106 = vpow.pop %v3105
      %v3107 = vmul.f32 %v3050, 1.442695
      %v3108 = vpow.pop %v3107
      %v3109 = vmul.f32 %v3051, 1.442695
      %v3110 = vpow.pop %v3109
      %v3111 = vmul.f32 %v3052, 1.442695
      %v3112 = vpow.pop %v3111
      %v3113 = vmul.f32 %v3053, 1.442695
      %v3114 = vpow.pop %v3113
      %v3115 = vmul.f32 %v3054, 1.442695
      %v3116 = vpow.pop %v3115
      %v3117 = vmul.f32 %v3055, 1.442695
      %v3118 = vpow.pop %v3117
      %v3119 = vmul.f32 %v3056, 1.442695
      %v3120 = vpow.pop %v3119
      %v3121 = vadd.f32 %v3058, 1.0
      %v3122 = vadd.f32 %v3060, 1.0
      %v3123 = vadd.f32 %v3062, 1.0
      %v3124 = vadd.f32 %v3064, 1.0
      %v3125 = vadd.f32 %v3066, 1.0
      %v3126 = vadd.f32 %v3068, 1.0
      %v3127 = vadd.f32 %v3070, 1.0
      %v3128 = vadd.f32 %v3072, 1.0
      %v3129 = vadd.f32 %v3074, 1.0
      %v3130 = vadd.f32 %v3076, 1.0
      %v3131 = vadd.f32 %v3078, 1.0
      %v3132 = vadd.f32 %v3080, 1.0
      %v3133 = vadd.f32 %v3082, 1.0
      %v3134 = vadd.f32 %v3084, 1.0
      %v3135 = vadd.f32 %v3086, 1.0
      %v3136 = vadd.f32 %v3088, 1.0
      %v3137 = vadd.f32 %v3090, 1.0
      %v3138 = vadd.f32 %v3092, 1.0
      %v3139 = vadd.f32 %v3094, 1.0
      %v3140 = vadd.f32 %v3096, 1.0
      %v3141 = vadd.f32 %v3098, 1.0
      %v3142 = vadd.f32 %v3100, 1.0
      %v3143 = vadd.f32 %v3102, 1.0
      %v3144 = vadd.f32 %v3104, 1.0
      %v3145 = vadd.f32 %v3106, 1.0
      %v3146 = vadd.f32 %v3108, 1.0
      %v3147 = vadd.f32 %v3110, 1.0
      %v3148 = vadd.f32 %v3112, 1.0
      %v3149 = vadd.f32 %v3114, 1.0
      %v3150 = vadd.f32 %v3116, 1.0
      %v3151 = vadd.f32 %v3118, 1.0
      %v3152 = vadd.f32 %v3120, 1.0
      %v3153 = vrcp.pop %v3121
      %v3154 = vmul.f32 1.0, %v3153
      %v3155 = vrcp.pop %v3122
      %v3156 = vmul.f32 1.0, %v3155
      %v3157 = vrcp.pop %v3123
      %v3158 = vmul.f32 1.0, %v3157
      %v3159 = vrcp.pop %v3124
      %v3160 = vmul.f32 1.0, %v3159
      %v3161 = vrcp.pop %v3125
      %v3162 = vmul.f32 1.0, %v3161
      %v3163 = vrcp.pop %v3126
      %v3164 = vmul.f32 1.0, %v3163
      %v3165 = vrcp.pop %v3127
      %v3166 = vmul.f32 1.0, %v3165
      %v3167 = vrcp.pop %v3128
      %v3168 = vmul.f32 1.0, %v3167
      %v3169 = vrcp.pop %v3129
      %v3170 = vmul.f32 1.0, %v3169
      %v3171 = vrcp.pop %v3130
      %v3172 = vmul.f32 1.0, %v3171
      %v3173 = vrcp.pop %v3131
      %v3174 = vmul.f32 1.0, %v3173
      %v3175 = vrcp.pop %v3132
      %v3176 = vmul.f32 1.0, %v3175
      %v3177 = vrcp.pop %v3133
      %v3178 = vmul.f32 1.0, %v3177
      %v3179 = vrcp.pop %v3134
      %v3180 = vmul.f32 1.0, %v3179
      %v3181 = vrcp.pop %v3135
      %v3182 = vmul.f32 1.0, %v3181
      %v3183 = vrcp.pop %v3136
      %v3184 = vmul.f32 1.0, %v3183
      %v3185 = vrcp.pop %v3137
      %v3186 = vmul.f32 1.0, %v3185
      %v3187 = vrcp.pop %v3138
      %v3188 = vmul.f32 1.0, %v3187
      %v3189 = vrcp.pop %v3139
      %v3190 = vmul.f32 1.0, %v3189
      %v3191 = vrcp.pop %v3140
      %v3192 = vmul.f32 1.0, %v3191
      %v3193 = vrcp.pop %v3141
      %v3194 = vmul.f32 1.0, %v3193
      %v3195 = vrcp.pop %v3142
      %v3196 = vmul.f32 1.0, %v3195
      %v3197 = vrcp.pop %v3143
      %v3198 = vmul.f32 1.0, %v3197
      %v3199 = vrcp.pop %v3144
      %v3200 = vmul.f32 1.0, %v3199
      %v3201 = vrcp.pop %v3145
      %v3202 = vmul.f32 1.0, %v3201
      %v3203 = vrcp.pop %v3146
      %v3204 = vmul.f32 1.0, %v3203
      %v3205 = vrcp.pop %v3147
      %v3206 = vmul.f32 1.0, %v3205
      %v3207 = vrcp.pop %v3148
      %v3208 = vmul.f32 1.0, %v3207
      %v3209 = vrcp.pop %v3149
      %v3210 = vmul.f32 1.0, %v3209
      %v3211 = vrcp.pop %v3150
      %v3212 = vmul.f32 1.0, %v3211
      %v3213 = vrcp.pop %v3151
      %v3214 = vmul.f32 1.0, %v3213
      %v3215 = vrcp.pop %v3152
      %v3216 = vmul.f32 1.0, %v3215
      %v3217 = vmul.f32 %v2899, %v3154
      %v3218 = vmul.f32 %v2902, %v3156
      %v3219 = vmul.f32 %v2907, %v3158
      %v3220 = vmul.f32 %v2910, %v3160
      %v3221 = vmul.f32 %v2915, %v3162
      %v3222 = vmul.f32 %v2918, %v3164
      %v3223 = vmul.f32 %v2923, %v3166
      %v3224 = vmul.f32 %v2926, %v3168
      %v3225 = vmul.f32 %v2931, %v3170
      %v3226 = vmul.f32 %v2934, %v3172
      %v3227 = vmul.f32 %v2939, %v3174
      %v3228 = vmul.f32 %v2942, %v3176
      %v3229 = vmul.f32 %v2947, %v3178
      %v3230 = vmul.f32 %v2950, %v3180
      %v3231 = vmul.f32 %v2955, %v3182
      %v3232 = vmul.f32 %v2958, %v3184
      %v3233 = vmul.f32 %v2963, %v3186
      %v3234 = vmul.f32 %v2966, %v3188
      %v3235 = vmul.f32 %v2971, %v3190
      %v3236 = vmul.f32 %v2974, %v3192
      %v3237 = vmul.f32 %v2979, %v3194
      %v3238 = vmul.f32 %v2982, %v3196
      %v3239 = vmul.f32 %v2987, %v3198
      %v3240 = vmul.f32 %v2990, %v3200
      %v3241 = vmul.f32 %v2995, %v3202
      %v3242 = vmul.f32 %v2998, %v3204
      %v3243 = vmul.f32 %v3003, %v3206
      %v3244 = vmul.f32 %v3006, %v3208
      %v3245 = vmul.f32 %v3011, %v3210
      %v3246 = vmul.f32 %v3014, %v3212
      %v3247 = vmul.f32 %v3019, %v3214
      %v3248 = vmul.f32 %v3022, %v3216
      %v3249 = vld [vmem:[#allocation2 + $0x200] sm:$0xff]
      %v3250 = vld [vmem:[#allocation2 + $0x208] sm:$0xff]
      %v3251 = vld [vmem:[#allocation2 + $0x210] sm:$0xff]
      %v3252 = vld [vmem:[#allocation2 + $0x218] sm:$0xff]
      %v3253 = vld [vmem:[#allocation2 + $0x220] sm:$0xff]
      %v3254 = vld [vmem:[#allocation2 + $0x228] sm:$0xff]
      %v3255 = vld [vmem:[#allocation2 + $0x230] sm:$0xff]
      %v3256 = vld [vmem:[#allocation2 + $0x238] sm:$0xff]
      %v3257 = vld [vmem:[#allocation2 + $0x240] sm:$0xff]
      %v3258 = vld [vmem:[#allocation2 + $0x248] sm:$0xff]
      %v3259 = vld [vmem:[#allocation2 + $0x250] sm:$0xff]
      %v3260 = vld [vmem:[#allocation2 + $0x258] sm:$0xff]
      %v3261 = vld [vmem:[#allocation2 + $0x260] sm:$0xff]
      %v3262 = vld [vmem:[#allocation2 + $0x268] sm:$0xff]
      %v3263 = vld [vmem:[#allocation2 + $0x270] sm:$0xff]
      %v3264 = vld [vmem:[#allocation2 + $0x278] sm:$0xff]
      %v3265 = vld [vmem:[#allocation2 + $0x280] sm:$0xff]
      %v3266 = vld [vmem:[#allocation2 + $0x288] sm:$0xff]
      %v3267 = vld [vmem:[#allocation2 + $0x290] sm:$0xff]
      %v3268 = vld [vmem:[#allocation2 + $0x298] sm:$0xff]
      %v3269 = vld [vmem:[#allocation2 + $0x2a0] sm:$0xff]
      %v3270 = vld [vmem:[#allocation2 + $0x2a8] sm:$0xff]
      %v3271 = vld [vmem:[#allocation2 + $0x2b0] sm:$0xff]
      %v3272 = vld [vmem:[#allocation2 + $0x2b8] sm:$0xff]
      %v3273 = vld [vmem:[#allocation2 + $0x2c0] sm:$0xff]
      %v3274 = vld [vmem:[#allocation2 + $0x2c8] sm:$0xff]
      %v3275 = vld [vmem:[#allocation2 + $0x2d0] sm:$0xff]
      %v3276 = vld [vmem:[#allocation2 + $0x2d8] sm:$0xff]
      %v3277 = vld [vmem:[#allocation2 + $0x2e0] sm:$0xff]
      %v3278 = vld [vmem:[#allocation2 + $0x2e8] sm:$0xff]
      %v3279 = vld [vmem:[#allocation2 + $0x2f0] sm:$0xff]
      %v3280 = vld [vmem:[#allocation2 + $0x2f8] sm:$0xff]
      %v3281 = vsel %vm1421, %v3217, 0.0
      %3282 = vadd.xlane.f32.xlu0 %v3281
      %v3283 = vpop.xlane.xlu0 %3282
      %v3284 = vsel %vm1421, %v3218, 0.0
      %3285 = vadd.xlane.f32.xlu0 %v3284
      %v3286 = vpop.xlane.xlu0 %3285
      %v3287 = vsel %vm1421, %v3219, 0.0
      %3288 = vadd.xlane.f32.xlu0 %v3287
      %v3289 = vpop.xlane.xlu0 %3288
      %v3290 = vsel %vm1421, %v3220, 0.0
      %3291 = vadd.xlane.f32.xlu0 %v3290
      %v3292 = vpop.xlane.xlu0 %3291
      %v3293 = vsel %vm1421, %v3221, 0.0
      %3294 = vadd.xlane.f32.xlu0 %v3293
      %v3295 = vpop.xlane.xlu0 %3294
      %v3296 = vsel %vm1421, %v3222, 0.0
      %3297 = vadd.xlane.f32.xlu0 %v3296
      %v3298 = vpop.xlane.xlu0 %3297
      %v3299 = vsel %vm1421, %v3223, 0.0
      %3300 = vadd.xlane.f32.xlu0 %v3299
      %v3301 = vpop.xlane.xlu0 %3300
      %v3302 = vsel %vm1421, %v3224, 0.0
      %3303 = vadd.xlane.f32.xlu0 %v3302
      %v3304 = vpop.xlane.xlu0 %3303
      %v3305 = vsel %vm1421, %v3225, 0.0
      %3306 = vadd.xlane.f32.xlu0 %v3305
      %v3307 = vpop.xlane.xlu0 %3306
      %v3308 = vsel %vm1421, %v3226, 0.0
      %3309 = vadd.xlane.f32.xlu0 %v3308
      %v3310 = vpop.xlane.xlu0 %3309
      %v3311 = vsel %vm1421, %v3227, 0.0
      %3312 = vadd.xlane.f32.xlu0 %v3311
      %v3313 = vpop.xlane.xlu0 %3312
      %v3314 = vsel %vm1421, %v3228, 0.0
      %3315 = vadd.xlane.f32.xlu0 %v3314
      %v3316 = vpop.xlane.xlu0 %3315
      %v3317 = vsel %vm1421, %v3229, 0.0
      %3318 = vadd.xlane.f32.xlu0 %v3317
      %v3319 = vpop.xlane.xlu0 %3318
      %v3320 = vsel %vm1421, %v3230, 0.0
      %3321 = vadd.xlane.f32.xlu0 %v3320
      %v3322 = vpop.xlane.xlu0 %3321
      %v3323 = vsel %vm1421, %v3231, 0.0
      %3324 = vadd.xlane.f32.xlu0 %v3323
      %v3325 = vpop.xlane.xlu0 %3324
      %v3326 = vsel %vm1421, %v3232, 0.0
      %3327 = vadd.xlane.f32.xlu0 %v3326
      %v3328 = vpop.xlane.xlu0 %3327
      %v3329 = vsel %vm1421, %v3233, 0.0
      %3330 = vadd.xlane.f32.xlu0 %v3329
      %v3331 = vpop.xlane.xlu0 %3330
      %v3332 = vsel %vm1421, %v3234, 0.0
      %3333 = vadd.xlane.f32.xlu0 %v3332
      %v3334 = vpop.xlane.xlu0 %3333
      %v3335 = vsel %vm1421, %v3235, 0.0
      %3336 = vadd.xlane.f32.xlu0 %v3335
      %v3337 = vpop.xlane.xlu0 %3336
      %v3338 = vsel %vm1421, %v3236, 0.0
      %3339 = vadd.xlane.f32.xlu0 %v3338
      %v3340 = vpop.xlane.xlu0 %3339
      %v3341 = vsel %vm1421, %v3237, 0.0
      %3342 = vadd.xlane.f32.xlu0 %v3341
      %v3343 = vpop.xlane.xlu0 %3342
      %v3344 = vsel %vm1421, %v3238, 0.0
      %3345 = vadd.xlane.f32.xlu0 %v3344
      %v3346 = vpop.xlane.xlu0 %3345
      %v3347 = vsel %vm1421, %v3239, 0.0
      %3348 = vadd.xlane.f32.xlu0 %v3347
      %v3349 = vpop.xlane.xlu0 %3348
      %v3350 = vsel %vm1421, %v3240, 0.0
      %3351 = vadd.xlane.f32.xlu0 %v3350
      %v3352 = vpop.xlane.xlu0 %3351
      %v3353 = vsel %vm1421, %v3241, 0.0
      %3354 = vadd.xlane.f32.xlu0 %v3353
      %v3355 = vpop.xlane.xlu0 %3354
      %v3356 = vsel %vm1421, %v3242, 0.0
      %3357 = vadd.xlane.f32.xlu0 %v3356
      %v3358 = vpop.xlane.xlu0 %3357
      %v3359 = vsel %vm1421, %v3243, 0.0
      %3360 = vadd.xlane.f32.xlu0 %v3359
      %v3361 = vpop.xlane.xlu0 %3360
      %v3362 = vsel %vm1421, %v3244, 0.0
      %3363 = vadd.xlane.f32.xlu0 %v3362
      %v3364 = vpop.xlane.xlu0 %3363
      %v3365 = vsel %vm1421, %v3245, 0.0
      %3366 = vadd.xlane.f32.xlu0 %v3365
      %v3367 = vpop.xlane.xlu0 %3366
      %v3368 = vsel %vm1421, %v3246, 0.0
      %3369 = vadd.xlane.f32.xlu0 %v3368
      %v3370 = vpop.xlane.xlu0 %3369
      %v3371 = vsel %vm1421, %v3247, 0.0
      %3372 = vadd.xlane.f32.xlu0 %v3371
      %v3373 = vpop.xlane.xlu0 %3372
      %v3374 = vsel %vm1421, %v3248, 0.0
      %3375 = vadd.xlane.f32.xlu0 %v3374
      %v3376 = vpop.xlane.xlu0 %3375
      %v3377 = vadd.f32 %v3249, %v3283
      %v3378 = vadd.f32 %v3250, %v3286
      %v3379 = vadd.f32 %v3251, %v3289
      %v3380 = vadd.f32 %v3252, %v3292
      %v3381 = vadd.f32 %v3253, %v3295
      %v3382 = vadd.f32 %v3254, %v3298
      %v3383 = vadd.f32 %v3255, %v3301
      %v3384 = vadd.f32 %v3256, %v3304
      %v3385 = vadd.f32 %v3257, %v3307
      %v3386 = vadd.f32 %v3258, %v3310
      %v3387 = vadd.f32 %v3259, %v3313
      %v3388 = vadd.f32 %v3260, %v3316
      %v3389 = vadd.f32 %v3261, %v3319
      %v3390 = vadd.f32 %v3262, %v3322
      %v3391 = vadd.f32 %v3263, %v3325
      %v3392 = vadd.f32 %v3264, %v3328
      %v3393 = vadd.f32 %v3265, %v3331
      %v3394 = vadd.f32 %v3266, %v3334
      %v3395 = vadd.f32 %v3267, %v3337
      %v3396 = vadd.f32 %v3268, %v3340
      %v3397 = vadd.f32 %v3269, %v3343
      %v3398 = vadd.f32 %v3270, %v3346
      %v3399 = vadd.f32 %v3271, %v3349
      %v3400 = vadd.f32 %v3272, %v3352
      %v3401 = vadd.f32 %v3273, %v3355
      %v3402 = vadd.f32 %v3274, %v3358
      %v3403 = vadd.f32 %v3275, %v3361
      %v3404 = vadd.f32 %v3276, %v3364
      %v3405 = vadd.f32 %v3277, %v3367
      %v3406 = vadd.f32 %v3278, %v3370
      %v3407 = vadd.f32 %v3279, %v3373
      %v3408 = vadd.f32 %v3280, %v3376
      %3409 = vst.msk [vmem:[#allocation2 + $0x200] sm:$0xff] %vm1550, %v3377
      %3410 = vst.msk [vmem:[#allocation2 + $0x208] sm:$0xff] %vm1550, %v3378
      %3411 = vst.msk [vmem:[#allocation2 + $0x210] sm:$0xff] %vm1550, %v3379
      %3412 = vst.msk [vmem:[#allocation2 + $0x218] sm:$0xff] %vm1550, %v3380
      %3413 = vst.msk [vmem:[#allocation2 + $0x220] sm:$0xff] %vm1550, %v3381
      %3414 = vst.msk [vmem:[#allocation2 + $0x228] sm:$0xff] %vm1550, %v3382
      %3415 = vst.msk [vmem:[#allocation2 + $0x230] sm:$0xff] %vm1550, %v3383
      %3416 = vst.msk [vmem:[#allocation2 + $0x238] sm:$0xff] %vm1550, %v3384
      %3417 = vst.msk [vmem:[#allocation2 + $0x240] sm:$0xff] %vm1550, %v3385
      %3418 = vst.msk [vmem:[#allocation2 + $0x248] sm:$0xff] %vm1550, %v3386
      %3419 = vst.msk [vmem:[#allocation2 + $0x250] sm:$0xff] %vm1550, %v3387
      %3420 = vst.msk [vmem:[#allocation2 + $0x258] sm:$0xff] %vm1550, %v3388
      %3421 = vst.msk [vmem:[#allocation2 + $0x260] sm:$0xff] %vm1550, %v3389
      %3422 = vst.msk [vmem:[#allocation2 + $0x268] sm:$0xff] %vm1550, %v3390
      %3423 = vst.msk [vmem:[#allocation2 + $0x270] sm:$0xff] %vm1550, %v3391
      %3424 = vst.msk [vmem:[#allocation2 + $0x278] sm:$0xff] %vm1550, %v3392
      %3425 = vst.msk [vmem:[#allocation2 + $0x280] sm:$0xff] %vm1550, %v3393
      %3426 = vst.msk [vmem:[#allocation2 + $0x288] sm:$0xff] %vm1550, %v3394
      %3427 = vst.msk [vmem:[#allocation2 + $0x290] sm:$0xff] %vm1550, %v3395
      %3428 = vst.msk [vmem:[#allocation2 + $0x298] sm:$0xff] %vm1550, %v3396
      %3429 = vst.msk [vmem:[#allocation2 + $0x2a0] sm:$0xff] %vm1550, %v3397
      %3430 = vst.msk [vmem:[#allocation2 + $0x2a8] sm:$0xff] %vm1550, %v3398
      %3431 = vst.msk [vmem:[#allocation2 + $0x2b0] sm:$0xff] %vm1550, %v3399
      %3432 = vst.msk [vmem:[#allocation2 + $0x2b8] sm:$0xff] %vm1550, %v3400
      %3433 = vst.msk [vmem:[#allocation2 + $0x2c0] sm:$0xff] %vm1550, %v3401
      %3434 = vst.msk [vmem:[#allocation2 + $0x2c8] sm:$0xff] %vm1550, %v3402
      %3435 = vst.msk [vmem:[#allocation2 + $0x2d0] sm:$0xff] %vm1550, %v3403
      %3436 = vst.msk [vmem:[#allocation2 + $0x2d8] sm:$0xff] %vm1550, %v3404
      %3437 = vst.msk [vmem:[#allocation2 + $0x2e0] sm:$0xff] %vm1550, %v3405
      %3438 = vst.msk [vmem:[#allocation2 + $0x2e8] sm:$0xff] %vm1550, %v3406
      %3439 = vst.msk [vmem:[#allocation2 + $0x2f0] sm:$0xff] %vm1550, %v3407
      %3440 = vst.msk [vmem:[#allocation2 + $0x2f8] sm:$0xff] %vm1550, %v3408
      %v3441 = vld [vmem:[%s3 + $0x180] sm:$0xf]
      %v3442 = vld [vmem:[%s3 + $0x184] sm:$0xf]
      %v3443 = vld [vmem:[%s3 + $0x188] sm:$0xf]
      %v3444 = vld [vmem:[%s3 + $0x18c] sm:$0xf]
      %v3445 = vld [vmem:[%s3 + $0x190] sm:$0xf]
      %v3446 = vld [vmem:[%s3 + $0x194] sm:$0xf]
      %v3447 = vld [vmem:[%s3 + $0x198] sm:$0xf]
      %v3448 = vld [vmem:[%s3 + $0x19c] sm:$0xf]
      %v3449 = vld [vmem:[%s3 + $0x1a0] sm:$0xf]
      %v3450 = vld [vmem:[%s3 + $0x1a4] sm:$0xf]
      %v3451 = vld [vmem:[%s3 + $0x1a8] sm:$0xf]
      %v3452 = vld [vmem:[%s3 + $0x1ac] sm:$0xf]
      %v3453 = vld [vmem:[%s3 + $0x1b0] sm:$0xf]
      %v3454 = vld [vmem:[%s3 + $0x1b4] sm:$0xf]
      %v3455 = vld [vmem:[%s3 + $0x1b8] sm:$0xf]
      %v3456 = vld [vmem:[%s3 + $0x1bc] sm:$0xf]
      %v3457 = vld [vmem:[%s3 + $0x1c0] sm:$0xf]
      %v3458 = vld [vmem:[%s3 + $0x1c4] sm:$0xf]
      %v3459 = vld [vmem:[%s3 + $0x1c8] sm:$0xf]
      %v3460 = vld [vmem:[%s3 + $0x1cc] sm:$0xf]
      %v3461 = vld [vmem:[%s3 + $0x1d0] sm:$0xf]
      %v3462 = vld [vmem:[%s3 + $0x1d4] sm:$0xf]
      %v3463 = vld [vmem:[%s3 + $0x1d8] sm:$0xf]
      %v3464 = vld [vmem:[%s3 + $0x1dc] sm:$0xf]
      %v3465 = vld [vmem:[%s3 + $0x1e0] sm:$0xf]
      %v3466 = vld [vmem:[%s3 + $0x1e4] sm:$0xf]
      %v3467 = vld [vmem:[%s3 + $0x1e8] sm:$0xf]
      %v3468 = vld [vmem:[%s3 + $0x1ec] sm:$0xf]
      %v3469 = vld [vmem:[%s3 + $0x1f0] sm:$0xf]
      %v3470 = vld [vmem:[%s3 + $0x1f4] sm:$0xf]
      %v3471 = vld [vmem:[%s3 + $0x1f8] sm:$0xf]
      %v3472 = vld [vmem:[%s3 + $0x1fc] sm:$0xf]
      %v3473 = vld [vmem:[%s4 + $0x300] sm:$0xff]
      %v3474 = vld [vmem:[%s4 + $0x308] sm:$0xff]
      %v3475 = vld [vmem:[%s4 + $0x310] sm:$0xff]
      %v3476 = vld [vmem:[%s4 + $0x318] sm:$0xff]
      %v3477 = vld [vmem:[%s4 + $0x320] sm:$0xff]
      %v3478 = vld [vmem:[%s4 + $0x328] sm:$0xff]
      %v3479 = vld [vmem:[%s4 + $0x330] sm:$0xff]
      %v3480 = vld [vmem:[%s4 + $0x338] sm:$0xff]
      %v3481 = vld [vmem:[%s4 + $0x340] sm:$0xff]
      %v3482 = vld [vmem:[%s4 + $0x348] sm:$0xff]
      %v3483 = vld [vmem:[%s4 + $0x350] sm:$0xff]
      %v3484 = vld [vmem:[%s4 + $0x358] sm:$0xff]
      %v3485 = vld [vmem:[%s4 + $0x360] sm:$0xff]
      %v3486 = vld [vmem:[%s4 + $0x368] sm:$0xff]
      %v3487 = vld [vmem:[%s4 + $0x370] sm:$0xff]
      %v3488 = vld [vmem:[%s4 + $0x378] sm:$0xff]
      %v3489 = vld [vmem:[%s4 + $0x380] sm:$0xff]
      %v3490 = vld [vmem:[%s4 + $0x388] sm:$0xff]
      %v3491 = vld [vmem:[%s4 + $0x390] sm:$0xff]
      %v3492 = vld [vmem:[%s4 + $0x398] sm:$0xff]
      %v3493 = vld [vmem:[%s4 + $0x3a0] sm:$0xff]
      %v3494 = vld [vmem:[%s4 + $0x3a8] sm:$0xff]
      %v3495 = vld [vmem:[%s4 + $0x3b0] sm:$0xff]
      %v3496 = vld [vmem:[%s4 + $0x3b8] sm:$0xff]
      %v3497 = vld [vmem:[%s4 + $0x3c0] sm:$0xff]
      %v3498 = vld [vmem:[%s4 + $0x3c8] sm:$0xff]
      %v3499 = vld [vmem:[%s4 + $0x3d0] sm:$0xff]
      %v3500 = vld [vmem:[%s4 + $0x3d8] sm:$0xff]
      %v3501 = vld [vmem:[%s4 + $0x3e0] sm:$0xff]
      %v3502 = vld [vmem:[%s4 + $0x3e8] sm:$0xff]
      %v3503 = vld [vmem:[%s4 + $0x3f0] sm:$0xff]
      %v3504 = vld [vmem:[%s4 + $0x3f8] sm:$0xff]
      %3506 = vset.pattern.permute.xlu0 0
      %3507 = vperm.xlu0 %3506, %v3473
      %v3508 = vpop.permute.xlu0 %3507
      %3511 = vset.pattern.permute.xlu0 0
      %3512 = vperm.xlu0 %3511, %v3474
      %v3513 = vpop.permute.xlu0 %3512
      %3516 = vset.pattern.permute.xlu0 0
      %3517 = vperm.xlu0 %3516, %v3475
      %v3518 = vpop.permute.xlu0 %3517
      %3521 = vset.pattern.permute.xlu0 0
      %3522 = vperm.xlu0 %3521, %v3476
      %v3523 = vpop.permute.xlu0 %3522
      %3526 = vset.pattern.permute.xlu0 0
      %3527 = vperm.xlu0 %3526, %v3477
      %v3528 = vpop.permute.xlu0 %3527
      %3531 = vset.pattern.permute.xlu0 0
      %3532 = vperm.xlu0 %3531, %v3478
      %v3533 = vpop.permute.xlu0 %3532
      %3536 = vset.pattern.permute.xlu0 0
      %3537 = vperm.xlu0 %3536, %v3479
      %v3538 = vpop.permute.xlu0 %3537
      %3541 = vset.pattern.permute.xlu0 0
      %3542 = vperm.xlu0 %3541, %v3480
      %v3543 = vpop.permute.xlu0 %3542
      %3546 = vset.pattern.permute.xlu0 0
      %3547 = vperm.xlu0 %3546, %v3481
      %v3548 = vpop.permute.xlu0 %3547
      %3551 = vset.pattern.permute.xlu0 0
      %3552 = vperm.xlu0 %3551, %v3482
      %v3553 = vpop.permute.xlu0 %3552
      %3556 = vset.pattern.permute.xlu0 0
      %3557 = vperm.xlu0 %3556, %v3483
      %v3558 = vpop.permute.xlu0 %3557
      %3561 = vset.pattern.permute.xlu0 0
      %3562 = vperm.xlu0 %3561, %v3484
      %v3563 = vpop.permute.xlu0 %3562
      %3566 = vset.pattern.permute.xlu0 0
      %3567 = vperm.xlu0 %3566, %v3485
      %v3568 = vpop.permute.xlu0 %3567
      %3571 = vset.pattern.permute.xlu0 0
      %3572 = vperm.xlu0 %3571, %v3486
      %v3573 = vpop.permute.xlu0 %3572
      %3576 = vset.pattern.permute.xlu0 0
      %3577 = vperm.xlu0 %3576, %v3487
      %v3578 = vpop.permute.xlu0 %3577
      %3581 = vset.pattern.permute.xlu0 0
      %3582 = vperm.xlu0 %3581, %v3488
      %v3583 = vpop.permute.xlu0 %3582
      %3586 = vset.pattern.permute.xlu0 0
      %3587 = vperm.xlu0 %3586, %v3489
      %v3588 = vpop.permute.xlu0 %3587
      %3591 = vset.pattern.permute.xlu0 0
      %3592 = vperm.xlu0 %3591, %v3490
      %v3593 = vpop.permute.xlu0 %3592
      %3596 = vset.pattern.permute.xlu0 0
      %3597 = vperm.xlu0 %3596, %v3491
      %v3598 = vpop.permute.xlu0 %3597
      %3601 = vset.pattern.permute.xlu0 0
      %3602 = vperm.xlu0 %3601, %v3492
      %v3603 = vpop.permute.xlu0 %3602
      %3606 = vset.pattern.permute.xlu0 0
      %3607 = vperm.xlu0 %3606, %v3493
      %v3608 = vpop.permute.xlu0 %3607
      %3611 = vset.pattern.permute.xlu0 0
      %3612 = vperm.xlu0 %3611, %v3494
      %v3613 = vpop.permute.xlu0 %3612
      %3616 = vset.pattern.permute.xlu0 0
      %3617 = vperm.xlu0 %3616, %v3495
      %v3618 = vpop.permute.xlu0 %3617
      %3621 = vset.pattern.permute.xlu0 0
      %3622 = vperm.xlu0 %3621, %v3496
      %v3623 = vpop.permute.xlu0 %3622
      %3626 = vset.pattern.permute.xlu0 0
      %3627 = vperm.xlu0 %3626, %v3497
      %v3628 = vpop.permute.xlu0 %3627
      %3631 = vset.pattern.permute.xlu0 0
      %3632 = vperm.xlu0 %3631, %v3498
      %v3633 = vpop.permute.xlu0 %3632
      %3636 = vset.pattern.permute.xlu0 0
      %3637 = vperm.xlu0 %3636, %v3499
      %v3638 = vpop.permute.xlu0 %3637
      %3641 = vset.pattern.permute.xlu0 0
      %3642 = vperm.xlu0 %3641, %v3500
      %v3643 = vpop.permute.xlu0 %3642
      %3646 = vset.pattern.permute.xlu0 0
      %3647 = vperm.xlu0 %3646, %v3501
      %v3648 = vpop.permute.xlu0 %3647
      %3651 = vset.pattern.permute.xlu0 0
      %3652 = vperm.xlu0 %3651, %v3502
      %v3653 = vpop.permute.xlu0 %3652
      %3656 = vset.pattern.permute.xlu0 0
      %3657 = vperm.xlu0 %3656, %v3503
      %v3658 = vpop.permute.xlu0 %3657
      %3661 = vset.pattern.permute.xlu0 0
      %3662 = vperm.xlu0 %3661, %v3504
      %v3663 = vpop.permute.xlu0 %3662
      %v3697 = vunpack.c.l.b16 %v3441
      %v3698 = vunpack.c.l.b16 %v3442
      %v3699 = vunpack.c.l.b16 %v3443
      %v3700 = vunpack.c.l.b16 %v3444
      %v3701 = vunpack.c.l.b16 %v3445
      %v3702 = vunpack.c.l.b16 %v3446
      %v3703 = vunpack.c.l.b16 %v3447
      %v3704 = vunpack.c.l.b16 %v3448
      %v3705 = vunpack.c.l.b16 %v3449
      %v3706 = vunpack.c.l.b16 %v3450
      %v3707 = vunpack.c.l.b16 %v3451
      %v3708 = vunpack.c.l.b16 %v3452
      %v3709 = vunpack.c.l.b16 %v3453
      %v3710 = vunpack.c.l.b16 %v3454
      %v3711 = vunpack.c.l.b16 %v3455
      %v3712 = vunpack.c.l.b16 %v3456
      %v3713 = vunpack.c.l.b16 %v3457
      %v3714 = vunpack.c.l.b16 %v3458
      %v3715 = vunpack.c.l.b16 %v3459
      %v3716 = vunpack.c.l.b16 %v3460
      %v3717 = vunpack.c.l.b16 %v3461
      %v3718 = vunpack.c.l.b16 %v3462
      %v3719 = vunpack.c.l.b16 %v3463
      %v3720 = vunpack.c.l.b16 %v3464
      %v3721 = vunpack.c.l.b16 %v3465
      %v3722 = vunpack.c.l.b16 %v3466
      %v3723 = vunpack.c.l.b16 %v3467
      %v3724 = vunpack.c.l.b16 %v3468
      %v3725 = vunpack.c.l.b16 %v3469
      %v3726 = vunpack.c.l.b16 %v3470
      %v3727 = vunpack.c.l.b16 %v3471
      %v3728 = vunpack.c.l.b16 %v3472
      %v3729 = vpack.c.b16 %v3698, %v3697
      %v3730 = vpack.c.b16 %v3700, %v3699
      %v3731 = vpack.c.b16 %v3702, %v3701
      %v3732 = vpack.c.b16 %v3704, %v3703
      %v3733 = vpack.c.b16 %v3706, %v3705
      %v3734 = vpack.c.b16 %v3708, %v3707
      %v3735 = vpack.c.b16 %v3710, %v3709
      %v3736 = vpack.c.b16 %v3712, %v3711
      %v3737 = vpack.c.b16 %v3714, %v3713
      %v3738 = vpack.c.b16 %v3716, %v3715
      %v3739 = vpack.c.b16 %v3718, %v3717
      %v3740 = vpack.c.b16 %v3720, %v3719
      %v3741 = vpack.c.b16 %v3722, %v3721
      %v3742 = vpack.c.b16 %v3724, %v3723
      %v3743 = vpack.c.b16 %v3726, %v3725
      %v3744 = vpack.c.b16 %v3728, %v3727
      %v3746 = vsel %vm951, %v3729, 0
      %v3749 = vsel %vm951, %v3730, 0
      %v3752 = vsel %vm951, %v3731, 0
      %v3755 = vsel %vm951, %v3732, 0
      %v3758 = vsel %vm951, %v3733, 0
      %v3761 = vsel %vm951, %v3734, 0
      %v3764 = vsel %vm951, %v3735, 0
      %v3767 = vsel %vm951, %v3736, 0
      %v3770 = vsel %vm951, %v3737, 0
      %v3773 = vsel %vm951, %v3738, 0
      %v3776 = vsel %vm951, %v3739, 0
      %v3779 = vsel %vm951, %v3740, 0
      %v3782 = vsel %vm951, %v3741, 0
      %v3785 = vsel %vm951, %v3742, 0
      %v3788 = vsel %vm951, %v3743, 0
      %v3791 = vsel %vm951, %v3744, 0
      %3793 = vmatprep.subr.bf16.mxu0 0
      %3794 = vmatpush1.bf16.msra.mxu0 %v644
      %3795 = vmatprep.subr.bf16.mxu0 0
      %3796 = vmatpush1.bf16.msra.mxu0 %v645
      %3797 = vmatprep.subr.bf16.mxu0 0
      %3798 = vmatpush1.bf16.msra.mxu0 %v1002
      %3799 = vmatprep.subr.bf16.mxu0 0
      %3800 = vmatpush1.bf16.msra.mxu0 0
      %3801 = vmatprep.subr.bf16.mxu0 0
      %3802 = vmatpush1.bf16.msra.mxu0 0
      %3803 = vmatprep.subr.bf16.mxu0 0
      %3804 = vmatpush1.bf16.msra.mxu0 0
      %3805 = vmatprep.subr.bf16.mxu0 0
      %3806 = vmatpush1.bf16.msra.mxu0 0
      %3807 = vmatprep.subr.bf16.mxu0 0
      %3808 = vmatpush1.bf16.msra.mxu0 0
      %3809 = vmatprep.subr.bf16.mxu0 0
      %3810 = vmatpush1.bf16.msra.mxu0 0
      %3811 = vmatprep.subr.bf16.mxu0 0
      %3812 = vmatpush1.bf16.msra.mxu0 0
      %3813 = vmatprep.subr.bf16.mxu0 0
      %3814 = vmatpush1.bf16.msra.mxu0 0
      %3815 = vmatprep.subr.bf16.mxu0 0
      %3816 = vmatpush1.bf16.msra.mxu0 0
      %3817 = vmatprep.subr.bf16.mxu0 0
      %3818 = vmatpush1.bf16.msra.mxu0 0
      %3819 = vmatprep.subr.bf16.mxu0 0
      %3820 = vmatpush1.bf16.msra.mxu0 0
      %3821 = vmatprep.subr.bf16.mxu0 0
      %3822 = vmatpush1.bf16.msra.mxu0 0
      %3823 = vmatprep.subr.bf16.mxu0 0
      %3824 = vmatpush1.bf16.msra.mxu0 0
      %3825 = vmatprep.mubr.bf16.mxu0 0
      %3826 = vmatmul.mubr.bf16.gmra.mrb[0].mxu0 %v3746
      %v3827 = vpop.f32.mrb[0].mxu0
      %v3828 = vadd.f32 %v3508, %v3827
      %v3829 = vpop.f32.mrb[0].mxu0
      %v3830 = vpop.f32.mrb[0].mxu0
      %v3831 = vadd.f32 %v3513, %v3830
      %v3832 = vpop.f32.mrb[0].mxu0
      %3833 = vmatprep.mubr.bf16.mxu0 0
      %3834 = vmatmul.mubr.bf16.gmra.mrb[0].mxu0 %v3749
      %v3835 = vpop.f32.mrb[0].mxu0
      %v3836 = vadd.f32 %v3518, %v3835
      %v3837 = vpop.f32.mrb[0].mxu0
      %v3838 = vpop.f32.mrb[0].mxu0
      %v3839 = vadd.f32 %v3523, %v3838
      %v3840 = vpop.f32.mrb[0].mxu0
      %3841 = vmatprep.mubr.bf16.mxu0 0
      %3842 = vmatmul.mubr.bf16.gmra.mrb[0].mxu0 %v3752
      %v3843 = vpop.f32.mrb[0].mxu0
      %v3844 = vadd.f32 %v3528, %v3843
      %v3845 = vpop.f32.mrb[0].mxu0
      %v3846 = vpop.f32.mrb[0].mxu0
      %v3847 = vadd.f32 %v3533, %v3846
      %v3848 = vpop.f32.mrb[0].mxu0
      %3849 = vmatprep.mubr.bf16.mxu0 0
      %3850 = vmatmul.mubr.bf16.gmra.mrb[0].mxu0 %v3755
      %v3851 = vpop.f32.mrb[0].mxu0
      %v3852 = vadd.f32 %v3538, %v3851
      %v3853 = vpop.f32.mrb[0].mxu0
      %v3854 = vpop.f32.mrb[0].mxu0
      %v3855 = vadd.f32 %v3543, %v3854
      %v3856 = vpop.f32.mrb[0].mxu0
      %3857 = vmatprep.mubr.bf16.mxu0 0
      %3858 = vmatmul.mubr.bf16.gmra.mrb[0].mxu0 %v3758
      %v3859 = vpop.f32.mrb[0].mxu0
      %v3860 = vadd.f32 %v3548, %v3859
      %v3861 = vpop.f32.mrb[0].mxu0
      %v3862 = vpop.f32.mrb[0].mxu0
      %v3863 = vadd.f32 %v3553, %v3862
      %v3864 = vpop.f32.mrb[0].mxu0
      %3865 = vmatprep.mubr.bf16.mxu0 0
      %3866 = vmatmul.mubr.bf16.gmra.mrb[0].mxu0 %v3761
      %v3867 = vpop.f32.mrb[0].mxu0
      %v3868 = vadd.f32 %v3558, %v3867
      %v3869 = vpop.f32.mrb[0].mxu0
      %v3870 = vpop.f32.mrb[0].mxu0
      %v3871 = vadd.f32 %v3563, %v3870
      %v3872 = vpop.f32.mrb[0].mxu0
      %3873 = vmatprep.mubr.bf16.mxu0 0
      %3874 = vmatmul.mubr.bf16.gmra.mrb[0].mxu0 %v3764
      %v3875 = vpop.f32.mrb[0].mxu0
      %v3876 = vadd.f32 %v3568, %v3875
      %v3877 = vpop.f32.mrb[0].mxu0
      %v3878 = vpop.f32.mrb[0].mxu0
      %v3879 = vadd.f32 %v3573, %v3878
      %v3880 = vpop.f32.mrb[0].mxu0
      %3881 = vmatprep.mubr.bf16.mxu0 0
      %3882 = vmatmul.mubr.bf16.gmra.mrb[0].mxu0 %v3767
      %v3883 = vpop.f32.mrb[0].mxu0
      %v3884 = vadd.f32 %v3578, %v3883
      %v3885 = vpop.f32.mrb[0].mxu0
      %v3886 = vpop.f32.mrb[0].mxu0
      %v3887 = vadd.f32 %v3583, %v3886
      %v3888 = vpop.f32.mrb[0].mxu0
      %3889 = vmatprep.mubr.bf16.mxu0 0
      %3890 = vmatmul.mubr.bf16.gmra.mrb[0].mxu0 %v3770
      %v3891 = vpop.f32.mrb[0].mxu0
      %v3892 = vadd.f32 %v3588, %v3891
      %v3893 = vpop.f32.mrb[0].mxu0
      %v3894 = vpop.f32.mrb[0].mxu0
      %v3895 = vadd.f32 %v3593, %v3894
      %v3896 = vpop.f32.mrb[0].mxu0
      %3897 = vmatprep.mubr.bf16.mxu0 0
      %3898 = vmatmul.mubr.bf16.gmra.mrb[0].mxu0 %v3773
      %v3899 = vpop.f32.mrb[0].mxu0
      %v3900 = vadd.f32 %v3598, %v3899
      %v3901 = vpop.f32.mrb[0].mxu0
      %v3902 = vpop.f32.mrb[0].mxu0
      %v3903 = vadd.f32 %v3603, %v3902
      %v3904 = vpop.f32.mrb[0].mxu0
      %3905 = vmatprep.mubr.bf16.mxu0 0
      %3906 = vmatmul.mubr.bf16.gmra.mrb[0].mxu0 %v3776
      %v3907 = vpop.f32.mrb[0].mxu0
      %v3908 = vadd.f32 %v3608, %v3907
      %v3909 = vpop.f32.mrb[0].mxu0
      %v3910 = vpop.f32.mrb[0].mxu0
      %v3911 = vadd.f32 %v3613, %v3910
      %v3912 = vpop.f32.mrb[0].mxu0
      %3913 = vmatprep.mubr.bf16.mxu0 0
      %3914 = vmatmul.mubr.bf16.gmra.mrb[0].mxu0 %v3779
      %v3915 = vpop.f32.mrb[0].mxu0
      %v3916 = vadd.f32 %v3618, %v3915
      %v3917 = vpop.f32.mrb[0].mxu0
      %v3918 = vpop.f32.mrb[0].mxu0
      %v3919 = vadd.f32 %v3623, %v3918
      %v3920 = vpop.f32.mrb[0].mxu0
      %3921 = vmatprep.mubr.bf16.mxu0 0
      %3922 = vmatmul.mubr.bf16.gmra.mrb[0].mxu0 %v3782
      %v3923 = vpop.f32.mrb[0].mxu0
      %v3924 = vadd.f32 %v3628, %v3923
      %v3925 = vpop.f32.mrb[0].mxu0
      %v3926 = vpop.f32.mrb[0].mxu0
      %v3927 = vadd.f32 %v3633, %v3926
      %v3928 = vpop.f32.mrb[0].mxu0
      %3929 = vmatprep.mubr.bf16.mxu0 0
      %3930 = vmatmul.mubr.bf16.gmra.mrb[0].mxu0 %v3785
      %v3931 = vpop.f32.mrb[0].mxu0
      %v3932 = vadd.f32 %v3638, %v3931
      %v3933 = vpop.f32.mrb[0].mxu0
      %v3934 = vpop.f32.mrb[0].mxu0
      %v3935 = vadd.f32 %v3643, %v3934
      %v3936 = vpop.f32.mrb[0].mxu0
      %3937 = vmatprep.mubr.bf16.mxu0 0
      %3938 = vmatmul.mubr.bf16.gmra.mrb[0].mxu0 %v3788
      %v3939 = vpop.f32.mrb[0].mxu0
      %v3940 = vadd.f32 %v3648, %v3939
      %v3941 = vpop.f32.mrb[0].mxu0
      %v3942 = vpop.f32.mrb[0].mxu0
      %v3943 = vadd.f32 %v3653, %v3942
      %v3944 = vpop.f32.mrb[0].mxu0
      %3945 = vmatprep.mubr.bf16.mxu0 0
      %3946 = vmatmul.mubr.bf16.gmra.mrb[0].mxu0 %v3791
      %v3947 = vpop.f32.mrb[0].mxu0
      %v3948 = vadd.f32 %v3658, %v3947
      %v3949 = vpop.f32.mrb[0].mxu0
      %v3950 = vpop.f32.mrb[0].mxu0
      %v3951 = vadd.f32 %v3663, %v3950
      %v3952 = vpop.f32.mrb[0].mxu0
      %3953 = vdwg.mxu0
      %v3954 = vxor.u32 %v3828, 2147483648
      %v3955 = vxor.u32 %v3831, 2147483648
      %v3956 = vxor.u32 %v3836, 2147483648
      %v3957 = vxor.u32 %v3839, 2147483648
      %v3958 = vxor.u32 %v3844, 2147483648
      %v3959 = vxor.u32 %v3847, 2147483648
      %v3960 = vxor.u32 %v3852, 2147483648
      %v3961 = vxor.u32 %v3855, 2147483648
      %v3962 = vxor.u32 %v3860, 2147483648
      %v3963 = vxor.u32 %v3863, 2147483648
      %v3964 = vxor.u32 %v3868, 2147483648
      %v3965 = vxor.u32 %v3871, 2147483648
      %v3966 = vxor.u32 %v3876, 2147483648
      %v3967 = vxor.u32 %v3879, 2147483648
      %v3968 = vxor.u32 %v3884, 2147483648
      %v3969 = vxor.u32 %v3887, 2147483648
      %v3970 = vxor.u32 %v3892, 2147483648
      %v3971 = vxor.u32 %v3895, 2147483648
      %v3972 = vxor.u32 %v3900, 2147483648
      %v3973 = vxor.u32 %v3903, 2147483648
      %v3974 = vxor.u32 %v3908, 2147483648
      %v3975 = vxor.u32 %v3911, 2147483648
      %v3976 = vxor.u32 %v3916, 2147483648
      %v3977 = vxor.u32 %v3919, 2147483648
      %v3978 = vxor.u32 %v3924, 2147483648
      %v3979 = vxor.u32 %v3927, 2147483648
      %v3980 = vxor.u32 %v3932, 2147483648
      %v3981 = vxor.u32 %v3935, 2147483648
      %v3982 = vxor.u32 %v3940, 2147483648
      %v3983 = vxor.u32 %v3943, 2147483648
      %v3984 = vxor.u32 %v3948, 2147483648
      %v3985 = vxor.u32 %v3951, 2147483648
      %v3986 = vmul.f32 %v3954, 1.442695
      %v3987 = vpow.pop %v3986
      %v3988 = vmul.f32 %v3955, 1.442695
      %v3989 = vpow.pop %v3988
      %v3990 = vmul.f32 %v3956, 1.442695
      %v3991 = vpow.pop %v3990
      %v3992 = vmul.f32 %v3957, 1.442695
      %v3993 = vpow.pop %v3992
      %v3994 = vmul.f32 %v3958, 1.442695
      %v3995 = vpow.pop %v3994
      %v3996 = vmul.f32 %v3959, 1.442695
      %v3997 = vpow.pop %v3996
      %v3998 = vmul.f32 %v3960, 1.442695
      %v3999 = vpow.pop %v3998
      %v4000 = vmul.f32 %v3961, 1.442695
      %v4001 = vpow.pop %v4000
      %v4002 = vmul.f32 %v3962, 1.442695
      %v4003 = vpow.pop %v4002
      %v4004 = vmul.f32 %v3963, 1.442695
      %v4005 = vpow.pop %v4004
      %v4006 = vmul.f32 %v3964, 1.442695
      %v4007 = vpow.pop %v4006
      %v4008 = vmul.f32 %v3965, 1.442695
      %v4009 = vpow.pop %v4008
      %v4010 = vmul.f32 %v3966, 1.442695
      %v4011 = vpow.pop %v4010
      %v4012 = vmul.f32 %v3967, 1.442695
      %v4013 = vpow.pop %v4012
      %v4014 = vmul.f32 %v3968, 1.442695
      %v4015 = vpow.pop %v4014
      %v4016 = vmul.f32 %v3969, 1.442695
      %v4017 = vpow.pop %v4016
      %v4018 = vmul.f32 %v3970, 1.442695
      %v4019 = vpow.pop %v4018
      %v4020 = vmul.f32 %v3971, 1.442695
      %v4021 = vpow.pop %v4020
      %v4022 = vmul.f32 %v3972, 1.442695
      %v4023 = vpow.pop %v4022
      %v4024 = vmul.f32 %v3973, 1.442695
      %v4025 = vpow.pop %v4024
      %v4026 = vmul.f32 %v3974, 1.442695
      %v4027 = vpow.pop %v4026
      %v4028 = vmul.f32 %v3975, 1.442695
      %v4029 = vpow.pop %v4028
      %v4030 = vmul.f32 %v3976, 1.442695
      %v4031 = vpow.pop %v4030
      %v4032 = vmul.f32 %v3977, 1.442695
      %v4033 = vpow.pop %v4032
      %v4034 = vmul.f32 %v3978, 1.442695
      %v4035 = vpow.pop %v4034
      %v4036 = vmul.f32 %v3979, 1.442695
      %v4037 = vpow.pop %v4036
      %v4038 = vmul.f32 %v3980, 1.442695
      %v4039 = vpow.pop %v4038
      %v4040 = vmul.f32 %v3981, 1.442695
      %v4041 = vpow.pop %v4040
      %v4042 = vmul.f32 %v3982, 1.442695
      %v4043 = vpow.pop %v4042
      %v4044 = vmul.f32 %v3983, 1.442695
      %v4045 = vpow.pop %v4044
      %v4046 = vmul.f32 %v3984, 1.442695
      %v4047 = vpow.pop %v4046
      %v4048 = vmul.f32 %v3985, 1.442695
      %v4049 = vpow.pop %v4048
      %v4050 = vadd.f32 %v3987, 1.0
      %v4051 = vadd.f32 %v3989, 1.0
      %v4052 = vadd.f32 %v3991, 1.0
      %v4053 = vadd.f32 %v3993, 1.0
      %v4054 = vadd.f32 %v3995, 1.0
      %v4055 = vadd.f32 %v3997, 1.0
      %v4056 = vadd.f32 %v3999, 1.0
      %v4057 = vadd.f32 %v4001, 1.0
      %v4058 = vadd.f32 %v4003, 1.0
      %v4059 = vadd.f32 %v4005, 1.0
      %v4060 = vadd.f32 %v4007, 1.0
      %v4061 = vadd.f32 %v4009, 1.0
      %v4062 = vadd.f32 %v4011, 1.0
      %v4063 = vadd.f32 %v4013, 1.0
      %v4064 = vadd.f32 %v4015, 1.0
      %v4065 = vadd.f32 %v4017, 1.0
      %v4066 = vadd.f32 %v4019, 1.0
      %v4067 = vadd.f32 %v4021, 1.0
      %v4068 = vadd.f32 %v4023, 1.0
      %v4069 = vadd.f32 %v4025, 1.0
      %v4070 = vadd.f32 %v4027, 1.0
      %v4071 = vadd.f32 %v4029, 1.0
      %v4072 = vadd.f32 %v4031, 1.0
      %v4073 = vadd.f32 %v4033, 1.0
      %v4074 = vadd.f32 %v4035, 1.0
      %v4075 = vadd.f32 %v4037, 1.0
      %v4076 = vadd.f32 %v4039, 1.0
      %v4077 = vadd.f32 %v4041, 1.0
      %v4078 = vadd.f32 %v4043, 1.0
      %v4079 = vadd.f32 %v4045, 1.0
      %v4080 = vadd.f32 %v4047, 1.0
      %v4081 = vadd.f32 %v4049, 1.0
      %v4082 = vrcp.pop %v4050
      %v4083 = vmul.f32 1.0, %v4082
      %v4084 = vrcp.pop %v4051
      %v4085 = vmul.f32 1.0, %v4084
      %v4086 = vrcp.pop %v4052
      %v4087 = vmul.f32 1.0, %v4086
      %v4088 = vrcp.pop %v4053
      %v4089 = vmul.f32 1.0, %v4088
      %v4090 = vrcp.pop %v4054
      %v4091 = vmul.f32 1.0, %v4090
      %v4092 = vrcp.pop %v4055
      %v4093 = vmul.f32 1.0, %v4092
      %v4094 = vrcp.pop %v4056
      %v4095 = vmul.f32 1.0, %v4094
      %v4096 = vrcp.pop %v4057
      %v4097 = vmul.f32 1.0, %v4096
      %v4098 = vrcp.pop %v4058
      %v4099 = vmul.f32 1.0, %v4098
      %v4100 = vrcp.pop %v4059
      %v4101 = vmul.f32 1.0, %v4100
      %v4102 = vrcp.pop %v4060
      %v4103 = vmul.f32 1.0, %v4102
      %v4104 = vrcp.pop %v4061
      %v4105 = vmul.f32 1.0, %v4104
      %v4106 = vrcp.pop %v4062
      %v4107 = vmul.f32 1.0, %v4106
      %v4108 = vrcp.pop %v4063
      %v4109 = vmul.f32 1.0, %v4108
      %v4110 = vrcp.pop %v4064
      %v4111 = vmul.f32 1.0, %v4110
      %v4112 = vrcp.pop %v4065
      %v4113 = vmul.f32 1.0, %v4112
      %v4114 = vrcp.pop %v4066
      %v4115 = vmul.f32 1.0, %v4114
      %v4116 = vrcp.pop %v4067
      %v4117 = vmul.f32 1.0, %v4116
      %v4118 = vrcp.pop %v4068
      %v4119 = vmul.f32 1.0, %v4118
      %v4120 = vrcp.pop %v4069
      %v4121 = vmul.f32 1.0, %v4120
      %v4122 = vrcp.pop %v4070
      %v4123 = vmul.f32 1.0, %v4122
      %v4124 = vrcp.pop %v4071
      %v4125 = vmul.f32 1.0, %v4124
      %v4126 = vrcp.pop %v4072
      %v4127 = vmul.f32 1.0, %v4126
      %v4128 = vrcp.pop %v4073
      %v4129 = vmul.f32 1.0, %v4128
      %v4130 = vrcp.pop %v4074
      %v4131 = vmul.f32 1.0, %v4130
      %v4132 = vrcp.pop %v4075
      %v4133 = vmul.f32 1.0, %v4132
      %v4134 = vrcp.pop %v4076
      %v4135 = vmul.f32 1.0, %v4134
      %v4136 = vrcp.pop %v4077
      %v4137 = vmul.f32 1.0, %v4136
      %v4138 = vrcp.pop %v4078
      %v4139 = vmul.f32 1.0, %v4138
      %v4140 = vrcp.pop %v4079
      %v4141 = vmul.f32 1.0, %v4140
      %v4142 = vrcp.pop %v4080
      %v4143 = vmul.f32 1.0, %v4142
      %v4144 = vrcp.pop %v4081
      %v4145 = vmul.f32 1.0, %v4144
      %v4146 = vmul.f32 %v3828, %v4083
      %v4147 = vmul.f32 %v3831, %v4085
      %v4148 = vmul.f32 %v3836, %v4087
      %v4149 = vmul.f32 %v3839, %v4089
      %v4150 = vmul.f32 %v3844, %v4091
      %v4151 = vmul.f32 %v3847, %v4093
      %v4152 = vmul.f32 %v3852, %v4095
      %v4153 = vmul.f32 %v3855, %v4097
      %v4154 = vmul.f32 %v3860, %v4099
      %v4155 = vmul.f32 %v3863, %v4101
      %v4156 = vmul.f32 %v3868, %v4103
      %v4157 = vmul.f32 %v3871, %v4105
      %v4158 = vmul.f32 %v3876, %v4107
      %v4159 = vmul.f32 %v3879, %v4109
      %v4160 = vmul.f32 %v3884, %v4111
      %v4161 = vmul.f32 %v3887, %v4113
      %v4162 = vmul.f32 %v3892, %v4115
      %v4163 = vmul.f32 %v3895, %v4117
      %v4164 = vmul.f32 %v3900, %v4119
      %v4165 = vmul.f32 %v3903, %v4121
      %v4166 = vmul.f32 %v3908, %v4123
      %v4167 = vmul.f32 %v3911, %v4125
      %v4168 = vmul.f32 %v3916, %v4127
      %v4169 = vmul.f32 %v3919, %v4129
      %v4170 = vmul.f32 %v3924, %v4131
      %v4171 = vmul.f32 %v3927, %v4133
      %v4172 = vmul.f32 %v3932, %v4135
      %v4173 = vmul.f32 %v3935, %v4137
      %v4174 = vmul.f32 %v3940, %v4139
      %v4175 = vmul.f32 %v3943, %v4141
      %v4176 = vmul.f32 %v3948, %v4143
      %v4177 = vmul.f32 %v3951, %v4145
      %v4178 = vld [vmem:[#allocation2 + $0x300] sm:$0xff]
      %v4179 = vld [vmem:[#allocation2 + $0x308] sm:$0xff]
      %v4180 = vld [vmem:[#allocation2 + $0x310] sm:$0xff]
      %v4181 = vld [vmem:[#allocation2 + $0x318] sm:$0xff]
      %v4182 = vld [vmem:[#allocation2 + $0x320] sm:$0xff]
      %v4183 = vld [vmem:[#allocation2 + $0x328] sm:$0xff]
      %v4184 = vld [vmem:[#allocation2 + $0x330] sm:$0xff]
      %v4185 = vld [vmem:[#allocation2 + $0x338] sm:$0xff]
      %v4186 = vld [vmem:[#allocation2 + $0x340] sm:$0xff]
      %v4187 = vld [vmem:[#allocation2 + $0x348] sm:$0xff]
      %v4188 = vld [vmem:[#allocation2 + $0x350] sm:$0xff]
      %v4189 = vld [vmem:[#allocation2 + $0x358] sm:$0xff]
      %v4190 = vld [vmem:[#allocation2 + $0x360] sm:$0xff]
      %v4191 = vld [vmem:[#allocation2 + $0x368] sm:$0xff]
      %v4192 = vld [vmem:[#allocation2 + $0x370] sm:$0xff]
      %v4193 = vld [vmem:[#allocation2 + $0x378] sm:$0xff]
      %v4194 = vld [vmem:[#allocation2 + $0x380] sm:$0xff]
      %v4195 = vld [vmem:[#allocation2 + $0x388] sm:$0xff]
      %v4196 = vld [vmem:[#allocation2 + $0x390] sm:$0xff]
      %v4197 = vld [vmem:[#allocation2 + $0x398] sm:$0xff]
      %v4198 = vld [vmem:[#allocation2 + $0x3a0] sm:$0xff]
      %v4199 = vld [vmem:[#allocation2 + $0x3a8] sm:$0xff]
      %v4200 = vld [vmem:[#allocation2 + $0x3b0] sm:$0xff]
      %v4201 = vld [vmem:[#allocation2 + $0x3b8] sm:$0xff]
      %v4202 = vld [vmem:[#allocation2 + $0x3c0] sm:$0xff]
      %v4203 = vld [vmem:[#allocation2 + $0x3c8] sm:$0xff]
      %v4204 = vld [vmem:[#allocation2 + $0x3d0] sm:$0xff]
      %v4205 = vld [vmem:[#allocation2 + $0x3d8] sm:$0xff]
      %v4206 = vld [vmem:[#allocation2 + $0x3e0] sm:$0xff]
      %v4207 = vld [vmem:[#allocation2 + $0x3e8] sm:$0xff]
      %v4208 = vld [vmem:[#allocation2 + $0x3f0] sm:$0xff]
      %v4209 = vld [vmem:[#allocation2 + $0x3f8] sm:$0xff]
      %v4210 = vsel %vm1421, %v4146, 0.0
      %4211 = vadd.xlane.f32.xlu0 %v4210
      %v4212 = vpop.xlane.xlu0 %4211
      %v4213 = vsel %vm1421, %v4147, 0.0
      %4214 = vadd.xlane.f32.xlu0 %v4213
      %v4215 = vpop.xlane.xlu0 %4214
      %v4216 = vsel %vm1421, %v4148, 0.0
      %4217 = vadd.xlane.f32.xlu0 %v4216
      %v4218 = vpop.xlane.xlu0 %4217
      %v4219 = vsel %vm1421, %v4149, 0.0
      %4220 = vadd.xlane.f32.xlu0 %v4219
      %v4221 = vpop.xlane.xlu0 %4220
      %v4222 = vsel %vm1421, %v4150, 0.0
      %4223 = vadd.xlane.f32.xlu0 %v4222
      %v4224 = vpop.xlane.xlu0 %4223
      %v4225 = vsel %vm1421, %v4151, 0.0
      %4226 = vadd.xlane.f32.xlu0 %v4225
      %v4227 = vpop.xlane.xlu0 %4226
      %v4228 = vsel %vm1421, %v4152, 0.0
      %4229 = vadd.xlane.f32.xlu0 %v4228
      %v4230 = vpop.xlane.xlu0 %4229
      %v4231 = vsel %vm1421, %v4153, 0.0
      %4232 = vadd.xlane.f32.xlu0 %v4231
      %v4233 = vpop.xlane.xlu0 %4232
      %v4234 = vsel %vm1421, %v4154, 0.0
      %4235 = vadd.xlane.f32.xlu0 %v4234
      %v4236 = vpop.xlane.xlu0 %4235
      %v4237 = vsel %vm1421, %v4155, 0.0
      %4238 = vadd.xlane.f32.xlu0 %v4237
      %v4239 = vpop.xlane.xlu0 %4238
      %v4240 = vsel %vm1421, %v4156, 0.0
      %4241 = vadd.xlane.f32.xlu0 %v4240
      %v4242 = vpop.xlane.xlu0 %4241
      %v4243 = vsel %vm1421, %v4157, 0.0
      %4244 = vadd.xlane.f32.xlu0 %v4243
      %v4245 = vpop.xlane.xlu0 %4244
      %v4246 = vsel %vm1421, %v4158, 0.0
      %4247 = vadd.xlane.f32.xlu0 %v4246
      %v4248 = vpop.xlane.xlu0 %4247
      %v4249 = vsel %vm1421, %v4159, 0.0
      %4250 = vadd.xlane.f32.xlu0 %v4249
      %v4251 = vpop.xlane.xlu0 %4250
      %v4252 = vsel %vm1421, %v4160, 0.0
      %4253 = vadd.xlane.f32.xlu0 %v4252
      %v4254 = vpop.xlane.xlu0 %4253
      %v4255 = vsel %vm1421, %v4161, 0.0
      %4256 = vadd.xlane.f32.xlu0 %v4255
      %v4257 = vpop.xlane.xlu0 %4256
      %v4258 = vsel %vm1421, %v4162, 0.0
      %4259 = vadd.xlane.f32.xlu0 %v4258
      %v4260 = vpop.xlane.xlu0 %4259
      %v4261 = vsel %vm1421, %v4163, 0.0
      %4262 = vadd.xlane.f32.xlu0 %v4261
      %v4263 = vpop.xlane.xlu0 %4262
      %v4264 = vsel %vm1421, %v4164, 0.0
      %4265 = vadd.xlane.f32.xlu0 %v4264
      %v4266 = vpop.xlane.xlu0 %4265
      %v4267 = vsel %vm1421, %v4165, 0.0
      %4268 = vadd.xlane.f32.xlu0 %v4267
      %v4269 = vpop.xlane.xlu0 %4268
      %v4270 = vsel %vm1421, %v4166, 0.0
      %4271 = vadd.xlane.f32.xlu0 %v4270
      %v4272 = vpop.xlane.xlu0 %4271
      %v4273 = vsel %vm1421, %v4167, 0.0
      %4274 = vadd.xlane.f32.xlu0 %v4273
      %v4275 = vpop.xlane.xlu0 %4274
      %v4276 = vsel %vm1421, %v4168, 0.0
      %4277 = vadd.xlane.f32.xlu0 %v4276
      %v4278 = vpop.xlane.xlu0 %4277
      %v4279 = vsel %vm1421, %v4169, 0.0
      %4280 = vadd.xlane.f32.xlu0 %v4279
      %v4281 = vpop.xlane.xlu0 %4280
      %v4282 = vsel %vm1421, %v4170, 0.0
      %4283 = vadd.xlane.f32.xlu0 %v4282
      %v4284 = vpop.xlane.xlu0 %4283
      %v4285 = vsel %vm1421, %v4171, 0.0
      %4286 = vadd.xlane.f32.xlu0 %v4285
      %v4287 = vpop.xlane.xlu0 %4286
      %v4288 = vsel %vm1421, %v4172, 0.0
      %4289 = vadd.xlane.f32.xlu0 %v4288
      %v4290 = vpop.xlane.xlu0 %4289
      %v4291 = vsel %vm1421, %v4173, 0.0
      %4292 = vadd.xlane.f32.xlu0 %v4291
      %v4293 = vpop.xlane.xlu0 %4292
      %v4294 = vsel %vm1421, %v4174, 0.0
      %4295 = vadd.xlane.f32.xlu0 %v4294
      %v4296 = vpop.xlane.xlu0 %4295
      %v4297 = vsel %vm1421, %v4175, 0.0
      %4298 = vadd.xlane.f32.xlu0 %v4297
      %v4299 = vpop.xlane.xlu0 %4298
      %v4300 = vsel %vm1421, %v4176, 0.0
      %4301 = vadd.xlane.f32.xlu0 %v4300
      %v4302 = vpop.xlane.xlu0 %4301
      %v4303 = vsel %vm1421, %v4177, 0.0
      %4304 = vadd.xlane.f32.xlu0 %v4303
      %v4305 = vpop.xlane.xlu0 %4304
      %v4306 = vadd.f32 %v4178, %v4212
      %v4307 = vadd.f32 %v4179, %v4215
      %v4308 = vadd.f32 %v4180, %v4218
      %v4309 = vadd.f32 %v4181, %v4221
      %v4310 = vadd.f32 %v4182, %v4224
      %v4311 = vadd.f32 %v4183, %v4227
      %v4312 = vadd.f32 %v4184, %v4230
      %v4313 = vadd.f32 %v4185, %v4233
      %v4314 = vadd.f32 %v4186, %v4236
      %v4315 = vadd.f32 %v4187, %v4239
      %v4316 = vadd.f32 %v4188, %v4242
      %v4317 = vadd.f32 %v4189, %v4245
      %v4318 = vadd.f32 %v4190, %v4248
      %v4319 = vadd.f32 %v4191, %v4251
      %v4320 = vadd.f32 %v4192, %v4254
      %v4321 = vadd.f32 %v4193, %v4257
      %v4322 = vadd.f32 %v4194, %v4260
      %v4323 = vadd.f32 %v4195, %v4263
      %v4324 = vadd.f32 %v4196, %v4266
      %v4325 = vadd.f32 %v4197, %v4269
      %v4326 = vadd.f32 %v4198, %v4272
      %v4327 = vadd.f32 %v4199, %v4275
      %v4328 = vadd.f32 %v4200, %v4278
      %v4329 = vadd.f32 %v4201, %v4281
      %v4330 = vadd.f32 %v4202, %v4284
      %v4331 = vadd.f32 %v4203, %v4287
      %v4332 = vadd.f32 %v4204, %v4290
      %v4333 = vadd.f32 %v4205, %v4293
      %v4334 = vadd.f32 %v4206, %v4296
      %v4335 = vadd.f32 %v4207, %v4299
      %v4336 = vadd.f32 %v4208, %v4302
      %v4337 = vadd.f32 %v4209, %v4305
      %4338 = vst.msk [vmem:[#allocation2 + $0x300] sm:$0xff] %vm1550, %v4306
      %4339 = vst.msk [vmem:[#allocation2 + $0x308] sm:$0xff] %vm1550, %v4307
      %4340 = vst.msk [vmem:[#allocation2 + $0x310] sm:$0xff] %vm1550, %v4308
      %4341 = vst.msk [vmem:[#allocation2 + $0x318] sm:$0xff] %vm1550, %v4309
      %4342 = vst.msk [vmem:[#allocation2 + $0x320] sm:$0xff] %vm1550, %v4310
      %4343 = vst.msk [vmem:[#allocation2 + $0x328] sm:$0xff] %vm1550, %v4311
      %4344 = vst.msk [vmem:[#allocation2 + $0x330] sm:$0xff] %vm1550, %v4312
      %4345 = vst.msk [vmem:[#allocation2 + $0x338] sm:$0xff] %vm1550, %v4313
      %4346 = vst.msk [vmem:[#allocation2 + $0x340] sm:$0xff] %vm1550, %v4314
      %4347 = vst.msk [vmem:[#allocation2 + $0x348] sm:$0xff] %vm1550, %v4315
      %4348 = vst.msk [vmem:[#allocation2 + $0x350] sm:$0xff] %vm1550, %v4316
      %4349 = vst.msk [vmem:[#allocation2 + $0x358] sm:$0xff] %vm1550, %v4317
      %4350 = vst.msk [vmem:[#allocation2 + $0x360] sm:$0xff] %vm1550, %v4318
      %4351 = vst.msk [vmem:[#allocation2 + $0x368] sm:$0xff] %vm1550, %v4319
      %4352 = vst.msk [vmem:[#allocation2 + $0x370] sm:$0xff] %vm1550, %v4320
      %4353 = vst.msk [vmem:[#allocation2 + $0x378] sm:$0xff] %vm1550, %v4321
      %4354 = vst.msk [vmem:[#allocation2 + $0x380] sm:$0xff] %vm1550, %v4322
      %4355 = vst.msk [vmem:[#allocation2 + $0x388] sm:$0xff] %vm1550, %v4323
      %4356 = vst.msk [vmem:[#allocation2 + $0x390] sm:$0xff] %vm1550, %v4324
      %4357 = vst.msk [vmem:[#allocation2 + $0x398] sm:$0xff] %vm1550, %v4325
      %4358 = vst.msk [vmem:[#allocation2 + $0x3a0] sm:$0xff] %vm1550, %v4326
      %4359 = vst.msk [vmem:[#allocation2 + $0x3a8] sm:$0xff] %vm1550, %v4327
      %4360 = vst.msk [vmem:[#allocation2 + $0x3b0] sm:$0xff] %vm1550, %v4328
      %4361 = vst.msk [vmem:[#allocation2 + $0x3b8] sm:$0xff] %vm1550, %v4329
      %4362 = vst.msk [vmem:[#allocation2 + $0x3c0] sm:$0xff] %vm1550, %v4330
      %4363 = vst.msk [vmem:[#allocation2 + $0x3c8] sm:$0xff] %vm1550, %v4331
      %4364 = vst.msk [vmem:[#allocation2 + $0x3d0] sm:$0xff] %vm1550, %v4332
      %4365 = vst.msk [vmem:[#allocation2 + $0x3d8] sm:$0xff] %vm1550, %v4333
      %4366 = vst.msk [vmem:[#allocation2 + $0x3e0] sm:$0xff] %vm1550, %v4334
      %4367 = vst.msk [vmem:[#allocation2 + $0x3e8] sm:$0xff] %vm1550, %v4335
      %4368 = vst.msk [vmem:[#allocation2 + $0x3f0] sm:$0xff] %vm1550, %v4336
      %4369 = vst.msk [vmem:[#allocation2 + $0x3f8] sm:$0xff] %vm1550, %v4337
      %v4370 = vld [vmem:[%s3 + $0x200] sm:$0xf]
      %v4371 = vld [vmem:[%s3 + $0x204] sm:$0xf]
      %v4372 = vld [vmem:[%s3 + $0x208] sm:$0xf]
      %v4373 = vld [vmem:[%s3 + $0x20c] sm:$0xf]
      %v4374 = vld [vmem:[%s3 + $0x210] sm:$0xf]
      %v4375 = vld [vmem:[%s3 + $0x214] sm:$0xf]
      %v4376 = vld [vmem:[%s3 + $0x218] sm:$0xf]
      %v4377 = vld [vmem:[%s3 + $0x21c] sm:$0xf]
      %v4378 = vld [vmem:[%s3 + $0x220] sm:$0xf]
      %v4379 = vld [vmem:[%s3 + $0x224] sm:$0xf]
      %v4380 = vld [vmem:[%s3 + $0x228] sm:$0xf]
      %v4381 = vld [vmem:[%s3 + $0x22c] sm:$0xf]
      %v4382 = vld [vmem:[%s3 + $0x230] sm:$0xf]
      %v4383 = vld [vmem:[%s3 + $0x234] sm:$0xf]
      %v4384 = vld [vmem:[%s3 + $0x238] sm:$0xf]
      %v4385 = vld [vmem:[%s3 + $0x23c] sm:$0xf]
      %v4386 = vld [vmem:[%s3 + $0x240] sm:$0xf]
      %v4387 = vld [vmem:[%s3 + $0x244] sm:$0xf]
      %v4388 = vld [vmem:[%s3 + $0x248] sm:$0xf]
      %v4389 = vld [vmem:[%s3 + $0x24c] sm:$0xf]
      %v4390 = vld [vmem:[%s3 + $0x250] sm:$0xf]
      %v4391 = vld [vmem:[%s3 + $0x254] sm:$0xf]
      %v4392 = vld [vmem:[%s3 + $0x258] sm:$0xf]
      %v4393 = vld [vmem:[%s3 + $0x25c] sm:$0xf]
      %v4394 = vld [vmem:[%s3 + $0x260] sm:$0xf]
      %v4395 = vld [vmem:[%s3 + $0x264] sm:$0xf]
      %v4396 = vld [vmem:[%s3 + $0x268] sm:$0xf]
      %v4397 = vld [vmem:[%s3 + $0x26c] sm:$0xf]
      %v4398 = vld [vmem:[%s3 + $0x270] sm:$0xf]
      %v4399 = vld [vmem:[%s3 + $0x274] sm:$0xf]
      %v4400 = vld [vmem:[%s3 + $0x278] sm:$0xf]
      %v4401 = vld [vmem:[%s3 + $0x27c] sm:$0xf]
      %v4402 = vld [vmem:[%s4 + $0x400] sm:$0xff]
      %v4403 = vld [vmem:[%s4 + $0x408] sm:$0xff]
      %v4404 = vld [vmem:[%s4 + $0x410] sm:$0xff]
      %v4405 = vld [vmem:[%s4 + $0x418] sm:$0xff]
      %v4406 = vld [vmem:[%s4 + $0x420] sm:$0xff]
      %v4407 = vld [vmem:[%s4 + $0x428] sm:$0xff]
      %v4408 = vld [vmem:[%s4 + $0x430] sm:$0xff]
      %v4409 = vld [vmem:[%s4 + $0x438] sm:$0xff]
      %v4410 = vld [vmem:[%s4 + $0x440] sm:$0xff]
      %v4411 = vld [vmem:[%s4 + $0x448] sm:$0xff]
      %v4412 = vld [vmem:[%s4 + $0x450] sm:$0xff]
      %v4413 = vld [vmem:[%s4 + $0x458] sm:$0xff]
      %v4414 = vld [vmem:[%s4 + $0x460] sm:$0xff]
      %v4415 = vld [vmem:[%s4 + $0x468] sm:$0xff]
      %v4416 = vld [vmem:[%s4 + $0x470] sm:$0xff]
      %v4417 = vld [vmem:[%s4 + $0x478] sm:$0xff]
      %v4418 = vld [vmem:[%s4 + $0x480] sm:$0xff]
      %v4419 = vld [vmem:[%s4 + $0x488] sm:$0xff]
      %v4420 = vld [vmem:[%s4 + $0x490] sm:$0xff]
      %v4421 = vld [vmem:[%s4 + $0x498] sm:$0xff]
      %v4422 = vld [vmem:[%s4 + $0x4a0] sm:$0xff]
      %v4423 = vld [vmem:[%s4 + $0x4a8] sm:$0xff]
      %v4424 = vld [vmem:[%s4 + $0x4b0] sm:$0xff]
      %v4425 = vld [vmem:[%s4 + $0x4b8] sm:$0xff]
      %v4426 = vld [vmem:[%s4 + $0x4c0] sm:$0xff]
      %v4427 = vld [vmem:[%s4 + $0x4c8] sm:$0xff]
      %v4428 = vld [vmem:[%s4 + $0x4d0] sm:$0xff]
      %v4429 = vld [vmem:[%s4 + $0x4d8] sm:$0xff]
      %v4430 = vld [vmem:[%s4 + $0x4e0] sm:$0xff]
      %v4431 = vld [vmem:[%s4 + $0x4e8] sm:$0xff]
      %v4432 = vld [vmem:[%s4 + $0x4f0] sm:$0xff]
      %v4433 = vld [vmem:[%s4 + $0x4f8] sm:$0xff]
      %4435 = vset.pattern.permute.xlu0 0
      %4436 = vperm.xlu0 %4435, %v4402
      %v4437 = vpop.permute.xlu0 %4436
      %4440 = vset.pattern.permute.xlu0 0
      %4441 = vperm.xlu0 %4440, %v4403
      %v4442 = vpop.permute.xlu0 %4441
      %4445 = vset.pattern.permute.xlu0 0
      %4446 = vperm.xlu0 %4445, %v4404
      %v4447 = vpop.permute.xlu0 %4446
      %4450 = vset.pattern.permute.xlu0 0
      %4451 = vperm.xlu0 %4450, %v4405
      %v4452 = vpop.permute.xlu0 %4451
      %4455 = vset.pattern.permute.xlu0 0
      %4456 = vperm.xlu0 %4455, %v4406
      %v4457 = vpop.permute.xlu0 %4456
      %4460 = vset.pattern.permute.xlu0 0
      %4461 = vperm.xlu0 %4460, %v4407
      %v4462 = vpop.permute.xlu0 %4461
      %4465 = vset.pattern.permute.xlu0 0
      %4466 = vperm.xlu0 %4465, %v4408
      %v4467 = vpop.permute.xlu0 %4466
      %4470 = vset.pattern.permute.xlu0 0
      %4471 = vperm.xlu0 %4470, %v4409
      %v4472 = vpop.permute.xlu0 %4471
      %4475 = vset.pattern.permute.xlu0 0
      %4476 = vperm.xlu0 %4475, %v4410
      %v4477 = vpop.permute.xlu0 %4476
      %4480 = vset.pattern.permute.xlu0 0
      %4481 = vperm.xlu0 %4480, %v4411
      %v4482 = vpop.permute.xlu0 %4481
      %4485 = vset.pattern.permute.xlu0 0
      %4486 = vperm.xlu0 %4485, %v4412
      %v4487 = vpop.permute.xlu0 %4486
      %4490 = vset.pattern.permute.xlu0 0
      %4491 = vperm.xlu0 %4490, %v4413
      %v4492 = vpop.permute.xlu0 %4491
      %4495 = vset.pattern.permute.xlu0 0
      %4496 = vperm.xlu0 %4495, %v4414
      %v4497 = vpop.permute.xlu0 %4496
      %4500 = vset.pattern.permute.xlu0 0
      %4501 = vperm.xlu0 %4500, %v4415
      %v4502 = vpop.permute.xlu0 %4501
      %4505 = vset.pattern.permute.xlu0 0
      %4506 = vperm.xlu0 %4505, %v4416
      %v4507 = vpop.permute.xlu0 %4506
      %4510 = vset.pattern.permute.xlu0 0
      %4511 = vperm.xlu0 %4510, %v4417
      %v4512 = vpop.permute.xlu0 %4511
      %4515 = vset.pattern.permute.xlu0 0
      %4516 = vperm.xlu0 %4515, %v4418
      %v4517 = vpop.permute.xlu0 %4516
      %4520 = vset.pattern.permute.xlu0 0
      %4521 = vperm.xlu0 %4520, %v4419
      %v4522 = vpop.permute.xlu0 %4521
      %4525 = vset.pattern.permute.xlu0 0
      %4526 = vperm.xlu0 %4525, %v4420
      %v4527 = vpop.permute.xlu0 %4526
      %4530 = vset.pattern.permute.xlu0 0
      %4531 = vperm.xlu0 %4530, %v4421
      %v4532 = vpop.permute.xlu0 %4531
      %4535 = vset.pattern.permute.xlu0 0
      %4536 = vperm.xlu0 %4535, %v4422
      %v4537 = vpop.permute.xlu0 %4536
      %4540 = vset.pattern.permute.xlu0 0
      %4541 = vperm.xlu0 %4540, %v4423
      %v4542 = vpop.permute.xlu0 %4541
      %4545 = vset.pattern.permute.xlu0 0
      %4546 = vperm.xlu0 %4545, %v4424
      %v4547 = vpop.permute.xlu0 %4546
      %4550 = vset.pattern.permute.xlu0 0
      %4551 = vperm.xlu0 %4550, %v4425
      %v4552 = vpop.permute.xlu0 %4551
      %4555 = vset.pattern.permute.xlu0 0
      %4556 = vperm.xlu0 %4555, %v4426
      %v4557 = vpop.permute.xlu0 %4556
      %4560 = vset.pattern.permute.xlu0 0
      %4561 = vperm.xlu0 %4560, %v4427
      %v4562 = vpop.permute.xlu0 %4561
      %4565 = vset.pattern.permute.xlu0 0
      %4566 = vperm.xlu0 %4565, %v4428
      %v4567 = vpop.permute.xlu0 %4566
      %4570 = vset.pattern.permute.xlu0 0
      %4571 = vperm.xlu0 %4570, %v4429
      %v4572 = vpop.permute.xlu0 %4571
      %4575 = vset.pattern.permute.xlu0 0
      %4576 = vperm.xlu0 %4575, %v4430
      %v4577 = vpop.permute.xlu0 %4576
      %4580 = vset.pattern.permute.xlu0 0
      %4581 = vperm.xlu0 %4580, %v4431
      %v4582 = vpop.permute.xlu0 %4581
      %4585 = vset.pattern.permute.xlu0 0
      %4586 = vperm.xlu0 %4585, %v4432
      %v4587 = vpop.permute.xlu0 %4586
      %4590 = vset.pattern.permute.xlu0 0
      %4591 = vperm.xlu0 %4590, %v4433
      %v4592 = vpop.permute.xlu0 %4591
      %v4626 = vunpack.c.l.b16 %v4370
      %v4627 = vunpack.c.l.b16 %v4371
      %v4628 = vunpack.c.l.b16 %v4372
      %v4629 = vunpack.c.l.b16 %v4373
      %v4630 = vunpack.c.l.b16 %v4374
      %v4631 = vunpack.c.l.b16 %v4375
      %v4632 = vunpack.c.l.b16 %v4376
      %v4633 = vunpack.c.l.b16 %v4377
      %v4634 = vunpack.c.l.b16 %v4378
      %v4635 = vunpack.c.l.b16 %v4379
      %v4636 = vunpack.c.l.b16 %v4380
      %v4637 = vunpack.c.l.b16 %v4381
      %v4638 = vunpack.c.l.b16 %v4382
      %v4639 = vunpack.c.l.b16 %v4383
      %v4640 = vunpack.c.l.b16 %v4384
      %v4641 = vunpack.c.l.b16 %v4385
      %v4642 = vunpack.c.l.b16 %v4386
      %v4643 = vunpack.c.l.b16 %v4387
      %v4644 = vunpack.c.l.b16 %v4388
      %v4645 = vunpack.c.l.b16 %v4389
      %v4646 = vunpack.c.l.b16 %v4390
      %v4647 = vunpack.c.l.b16 %v4391
      %v4648 = vunpack.c.l.b16 %v4392
      %v4649 = vunpack.c.l.b16 %v4393
      %v4650 = vunpack.c.l.b16 %v4394
      %v4651 = vunpack.c.l.b16 %v4395
      %v4652 = vunpack.c.l.b16 %v4396
      %v4653 = vunpack.c.l.b16 %v4397
      %v4654 = vunpack.c.l.b16 %v4398
      %v4655 = vunpack.c.l.b16 %v4399
      %v4656 = vunpack.c.l.b16 %v4400
      %v4657 = vunpack.c.l.b16 %v4401
      %v4658 = vpack.c.b16 %v4627, %v4626
      %v4659 = vpack.c.b16 %v4629, %v4628
      %v4660 = vpack.c.b16 %v4631, %v4630
      %v4661 = vpack.c.b16 %v4633, %v4632
      %v4662 = vpack.c.b16 %v4635, %v4634
      %v4663 = vpack.c.b16 %v4637, %v4636
      %v4664 = vpack.c.b16 %v4639, %v4638
      %v4665 = vpack.c.b16 %v4641, %v4640
      %v4666 = vpack.c.b16 %v4643, %v4642
      %v4667 = vpack.c.b16 %v4645, %v4644
      %v4668 = vpack.c.b16 %v4647, %v4646
      %v4669 = vpack.c.b16 %v4649, %v4648
      %v4670 = vpack.c.b16 %v4651, %v4650
      %v4671 = vpack.c.b16 %v4653, %v4652
      %v4672 = vpack.c.b16 %v4655, %v4654
      %v4673 = vpack.c.b16 %v4657, %v4656
      %v4675 = vsel %vm951, %v4658, 0
      %v4678 = vsel %vm951, %v4659, 0
      %v4681 = vsel %vm951, %v4660, 0
      %v4684 = vsel %vm951, %v4661, 0
      %v4687 = vsel %vm951, %v4662, 0
      %v4690 = vsel %vm951, %v4663, 0
      %v4693 = vsel %vm951, %v4664, 0
      %v4696 = vsel %vm951, %v4665, 0
      %v4699 = vsel %vm951, %v4666, 0
      %v4702 = vsel %vm951, %v4667, 0
      %v4705 = vsel %vm951, %v4668, 0
      %v4708 = vsel %vm951, %v4669, 0
      %v4711 = vsel %vm951, %v4670, 0
      %v4714 = vsel %vm951, %v4671, 0
      %v4717 = vsel %vm951, %v4672, 0
      %v4720 = vsel %vm951, %v4673, 0
      %4722 = vmatprep.subr.bf16.mxu0 0
      %4723 = vmatpush1.bf16.msra.mxu0 %v644
      %4724 = vmatprep.subr.bf16.mxu0 0
      %4725 = vmatpush1.bf16.msra.mxu0 %v645
      %4726 = vmatprep.subr.bf16.mxu0 0
      %4727 = vmatpush1.bf16.msra.mxu0 %v1002
      %4728 = vmatprep.subr.bf16.mxu0 0
      %4729 = vmatpush1.bf16.msra.mxu0 0
      %4730 = vmatprep.subr.bf16.mxu0 0
      %4731 = vmatpush1.bf16.msra.mxu0 0
      %4732 = vmatprep.subr.bf16.mxu0 0
      %4733 = vmatpush1.bf16.msra.mxu0 0
      %4734 = vmatprep.subr.bf16.mxu0 0
      %4735 = vmatpush1.bf16.msra.mxu0 0
      %4736 = vmatprep.subr.bf16.mxu0 0
      %4737 = vmatpush1.bf16.msra.mxu0 0
      %4738 = vmatprep.subr.bf16.mxu0 0
      %4739 = vmatpush1.bf16.msra.mxu0 0
      %4740 = vmatprep.subr.bf16.mxu0 0
      %4741 = vmatpush1.bf16.msra.mxu0 0
      %4742 = vmatprep.subr.bf16.mxu0 0
      %4743 = vmatpush1.bf16.msra.mxu0 0
      %4744 = vmatprep.subr.bf16.mxu0 0
      %4745 = vmatpush1.bf16.msra.mxu0 0
      %4746 = vmatprep.subr.bf16.mxu0 0
      %4747 = vmatpush1.bf16.msra.mxu0 0
      %4748 = vmatprep.subr.bf16.mxu0 0
      %4749 = vmatpush1.bf16.msra.mxu0 0
      %4750 = vmatprep.subr.bf16.mxu0 0
      %4751 = vmatpush1.bf16.msra.mxu0 0
      %4752 = vmatprep.subr.bf16.mxu0 0
      %4753 = vmatpush1.bf16.msra.mxu0 0
      %4754 = vmatprep.mubr.bf16.mxu0 0
      %4755 = vmatmul.mubr.bf16.gmra.mrb[0].mxu0 %v4675
      %v4756 = vpop.f32.mrb[0].mxu0
      %v4757 = vadd.f32 %v4437, %v4756
      %v4758 = vpop.f32.mrb[0].mxu0
      %v4759 = vpop.f32.mrb[0].mxu0
      %v4760 = vadd.f32 %v4442, %v4759
      %v4761 = vpop.f32.mrb[0].mxu0
      %4762 = vmatprep.mubr.bf16.mxu0 0
      %4763 = vmatmul.mubr.bf16.gmra.mrb[0].mxu0 %v4678
      %v4764 = vpop.f32.mrb[0].mxu0
      %v4765 = vadd.f32 %v4447, %v4764
      %v4766 = vpop.f32.mrb[0].mxu0
      %v4767 = vpop.f32.mrb[0].mxu0
      %v4768 = vadd.f32 %v4452, %v4767
      %v4769 = vpop.f32.mrb[0].mxu0
      %4770 = vmatprep.mubr.bf16.mxu0 0
      %4771 = vmatmul.mubr.bf16.gmra.mrb[0].mxu0 %v4681
      %v4772 = vpop.f32.mrb[0].mxu0
      %v4773 = vadd.f32 %v4457, %v4772
      %v4774 = vpop.f32.mrb[0].mxu0
      %v4775 = vpop.f32.mrb[0].mxu0
      %v4776 = vadd.f32 %v4462, %v4775
      %v4777 = vpop.f32.mrb[0].mxu0
      %4778 = vmatprep.mubr.bf16.mxu0 0
      %4779 = vmatmul.mubr.bf16.gmra.mrb[0].mxu0 %v4684
      %v4780 = vpop.f32.mrb[0].mxu0
      %v4781 = vadd.f32 %v4467, %v4780
      %v4782 = vpop.f32.mrb[0].mxu0
      %v4783 = vpop.f32.mrb[0].mxu0
      %v4784 = vadd.f32 %v4472, %v4783
      %v4785 = vpop.f32.mrb[0].mxu0
      %4786 = vmatprep.mubr.bf16.mxu0 0
      %4787 = vmatmul.mubr.bf16.gmra.mrb[0].mxu0 %v4687
      %v4788 = vpop.f32.mrb[0].mxu0
      %v4789 = vadd.f32 %v4477, %v4788
      %v4790 = vpop.f32.mrb[0].mxu0
      %v4791 = vpop.f32.mrb[0].mxu0
      %v4792 = vadd.f32 %v4482, %v4791
      %v4793 = vpop.f32.mrb[0].mxu0
      %4794 = vmatprep.mubr.bf16.mxu0 0
      %4795 = vmatmul.mubr.bf16.gmra.mrb[0].mxu0 %v4690
      %v4796 = vpop.f32.mrb[0].mxu0
      %v4797 = vadd.f32 %v4487, %v4796
      %v4798 = vpop.f32.mrb[0].mxu0
      %v4799 = vpop.f32.mrb[0].mxu0
      %v4800 = vadd.f32 %v4492, %v4799
      %v4801 = vpop.f32.mrb[0].mxu0
      %4802 = vmatprep.mubr.bf16.mxu0 0
      %4803 = vmatmul.mubr.bf16.gmra.mrb[0].mxu0 %v4693
      %v4804 = vpop.f32.mrb[0].mxu0
      %v4805 = vadd.f32 %v4497, %v4804
      %v4806 = vpop.f32.mrb[0].mxu0
      %v4807 = vpop.f32.mrb[0].mxu0
      %v4808 = vadd.f32 %v4502, %v4807
      %v4809 = vpop.f32.mrb[0].mxu0
      %4810 = vmatprep.mubr.bf16.mxu0 0
      %4811 = vmatmul.mubr.bf16.gmra.mrb[0].mxu0 %v4696
      %v4812 = vpop.f32.mrb[0].mxu0
      %v4813 = vadd.f32 %v4507, %v4812
      %v4814 = vpop.f32.mrb[0].mxu0
      %v4815 = vpop.f32.mrb[0].mxu0
      %v4816 = vadd.f32 %v4512, %v4815
      %v4817 = vpop.f32.mrb[0].mxu0
      %4818 = vmatprep.mubr.bf16.mxu0 0
      %4819 = vmatmul.mubr.bf16.gmra.mrb[0].mxu0 %v4699
      %v4820 = vpop.f32.mrb[0].mxu0
      %v4821 = vadd.f32 %v4517, %v4820
      %v4822 = vpop.f32.mrb[0].mxu0
      %v4823 = vpop.f32.mrb[0].mxu0
      %v4824 = vadd.f32 %v4522, %v4823
      %v4825 = vpop.f32.mrb[0].mxu0
      %4826 = vmatprep.mubr.bf16.mxu0 0
      %4827 = vmatmul.mubr.bf16.gmra.mrb[0].mxu0 %v4702
      %v4828 = vpop.f32.mrb[0].mxu0
      %v4829 = vadd.f32 %v4527, %v4828
      %v4830 = vpop.f32.mrb[0].mxu0
      %v4831 = vpop.f32.mrb[0].mxu0
      %v4832 = vadd.f32 %v4532, %v4831
      %v4833 = vpop.f32.mrb[0].mxu0
      %4834 = vmatprep.mubr.bf16.mxu0 0
      %4835 = vmatmul.mubr.bf16.gmra.mrb[0].mxu0 %v4705
      %v4836 = vpop.f32.mrb[0].mxu0
      %v4837 = vadd.f32 %v4537, %v4836
      %v4838 = vpop.f32.mrb[0].mxu0
      %v4839 = vpop.f32.mrb[0].mxu0
      %v4840 = vadd.f32 %v4542, %v4839
      %v4841 = vpop.f32.mrb[0].mxu0
      %4842 = vmatprep.mubr.bf16.mxu0 0
      %4843 = vmatmul.mubr.bf16.gmra.mrb[0].mxu0 %v4708
      %v4844 = vpop.f32.mrb[0].mxu0
      %v4845 = vadd.f32 %v4547, %v4844
      %v4846 = vpop.f32.mrb[0].mxu0
      %v4847 = vpop.f32.mrb[0].mxu0
      %v4848 = vadd.f32 %v4552, %v4847
      %v4849 = vpop.f32.mrb[0].mxu0
      %4850 = vmatprep.mubr.bf16.mxu0 0
      %4851 = vmatmul.mubr.bf16.gmra.mrb[0].mxu0 %v4711
      %v4852 = vpop.f32.mrb[0].mxu0
      %v4853 = vadd.f32 %v4557, %v4852
      %v4854 = vpop.f32.mrb[0].mxu0
      %v4855 = vpop.f32.mrb[0].mxu0
      %v4856 = vadd.f32 %v4562, %v4855
      %v4857 = vpop.f32.mrb[0].mxu0
      %4858 = vmatprep.mubr.bf16.mxu0 0
      %4859 = vmatmul.mubr.bf16.gmra.mrb[0].mxu0 %v4714
      %v4860 = vpop.f32.mrb[0].mxu0
      %v4861 = vadd.f32 %v4567, %v4860
      %v4862 = vpop.f32.mrb[0].mxu0
      %v4863 = vpop.f32.mrb[0].mxu0
      %v4864 = vadd.f32 %v4572, %v4863
      %v4865 = vpop.f32.mrb[0].mxu0
      %4866 = vmatprep.mubr.bf16.mxu0 0
      %4867 = vmatmul.mubr.bf16.gmra.mrb[0].mxu0 %v4717
      %v4868 = vpop.f32.mrb[0].mxu0
      %v4869 = vadd.f32 %v4577, %v4868
      %v4870 = vpop.f32.mrb[0].mxu0
      %v4871 = vpop.f32.mrb[0].mxu0
      %v4872 = vadd.f32 %v4582, %v4871
      %v4873 = vpop.f32.mrb[0].mxu0
      %4874 = vmatprep.mubr.bf16.mxu0 0
      %4875 = vmatmul.mubr.bf16.gmra.mrb[0].mxu0 %v4720
      %v4876 = vpop.f32.mrb[0].mxu0
      %v4877 = vadd.f32 %v4587, %v4876
      %v4878 = vpop.f32.mrb[0].mxu0
      %v4879 = vpop.f32.mrb[0].mxu0
      %v4880 = vadd.f32 %v4592, %v4879
      %v4881 = vpop.f32.mrb[0].mxu0
      %4882 = vdwg.mxu0
      %v4883 = vxor.u32 %v4757, 2147483648
      %v4884 = vxor.u32 %v4760, 2147483648
      %v4885 = vxor.u32 %v4765, 2147483648
      %v4886 = vxor.u32 %v4768, 2147483648
      %v4887 = vxor.u32 %v4773, 2147483648
      %v4888 = vxor.u32 %v4776, 2147483648
      %v4889 = vxor.u32 %v4781, 2147483648
      %v4890 = vxor.u32 %v4784, 2147483648
      %v4891 = vxor.u32 %v4789, 2147483648
      %v4892 = vxor.u32 %v4792, 2147483648
      %v4893 = vxor.u32 %v4797, 2147483648
      %v4894 = vxor.u32 %v4800, 2147483648
      %v4895 = vxor.u32 %v4805, 2147483648
      %v4896 = vxor.u32 %v4808, 2147483648
      %v4897 = vxor.u32 %v4813, 2147483648
      %v4898 = vxor.u32 %v4816, 2147483648
      %v4899 = vxor.u32 %v4821, 2147483648
      %v4900 = vxor.u32 %v4824, 2147483648
      %v4901 = vxor.u32 %v4829, 2147483648
      %v4902 = vxor.u32 %v4832, 2147483648
      %v4903 = vxor.u32 %v4837, 2147483648
      %v4904 = vxor.u32 %v4840, 2147483648
      %v4905 = vxor.u32 %v4845, 2147483648
      %v4906 = vxor.u32 %v4848, 2147483648
      %v4907 = vxor.u32 %v4853, 2147483648
      %v4908 = vxor.u32 %v4856, 2147483648
      %v4909 = vxor.u32 %v4861, 2147483648
      %v4910 = vxor.u32 %v4864, 2147483648
      %v4911 = vxor.u32 %v4869, 2147483648
      %v4912 = vxor.u32 %v4872, 2147483648
      %v4913 = vxor.u32 %v4877, 2147483648
      %v4914 = vxor.u32 %v4880, 2147483648
      %v4915 = vmul.f32 %v4883, 1.442695
      %v4916 = vpow.pop %v4915
      %v4917 = vmul.f32 %v4884, 1.442695
      %v4918 = vpow.pop %v4917
      %v4919 = vmul.f32 %v4885, 1.442695
      %v4920 = vpow.pop %v4919
      %v4921 = vmul.f32 %v4886, 1.442695
      %v4922 = vpow.pop %v4921
      %v4923 = vmul.f32 %v4887, 1.442695
      %v4924 = vpow.pop %v4923
      %v4925 = vmul.f32 %v4888, 1.442695
      %v4926 = vpow.pop %v4925
      %v4927 = vmul.f32 %v4889, 1.442695
      %v4928 = vpow.pop %v4927
      %v4929 = vmul.f32 %v4890, 1.442695
      %v4930 = vpow.pop %v4929
      %v4931 = vmul.f32 %v4891, 1.442695
      %v4932 = vpow.pop %v4931
      %v4933 = vmul.f32 %v4892, 1.442695
      %v4934 = vpow.pop %v4933
      %v4935 = vmul.f32 %v4893, 1.442695
      %v4936 = vpow.pop %v4935
      %v4937 = vmul.f32 %v4894, 1.442695
      %v4938 = vpow.pop %v4937
      %v4939 = vmul.f32 %v4895, 1.442695
      %v4940 = vpow.pop %v4939
      %v4941 = vmul.f32 %v4896, 1.442695
      %v4942 = vpow.pop %v4941
      %v4943 = vmul.f32 %v4897, 1.442695
      %v4944 = vpow.pop %v4943
      %v4945 = vmul.f32 %v4898, 1.442695
      %v4946 = vpow.pop %v4945
      %v4947 = vmul.f32 %v4899, 1.442695
      %v4948 = vpow.pop %v4947
      %v4949 = vmul.f32 %v4900, 1.442695
      %v4950 = vpow.pop %v4949
      %v4951 = vmul.f32 %v4901, 1.442695
      %v4952 = vpow.pop %v4951
      %v4953 = vmul.f32 %v4902, 1.442695
      %v4954 = vpow.pop %v4953
      %v4955 = vmul.f32 %v4903, 1.442695
      %v4956 = vpow.pop %v4955
      %v4957 = vmul.f32 %v4904, 1.442695
      %v4958 = vpow.pop %v4957
      %v4959 = vmul.f32 %v4905, 1.442695
      %v4960 = vpow.pop %v4959
      %v4961 = vmul.f32 %v4906, 1.442695
      %v4962 = vpow.pop %v4961
      %v4963 = vmul.f32 %v4907, 1.442695
      %v4964 = vpow.pop %v4963
      %v4965 = vmul.f32 %v4908, 1.442695
      %v4966 = vpow.pop %v4965
      %v4967 = vmul.f32 %v4909, 1.442695
      %v4968 = vpow.pop %v4967
      %v4969 = vmul.f32 %v4910, 1.442695
      %v4970 = vpow.pop %v4969
      %v4971 = vmul.f32 %v4911, 1.442695
      %v4972 = vpow.pop %v4971
      %v4973 = vmul.f32 %v4912, 1.442695
      %v4974 = vpow.pop %v4973
      %v4975 = vmul.f32 %v4913, 1.442695
      %v4976 = vpow.pop %v4975
      %v4977 = vmul.f32 %v4914, 1.442695
      %v4978 = vpow.pop %v4977
      %v4979 = vadd.f32 %v4916, 1.0
      %v4980 = vadd.f32 %v4918, 1.0
      %v4981 = vadd.f32 %v4920, 1.0
      %v4982 = vadd.f32 %v4922, 1.0
      %v4983 = vadd.f32 %v4924, 1.0
      %v4984 = vadd.f32 %v4926, 1.0
      %v4985 = vadd.f32 %v4928, 1.0
      %v4986 = vadd.f32 %v4930, 1.0
      %v4987 = vadd.f32 %v4932, 1.0
      %v4988 = vadd.f32 %v4934, 1.0
      %v4989 = vadd.f32 %v4936, 1.0
      %v4990 = vadd.f32 %v4938, 1.0
      %v4991 = vadd.f32 %v4940, 1.0
      %v4992 = vadd.f32 %v4942, 1.0
      %v4993 = vadd.f32 %v4944, 1.0
      %v4994 = vadd.f32 %v4946, 1.0
      %v4995 = vadd.f32 %v4948, 1.0
      %v4996 = vadd.f32 %v4950, 1.0
      %v4997 = vadd.f32 %v4952, 1.0
      %v4998 = vadd.f32 %v4954, 1.0
      %v4999 = vadd.f32 %v4956, 1.0
      %v5000 = vadd.f32 %v4958, 1.0
      %v5001 = vadd.f32 %v4960, 1.0
      %v5002 = vadd.f32 %v4962, 1.0
      %v5003 = vadd.f32 %v4964, 1.0
      %v5004 = vadd.f32 %v4966, 1.0
      %v5005 = vadd.f32 %v4968, 1.0
      %v5006 = vadd.f32 %v4970, 1.0
      %v5007 = vadd.f32 %v4972, 1.0
      %v5008 = vadd.f32 %v4974, 1.0
      %v5009 = vadd.f32 %v4976, 1.0
      %v5010 = vadd.f32 %v4978, 1.0
      %v5011 = vrcp.pop %v4979
      %v5012 = vmul.f32 1.0, %v5011
      %v5013 = vrcp.pop %v4980
      %v5014 = vmul.f32 1.0, %v5013
      %v5015 = vrcp.pop %v4981
      %v5016 = vmul.f32 1.0, %v5015
      %v5017 = vrcp.pop %v4982
      %v5018 = vmul.f32 1.0, %v5017
      %v5019 = vrcp.pop %v4983
      %v5020 = vmul.f32 1.0, %v5019
      %v5021 = vrcp.pop %v4984
      %v5022 = vmul.f32 1.0, %v5021
      %v5023 = vrcp.pop %v4985
      %v5024 = vmul.f32 1.0, %v5023
      %v5025 = vrcp.pop %v4986
      %v5026 = vmul.f32 1.0, %v5025
      %v5027 = vrcp.pop %v4987
      %v5028 = vmul.f32 1.0, %v5027
      %v5029 = vrcp.pop %v4988
      %v5030 = vmul.f32 1.0, %v5029
      %v5031 = vrcp.pop %v4989
      %v5032 = vmul.f32 1.0, %v5031
      %v5033 = vrcp.pop %v4990
      %v5034 = vmul.f32 1.0, %v5033
      %v5035 = vrcp.pop %v4991
      %v5036 = vmul.f32 1.0, %v5035
      %v5037 = vrcp.pop %v4992
      %v5038 = vmul.f32 1.0, %v5037
      %v5039 = vrcp.pop %v4993
      %v5040 = vmul.f32 1.0, %v5039
      %v5041 = vrcp.pop %v4994
      %v5042 = vmul.f32 1.0, %v5041
      %v5043 = vrcp.pop %v4995
      %v5044 = vmul.f32 1.0, %v5043
      %v5045 = vrcp.pop %v4996
      %v5046 = vmul.f32 1.0, %v5045
      %v5047 = vrcp.pop %v4997
      %v5048 = vmul.f32 1.0, %v5047
      %v5049 = vrcp.pop %v4998
      %v5050 = vmul.f32 1.0, %v5049
      %v5051 = vrcp.pop %v4999
      %v5052 = vmul.f32 1.0, %v5051
      %v5053 = vrcp.pop %v5000
      %v5054 = vmul.f32 1.0, %v5053
      %v5055 = vrcp.pop %v5001
      %v5056 = vmul.f32 1.0, %v5055
      %v5057 = vrcp.pop %v5002
      %v5058 = vmul.f32 1.0, %v5057
      %v5059 = vrcp.pop %v5003
      %v5060 = vmul.f32 1.0, %v5059
      %v5061 = vrcp.pop %v5004
      %v5062 = vmul.f32 1.0, %v5061
      %v5063 = vrcp.pop %v5005
      %v5064 = vmul.f32 1.0, %v5063
      %v5065 = vrcp.pop %v5006
      %v5066 = vmul.f32 1.0, %v5065
      %v5067 = vrcp.pop %v5007
      %v5068 = vmul.f32 1.0, %v5067
      %v5069 = vrcp.pop %v5008
      %v5070 = vmul.f32 1.0, %v5069
      %v5071 = vrcp.pop %v5009
      %v5072 = vmul.f32 1.0, %v5071
      %v5073 = vrcp.pop %v5010
      %v5074 = vmul.f32 1.0, %v5073
      %v5075 = vmul.f32 %v4757, %v5012
      %v5076 = vmul.f32 %v4760, %v5014
      %v5077 = vmul.f32 %v4765, %v5016
      %v5078 = vmul.f32 %v4768, %v5018
      %v5079 = vmul.f32 %v4773, %v5020
      %v5080 = vmul.f32 %v4776, %v5022
      %v5081 = vmul.f32 %v4781, %v5024
      %v5082 = vmul.f32 %v4784, %v5026
      %v5083 = vmul.f32 %v4789, %v5028
      %v5084 = vmul.f32 %v4792, %v5030
      %v5085 = vmul.f32 %v4797, %v5032
      %v5086 = vmul.f32 %v4800, %v5034
      %v5087 = vmul.f32 %v4805, %v5036
      %v5088 = vmul.f32 %v4808, %v5038
      %v5089 = vmul.f32 %v4813, %v5040
      %v5090 = vmul.f32 %v4816, %v5042
      %v5091 = vmul.f32 %v4821, %v5044
      %v5092 = vmul.f32 %v4824, %v5046
      %v5093 = vmul.f32 %v4829, %v5048
      %v5094 = vmul.f32 %v4832, %v5050
      %v5095 = vmul.f32 %v4837, %v5052
      %v5096 = vmul.f32 %v4840, %v5054
      %v5097 = vmul.f32 %v4845, %v5056
      %v5098 = vmul.f32 %v4848, %v5058
      %v5099 = vmul.f32 %v4853, %v5060
      %v5100 = vmul.f32 %v4856, %v5062
      %v5101 = vmul.f32 %v4861, %v5064
      %v5102 = vmul.f32 %v4864, %v5066
      %v5103 = vmul.f32 %v4869, %v5068
      %v5104 = vmul.f32 %v4872, %v5070
      %v5105 = vmul.f32 %v4877, %v5072
      %v5106 = vmul.f32 %v4880, %v5074
      %v5107 = vld [vmem:[#allocation2 + $0x400] sm:$0xff]
      %v5108 = vld [vmem:[#allocation2 + $0x408] sm:$0xff]
      %v5109 = vld [vmem:[#allocation2 + $0x410] sm:$0xff]
      %v5110 = vld [vmem:[#allocation2 + $0x418] sm:$0xff]
      %v5111 = vld [vmem:[#allocation2 + $0x420] sm:$0xff]
      %v5112 = vld [vmem:[#allocation2 + $0x428] sm:$0xff]
      %v5113 = vld [vmem:[#allocation2 + $0x430] sm:$0xff]
      %v5114 = vld [vmem:[#allocation2 + $0x438] sm:$0xff]
      %v5115 = vld [vmem:[#allocation2 + $0x440] sm:$0xff]
      %v5116 = vld [vmem:[#allocation2 + $0x448] sm:$0xff]
      %v5117 = vld [vmem:[#allocation2 + $0x450] sm:$0xff]
      %v5118 = vld [vmem:[#allocation2 + $0x458] sm:$0xff]
      %v5119 = vld [vmem:[#allocation2 + $0x460] sm:$0xff]
      %v5120 = vld [vmem:[#allocation2 + $0x468] sm:$0xff]
      %v5121 = vld [vmem:[#allocation2 + $0x470] sm:$0xff]
      %v5122 = vld [vmem:[#allocation2 + $0x478] sm:$0xff]
      %v5123 = vld [vmem:[#allocation2 + $0x480] sm:$0xff]
      %v5124 = vld [vmem:[#allocation2 + $0x488] sm:$0xff]
      %v5125 = vld [vmem:[#allocation2 + $0x490] sm:$0xff]
      %v5126 = vld [vmem:[#allocation2 + $0x498] sm:$0xff]
      %v5127 = vld [vmem:[#allocation2 + $0x4a0] sm:$0xff]
      %v5128 = vld [vmem:[#allocation2 + $0x4a8] sm:$0xff]
      %v5129 = vld [vmem:[#allocation2 + $0x4b0] sm:$0xff]
      %v5130 = vld [vmem:[#allocation2 + $0x4b8] sm:$0xff]
      %v5131 = vld [vmem:[#allocation2 + $0x4c0] sm:$0xff]
      %v5132 = vld [vmem:[#allocation2 + $0x4c8] sm:$0xff]
      %v5133 = vld [vmem:[#allocation2 + $0x4d0] sm:$0xff]
      %v5134 = vld [vmem:[#allocation2 + $0x4d8] sm:$0xff]
      %v5135 = vld [vmem:[#allocation2 + $0x4e0] sm:$0xff]
      %v5136 = vld [vmem:[#allocation2 + $0x4e8] sm:$0xff]
      %v5137 = vld [vmem:[#allocation2 + $0x4f0] sm:$0xff]
      %v5138 = vld [vmem:[#allocation2 + $0x4f8] sm:$0xff]
      %v5139 = vsel %vm1421, %v5075, 0.0
      %5140 = vadd.xlane.f32.xlu0 %v5139
      %v5141 = vpop.xlane.xlu0 %5140
      %v5142 = vsel %vm1421, %v5076, 0.0
      %5143 = vadd.xlane.f32.xlu0 %v5142
      %v5144 = vpop.xlane.xlu0 %5143
      %v5145 = vsel %vm1421, %v5077, 0.0
      %5146 = vadd.xlane.f32.xlu0 %v5145
      %v5147 = vpop.xlane.xlu0 %5146
      %v5148 = vsel %vm1421, %v5078, 0.0
      %5149 = vadd.xlane.f32.xlu0 %v5148
      %v5150 = vpop.xlane.xlu0 %5149
      %v5151 = vsel %vm1421, %v5079, 0.0
      %5152 = vadd.xlane.f32.xlu0 %v5151
      %v5153 = vpop.xlane.xlu0 %5152
      %v5154 = vsel %vm1421, %v5080, 0.0
      %5155 = vadd.xlane.f32.xlu0 %v5154
      %v5156 = vpop.xlane.xlu0 %5155
      %v5157 = vsel %vm1421, %v5081, 0.0
      %5158 = vadd.xlane.f32.xlu0 %v5157
      %v5159 = vpop.xlane.xlu0 %5158
      %v5160 = vsel %vm1421, %v5082, 0.0
      %5161 = vadd.xlane.f32.xlu0 %v5160
      %v5162 = vpop.xlane.xlu0 %5161
      %v5163 = vsel %vm1421, %v5083, 0.0
      %5164 = vadd.xlane.f32.xlu0 %v5163
      %v5165 = vpop.xlane.xlu0 %5164
      %v5166 = vsel %vm1421, %v5084, 0.0
      %5167 = vadd.xlane.f32.xlu0 %v5166
      %v5168 = vpop.xlane.xlu0 %5167
      %v5169 = vsel %vm1421, %v5085, 0.0
      %5170 = vadd.xlane.f32.xlu0 %v5169
      %v5171 = vpop.xlane.xlu0 %5170
      %v5172 = vsel %vm1421, %v5086, 0.0
      %5173 = vadd.xlane.f32.xlu0 %v5172
      %v5174 = vpop.xlane.xlu0 %5173
      %v5175 = vsel %vm1421, %v5087, 0.0
      %5176 = vadd.xlane.f32.xlu0 %v5175
      %v5177 = vpop.xlane.xlu0 %5176
      %v5178 = vsel %vm1421, %v5088, 0.0
      %5179 = vadd.xlane.f32.xlu0 %v5178
      %v5180 = vpop.xlane.xlu0 %5179
      %v5181 = vsel %vm1421, %v5089, 0.0
      %5182 = vadd.xlane.f32.xlu0 %v5181
      %v5183 = vpop.xlane.xlu0 %5182
      %v5184 = vsel %vm1421, %v5090, 0.0
      %5185 = vadd.xlane.f32.xlu0 %v5184
      %v5186 = vpop.xlane.xlu0 %5185
      %v5187 = vsel %vm1421, %v5091, 0.0
      %5188 = vadd.xlane.f32.xlu0 %v5187
      %v5189 = vpop.xlane.xlu0 %5188
      %v5190 = vsel %vm1421, %v5092, 0.0
      %5191 = vadd.xlane.f32.xlu0 %v5190
      %v5192 = vpop.xlane.xlu0 %5191
      %v5193 = vsel %vm1421, %v5093, 0.0
      %5194 = vadd.xlane.f32.xlu0 %v5193
      %v5195 = vpop.xlane.xlu0 %5194
      %v5196 = vsel %vm1421, %v5094, 0.0
      %5197 = vadd.xlane.f32.xlu0 %v5196
      %v5198 = vpop.xlane.xlu0 %5197
      %v5199 = vsel %vm1421, %v5095, 0.0
      %5200 = vadd.xlane.f32.xlu0 %v5199
      %v5201 = vpop.xlane.xlu0 %5200
      %v5202 = vsel %vm1421, %v5096, 0.0
      %5203 = vadd.xlane.f32.xlu0 %v5202
      %v5204 = vpop.xlane.xlu0 %5203
      %v5205 = vsel %vm1421, %v5097, 0.0
      %5206 = vadd.xlane.f32.xlu0 %v5205
      %v5207 = vpop.xlane.xlu0 %5206
      %v5208 = vsel %vm1421, %v5098, 0.0
      %5209 = vadd.xlane.f32.xlu0 %v5208
      %v5210 = vpop.xlane.xlu0 %5209
      %v5211 = vsel %vm1421, %v5099, 0.0
      %5212 = vadd.xlane.f32.xlu0 %v5211
      %v5213 = vpop.xlane.xlu0 %5212
      %v5214 = vsel %vm1421, %v5100, 0.0
      %5215 = vadd.xlane.f32.xlu0 %v5214
      %v5216 = vpop.xlane.xlu0 %5215
      %v5217 = vsel %vm1421, %v5101, 0.0
      %5218 = vadd.xlane.f32.xlu0 %v5217
      %v5219 = vpop.xlane.xlu0 %5218
      %v5220 = vsel %vm1421, %v5102, 0.0
      %5221 = vadd.xlane.f32.xlu0 %v5220
      %v5222 = vpop.xlane.xlu0 %5221
      %v5223 = vsel %vm1421, %v5103, 0.0
      %5224 = vadd.xlane.f32.xlu0 %v5223
      %v5225 = vpop.xlane.xlu0 %5224
      %v5226 = vsel %vm1421, %v5104, 0.0
      %5227 = vadd.xlane.f32.xlu0 %v5226
      %v5228 = vpop.xlane.xlu0 %5227
      %v5229 = vsel %vm1421, %v5105, 0.0
      %5230 = vadd.xlane.f32.xlu0 %v5229
      %v5231 = vpop.xlane.xlu0 %5230
      %v5232 = vsel %vm1421, %v5106, 0.0
      %5233 = vadd.xlane.f32.xlu0 %v5232
      %v5234 = vpop.xlane.xlu0 %5233
      %v5235 = vadd.f32 %v5107, %v5141
      %v5236 = vadd.f32 %v5108, %v5144
      %v5237 = vadd.f32 %v5109, %v5147
      %v5238 = vadd.f32 %v5110, %v5150
      %v5239 = vadd.f32 %v5111, %v5153
      %v5240 = vadd.f32 %v5112, %v5156
      %v5241 = vadd.f32 %v5113, %v5159
      %v5242 = vadd.f32 %v5114, %v5162
      %v5243 = vadd.f32 %v5115, %v5165
      %v5244 = vadd.f32 %v5116, %v5168
      %v5245 = vadd.f32 %v5117, %v5171
      %v5246 = vadd.f32 %v5118, %v5174
      %v5247 = vadd.f32 %v5119, %v5177
      %v5248 = vadd.f32 %v5120, %v5180
      %v5249 = vadd.f32 %v5121, %v5183
      %v5250 = vadd.f32 %v5122, %v5186
      %v5251 = vadd.f32 %v5123, %v5189
      %v5252 = vadd.f32 %v5124, %v5192
      %v5253 = vadd.f32 %v5125, %v5195
      %v5254 = vadd.f32 %v5126, %v5198
      %v5255 = vadd.f32 %v5127, %v5201
      %v5256 = vadd.f32 %v5128, %v5204
      %v5257 = vadd.f32 %v5129, %v5207
      %v5258 = vadd.f32 %v5130, %v5210
      %v5259 = vadd.f32 %v5131, %v5213
      %v5260 = vadd.f32 %v5132, %v5216
      %v5261 = vadd.f32 %v5133, %v5219
      %v5262 = vadd.f32 %v5134, %v5222
      %v5263 = vadd.f32 %v5135, %v5225
      %v5264 = vadd.f32 %v5136, %v5228
      %v5265 = vadd.f32 %v5137, %v5231
      %v5266 = vadd.f32 %v5138, %v5234
      %5267 = vst.msk [vmem:[#allocation2 + $0x400] sm:$0xff] %vm1550, %v5235
      %5268 = vst.msk [vmem:[#allocation2 + $0x408] sm:$0xff] %vm1550, %v5236
      %5269 = vst.msk [vmem:[#allocation2 + $0x410] sm:$0xff] %vm1550, %v5237
      %5270 = vst.msk [vmem:[#allocation2 + $0x418] sm:$0xff] %vm1550, %v5238
      %5271 = vst.msk [vmem:[#allocation2 + $0x420] sm:$0xff] %vm1550, %v5239
      %5272 = vst.msk [vmem:[#allocation2 + $0x428] sm:$0xff] %vm1550, %v5240
      %5273 = vst.msk [vmem:[#allocation2 + $0x430] sm:$0xff] %vm1550, %v5241
      %5274 = vst.msk [vmem:[#allocation2 + $0x438] sm:$0xff] %vm1550, %v5242
      %5275 = vst.msk [vmem:[#allocation2 + $0x440] sm:$0xff] %vm1550, %v5243
      %5276 = vst.msk [vmem:[#allocation2 + $0x448] sm:$0xff] %vm1550, %v5244
      %5277 = vst.msk [vmem:[#allocation2 + $0x450] sm:$0xff] %vm1550, %v5245
      %5278 = vst.msk [vmem:[#allocation2 + $0x458] sm:$0xff] %vm1550, %v5246
      %5279 = vst.msk [vmem:[#allocation2 + $0x460] sm:$0xff] %vm1550, %v5247
      %5280 = vst.msk [vmem:[#allocation2 + $0x468] sm:$0xff] %vm1550, %v5248
      %5281 = vst.msk [vmem:[#allocation2 + $0x470] sm:$0xff] %vm1550, %v5249
      %5282 = vst.msk [vmem:[#allocation2 + $0x478] sm:$0xff] %vm1550, %v5250
      %5283 = vst.msk [vmem:[#allocation2 + $0x480] sm:$0xff] %vm1550, %v5251
      %5284 = vst.msk [vmem:[#allocation2 + $0x488] sm:$0xff] %vm1550, %v5252
      %5285 = vst.msk [vmem:[#allocation2 + $0x490] sm:$0xff] %vm1550, %v5253
      %5286 = vst.msk [vmem:[#allocation2 + $0x498] sm:$0xff] %vm1550, %v5254
      %5287 = vst.msk [vmem:[#allocation2 + $0x4a0] sm:$0xff] %vm1550, %v5255
      %5288 = vst.msk [vmem:[#allocation2 + $0x4a8] sm:$0xff] %vm1550, %v5256
      %5289 = vst.msk [vmem:[#allocation2 + $0x4b0] sm:$0xff] %vm1550, %v5257
      %5290 = vst.msk [vmem:[#allocation2 + $0x4b8] sm:$0xff] %vm1550, %v5258
      %5291 = vst.msk [vmem:[#allocation2 + $0x4c0] sm:$0xff] %vm1550, %v5259
      %5292 = vst.msk [vmem:[#allocation2 + $0x4c8] sm:$0xff] %vm1550, %v5260
      %5293 = vst.msk [vmem:[#allocation2 + $0x4d0] sm:$0xff] %vm1550, %v5261
      %5294 = vst.msk [vmem:[#allocation2 + $0x4d8] sm:$0xff] %vm1550, %v5262
      %5295 = vst.msk [vmem:[#allocation2 + $0x4e0] sm:$0xff] %vm1550, %v5263
      %5296 = vst.msk [vmem:[#allocation2 + $0x4e8] sm:$0xff] %vm1550, %v5264
      %5297 = vst.msk [vmem:[#allocation2 + $0x4f0] sm:$0xff] %vm1550, %v5265
      %5298 = vst.msk [vmem:[#allocation2 + $0x4f8] sm:$0xff] %vm1550, %v5266
      %v5299 = vld [vmem:[%s3 + $0x280] sm:$0xf]
      %v5300 = vld [vmem:[%s3 + $0x284] sm:$0xf]
      %v5301 = vld [vmem:[%s3 + $0x288] sm:$0xf]
      %v5302 = vld [vmem:[%s3 + $0x28c] sm:$0xf]
      %v5303 = vld [vmem:[%s3 + $0x290] sm:$0xf]
      %v5304 = vld [vmem:[%s3 + $0x294] sm:$0xf]
      %v5305 = vld [vmem:[%s3 + $0x298] sm:$0xf]
      %v5306 = vld [vmem:[%s3 + $0x29c] sm:$0xf]
      %v5307 = vld [vmem:[%s3 + $0x2a0] sm:$0xf]
      %v5308 = vld [vmem:[%s3 + $0x2a4] sm:$0xf]
      %v5309 = vld [vmem:[%s3 + $0x2a8] sm:$0xf]
      %v5310 = vld [vmem:[%s3 + $0x2ac] sm:$0xf]
      %v5311 = vld [vmem:[%s3 + $0x2b0] sm:$0xf]
      %v5312 = vld [vmem:[%s3 + $0x2b4] sm:$0xf]
      %v5313 = vld [vmem:[%s3 + $0x2b8] sm:$0xf]
      %v5314 = vld [vmem:[%s3 + $0x2bc] sm:$0xf]
      %v5315 = vld [vmem:[%s3 + $0x2c0] sm:$0xf]
      %v5316 = vld [vmem:[%s3 + $0x2c4] sm:$0xf]
      %v5317 = vld [vmem:[%s3 + $0x2c8] sm:$0xf]
      %v5318 = vld [vmem:[%s3 + $0x2cc] sm:$0xf]
      %v5319 = vld [vmem:[%s3 + $0x2d0] sm:$0xf]
      %v5320 = vld [vmem:[%s3 + $0x2d4] sm:$0xf]
      %v5321 = vld [vmem:[%s3 + $0x2d8] sm:$0xf]
      %v5322 = vld [vmem:[%s3 + $0x2dc] sm:$0xf]
      %v5323 = vld [vmem:[%s3 + $0x2e0] sm:$0xf]
      %v5324 = vld [vmem:[%s3 + $0x2e4] sm:$0xf]
      %v5325 = vld [vmem:[%s3 + $0x2e8] sm:$0xf]
      %v5326 = vld [vmem:[%s3 + $0x2ec] sm:$0xf]
      %v5327 = vld [vmem:[%s3 + $0x2f0] sm:$0xf]
      %v5328 = vld [vmem:[%s3 + $0x2f4] sm:$0xf]
      %v5329 = vld [vmem:[%s3 + $0x2f8] sm:$0xf]
      %v5330 = vld [vmem:[%s3 + $0x2fc] sm:$0xf]
      %v5331 = vld [vmem:[%s4 + $0x500] sm:$0xff]
      %v5332 = vld [vmem:[%s4 + $0x508] sm:$0xff]
      %v5333 = vld [vmem:[%s4 + $0x510] sm:$0xff]
      %v5334 = vld [vmem:[%s4 + $0x518] sm:$0xff]
      %v5335 = vld [vmem:[%s4 + $0x520] sm:$0xff]
      %v5336 = vld [vmem:[%s4 + $0x528] sm:$0xff]
      %v5337 = vld [vmem:[%s4 + $0x530] sm:$0xff]
      %v5338 = vld [vmem:[%s4 + $0x538] sm:$0xff]
      %v5339 = vld [vmem:[%s4 + $0x540] sm:$0xff]
      %v5340 = vld [vmem:[%s4 + $0x548] sm:$0xff]
      %v5341 = vld [vmem:[%s4 + $0x550] sm:$0xff]
      %v5342 = vld [vmem:[%s4 + $0x558] sm:$0xff]
      %v5343 = vld [vmem:[%s4 + $0x560] sm:$0xff]
      %v5344 = vld [vmem:[%s4 + $0x568] sm:$0xff]
      %v5345 = vld [vmem:[%s4 + $0x570] sm:$0xff]
      %v5346 = vld [vmem:[%s4 + $0x578] sm:$0xff]
      %v5347 = vld [vmem:[%s4 + $0x580] sm:$0xff]
      %v5348 = vld [vmem:[%s4 + $0x588] sm:$0xff]
      %v5349 = vld [vmem:[%s4 + $0x590] sm:$0xff]
      %v5350 = vld [vmem:[%s4 + $0x598] sm:$0xff]
      %v5351 = vld [vmem:[%s4 + $0x5a0] sm:$0xff]
      %v5352 = vld [vmem:[%s4 + $0x5a8] sm:$0xff]
      %v5353 = vld [vmem:[%s4 + $0x5b0] sm:$0xff]
      %v5354 = vld [vmem:[%s4 + $0x5b8] sm:$0xff]
      %v5355 = vld [vmem:[%s4 + $0x5c0] sm:$0xff]
      %v5356 = vld [vmem:[%s4 + $0x5c8] sm:$0xff]
      %v5357 = vld [vmem:[%s4 + $0x5d0] sm:$0xff]
      %v5358 = vld [vmem:[%s4 + $0x5d8] sm:$0xff]
      %v5359 = vld [vmem:[%s4 + $0x5e0] sm:$0xff]
      %v5360 = vld [vmem:[%s4 + $0x5e8] sm:$0xff]
      %v5361 = vld [vmem:[%s4 + $0x5f0] sm:$0xff]
      %v5362 = vld [vmem:[%s4 + $0x5f8] sm:$0xff]
      %5364 = vset.pattern.permute.xlu0 0
      %5365 = vperm.xlu0 %5364, %v5331
      %v5366 = vpop.permute.xlu0 %5365
      %5369 = vset.pattern.permute.xlu0 0
      %5370 = vperm.xlu0 %5369, %v5332
      %v5371 = vpop.permute.xlu0 %5370
      %5374 = vset.pattern.permute.xlu0 0
      %5375 = vperm.xlu0 %5374, %v5333
      %v5376 = vpop.permute.xlu0 %5375
      %5379 = vset.pattern.permute.xlu0 0
      %5380 = vperm.xlu0 %5379, %v5334
      %v5381 = vpop.permute.xlu0 %5380
      %5384 = vset.pattern.permute.xlu0 0
      %5385 = vperm.xlu0 %5384, %v5335
      %v5386 = vpop.permute.xlu0 %5385
      %5389 = vset.pattern.permute.xlu0 0
      %5390 = vperm.xlu0 %5389, %v5336
      %v5391 = vpop.permute.xlu0 %5390
      %5394 = vset.pattern.permute.xlu0 0
      %5395 = vperm.xlu0 %5394, %v5337
      %v5396 = vpop.permute.xlu0 %5395
      %5399 = vset.pattern.permute.xlu0 0
      %5400 = vperm.xlu0 %5399, %v5338
      %v5401 = vpop.permute.xlu0 %5400
      %5404 = vset.pattern.permute.xlu0 0
      %5405 = vperm.xlu0 %5404, %v5339
      %v5406 = vpop.permute.xlu0 %5405
      %5409 = vset.pattern.permute.xlu0 0
      %5410 = vperm.xlu0 %5409, %v5340
      %v5411 = vpop.permute.xlu0 %5410
      %5414 = vset.pattern.permute.xlu0 0
      %5415 = vperm.xlu0 %5414, %v5341
      %v5416 = vpop.permute.xlu0 %5415
      %5419 = vset.pattern.permute.xlu0 0
      %5420 = vperm.xlu0 %5419, %v5342
      %v5421 = vpop.permute.xlu0 %5420
      %5424 = vset.pattern.permute.xlu0 0
      %5425 = vperm.xlu0 %5424, %v5343
      %v5426 = vpop.permute.xlu0 %5425
      %5429 = vset.pattern.permute.xlu0 0
      %5430 = vperm.xlu0 %5429, %v5344
      %v5431 = vpop.permute.xlu0 %5430
      %5434 = vset.pattern.permute.xlu0 0
      %5435 = vperm.xlu0 %5434, %v5345
      %v5436 = vpop.permute.xlu0 %5435
      %5439 = vset.pattern.permute.xlu0 0
      %5440 = vperm.xlu0 %5439, %v5346
      %v5441 = vpop.permute.xlu0 %5440
      %5444 = vset.pattern.permute.xlu0 0
      %5445 = vperm.xlu0 %5444, %v5347
      %v5446 = vpop.permute.xlu0 %5445
      %5449 = vset.pattern.permute.xlu0 0
      %5450 = vperm.xlu0 %5449, %v5348
      %v5451 = vpop.permute.xlu0 %5450
      %5454 = vset.pattern.permute.xlu0 0
      %5455 = vperm.xlu0 %5454, %v5349
      %v5456 = vpop.permute.xlu0 %5455
      %5459 = vset.pattern.permute.xlu0 0
      %5460 = vperm.xlu0 %5459, %v5350
      %v5461 = vpop.permute.xlu0 %5460
      %5464 = vset.pattern.permute.xlu0 0
      %5465 = vperm.xlu0 %5464, %v5351
      %v5466 = vpop.permute.xlu0 %5465
      %5469 = vset.pattern.permute.xlu0 0
      %5470 = vperm.xlu0 %5469, %v5352
      %v5471 = vpop.permute.xlu0 %5470
      %5474 = vset.pattern.permute.xlu0 0
      %5475 = vperm.xlu0 %5474, %v5353
      %v5476 = vpop.permute.xlu0 %5475
      %5479 = vset.pattern.permute.xlu0 0
      %5480 = vperm.xlu0 %5479, %v5354
      %v5481 = vpop.permute.xlu0 %5480
      %5484 = vset.pattern.permute.xlu0 0
      %5485 = vperm.xlu0 %5484, %v5355
      %v5486 = vpop.permute.xlu0 %5485
      %5489 = vset.pattern.permute.xlu0 0
      %5490 = vperm.xlu0 %5489, %v5356
      %v5491 = vpop.permute.xlu0 %5490
      %5494 = vset.pattern.permute.xlu0 0
      %5495 = vperm.xlu0 %5494, %v5357
      %v5496 = vpop.permute.xlu0 %5495
      %5499 = vset.pattern.permute.xlu0 0
      %5500 = vperm.xlu0 %5499, %v5358
      %v5501 = vpop.permute.xlu0 %5500
      %5504 = vset.pattern.permute.xlu0 0
      %5505 = vperm.xlu0 %5504, %v5359
      %v5506 = vpop.permute.xlu0 %5505
      %5509 = vset.pattern.permute.xlu0 0
      %5510 = vperm.xlu0 %5509, %v5360
      %v5511 = vpop.permute.xlu0 %5510
      %5514 = vset.pattern.permute.xlu0 0
      %5515 = vperm.xlu0 %5514, %v5361
      %v5516 = vpop.permute.xlu0 %5515
      %5519 = vset.pattern.permute.xlu0 0
      %5520 = vperm.xlu0 %5519, %v5362
      %v5521 = vpop.permute.xlu0 %5520
      %v5555 = vunpack.c.l.b16 %v5299
      %v5556 = vunpack.c.l.b16 %v5300
      %v5557 = vunpack.c.l.b16 %v5301
      %v5558 = vunpack.c.l.b16 %v5302
      %v5559 = vunpack.c.l.b16 %v5303
      %v5560 = vunpack.c.l.b16 %v5304
      %v5561 = vunpack.c.l.b16 %v5305
      %v5562 = vunpack.c.l.b16 %v5306
      %v5563 = vunpack.c.l.b16 %v5307
      %v5564 = vunpack.c.l.b16 %v5308
      %v5565 = vunpack.c.l.b16 %v5309
      %v5566 = vunpack.c.l.b16 %v5310
      %v5567 = vunpack.c.l.b16 %v5311
      %v5568 = vunpack.c.l.b16 %v5312
      %v5569 = vunpack.c.l.b16 %v5313
      %v5570 = vunpack.c.l.b16 %v5314
      %v5571 = vunpack.c.l.b16 %v5315
      %v5572 = vunpack.c.l.b16 %v5316
      %v5573 = vunpack.c.l.b16 %v5317
      %v5574 = vunpack.c.l.b16 %v5318
      %v5575 = vunpack.c.l.b16 %v5319
      %v5576 = vunpack.c.l.b16 %v5320
      %v5577 = vunpack.c.l.b16 %v5321
      %v5578 = vunpack.c.l.b16 %v5322
      %v5579 = vunpack.c.l.b16 %v5323
      %v5580 = vunpack.c.l.b16 %v5324
      %v5581 = vunpack.c.l.b16 %v5325
      %v5582 = vunpack.c.l.b16 %v5326
      %v5583 = vunpack.c.l.b16 %v5327
      %v5584 = vunpack.c.l.b16 %v5328
      %v5585 = vunpack.c.l.b16 %v5329
      %v5586 = vunpack.c.l.b16 %v5330
      %v5587 = vpack.c.b16 %v5556, %v5555
      %v5588 = vpack.c.b16 %v5558, %v5557
      %v5589 = vpack.c.b16 %v5560, %v5559
      %v5590 = vpack.c.b16 %v5562, %v5561
      %v5591 = vpack.c.b16 %v5564, %v5563
      %v5592 = vpack.c.b16 %v5566, %v5565
      %v5593 = vpack.c.b16 %v5568, %v5567
      %v5594 = vpack.c.b16 %v5570, %v5569
      %v5595 = vpack.c.b16 %v5572, %v5571
      %v5596 = vpack.c.b16 %v5574, %v5573
      %v5597 = vpack.c.b16 %v5576, %v5575
      %v5598 = vpack.c.b16 %v5578, %v5577
      %v5599 = vpack.c.b16 %v5580, %v5579
      %v5600 = vpack.c.b16 %v5582, %v5581
      %v5601 = vpack.c.b16 %v5584, %v5583
      %v5602 = vpack.c.b16 %v5586, %v5585
      %v5604 = vsel %vm951, %v5587, 0
      %v5607 = vsel %vm951, %v5588, 0
      %v5610 = vsel %vm951, %v5589, 0
      %v5613 = vsel %vm951, %v5590, 0
      %v5616 = vsel %vm951, %v5591, 0
      %v5619 = vsel %vm951, %v5592, 0
      %v5622 = vsel %vm951, %v5593, 0
      %v5625 = vsel %vm951, %v5594, 0
      %v5628 = vsel %vm951, %v5595, 0
      %v5631 = vsel %vm951, %v5596, 0
      %v5634 = vsel %vm951, %v5597, 0
      %v5637 = vsel %vm951, %v5598, 0
      %v5640 = vsel %vm951, %v5599, 0
      %v5643 = vsel %vm951, %v5600, 0
      %v5646 = vsel %vm951, %v5601, 0
      %v5649 = vsel %vm951, %v5602, 0
      %5651 = vmatprep.subr.bf16.mxu0 0
      %5652 = vmatpush1.bf16.msra.mxu0 %v644
      %5653 = vmatprep.subr.bf16.mxu0 0
      %5654 = vmatpush1.bf16.msra.mxu0 %v645
      %5655 = vmatprep.subr.bf16.mxu0 0
      %5656 = vmatpush1.bf16.msra.mxu0 %v1002
      %5657 = vmatprep.subr.bf16.mxu0 0
      %5658 = vmatpush1.bf16.msra.mxu0 0
      %5659 = vmatprep.subr.bf16.mxu0 0
      %5660 = vmatpush1.bf16.msra.mxu0 0
      %5661 = vmatprep.subr.bf16.mxu0 0
      %5662 = vmatpush1.bf16.msra.mxu0 0
      %5663 = vmatprep.subr.bf16.mxu0 0
      %5664 = vmatpush1.bf16.msra.mxu0 0
      %5665 = vmatprep.subr.bf16.mxu0 0
      %5666 = vmatpush1.bf16.msra.mxu0 0
      %5667 = vmatprep.subr.bf16.mxu0 0
      %5668 = vmatpush1.bf16.msra.mxu0 0
      %5669 = vmatprep.subr.bf16.mxu0 0
      %5670 = vmatpush1.bf16.msra.mxu0 0
      %5671 = vmatprep.subr.bf16.mxu0 0
      %5672 = vmatpush1.bf16.msra.mxu0 0
      %5673 = vmatprep.subr.bf16.mxu0 0
      %5674 = vmatpush1.bf16.msra.mxu0 0
      %5675 = vmatprep.subr.bf16.mxu0 0
      %5676 = vmatpush1.bf16.msra.mxu0 0
      %5677 = vmatprep.subr.bf16.mxu0 0
      %5678 = vmatpush1.bf16.msra.mxu0 0
      %5679 = vmatprep.subr.bf16.mxu0 0
      %5680 = vmatpush1.bf16.msra.mxu0 0
      %5681 = vmatprep.subr.bf16.mxu0 0
      %5682 = vmatpush1.bf16.msra.mxu0 0
      %5683 = vmatprep.mubr.bf16.mxu0 0
      %5684 = vmatmul.mubr.bf16.gmra.mrb[0].mxu0 %v5604
      %v5685 = vpop.f32.mrb[0].mxu0
      %v5686 = vadd.f32 %v5366, %v5685
      %v5687 = vpop.f32.mrb[0].mxu0
      %v5688 = vpop.f32.mrb[0].mxu0
      %v5689 = vadd.f32 %v5371, %v5688
      %v5690 = vpop.f32.mrb[0].mxu0
      %5691 = vmatprep.mubr.bf16.mxu0 0
      %5692 = vmatmul.mubr.bf16.gmra.mrb[0].mxu0 %v5607
      %v5693 = vpop.f32.mrb[0].mxu0
      %v5694 = vadd.f32 %v5376, %v5693
      %v5695 = vpop.f32.mrb[0].mxu0
      %v5696 = vpop.f32.mrb[0].mxu0
      %v5697 = vadd.f32 %v5381, %v5696
      %v5698 = vpop.f32.mrb[0].mxu0
      %5699 = vmatprep.mubr.bf16.mxu0 0
      %5700 = vmatmul.mubr.bf16.gmra.mrb[0].mxu0 %v5610
      %v5701 = vpop.f32.mrb[0].mxu0
      %v5702 = vadd.f32 %v5386, %v5701
      %v5703 = vpop.f32.mrb[0].mxu0
      %v5704 = vpop.f32.mrb[0].mxu0
      %v5705 = vadd.f32 %v5391, %v5704
      %v5706 = vpop.f32.mrb[0].mxu0
      %5707 = vmatprep.mubr.bf16.mxu0 0
      %5708 = vmatmul.mubr.bf16.gmra.mrb[0].mxu0 %v5613
      %v5709 = vpop.f32.mrb[0].mxu0
      %v5710 = vadd.f32 %v5396, %v5709
      %v5711 = vpop.f32.mrb[0].mxu0
      %v5712 = vpop.f32.mrb[0].mxu0
      %v5713 = vadd.f32 %v5401, %v5712
      %v5714 = vpop.f32.mrb[0].mxu0
      %5715 = vmatprep.mubr.bf16.mxu0 0
      %5716 = vmatmul.mubr.bf16.gmra.mrb[0].mxu0 %v5616
      %v5717 = vpop.f32.mrb[0].mxu0
      %v5718 = vadd.f32 %v5406, %v5717
      %v5719 = vpop.f32.mrb[0].mxu0
      %v5720 = vpop.f32.mrb[0].mxu0
      %v5721 = vadd.f32 %v5411, %v5720
      %v5722 = vpop.f32.mrb[0].mxu0
      %5723 = vmatprep.mubr.bf16.mxu0 0
      %5724 = vmatmul.mubr.bf16.gmra.mrb[0].mxu0 %v5619
      %v5725 = vpop.f32.mrb[0].mxu0
      %v5726 = vadd.f32 %v5416, %v5725
      %v5727 = vpop.f32.mrb[0].mxu0
      %v5728 = vpop.f32.mrb[0].mxu0
      %v5729 = vadd.f32 %v5421, %v5728
      %v5730 = vpop.f32.mrb[0].mxu0
      %5731 = vmatprep.mubr.bf16.mxu0 0
      %5732 = vmatmul.mubr.bf16.gmra.mrb[0].mxu0 %v5622
      %v5733 = vpop.f32.mrb[0].mxu0
      %v5734 = vadd.f32 %v5426, %v5733
      %v5735 = vpop.f32.mrb[0].mxu0
      %v5736 = vpop.f32.mrb[0].mxu0
      %v5737 = vadd.f32 %v5431, %v5736
      %v5738 = vpop.f32.mrb[0].mxu0
      %5739 = vmatprep.mubr.bf16.mxu0 0
      %5740 = vmatmul.mubr.bf16.gmra.mrb[0].mxu0 %v5625
      %v5741 = vpop.f32.mrb[0].mxu0
      %v5742 = vadd.f32 %v5436, %v5741
      %v5743 = vpop.f32.mrb[0].mxu0
      %v5744 = vpop.f32.mrb[0].mxu0
      %v5745 = vadd.f32 %v5441, %v5744
      %v5746 = vpop.f32.mrb[0].mxu0
      %5747 = vmatprep.mubr.bf16.mxu0 0
      %5748 = vmatmul.mubr.bf16.gmra.mrb[0].mxu0 %v5628
      %v5749 = vpop.f32.mrb[0].mxu0
      %v5750 = vadd.f32 %v5446, %v5749
      %v5751 = vpop.f32.mrb[0].mxu0
      %v5752 = vpop.f32.mrb[0].mxu0
      %v5753 = vadd.f32 %v5451, %v5752
      %v5754 = vpop.f32.mrb[0].mxu0
      %5755 = vmatprep.mubr.bf16.mxu0 0
      %5756 = vmatmul.mubr.bf16.gmra.mrb[0].mxu0 %v5631
      %v5757 = vpop.f32.mrb[0].mxu0
      %v5758 = vadd.f32 %v5456, %v5757
      %v5759 = vpop.f32.mrb[0].mxu0
      %v5760 = vpop.f32.mrb[0].mxu0
      %v5761 = vadd.f32 %v5461, %v5760
      %v5762 = vpop.f32.mrb[0].mxu0
      %5763 = vmatprep.mubr.bf16.mxu0 0
      %5764 = vmatmul.mubr.bf16.gmra.mrb[0].mxu0 %v5634
      %v5765 = vpop.f32.mrb[0].mxu0
      %v5766 = vadd.f32 %v5466, %v5765
      %v5767 = vpop.f32.mrb[0].mxu0
      %v5768 = vpop.f32.mrb[0].mxu0
      %v5769 = vadd.f32 %v5471, %v5768
      %v5770 = vpop.f32.mrb[0].mxu0
      %5771 = vmatprep.mubr.bf16.mxu0 0
      %5772 = vmatmul.mubr.bf16.gmra.mrb[0].mxu0 %v5637
      %v5773 = vpop.f32.mrb[0].mxu0
      %v5774 = vadd.f32 %v5476, %v5773
      %v5775 = vpop.f32.mrb[0].mxu0
      %v5776 = vpop.f32.mrb[0].mxu0
      %v5777 = vadd.f32 %v5481, %v5776
      %v5778 = vpop.f32.mrb[0].mxu0
      %5779 = vmatprep.mubr.bf16.mxu0 0
      %5780 = vmatmul.mubr.bf16.gmra.mrb[0].mxu0 %v5640
      %v5781 = vpop.f32.mrb[0].mxu0
      %v5782 = vadd.f32 %v5486, %v5781
      %v5783 = vpop.f32.mrb[0].mxu0
      %v5784 = vpop.f32.mrb[0].mxu0
      %v5785 = vadd.f32 %v5491, %v5784
      %v5786 = vpop.f32.mrb[0].mxu0
      %5787 = vmatprep.mubr.bf16.mxu0 0
      %5788 = vmatmul.mubr.bf16.gmra.mrb[0].mxu0 %v5643
      %v5789 = vpop.f32.mrb[0].mxu0
      %v5790 = vadd.f32 %v5496, %v5789
      %v5791 = vpop.f32.mrb[0].mxu0
      %v5792 = vpop.f32.mrb[0].mxu0
      %v5793 = vadd.f32 %v5501, %v5792
      %v5794 = vpop.f32.mrb[0].mxu0
      %5795 = vmatprep.mubr.bf16.mxu0 0
      %5796 = vmatmul.mubr.bf16.gmra.mrb[0].mxu0 %v5646
      %v5797 = vpop.f32.mrb[0].mxu0
      %v5798 = vadd.f32 %v5506, %v5797
      %v5799 = vpop.f32.mrb[0].mxu0
      %v5800 = vpop.f32.mrb[0].mxu0
      %v5801 = vadd.f32 %v5511, %v5800
      %v5802 = vpop.f32.mrb[0].mxu0
      %5803 = vmatprep.mubr.bf16.mxu0 0
      %5804 = vmatmul.mubr.bf16.gmra.mrb[0].mxu0 %v5649
      %v5805 = vpop.f32.mrb[0].mxu0
      %v5806 = vadd.f32 %v5516, %v5805
      %v5807 = vpop.f32.mrb[0].mxu0
      %v5808 = vpop.f32.mrb[0].mxu0
      %v5809 = vadd.f32 %v5521, %v5808
      %v5810 = vpop.f32.mrb[0].mxu0
      %5811 = vdwg.mxu0
      %v5812 = vxor.u32 %v5686, 2147483648
      %v5813 = vxor.u32 %v5689, 2147483648
      %v5814 = vxor.u32 %v5694, 2147483648
      %v5815 = vxor.u32 %v5697, 2147483648
      %v5816 = vxor.u32 %v5702, 2147483648
      %v5817 = vxor.u32 %v5705, 2147483648
      %v5818 = vxor.u32 %v5710, 2147483648
      %v5819 = vxor.u32 %v5713, 2147483648
      %v5820 = vxor.u32 %v5718, 2147483648
      %v5821 = vxor.u32 %v5721, 2147483648
      %v5822 = vxor.u32 %v5726, 2147483648
      %v5823 = vxor.u32 %v5729, 2147483648
      %v5824 = vxor.u32 %v5734, 2147483648
      %v5825 = vxor.u32 %v5737, 2147483648
      %v5826 = vxor.u32 %v5742, 2147483648
      %v5827 = vxor.u32 %v5745, 2147483648
      %v5828 = vxor.u32 %v5750, 2147483648
      %v5829 = vxor.u32 %v5753, 2147483648
      %v5830 = vxor.u32 %v5758, 2147483648
      %v5831 = vxor.u32 %v5761, 2147483648
      %v5832 = vxor.u32 %v5766, 2147483648
      %v5833 = vxor.u32 %v5769, 2147483648
      %v5834 = vxor.u32 %v5774, 2147483648
      %v5835 = vxor.u32 %v5777, 2147483648
      %v5836 = vxor.u32 %v5782, 2147483648
      %v5837 = vxor.u32 %v5785, 2147483648
      %v5838 = vxor.u32 %v5790, 2147483648
      %v5839 = vxor.u32 %v5793, 2147483648
      %v5840 = vxor.u32 %v5798, 2147483648
      %v5841 = vxor.u32 %v5801, 2147483648
      %v5842 = vxor.u32 %v5806, 2147483648
      %v5843 = vxor.u32 %v5809, 2147483648
      %v5844 = vmul.f32 %v5812, 1.442695
      %v5845 = vpow.pop %v5844
      %v5846 = vmul.f32 %v5813, 1.442695
      %v5847 = vpow.pop %v5846
      %v5848 = vmul.f32 %v5814, 1.442695
      %v5849 = vpow.pop %v5848
      %v5850 = vmul.f32 %v5815, 1.442695
      %v5851 = vpow.pop %v5850
      %v5852 = vmul.f32 %v5816, 1.442695
      %v5853 = vpow.pop %v5852
      %v5854 = vmul.f32 %v5817, 1.442695
      %v5855 = vpow.pop %v5854
      %v5856 = vmul.f32 %v5818, 1.442695
      %v5857 = vpow.pop %v5856
      %v5858 = vmul.f32 %v5819, 1.442695
      %v5859 = vpow.pop %v5858
      %v5860 = vmul.f32 %v5820, 1.442695
      %v5861 = vpow.pop %v5860
      %v5862 = vmul.f32 %v5821, 1.442695
      %v5863 = vpow.pop %v5862
      %v5864 = vmul.f32 %v5822, 1.442695
      %v5865 = vpow.pop %v5864
      %v5866 = vmul.f32 %v5823, 1.442695
      %v5867 = vpow.pop %v5866
      %v5868 = vmul.f32 %v5824, 1.442695
      %v5869 = vpow.pop %v5868
      %v5870 = vmul.f32 %v5825, 1.442695
      %v5871 = vpow.pop %v5870
      %v5872 = vmul.f32 %v5826, 1.442695
      %v5873 = vpow.pop %v5872
      %v5874 = vmul.f32 %v5827, 1.442695
      %v5875 = vpow.pop %v5874
      %v5876 = vmul.f32 %v5828, 1.442695
      %v5877 = vpow.pop %v5876
      %v5878 = vmul.f32 %v5829, 1.442695
      %v5879 = vpow.pop %v5878
      %v5880 = vmul.f32 %v5830, 1.442695
      %v5881 = vpow.pop %v5880
      %v5882 = vmul.f32 %v5831, 1.442695
      %v5883 = vpow.pop %v5882
      %v5884 = vmul.f32 %v5832, 1.442695
      %v5885 = vpow.pop %v5884
      %v5886 = vmul.f32 %v5833, 1.442695
      %v5887 = vpow.pop %v5886
      %v5888 = vmul.f32 %v5834, 1.442695
      %v5889 = vpow.pop %v5888
      %v5890 = vmul.f32 %v5835, 1.442695
      %v5891 = vpow.pop %v5890
      %v5892 = vmul.f32 %v5836, 1.442695
      %v5893 = vpow.pop %v5892
      %v5894 = vmul.f32 %v5837, 1.442695
      %v5895 = vpow.pop %v5894
      %v5896 = vmul.f32 %v5838, 1.442695
      %v5897 = vpow.pop %v5896
      %v5898 = vmul.f32 %v5839, 1.442695
      %v5899 = vpow.pop %v5898
      %v5900 = vmul.f32 %v5840, 1.442695
      %v5901 = vpow.pop %v5900
      %v5902 = vmul.f32 %v5841, 1.442695
      %v5903 = vpow.pop %v5902
      %v5904 = vmul.f32 %v5842, 1.442695
      %v5905 = vpow.pop %v5904
      %v5906 = vmul.f32 %v5843, 1.442695
      %v5907 = vpow.pop %v5906
      %v5908 = vadd.f32 %v5845, 1.0
      %v5909 = vadd.f32 %v5847, 1.0
      %v5910 = vadd.f32 %v5849, 1.0
      %v5911 = vadd.f32 %v5851, 1.0
      %v5912 = vadd.f32 %v5853, 1.0
      %v5913 = vadd.f32 %v5855, 1.0
      %v5914 = vadd.f32 %v5857, 1.0
      %v5915 = vadd.f32 %v5859, 1.0
      %v5916 = vadd.f32 %v5861, 1.0
      %v5917 = vadd.f32 %v5863, 1.0
      %v5918 = vadd.f32 %v5865, 1.0
      %v5919 = vadd.f32 %v5867, 1.0
      %v5920 = vadd.f32 %v5869, 1.0
      %v5921 = vadd.f32 %v5871, 1.0
      %v5922 = vadd.f32 %v5873, 1.0
      %v5923 = vadd.f32 %v5875, 1.0
      %v5924 = vadd.f32 %v5877, 1.0
      %v5925 = vadd.f32 %v5879, 1.0
      %v5926 = vadd.f32 %v5881, 1.0
      %v5927 = vadd.f32 %v5883, 1.0
      %v5928 = vadd.f32 %v5885, 1.0
      %v5929 = vadd.f32 %v5887, 1.0
      %v5930 = vadd.f32 %v5889, 1.0
      %v5931 = vadd.f32 %v5891, 1.0
      %v5932 = vadd.f32 %v5893, 1.0
      %v5933 = vadd.f32 %v5895, 1.0
      %v5934 = vadd.f32 %v5897, 1.0
      %v5935 = vadd.f32 %v5899, 1.0
      %v5936 = vadd.f32 %v5901, 1.0
      %v5937 = vadd.f32 %v5903, 1.0
      %v5938 = vadd.f32 %v5905, 1.0
      %v5939 = vadd.f32 %v5907, 1.0
      %v5940 = vrcp.pop %v5908
      %v5941 = vmul.f32 1.0, %v5940
      %v5942 = vrcp.pop %v5909
      %v5943 = vmul.f32 1.0, %v5942
      %v5944 = vrcp.pop %v5910
      %v5945 = vmul.f32 1.0, %v5944
      %v5946 = vrcp.pop %v5911
      %v5947 = vmul.f32 1.0, %v5946
      %v5948 = vrcp.pop %v5912
      %v5949 = vmul.f32 1.0, %v5948
      %v5950 = vrcp.pop %v5913
      %v5951 = vmul.f32 1.0, %v5950
      %v5952 = vrcp.pop %v5914
      %v5953 = vmul.f32 1.0, %v5952
      %v5954 = vrcp.pop %v5915
      %v5955 = vmul.f32 1.0, %v5954
      %v5956 = vrcp.pop %v5916
      %v5957 = vmul.f32 1.0, %v5956
      %v5958 = vrcp.pop %v5917
      %v5959 = vmul.f32 1.0, %v5958
      %v5960 = vrcp.pop %v5918
      %v5961 = vmul.f32 1.0, %v5960
      %v5962 = vrcp.pop %v5919
      %v5963 = vmul.f32 1.0, %v5962
      %v5964 = vrcp.pop %v5920
      %v5965 = vmul.f32 1.0, %v5964
      %v5966 = vrcp.pop %v5921
      %v5967 = vmul.f32 1.0, %v5966
      %v5968 = vrcp.pop %v5922
      %v5969 = vmul.f32 1.0, %v5968
      %v5970 = vrcp.pop %v5923
      %v5971 = vmul.f32 1.0, %v5970
      %v5972 = vrcp.pop %v5924
      %v5973 = vmul.f32 1.0, %v5972
      %v5974 = vrcp.pop %v5925
      %v5975 = vmul.f32 1.0, %v5974
      %v5976 = vrcp.pop %v5926
      %v5977 = vmul.f32 1.0, %v5976
      %v5978 = vrcp.pop %v5927
      %v5979 = vmul.f32 1.0, %v5978
      %v5980 = vrcp.pop %v5928
      %v5981 = vmul.f32 1.0, %v5980
      %v5982 = vrcp.pop %v5929
      %v5983 = vmul.f32 1.0, %v5982
      %v5984 = vrcp.pop %v5930
      %v5985 = vmul.f32 1.0, %v5984
      %v5986 = vrcp.pop %v5931
      %v5987 = vmul.f32 1.0, %v5986
      %v5988 = vrcp.pop %v5932
      %v5989 = vmul.f32 1.0, %v5988
      %v5990 = vrcp.pop %v5933
      %v5991 = vmul.f32 1.0, %v5990
      %v5992 = vrcp.pop %v5934
      %v5993 = vmul.f32 1.0, %v5992
      %v5994 = vrcp.pop %v5935
      %v5995 = vmul.f32 1.0, %v5994
      %v5996 = vrcp.pop %v5936
      %v5997 = vmul.f32 1.0, %v5996
      %v5998 = vrcp.pop %v5937
      %v5999 = vmul.f32 1.0, %v5998
      %v6000 = vrcp.pop %v5938
      %v6001 = vmul.f32 1.0, %v6000
      %v6002 = vrcp.pop %v5939
      %v6003 = vmul.f32 1.0, %v6002
      %v6004 = vmul.f32 %v5686, %v5941
      %v6005 = vmul.f32 %v5689, %v5943
      %v6006 = vmul.f32 %v5694, %v5945
      %v6007 = vmul.f32 %v5697, %v5947
      %v6008 = vmul.f32 %v5702, %v5949
      %v6009 = vmul.f32 %v5705, %v5951
      %v6010 = vmul.f32 %v5710, %v5953
      %v6011 = vmul.f32 %v5713, %v5955
      %v6012 = vmul.f32 %v5718, %v5957
      %v6013 = vmul.f32 %v5721, %v5959
      %v6014 = vmul.f32 %v5726, %v5961
      %v6015 = vmul.f32 %v5729, %v5963
      %v6016 = vmul.f32 %v5734, %v5965
      %v6017 = vmul.f32 %v5737, %v5967
      %v6018 = vmul.f32 %v5742, %v5969
      %v6019 = vmul.f32 %v5745, %v5971
      %v6020 = vmul.f32 %v5750, %v5973
      %v6021 = vmul.f32 %v5753, %v5975
      %v6022 = vmul.f32 %v5758, %v5977
      %v6023 = vmul.f32 %v5761, %v5979
      %v6024 = vmul.f32 %v5766, %v5981
      %v6025 = vmul.f32 %v5769, %v5983
      %v6026 = vmul.f32 %v5774, %v5985
      %v6027 = vmul.f32 %v5777, %v5987
      %v6028 = vmul.f32 %v5782, %v5989
      %v6029 = vmul.f32 %v5785, %v5991
      %v6030 = vmul.f32 %v5790, %v5993
      %v6031 = vmul.f32 %v5793, %v5995
      %v6032 = vmul.f32 %v5798, %v5997
      %v6033 = vmul.f32 %v5801, %v5999
      %v6034 = vmul.f32 %v5806, %v6001
      %v6035 = vmul.f32 %v5809, %v6003
      %v6036 = vld [vmem:[#allocation2 + $0x500] sm:$0xff]
      %v6037 = vld [vmem:[#allocation2 + $0x508] sm:$0xff]
      %v6038 = vld [vmem:[#allocation2 + $0x510] sm:$0xff]
      %v6039 = vld [vmem:[#allocation2 + $0x518] sm:$0xff]
      %v6040 = vld [vmem:[#allocation2 + $0x520] sm:$0xff]
      %v6041 = vld [vmem:[#allocation2 + $0x528] sm:$0xff]
      %v6042 = vld [vmem:[#allocation2 + $0x530] sm:$0xff]
      %v6043 = vld [vmem:[#allocation2 + $0x538] sm:$0xff]
      %v6044 = vld [vmem:[#allocation2 + $0x540] sm:$0xff]
      %v6045 = vld [vmem:[#allocation2 + $0x548] sm:$0xff]
      %v6046 = vld [vmem:[#allocation2 + $0x550] sm:$0xff]
      %v6047 = vld [vmem:[#allocation2 + $0x558] sm:$0xff]
      %v6048 = vld [vmem:[#allocation2 + $0x560] sm:$0xff]
      %v6049 = vld [vmem:[#allocation2 + $0x568] sm:$0xff]
      %v6050 = vld [vmem:[#allocation2 + $0x570] sm:$0xff]
      %v6051 = vld [vmem:[#allocation2 + $0x578] sm:$0xff]
      %v6052 = vld [vmem:[#allocation2 + $0x580] sm:$0xff]
      %v6053 = vld [vmem:[#allocation2 + $0x588] sm:$0xff]
      %v6054 = vld [vmem:[#allocation2 + $0x590] sm:$0xff]
      %v6055 = vld [vmem:[#allocation2 + $0x598] sm:$0xff]
      %v6056 = vld [vmem:[#allocation2 + $0x5a0] sm:$0xff]
      %v6057 = vld [vmem:[#allocation2 + $0x5a8] sm:$0xff]
      %v6058 = vld [vmem:[#allocation2 + $0x5b0] sm:$0xff]
      %v6059 = vld [vmem:[#allocation2 + $0x5b8] sm:$0xff]
      %v6060 = vld [vmem:[#allocation2 + $0x5c0] sm:$0xff]
      %v6061 = vld [vmem:[#allocation2 + $0x5c8] sm:$0xff]
      %v6062 = vld [vmem:[#allocation2 + $0x5d0] sm:$0xff]
      %v6063 = vld [vmem:[#allocation2 + $0x5d8] sm:$0xff]
      %v6064 = vld [vmem:[#allocation2 + $0x5e0] sm:$0xff]
      %v6065 = vld [vmem:[#allocation2 + $0x5e8] sm:$0xff]
      %v6066 = vld [vmem:[#allocation2 + $0x5f0] sm:$0xff]
      %v6067 = vld [vmem:[#allocation2 + $0x5f8] sm:$0xff]
      %v6068 = vsel %vm1421, %v6004, 0.0
      %6069 = vadd.xlane.f32.xlu0 %v6068
      %v6070 = vpop.xlane.xlu0 %6069
      %v6071 = vsel %vm1421, %v6005, 0.0
      %6072 = vadd.xlane.f32.xlu0 %v6071
      %v6073 = vpop.xlane.xlu0 %6072
      %v6074 = vsel %vm1421, %v6006, 0.0
      %6075 = vadd.xlane.f32.xlu0 %v6074
      %v6076 = vpop.xlane.xlu0 %6075
      %v6077 = vsel %vm1421, %v6007, 0.0
      %6078 = vadd.xlane.f32.xlu0 %v6077
      %v6079 = vpop.xlane.xlu0 %6078
      %v6080 = vsel %vm1421, %v6008, 0.0
      %6081 = vadd.xlane.f32.xlu0 %v6080
      %v6082 = vpop.xlane.xlu0 %6081
      %v6083 = vsel %vm1421, %v6009, 0.0
      %6084 = vadd.xlane.f32.xlu0 %v6083
      %v6085 = vpop.xlane.xlu0 %6084
      %v6086 = vsel %vm1421, %v6010, 0.0
      %6087 = vadd.xlane.f32.xlu0 %v6086
      %v6088 = vpop.xlane.xlu0 %6087
      %v6089 = vsel %vm1421, %v6011, 0.0
      %6090 = vadd.xlane.f32.xlu0 %v6089
      %v6091 = vpop.xlane.xlu0 %6090
      %v6092 = vsel %vm1421, %v6012, 0.0
      %6093 = vadd.xlane.f32.xlu0 %v6092
      %v6094 = vpop.xlane.xlu0 %6093
      %v6095 = vsel %vm1421, %v6013, 0.0
      %6096 = vadd.xlane.f32.xlu0 %v6095
      %v6097 = vpop.xlane.xlu0 %6096
      %v6098 = vsel %vm1421, %v6014, 0.0
      %6099 = vadd.xlane.f32.xlu0 %v6098
      %v6100 = vpop.xlane.xlu0 %6099
      %v6101 = vsel %vm1421, %v6015, 0.0
      %6102 = vadd.xlane.f32.xlu0 %v6101
      %v6103 = vpop.xlane.xlu0 %6102
      %v6104 = vsel %vm1421, %v6016, 0.0
      %6105 = vadd.xlane.f32.xlu0 %v6104
      %v6106 = vpop.xlane.xlu0 %6105
      %v6107 = vsel %vm1421, %v6017, 0.0
      %6108 = vadd.xlane.f32.xlu0 %v6107
      %v6109 = vpop.xlane.xlu0 %6108
      %v6110 = vsel %vm1421, %v6018, 0.0
      %6111 = vadd.xlane.f32.xlu0 %v6110
      %v6112 = vpop.xlane.xlu0 %6111
      %v6113 = vsel %vm1421, %v6019, 0.0
      %6114 = vadd.xlane.f32.xlu0 %v6113
      %v6115 = vpop.xlane.xlu0 %6114
      %v6116 = vsel %vm1421, %v6020, 0.0
      %6117 = vadd.xlane.f32.xlu0 %v6116
      %v6118 = vpop.xlane.xlu0 %6117
      %v6119 = vsel %vm1421, %v6021, 0.0
      %6120 = vadd.xlane.f32.xlu0 %v6119
      %v6121 = vpop.xlane.xlu0 %6120
      %v6122 = vsel %vm1421, %v6022, 0.0
      %6123 = vadd.xlane.f32.xlu0 %v6122
      %v6124 = vpop.xlane.xlu0 %6123
      %v6125 = vsel %vm1421, %v6023, 0.0
      %6126 = vadd.xlane.f32.xlu0 %v6125
      %v6127 = vpop.xlane.xlu0 %6126
      %v6128 = vsel %vm1421, %v6024, 0.0
      %6129 = vadd.xlane.f32.xlu0 %v6128
      %v6130 = vpop.xlane.xlu0 %6129
      %v6131 = vsel %vm1421, %v6025, 0.0
      %6132 = vadd.xlane.f32.xlu0 %v6131
      %v6133 = vpop.xlane.xlu0 %6132
      %v6134 = vsel %vm1421, %v6026, 0.0
      %6135 = vadd.xlane.f32.xlu0 %v6134
      %v6136 = vpop.xlane.xlu0 %6135
      %v6137 = vsel %vm1421, %v6027, 0.0
      %6138 = vadd.xlane.f32.xlu0 %v6137
      %v6139 = vpop.xlane.xlu0 %6138
      %v6140 = vsel %vm1421, %v6028, 0.0
      %6141 = vadd.xlane.f32.xlu0 %v6140
      %v6142 = vpop.xlane.xlu0 %6141
      %v6143 = vsel %vm1421, %v6029, 0.0
      %6144 = vadd.xlane.f32.xlu0 %v6143
      %v6145 = vpop.xlane.xlu0 %6144
      %v6146 = vsel %vm1421, %v6030, 0.0
      %6147 = vadd.xlane.f32.xlu0 %v6146
      %v6148 = vpop.xlane.xlu0 %6147
      %v6149 = vsel %vm1421, %v6031, 0.0
      %6150 = vadd.xlane.f32.xlu0 %v6149
      %v6151 = vpop.xlane.xlu0 %6150
      %v6152 = vsel %vm1421, %v6032, 0.0
      %6153 = vadd.xlane.f32.xlu0 %v6152
      %v6154 = vpop.xlane.xlu0 %6153
      %v6155 = vsel %vm1421, %v6033, 0.0
      %6156 = vadd.xlane.f32.xlu0 %v6155
      %v6157 = vpop.xlane.xlu0 %6156
      %v6158 = vsel %vm1421, %v6034, 0.0
      %6159 = vadd.xlane.f32.xlu0 %v6158
      %v6160 = vpop.xlane.xlu0 %6159
      %v6161 = vsel %vm1421, %v6035, 0.0
      %6162 = vadd.xlane.f32.xlu0 %v6161
      %v6163 = vpop.xlane.xlu0 %6162
      %v6164 = vadd.f32 %v6036, %v6070
      %v6165 = vadd.f32 %v6037, %v6073
      %v6166 = vadd.f32 %v6038, %v6076
      %v6167 = vadd.f32 %v6039, %v6079
      %v6168 = vadd.f32 %v6040, %v6082
      %v6169 = vadd.f32 %v6041, %v6085
      %v6170 = vadd.f32 %v6042, %v6088
      %v6171 = vadd.f32 %v6043, %v6091
      %v6172 = vadd.f32 %v6044, %v6094
      %v6173 = vadd.f32 %v6045, %v6097
      %v6174 = vadd.f32 %v6046, %v6100
      %v6175 = vadd.f32 %v6047, %v6103
      %v6176 = vadd.f32 %v6048, %v6106
      %v6177 = vadd.f32 %v6049, %v6109
      %v6178 = vadd.f32 %v6050, %v6112
      %v6179 = vadd.f32 %v6051, %v6115
      %v6180 = vadd.f32 %v6052, %v6118
      %v6181 = vadd.f32 %v6053, %v6121
      %v6182 = vadd.f32 %v6054, %v6124
      %v6183 = vadd.f32 %v6055, %v6127
      %v6184 = vadd.f32 %v6056, %v6130
      %v6185 = vadd.f32 %v6057, %v6133
      %v6186 = vadd.f32 %v6058, %v6136
      %v6187 = vadd.f32 %v6059, %v6139
      %v6188 = vadd.f32 %v6060, %v6142
      %v6189 = vadd.f32 %v6061, %v6145
      %v6190 = vadd.f32 %v6062, %v6148
      %v6191 = vadd.f32 %v6063, %v6151
      %v6192 = vadd.f32 %v6064, %v6154
      %v6193 = vadd.f32 %v6065, %v6157
      %v6194 = vadd.f32 %v6066, %v6160
      %v6195 = vadd.f32 %v6067, %v6163
      %6196 = vst.msk [vmem:[#allocation2 + $0x500] sm:$0xff] %vm1550, %v6164
      %6197 = vst.msk [vmem:[#allocation2 + $0x508] sm:$0xff] %vm1550, %v6165
      %6198 = vst.msk [vmem:[#allocation2 + $0x510] sm:$0xff] %vm1550, %v6166
      %6199 = vst.msk [vmem:[#allocation2 + $0x518] sm:$0xff] %vm1550, %v6167
      %6200 = vst.msk [vmem:[#allocation2 + $0x520] sm:$0xff] %vm1550, %v6168
      %6201 = vst.msk [vmem:[#allocation2 + $0x528] sm:$0xff] %vm1550, %v6169
      %6202 = vst.msk [vmem:[#allocation2 + $0x530] sm:$0xff] %vm1550, %v6170
      %6203 = vst.msk [vmem:[#allocation2 + $0x538] sm:$0xff] %vm1550, %v6171
      %6204 = vst.msk [vmem:[#allocation2 + $0x540] sm:$0xff] %vm1550, %v6172
      %6205 = vst.msk [vmem:[#allocation2 + $0x548] sm:$0xff] %vm1550, %v6173
      %6206 = vst.msk [vmem:[#allocation2 + $0x550] sm:$0xff] %vm1550, %v6174
      %6207 = vst.msk [vmem:[#allocation2 + $0x558] sm:$0xff] %vm1550, %v6175
      %6208 = vst.msk [vmem:[#allocation2 + $0x560] sm:$0xff] %vm1550, %v6176
      %6209 = vst.msk [vmem:[#allocation2 + $0x568] sm:$0xff] %vm1550, %v6177
      %6210 = vst.msk [vmem:[#allocation2 + $0x570] sm:$0xff] %vm1550, %v6178
      %6211 = vst.msk [vmem:[#allocation2 + $0x578] sm:$0xff] %vm1550, %v6179
      %6212 = vst.msk [vmem:[#allocation2 + $0x580] sm:$0xff] %vm1550, %v6180
      %6213 = vst.msk [vmem:[#allocation2 + $0x588] sm:$0xff] %vm1550, %v6181
      %6214 = vst.msk [vmem:[#allocation2 + $0x590] sm:$0xff] %vm1550, %v6182
      %6215 = vst.msk [vmem:[#allocation2 + $0x598] sm:$0xff] %vm1550, %v6183
      %6216 = vst.msk [vmem:[#allocation2 + $0x5a0] sm:$0xff] %vm1550, %v6184
      %6217 = vst.msk [vmem:[#allocation2 + $0x5a8] sm:$0xff] %vm1550, %v6185
      %6218 = vst.msk [vmem:[#allocation2 + $0x5b0] sm:$0xff] %vm1550, %v6186
      %6219 = vst.msk [vmem:[#allocation2 + $0x5b8] sm:$0xff] %vm1550, %v6187
      %6220 = vst.msk [vmem:[#allocation2 + $0x5c0] sm:$0xff] %vm1550, %v6188
      %6221 = vst.msk [vmem:[#allocation2 + $0x5c8] sm:$0xff] %vm1550, %v6189
      %6222 = vst.msk [vmem:[#allocation2 + $0x5d0] sm:$0xff] %vm1550, %v6190
      %6223 = vst.msk [vmem:[#allocation2 + $0x5d8] sm:$0xff] %vm1550, %v6191
      %6224 = vst.msk [vmem:[#allocation2 + $0x5e0] sm:$0xff] %vm1550, %v6192
      %6225 = vst.msk [vmem:[#allocation2 + $0x5e8] sm:$0xff] %vm1550, %v6193
      %6226 = vst.msk [vmem:[#allocation2 + $0x5f0] sm:$0xff] %vm1550, %v6194
      %6227 = vst.msk [vmem:[#allocation2 + $0x5f8] sm:$0xff] %vm1550, %v6195
      // Predicated region
      $region49: #{eff_b3_lstm_forward.2} parent=43 // pred_check
        %p6228 = pneg %p276
      $region50: #{eff_b3_lstm_forward.2} parent=43 // pred_check_branch
        %6230 = sbr.rel (%p6228) target = $region52
      $region51: #{eff_b3_lstm_forward.2} parent=43 // pred_region
        %v6231 = vld [vmem:[#allocation2] sm:$0xff]
        %v6232 = vld [vmem:[#allocation2 + $0x8] sm:$0xff]
        %v6233 = vld [vmem:[#allocation2 + $0x10] sm:$0xff]
        %v6234 = vld [vmem:[#allocation2 + $0x18] sm:$0xff]
        %v6235 = vld [vmem:[#allocation2 + $0x20] sm:$0xff]
        %v6236 = vld [vmem:[#allocation2 + $0x28] sm:$0xff]
        %v6237 = vld [vmem:[#allocation2 + $0x30] sm:$0xff]
        %v6238 = vld [vmem:[#allocation2 + $0x38] sm:$0xff]
        %v6239 = vld [vmem:[#allocation2 + $0x40] sm:$0xff]
        %v6240 = vld [vmem:[#allocation2 + $0x48] sm:$0xff]
        %v6241 = vld [vmem:[#allocation2 + $0x50] sm:$0xff]
        %v6242 = vld [vmem:[#allocation2 + $0x58] sm:$0xff]
        %v6243 = vld [vmem:[#allocation2 + $0x60] sm:$0xff]
        %v6244 = vld [vmem:[#allocation2 + $0x68] sm:$0xff]
        %v6245 = vld [vmem:[#allocation2 + $0x70] sm:$0xff]
        %v6246 = vld [vmem:[#allocation2 + $0x78] sm:$0xff]
        %v6247 = vld [vmem:[#allocation2 + $0x80] sm:$0xff]
        %v6248 = vld [vmem:[#allocation2 + $0x88] sm:$0xff]
        %v6249 = vld [vmem:[#allocation2 + $0x90] sm:$0xff]
        %v6250 = vld [vmem:[#allocation2 + $0x98] sm:$0xff]
        %v6251 = vld [vmem:[#allocation2 + $0xa0] sm:$0xff]
        %v6252 = vld [vmem:[#allocation2 + $0xa8] sm:$0xff]
        %v6253 = vld [vmem:[#allocation2 + $0xb0] sm:$0xff]
        %v6254 = vld [vmem:[#allocation2 + $0xb8] sm:$0xff]
        %v6255 = vld [vmem:[#allocation2 + $0xc0] sm:$0xff]
        %v6256 = vld [vmem:[#allocation2 + $0xc8] sm:$0xff]
        %v6257 = vld [vmem:[#allocation2 + $0xd0] sm:$0xff]
        %v6258 = vld [vmem:[#allocation2 + $0xd8] sm:$0xff]
        %v6259 = vld [vmem:[#allocation2 + $0xe0] sm:$0xff]
        %v6260 = vld [vmem:[#allocation2 + $0xe8] sm:$0xff]
        %v6261 = vld [vmem:[#allocation2 + $0xf0] sm:$0xff]
        %v6262 = vld [vmem:[#allocation2 + $0xf8] sm:$0xff]
        %v6263 = vld [vmem:[#allocation2 + $0x100] sm:$0xff]
        %v6264 = vld [vmem:[#allocation2 + $0x108] sm:$0xff]
        %v6265 = vld [vmem:[#allocation2 + $0x110] sm:$0xff]
        %v6266 = vld [vmem:[#allocation2 + $0x118] sm:$0xff]
        %v6267 = vld [vmem:[#allocation2 + $0x120] sm:$0xff]
        %v6268 = vld [vmem:[#allocation2 + $0x128] sm:$0xff]
        %v6269 = vld [vmem:[#allocation2 + $0x130] sm:$0xff]
        %v6270 = vld [vmem:[#allocation2 + $0x138] sm:$0xff]
        %v6271 = vld [vmem:[#allocation2 + $0x140] sm:$0xff]
        %v6272 = vld [vmem:[#allocation2 + $0x148] sm:$0xff]
        %v6273 = vld [vmem:[#allocation2 + $0x150] sm:$0xff]
        %v6274 = vld [vmem:[#allocation2 + $0x158] sm:$0xff]
        %v6275 = vld [vmem:[#allocation2 + $0x160] sm:$0xff]
        %v6276 = vld [vmem:[#allocation2 + $0x168] sm:$0xff]
        %v6277 = vld [vmem:[#allocation2 + $0x170] sm:$0xff]
        %v6278 = vld [vmem:[#allocation2 + $0x178] sm:$0xff]
        %v6279 = vld [vmem:[#allocation2 + $0x180] sm:$0xff]
        %v6280 = vld [vmem:[#allocation2 + $0x188] sm:$0xff]
        %v6281 = vld [vmem:[#allocation2 + $0x190] sm:$0xff]
        %v6282 = vld [vmem:[#allocation2 + $0x198] sm:$0xff]
        %v6283 = vld [vmem:[#allocation2 + $0x1a0] sm:$0xff]
        %v6284 = vld [vmem:[#allocation2 + $0x1a8] sm:$0xff]
        %v6285 = vld [vmem:[#allocation2 + $0x1b0] sm:$0xff]
        %v6286 = vld [vmem:[#allocation2 + $0x1b8] sm:$0xff]
        %v6287 = vld [vmem:[#allocation2 + $0x1c0] sm:$0xff]
        %v6288 = vld [vmem:[#allocation2 + $0x1c8] sm:$0xff]
        %v6289 = vld [vmem:[#allocation2 + $0x1d0] sm:$0xff]
        %v6290 = vld [vmem:[#allocation2 + $0x1d8] sm:$0xff]
        %v6291 = vld [vmem:[#allocation2 + $0x1e0] sm:$0xff]
        %v6292 = vld [vmem:[#allocation2 + $0x1e8] sm:$0xff]
        %v6293 = vld [vmem:[#allocation2 + $0x1f0] sm:$0xff]
        %v6294 = vld [vmem:[#allocation2 + $0x1f8] sm:$0xff]
        %v6295 = vld [vmem:[#allocation2 + $0x200] sm:$0xff]
        %v6296 = vld [vmem:[#allocation2 + $0x208] sm:$0xff]
        %v6297 = vld [vmem:[#allocation2 + $0x210] sm:$0xff]
        %v6298 = vld [vmem:[#allocation2 + $0x218] sm:$0xff]
        %v6299 = vld [vmem:[#allocation2 + $0x220] sm:$0xff]
        %v6300 = vld [vmem:[#allocation2 + $0x228] sm:$0xff]
        %v6301 = vld [vmem:[#allocation2 + $0x230] sm:$0xff]
        %v6302 = vld [vmem:[#allocation2 + $0x238] sm:$0xff]
        %v6303 = vld [vmem:[#allocation2 + $0x240] sm:$0xff]
        %v6304 = vld [vmem:[#allocation2 + $0x248] sm:$0xff]
        %v6305 = vld [vmem:[#allocation2 + $0x250] sm:$0xff]
        %v6306 = vld [vmem:[#allocation2 + $0x258] sm:$0xff]
        %v6307 = vld [vmem:[#allocation2 + $0x260] sm:$0xff]
        %v6308 = vld [vmem:[#allocation2 + $0x268] sm:$0xff]
        %v6309 = vld [vmem:[#allocation2 + $0x270] sm:$0xff]
        %v6310 = vld [vmem:[#allocation2 + $0x278] sm:$0xff]
        %v6311 = vld [vmem:[#allocation2 + $0x280] sm:$0xff]
        %v6312 = vld [vmem:[#allocation2 + $0x288] sm:$0xff]
        %v6313 = vld [vmem:[#allocation2 + $0x290] sm:$0xff]
        %v6314 = vld [vmem:[#allocation2 + $0x298] sm:$0xff]
        %v6315 = vld [vmem:[#allocation2 + $0x2a0] sm:$0xff]
        %v6316 = vld [vmem:[#allocation2 + $0x2a8] sm:$0xff]
        %v6317 = vld [vmem:[#allocation2 + $0x2b0] sm:$0xff]
        %v6318 = vld [vmem:[#allocation2 + $0x2b8] sm:$0xff]
        %v6319 = vld [vmem:[#allocation2 + $0x2c0] sm:$0xff]
        %v6320 = vld [vmem:[#allocation2 + $0x2c8] sm:$0xff]
        %v6321 = vld [vmem:[#allocation2 + $0x2d0] sm:$0xff]
        %v6322 = vld [vmem:[#allocation2 + $0x2d8] sm:$0xff]
        %v6323 = vld [vmem:[#allocation2 + $0x2e0] sm:$0xff]
        %v6324 = vld [vmem:[#allocation2 + $0x2e8] sm:$0xff]
        %v6325 = vld [vmem:[#allocation2 + $0x2f0] sm:$0xff]
        %v6326 = vld [vmem:[#allocation2 + $0x2f8] sm:$0xff]
        %v6327 = vld [vmem:[#allocation2 + $0x300] sm:$0xff]
        %v6328 = vld [vmem:[#allocation2 + $0x308] sm:$0xff]
        %v6329 = vld [vmem:[#allocation2 + $0x310] sm:$0xff]
        %v6330 = vld [vmem:[#allocation2 + $0x318] sm:$0xff]
        %v6331 = vld [vmem:[#allocation2 + $0x320] sm:$0xff]
        %v6332 = vld [vmem:[#allocation2 + $0x328] sm:$0xff]
        %v6333 = vld [vmem:[#allocation2 + $0x330] sm:$0xff]
        %v6334 = vld [vmem:[#allocation2 + $0x338] sm:$0xff]
        %v6335 = vld [vmem:[#allocation2 + $0x340] sm:$0xff]
        %v6336 = vld [vmem:[#allocation2 + $0x348] sm:$0xff]
        %v6337 = vld [vmem:[#allocation2 + $0x350] sm:$0xff]
        %v6338 = vld [vmem:[#allocation2 + $0x358] sm:$0xff]
        %v6339 = vld [vmem:[#allocation2 + $0x360] sm:$0xff]
        %v6340 = vld [vmem:[#allocation2 + $0x368] sm:$0xff]
        %v6341 = vld [vmem:[#allocation2 + $0x370] sm:$0xff]
        %v6342 = vld [vmem:[#allocation2 + $0x378] sm:$0xff]
        %v6343 = vld [vmem:[#allocation2 + $0x380] sm:$0xff]
        %v6344 = vld [vmem:[#allocation2 + $0x388] sm:$0xff]
        %v6345 = vld [vmem:[#allocation2 + $0x390] sm:$0xff]
        %v6346 = vld [vmem:[#allocation2 + $0x398] sm:$0xff]
        %v6347 = vld [vmem:[#allocation2 + $0x3a0] sm:$0xff]
        %v6348 = vld [vmem:[#allocation2 + $0x3a8] sm:$0xff]
        %v6349 = vld [vmem:[#allocation2 + $0x3b0] sm:$0xff]
        %v6350 = vld [vmem:[#allocation2 + $0x3b8] sm:$0xff]
        %v6351 = vld [vmem:[#allocation2 + $0x3c0] sm:$0xff]
        %v6352 = vld [vmem:[#allocation2 + $0x3c8] sm:$0xff]
        %v6353 = vld [vmem:[#allocation2 + $0x3d0] sm:$0xff]
        %v6354 = vld [vmem:[#allocation2 + $0x3d8] sm:$0xff]
        %v6355 = vld [vmem:[#allocation2 + $0x3e0] sm:$0xff]
        %v6356 = vld [vmem:[#allocation2 + $0x3e8] sm:$0xff]
        %v6357 = vld [vmem:[#allocation2 + $0x3f0] sm:$0xff]
        %v6358 = vld [vmem:[#allocation2 + $0x3f8] sm:$0xff]
        %v6359 = vld [vmem:[#allocation2 + $0x400] sm:$0xff]
        %v6360 = vld [vmem:[#allocation2 + $0x408] sm:$0xff]
        %v6361 = vld [vmem:[#allocation2 + $0x410] sm:$0xff]
        %v6362 = vld [vmem:[#allocation2 + $0x418] sm:$0xff]
        %v6363 = vld [vmem:[#allocation2 + $0x420] sm:$0xff]
        %v6364 = vld [vmem:[#allocation2 + $0x428] sm:$0xff]
        %v6365 = vld [vmem:[#allocation2 + $0x430] sm:$0xff]
        %v6366 = vld [vmem:[#allocation2 + $0x438] sm:$0xff]
        %v6367 = vld [vmem:[#allocation2 + $0x440] sm:$0xff]
        %v6368 = vld [vmem:[#allocation2 + $0x448] sm:$0xff]
        %v6369 = vld [vmem:[#allocation2 + $0x450] sm:$0xff]
        %v6370 = vld [vmem:[#allocation2 + $0x458] sm:$0xff]
        %v6371 = vld [vmem:[#allocation2 + $0x460] sm:$0xff]
        %v6372 = vld [vmem:[#allocation2 + $0x468] sm:$0xff]
        %v6373 = vld [vmem:[#allocation2 + $0x470] sm:$0xff]
        %v6374 = vld [vmem:[#allocation2 + $0x478] sm:$0xff]
        %v6375 = vld [vmem:[#allocation2 + $0x480] sm:$0xff]
        %v6376 = vld [vmem:[#allocation2 + $0x488] sm:$0xff]
        %v6377 = vld [vmem:[#allocation2 + $0x490] sm:$0xff]
        %v6378 = vld [vmem:[#allocation2 + $0x498] sm:$0xff]
        %v6379 = vld [vmem:[#allocation2 + $0x4a0] sm:$0xff]
        %v6380 = vld [vmem:[#allocation2 + $0x4a8] sm:$0xff]
        %v6381 = vld [vmem:[#allocation2 + $0x4b0] sm:$0xff]
        %v6382 = vld [vmem:[#allocation2 + $0x4b8] sm:$0xff]
        %v6383 = vld [vmem:[#allocation2 + $0x4c0] sm:$0xff]
        %v6384 = vld [vmem:[#allocation2 + $0x4c8] sm:$0xff]
        %v6385 = vld [vmem:[#allocation2 + $0x4d0] sm:$0xff]
        %v6386 = vld [vmem:[#allocation2 + $0x4d8] sm:$0xff]
        %v6387 = vld [vmem:[#allocation2 + $0x4e0] sm:$0xff]
        %v6388 = vld [vmem:[#allocation2 + $0x4e8] sm:$0xff]
        %v6389 = vld [vmem:[#allocation2 + $0x4f0] sm:$0xff]
        %v6390 = vld [vmem:[#allocation2 + $0x4f8] sm:$0xff]
        %v6391 = vld [vmem:[#allocation2 + $0x500] sm:$0xff]
        %v6392 = vld [vmem:[#allocation2 + $0x508] sm:$0xff]
        %v6393 = vld [vmem:[#allocation2 + $0x510] sm:$0xff]
        %v6394 = vld [vmem:[#allocation2 + $0x518] sm:$0xff]
        %v6395 = vld [vmem:[#allocation2 + $0x520] sm:$0xff]
        %v6396 = vld [vmem:[#allocation2 + $0x528] sm:$0xff]
        %v6397 = vld [vmem:[#allocation2 + $0x530] sm:$0xff]
        %v6398 = vld [vmem:[#allocation2 + $0x538] sm:$0xff]
        %v6399 = vld [vmem:[#allocation2 + $0x540] sm:$0xff]
        %v6400 = vld [vmem:[#allocation2 + $0x548] sm:$0xff]
        %v6401 = vld [vmem:[#allocation2 + $0x550] sm:$0xff]
        %v6402 = vld [vmem:[#allocation2 + $0x558] sm:$0xff]
        %v6403 = vld [vmem:[#allocation2 + $0x560] sm:$0xff]
        %v6404 = vld [vmem:[#allocation2 + $0x568] sm:$0xff]
        %v6405 = vld [vmem:[#allocation2 + $0x570] sm:$0xff]
        %v6406 = vld [vmem:[#allocation2 + $0x578] sm:$0xff]
        %v6407 = vld [vmem:[#allocation2 + $0x580] sm:$0xff]
        %v6408 = vld [vmem:[#allocation2 + $0x588] sm:$0xff]
        %v6409 = vld [vmem:[#allocation2 + $0x590] sm:$0xff]
        %v6410 = vld [vmem:[#allocation2 + $0x598] sm:$0xff]
        %v6411 = vld [vmem:[#allocation2 + $0x5a0] sm:$0xff]
        %v6412 = vld [vmem:[#allocation2 + $0x5a8] sm:$0xff]
        %v6413 = vld [vmem:[#allocation2 + $0x5b0] sm:$0xff]
        %v6414 = vld [vmem:[#allocation2 + $0x5b8] sm:$0xff]
        %v6415 = vld [vmem:[#allocation2 + $0x5c0] sm:$0xff]
        %v6416 = vld [vmem:[#allocation2 + $0x5c8] sm:$0xff]
        %v6417 = vld [vmem:[#allocation2 + $0x5d0] sm:$0xff]
        %v6418 = vld [vmem:[#allocation2 + $0x5d8] sm:$0xff]
        %v6419 = vld [vmem:[#allocation2 + $0x5e0] sm:$0xff]
        %v6420 = vld [vmem:[#allocation2 + $0x5e8] sm:$0xff]
        %v6421 = vld [vmem:[#allocation2 + $0x5f0] sm:$0xff]
        %v6422 = vld [vmem:[#allocation2 + $0x5f8] sm:$0xff]
        %v6423 = vmul.f32 %v6231, 0.015625
        %v6424 = vmul.f32 %v6232, 0.015625
        %v6425 = vmul.f32 %v6233, 0.015625
        %v6426 = vmul.f32 %v6234, 0.015625
        %v6427 = vmul.f32 %v6235, 0.015625
        %v6428 = vmul.f32 %v6236, 0.015625
        %v6429 = vmul.f32 %v6237, 0.015625
        %v6430 = vmul.f32 %v6238, 0.015625
        %v6431 = vmul.f32 %v6239, 0.015625
        %v6432 = vmul.f32 %v6240, 0.015625
        %v6433 = vmul.f32 %v6241, 0.015625
        %v6434 = vmul.f32 %v6242, 0.015625
        %v6435 = vmul.f32 %v6243, 0.015625
        %v6436 = vmul.f32 %v6244, 0.015625
        %v6437 = vmul.f32 %v6245, 0.015625
        %v6438 = vmul.f32 %v6246, 0.015625
        %v6439 = vmul.f32 %v6247, 0.015625
        %v6440 = vmul.f32 %v6248, 0.015625
        %v6441 = vmul.f32 %v6249, 0.015625
        %v6442 = vmul.f32 %v6250, 0.015625
        %v6443 = vmul.f32 %v6251, 0.015625
        %v6444 = vmul.f32 %v6252, 0.015625
        %v6445 = vmul.f32 %v6253, 0.015625
        %v6446 = vmul.f32 %v6254, 0.015625
        %v6447 = vmul.f32 %v6255, 0.015625
        %v6448 = vmul.f32 %v6256, 0.015625
        %v6449 = vmul.f32 %v6257, 0.015625
        %v6450 = vmul.f32 %v6258, 0.015625
        %v6451 = vmul.f32 %v6259, 0.015625
        %v6452 = vmul.f32 %v6260, 0.015625
        %v6453 = vmul.f32 %v6261, 0.015625
        %v6454 = vmul.f32 %v6262, 0.015625
        %v6455 = vmul.f32 %v6263, 0.015625
        %v6456 = vmul.f32 %v6264, 0.015625
        %v6457 = vmul.f32 %v6265, 0.015625
        %v6458 = vmul.f32 %v6266, 0.015625
        %v6459 = vmul.f32 %v6267, 0.015625
        %v6460 = vmul.f32 %v6268, 0.015625
        %v6461 = vmul.f32 %v6269, 0.015625
        %v6462 = vmul.f32 %v6270, 0.015625
        %v6463 = vmul.f32 %v6271, 0.015625
        %v6464 = vmul.f32 %v6272, 0.015625
        %v6465 = vmul.f32 %v6273, 0.015625
        %v6466 = vmul.f32 %v6274, 0.015625
        %v6467 = vmul.f32 %v6275, 0.015625
        %v6468 = vmul.f32 %v6276, 0.015625
        %v6469 = vmul.f32 %v6277, 0.015625
        %v6470 = vmul.f32 %v6278, 0.015625
        %v6471 = vmul.f32 %v6279, 0.015625
        %v6472 = vmul.f32 %v6280, 0.015625
        %v6473 = vmul.f32 %v6281, 0.015625
        %v6474 = vmul.f32 %v6282, 0.015625
        %v6475 = vmul.f32 %v6283, 0.015625
        %v6476 = vmul.f32 %v6284, 0.015625
        %v6477 = vmul.f32 %v6285, 0.015625
        %v6478 = vmul.f32 %v6286, 0.015625
        %v6479 = vmul.f32 %v6287, 0.015625
        %v6480 = vmul.f32 %v6288, 0.015625
        %v6481 = vmul.f32 %v6289, 0.015625
        %v6482 = vmul.f32 %v6290, 0.015625
        %v6483 = vmul.f32 %v6291, 0.015625
        %v6484 = vmul.f32 %v6292, 0.015625
        %v6485 = vmul.f32 %v6293, 0.015625
        %v6486 = vmul.f32 %v6294, 0.015625
        %v6487 = vmul.f32 %v6295, 0.015625
        %v6488 = vmul.f32 %v6296, 0.015625
        %v6489 = vmul.f32 %v6297, 0.015625
        %v6490 = vmul.f32 %v6298, 0.015625
        %v6491 = vmul.f32 %v6299, 0.015625
        %v6492 = vmul.f32 %v6300, 0.015625
        %v6493 = vmul.f32 %v6301, 0.015625
        %v6494 = vmul.f32 %v6302, 0.015625
        %v6495 = vmul.f32 %v6303, 0.015625
        %v6496 = vmul.f32 %v6304, 0.015625
        %v6497 = vmul.f32 %v6305, 0.015625
        %v6498 = vmul.f32 %v6306, 0.015625
        %v6499 = vmul.f32 %v6307, 0.015625
        %v6500 = vmul.f32 %v6308, 0.015625
        %v6501 = vmul.f32 %v6309, 0.015625
        %v6502 = vmul.f32 %v6310, 0.015625
        %v6503 = vmul.f32 %v6311, 0.015625
        %v6504 = vmul.f32 %v6312, 0.015625
        %v6505 = vmul.f32 %v6313, 0.015625
        %v6506 = vmul.f32 %v6314, 0.015625
        %v6507 = vmul.f32 %v6315, 0.015625
        %v6508 = vmul.f32 %v6316, 0.015625
        %v6509 = vmul.f32 %v6317, 0.015625
        %v6510 = vmul.f32 %v6318, 0.015625
        %v6511 = vmul.f32 %v6319, 0.015625
        %v6512 = vmul.f32 %v6320, 0.015625
        %v6513 = vmul.f32 %v6321, 0.015625
        %v6514 = vmul.f32 %v6322, 0.015625
        %v6515 = vmul.f32 %v6323, 0.015625
        %v6516 = vmul.f32 %v6324, 0.015625
        %v6517 = vmul.f32 %v6325, 0.015625
        %v6518 = vmul.f32 %v6326, 0.015625
        %v6519 = vmul.f32 %v6327, 0.015625
        %v6520 = vmul.f32 %v6328, 0.015625
        %v6521 = vmul.f32 %v6329, 0.015625
        %v6522 = vmul.f32 %v6330, 0.015625
        %v6523 = vmul.f32 %v6331, 0.015625
        %v6524 = vmul.f32 %v6332, 0.015625
        %v6525 = vmul.f32 %v6333, 0.015625
        %v6526 = vmul.f32 %v6334, 0.015625
        %v6527 = vmul.f32 %v6335, 0.015625
        %v6528 = vmul.f32 %v6336, 0.015625
        %v6529 = vmul.f32 %v6337, 0.015625
        %v6530 = vmul.f32 %v6338, 0.015625
        %v6531 = vmul.f32 %v6339, 0.015625
        %v6532 = vmul.f32 %v6340, 0.015625
        %v6533 = vmul.f32 %v6341, 0.015625
        %v6534 = vmul.f32 %v6342, 0.015625
        %v6535 = vmul.f32 %v6343, 0.015625
        %v6536 = vmul.f32 %v6344, 0.015625
        %v6537 = vmul.f32 %v6345, 0.015625
        %v6538 = vmul.f32 %v6346, 0.015625
        %v6539 = vmul.f32 %v6347, 0.015625
        %v6540 = vmul.f32 %v6348, 0.015625
        %v6541 = vmul.f32 %v6349, 0.015625
        %v6542 = vmul.f32 %v6350, 0.015625
        %v6543 = vmul.f32 %v6351, 0.015625
        %v6544 = vmul.f32 %v6352, 0.015625
        %v6545 = vmul.f32 %v6353, 0.015625
        %v6546 = vmul.f32 %v6354, 0.015625
        %v6547 = vmul.f32 %v6355, 0.015625
        %v6548 = vmul.f32 %v6356, 0.015625
        %v6549 = vmul.f32 %v6357, 0.015625
        %v6550 = vmul.f32 %v6358, 0.015625
        %v6551 = vmul.f32 %v6359, 0.015625
        %v6552 = vmul.f32 %v6360, 0.015625
        %v6553 = vmul.f32 %v6361, 0.015625
        %v6554 = vmul.f32 %v6362, 0.015625
        %v6555 = vmul.f32 %v6363, 0.015625
        %v6556 = vmul.f32 %v6364, 0.015625
        %v6557 = vmul.f32 %v6365, 0.015625
        %v6558 = vmul.f32 %v6366, 0.015625
        %v6559 = vmul.f32 %v6367, 0.015625
        %v6560 = vmul.f32 %v6368, 0.015625
        %v6561 = vmul.f32 %v6369, 0.015625
        %v6562 = vmul.f32 %v6370, 0.015625
        %v6563 = vmul.f32 %v6371, 0.015625
        %v6564 = vmul.f32 %v6372, 0.015625
        %v6565 = vmul.f32 %v6373, 0.015625
        %v6566 = vmul.f32 %v6374, 0.015625
        %v6567 = vmul.f32 %v6375, 0.015625
        %v6568 = vmul.f32 %v6376, 0.015625
        %v6569 = vmul.f32 %v6377, 0.015625
        %v6570 = vmul.f32 %v6378, 0.015625
        %v6571 = vmul.f32 %v6379, 0.015625
        %v6572 = vmul.f32 %v6380, 0.015625
        %v6573 = vmul.f32 %v6381, 0.015625
        %v6574 = vmul.f32 %v6382, 0.015625
        %v6575 = vmul.f32 %v6383, 0.015625
        %v6576 = vmul.f32 %v6384, 0.015625
        %v6577 = vmul.f32 %v6385, 0.015625
        %v6578 = vmul.f32 %v6386, 0.015625
        %v6579 = vmul.f32 %v6387, 0.015625
        %v6580 = vmul.f32 %v6388, 0.015625
        %v6581 = vmul.f32 %v6389, 0.015625
        %v6582 = vmul.f32 %v6390, 0.015625
        %v6583 = vmul.f32 %v6391, 0.015625
        %v6584 = vmul.f32 %v6392, 0.015625
        %v6585 = vmul.f32 %v6393, 0.015625
        %v6586 = vmul.f32 %v6394, 0.015625
        %v6587 = vmul.f32 %v6395, 0.015625
        %v6588 = vmul.f32 %v6396, 0.015625
        %v6589 = vmul.f32 %v6397, 0.015625
        %v6590 = vmul.f32 %v6398, 0.015625
        %v6591 = vmul.f32 %v6399, 0.015625
        %v6592 = vmul.f32 %v6400, 0.015625
        %v6593 = vmul.f32 %v6401, 0.015625
        %v6594 = vmul.f32 %v6402, 0.015625
        %v6595 = vmul.f32 %v6403, 0.015625
        %v6596 = vmul.f32 %v6404, 0.015625
        %v6597 = vmul.f32 %v6405, 0.015625
        %v6598 = vmul.f32 %v6406, 0.015625
        %v6599 = vmul.f32 %v6407, 0.015625
        %v6600 = vmul.f32 %v6408, 0.015625
        %v6601 = vmul.f32 %v6409, 0.015625
        %v6602 = vmul.f32 %v6410, 0.015625
        %v6603 = vmul.f32 %v6411, 0.015625
        %v6604 = vmul.f32 %v6412, 0.015625
        %v6605 = vmul.f32 %v6413, 0.015625
        %v6606 = vmul.f32 %v6414, 0.015625
        %v6607 = vmul.f32 %v6415, 0.015625
        %v6608 = vmul.f32 %v6416, 0.015625
        %v6609 = vmul.f32 %v6417, 0.015625
        %v6610 = vmul.f32 %v6418, 0.015625
        %v6611 = vmul.f32 %v6419, 0.015625
        %v6612 = vmul.f32 %v6420, 0.015625
        %v6613 = vmul.f32 %v6421, 0.015625
        %v6614 = vmul.f32 %v6422, 0.015625
        %v6615 = vpack.c.bf16 %v6424, %v6423
        %v6616 = vpack.c.bf16 %v6426, %v6425
        %v6617 = vpack.c.bf16 %v6428, %v6427
        %v6618 = vpack.c.bf16 %v6430, %v6429
        %v6619 = vpack.c.bf16 %v6432, %v6431
        %v6620 = vpack.c.bf16 %v6434, %v6433
        %v6621 = vpack.c.bf16 %v6436, %v6435
        %v6622 = vpack.c.bf16 %v6438, %v6437
        %v6623 = vpack.c.bf16 %v6440, %v6439
        %v6624 = vpack.c.bf16 %v6442, %v6441
        %v6625 = vpack.c.bf16 %v6444, %v6443
        %v6626 = vpack.c.bf16 %v6446, %v6445
        %v6627 = vpack.c.bf16 %v6448, %v6447
        %v6628 = vpack.c.bf16 %v6450, %v6449
        %v6629 = vpack.c.bf16 %v6452, %v6451
        %v6630 = vpack.c.bf16 %v6454, %v6453
        %v6631 = vpack.c.bf16 %v6456, %v6455
        %v6632 = vpack.c.bf16 %v6458, %v6457
        %v6633 = vpack.c.bf16 %v6460, %v6459
        %v6634 = vpack.c.bf16 %v6462, %v6461
        %v6635 = vpack.c.bf16 %v6464, %v6463
        %v6636 = vpack.c.bf16 %v6466, %v6465
        %v6637 = vpack.c.bf16 %v6468, %v6467
        %v6638 = vpack.c.bf16 %v6470, %v6469
        %v6639 = vpack.c.bf16 %v6472, %v6471
        %v6640 = vpack.c.bf16 %v6474, %v6473
        %v6641 = vpack.c.bf16 %v6476, %v6475
        %v6642 = vpack.c.bf16 %v6478, %v6477
        %v6643 = vpack.c.bf16 %v6480, %v6479
        %v6644 = vpack.c.bf16 %v6482, %v6481
        %v6645 = vpack.c.bf16 %v6484, %v6483
        %v6646 = vpack.c.bf16 %v6486, %v6485
        %v6647 = vpack.c.bf16 %v6488, %v6487
        %v6648 = vpack.c.bf16 %v6490, %v6489
        %v6649 = vpack.c.bf16 %v6492, %v6491
        %v6650 = vpack.c.bf16 %v6494, %v6493
        %v6651 = vpack.c.bf16 %v6496, %v6495
        %v6652 = vpack.c.bf16 %v6498, %v6497
        %v6653 = vpack.c.bf16 %v6500, %v6499
        %v6654 = vpack.c.bf16 %v6502, %v6501
        %v6655 = vpack.c.bf16 %v6504, %v6503
        %v6656 = vpack.c.bf16 %v6506, %v6505
        %v6657 = vpack.c.bf16 %v6508, %v6507
        %v6658 = vpack.c.bf16 %v6510, %v6509
        %v6659 = vpack.c.bf16 %v6512, %v6511
        %v6660 = vpack.c.bf16 %v6514, %v6513
        %v6661 = vpack.c.bf16 %v6516, %v6515
        %v6662 = vpack.c.bf16 %v6518, %v6517
        %v6663 = vpack.c.bf16 %v6520, %v6519
        %v6664 = vpack.c.bf16 %v6522, %v6521
        %v6665 = vpack.c.bf16 %v6524, %v6523
        %v6666 = vpack.c.bf16 %v6526, %v6525
        %v6667 = vpack.c.bf16 %v6528, %v6527
        %v6668 = vpack.c.bf16 %v6530, %v6529
        %v6669 = vpack.c.bf16 %v6532, %v6531
        %v6670 = vpack.c.bf16 %v6534, %v6533
        %v6671 = vpack.c.bf16 %v6536, %v6535
        %v6672 = vpack.c.bf16 %v6538, %v6537
        %v6673 = vpack.c.bf16 %v6540, %v6539
        %v6674 = vpack.c.bf16 %v6542, %v6541
        %v6675 = vpack.c.bf16 %v6544, %v6543
        %v6676 = vpack.c.bf16 %v6546, %v6545
        %v6677 = vpack.c.bf16 %v6548, %v6547
        %v6678 = vpack.c.bf16 %v6550, %v6549
        %v6679 = vpack.c.bf16 %v6552, %v6551
        %v6680 = vpack.c.bf16 %v6554, %v6553
        %v6681 = vpack.c.bf16 %v6556, %v6555
        %v6682 = vpack.c.bf16 %v6558, %v6557
        %v6683 = vpack.c.bf16 %v6560, %v6559
        %v6684 = vpack.c.bf16 %v6562, %v6561
        %v6685 = vpack.c.bf16 %v6564, %v6563
        %v6686 = vpack.c.bf16 %v6566, %v6565
        %v6687 = vpack.c.bf16 %v6568, %v6567
        %v6688 = vpack.c.bf16 %v6570, %v6569
        %v6689 = vpack.c.bf16 %v6572, %v6571
        %v6690 = vpack.c.bf16 %v6574, %v6573
        %v6691 = vpack.c.bf16 %v6576, %v6575
        %v6692 = vpack.c.bf16 %v6578, %v6577
        %v6693 = vpack.c.bf16 %v6580, %v6579
        %v6694 = vpack.c.bf16 %v6582, %v6581
        %v6695 = vpack.c.bf16 %v6584, %v6583
        %v6696 = vpack.c.bf16 %v6586, %v6585
        %v6697 = vpack.c.bf16 %v6588, %v6587
        %v6698 = vpack.c.bf16 %v6590, %v6589
        %v6699 = vpack.c.bf16 %v6592, %v6591
        %v6700 = vpack.c.bf16 %v6594, %v6593
        %v6701 = vpack.c.bf16 %v6596, %v6595
        %v6702 = vpack.c.bf16 %v6598, %v6597
        %v6703 = vpack.c.bf16 %v6600, %v6599
        %v6704 = vpack.c.bf16 %v6602, %v6601
        %v6705 = vpack.c.bf16 %v6604, %v6603
        %v6706 = vpack.c.bf16 %v6606, %v6605
        %v6707 = vpack.c.bf16 %v6608, %v6607
        %v6708 = vpack.c.bf16 %v6610, %v6609
        %v6709 = vpack.c.bf16 %v6612, %v6611
        %v6710 = vpack.c.bf16 %v6614, %v6613
        %v6711 = vld [vmem:[%s5] sm:$0xff]
        %v6712 = vld [vmem:[%s5 + $0x8] sm:$0xff]
        %v6713 = vld [vmem:[%s5 + $0x10] sm:$0xff]
        %v6714 = vld [vmem:[%s5 + $0x18] sm:$0xff]
        %v6715 = vld [vmem:[%s5 + $0x20] sm:$0xff]
        %v6716 = vld [vmem:[%s5 + $0x28] sm:$0xff]
        %v6717 = vld [vmem:[%s5 + $0x30] sm:$0xff]
        %v6718 = vld [vmem:[%s5 + $0x38] sm:$0xff]
        %v6719 = vld [vmem:[%s5 + $0x40] sm:$0xff]
        %v6720 = vld [vmem:[%s5 + $0x48] sm:$0xff]
        %v6721 = vld [vmem:[%s5 + $0x50] sm:$0xff]
        %v6722 = vld [vmem:[%s5 + $0x58] sm:$0xff]
        %v6723 = vld [vmem:[%s5 + $0x60] sm:$0xff]
        %v6724 = vld [vmem:[%s5 + $0x68] sm:$0xff]
        %v6725 = vld [vmem:[%s5 + $0x70] sm:$0xff]
        %v6726 = vld [vmem:[%s5 + $0x78] sm:$0xff]
        %v6727 = vld [vmem:[%s5 + $0x80] sm:$0xff]
        %v6728 = vld [vmem:[%s5 + $0x88] sm:$0xff]
        %v6729 = vld [vmem:[%s5 + $0x90] sm:$0xff]
        %v6730 = vld [vmem:[%s5 + $0x98] sm:$0xff]
        %v6731 = vld [vmem:[%s5 + $0xa0] sm:$0xff]
        %v6732 = vld [vmem:[%s5 + $0xa8] sm:$0xff]
        %v6733 = vld [vmem:[%s5 + $0xb0] sm:$0xff]
        %v6734 = vld [vmem:[%s5 + $0xb8] sm:$0xff]
        %v6735 = vld [vmem:[%s5 + $0xc0] sm:$0xff]
        %v6736 = vld [vmem:[%s5 + $0xc8] sm:$0xff]
        %v6737 = vld [vmem:[%s5 + $0xd0] sm:$0xff]
        %v6738 = vld [vmem:[%s5 + $0xd8] sm:$0xff]
        %v6739 = vld [vmem:[%s5 + $0xe0] sm:$0xff]
        %v6740 = vld [vmem:[%s5 + $0xe8] sm:$0xff]
        %v6741 = vld [vmem:[%s5 + $0xf0] sm:$0xff]
        %v6742 = vld [vmem:[%s5 + $0xf8] sm:$0xff]
        %v6743 = vld [vmem:[%s5 + $0x100] sm:$0xff]
        %v6744 = vld [vmem:[%s5 + $0x108] sm:$0xff]
        %v6745 = vld [vmem:[%s5 + $0x110] sm:$0xff]
        %v6746 = vld [vmem:[%s5 + $0x118] sm:$0xff]
        %v6747 = vld [vmem:[%s5 + $0x120] sm:$0xff]
        %v6748 = vld [vmem:[%s5 + $0x128] sm:$0xff]
        %v6749 = vld [vmem:[%s5 + $0x130] sm:$0xff]
        %v6750 = vld [vmem:[%s5 + $0x138] sm:$0xff]
        %v6751 = vld [vmem:[%s5 + $0x140] sm:$0xff]
        %v6752 = vld [vmem:[%s5 + $0x148] sm:$0xff]
        %v6753 = vld [vmem:[%s5 + $0x150] sm:$0xff]
        %v6754 = vld [vmem:[%s5 + $0x158] sm:$0xff]
        %v6755 = vld [vmem:[%s5 + $0x160] sm:$0xff]
        %v6756 = vld [vmem:[%s5 + $0x168] sm:$0xff]
        %v6757 = vld [vmem:[%s5 + $0x170] sm:$0xff]
        %v6758 = vld [vmem:[%s5 + $0x178] sm:$0xff]
        %v6759 = vld [vmem:[%s5 + $0x180] sm:$0xff]
        %v6760 = vld [vmem:[%s5 + $0x188] sm:$0xff]
        %v6761 = vld [vmem:[%s5 + $0x190] sm:$0xff]
        %v6762 = vld [vmem:[%s5 + $0x198] sm:$0xff]
        %v6763 = vld [vmem:[%s5 + $0x1a0] sm:$0xff]
        %v6764 = vld [vmem:[%s5 + $0x1a8] sm:$0xff]
        %v6765 = vld [vmem:[%s5 + $0x1b0] sm:$0xff]
        %v6766 = vld [vmem:[%s5 + $0x1b8] sm:$0xff]
        %v6767 = vld [vmem:[%s5 + $0x1c0] sm:$0xff]
        %v6768 = vld [vmem:[%s5 + $0x1c8] sm:$0xff]
        %v6769 = vld [vmem:[%s5 + $0x1d0] sm:$0xff]
        %v6770 = vld [vmem:[%s5 + $0x1d8] sm:$0xff]
        %v6771 = vld [vmem:[%s5 + $0x1e0] sm:$0xff]
        %v6772 = vld [vmem:[%s5 + $0x1e8] sm:$0xff]
        %v6773 = vld [vmem:[%s5 + $0x1f0] sm:$0xff]
        %v6774 = vld [vmem:[%s5 + $0x1f8] sm:$0xff]
        %v6775 = vld [vmem:[%s5 + $0x200] sm:$0xff]
        %v6776 = vld [vmem:[%s5 + $0x208] sm:$0xff]
        %v6777 = vld [vmem:[%s5 + $0x210] sm:$0xff]
        %v6778 = vld [vmem:[%s5 + $0x218] sm:$0xff]
        %v6779 = vld [vmem:[%s5 + $0x220] sm:$0xff]
        %v6780 = vld [vmem:[%s5 + $0x228] sm:$0xff]
        %v6781 = vld [vmem:[%s5 + $0x230] sm:$0xff]
        %v6782 = vld [vmem:[%s5 + $0x238] sm:$0xff]
        %v6783 = vld [vmem:[%s5 + $0x240] sm:$0xff]
        %v6784 = vld [vmem:[%s5 + $0x248] sm:$0xff]
        %v6785 = vld [vmem:[%s5 + $0x250] sm:$0xff]
        %v6786 = vld [vmem:[%s5 + $0x258] sm:$0xff]
        %v6787 = vld [vmem:[%s5 + $0x260] sm:$0xff]
        %v6788 = vld [vmem:[%s5 + $0x268] sm:$0xff]
        %v6789 = vld [vmem:[%s5 + $0x270] sm:$0xff]
        %v6790 = vld [vmem:[%s5 + $0x278] sm:$0xff]
        %v6791 = vld [vmem:[%s5 + $0x280] sm:$0xff]
        %v6792 = vld [vmem:[%s5 + $0x288] sm:$0xff]
        %v6793 = vld [vmem:[%s5 + $0x290] sm:$0xff]
        %v6794 = vld [vmem:[%s5 + $0x298] sm:$0xff]
        %v6795 = vld [vmem:[%s5 + $0x2a0] sm:$0xff]
        %v6796 = vld [vmem:[%s5 + $0x2a8] sm:$0xff]
        %v6797 = vld [vmem:[%s5 + $0x2b0] sm:$0xff]
        %v6798 = vld [vmem:[%s5 + $0x2b8] sm:$0xff]
        %v6799 = vld [vmem:[%s5 + $0x2c0] sm:$0xff]
        %v6800 = vld [vmem:[%s5 + $0x2c8] sm:$0xff]
        %v6801 = vld [vmem:[%s5 + $0x2d0] sm:$0xff]
        %v6802 = vld [vmem:[%s5 + $0x2d8] sm:$0xff]
        %v6803 = vld [vmem:[%s5 + $0x2e0] sm:$0xff]
        %v6804 = vld [vmem:[%s5 + $0x2e8] sm:$0xff]
        %v6805 = vld [vmem:[%s5 + $0x2f0] sm:$0xff]
        %v6806 = vld [vmem:[%s5 + $0x2f8] sm:$0xff]
        %v6903 = vunpack.c.l.b16 %v6711
        %v6904 = vunpack.c.h.b16 %v6711
        %v6905 = vunpack.c.l.b16 %v6712
        %v6906 = vunpack.c.h.b16 %v6712
        %v6907 = vunpack.c.l.b16 %v6713
        %v6908 = vunpack.c.h.b16 %v6713
        %v6909 = vunpack.c.l.b16 %v6714
        %v6910 = vunpack.c.h.b16 %v6714
        %v6911 = vunpack.c.l.b16 %v6715
        %v6912 = vunpack.c.h.b16 %v6715
        %v6913 = vunpack.c.l.b16 %v6716
        %v6914 = vunpack.c.h.b16 %v6716
        %v6915 = vunpack.c.l.b16 %v6717
        %v6916 = vunpack.c.h.b16 %v6717
        %v6917 = vunpack.c.l.b16 %v6718
        %v6918 = vunpack.c.h.b16 %v6718
        %v6919 = vunpack.c.l.b16 %v6719
        %v6920 = vunpack.c.h.b16 %v6719
        %v6921 = vunpack.c.l.b16 %v6720
        %v6922 = vunpack.c.h.b16 %v6720
        %v6923 = vunpack.c.l.b16 %v6721
        %v6924 = vunpack.c.h.b16 %v6721
        %v6925 = vunpack.c.l.b16 %v6722
        %v6926 = vunpack.c.h.b16 %v6722
        %v6927 = vunpack.c.l.b16 %v6723
        %v6928 = vunpack.c.h.b16 %v6723
        %v6929 = vunpack.c.l.b16 %v6724
        %v6930 = vunpack.c.h.b16 %v6724
        %v6931 = vunpack.c.l.b16 %v6725
        %v6932 = vunpack.c.h.b16 %v6725
        %v6933 = vunpack.c.l.b16 %v6726
        %v6934 = vunpack.c.h.b16 %v6726
        %v6935 = vunpack.c.l.b16 %v6727
        %v6936 = vunpack.c.h.b16 %v6727
        %v6937 = vunpack.c.l.b16 %v6728
        %v6938 = vunpack.c.h.b16 %v6728
        %v6939 = vunpack.c.l.b16 %v6729
        %v6940 = vunpack.c.h.b16 %v6729
        %v6941 = vunpack.c.l.b16 %v6730
        %v6942 = vunpack.c.h.b16 %v6730
        %v6943 = vunpack.c.l.b16 %v6731
        %v6944 = vunpack.c.h.b16 %v6731
        %v6945 = vunpack.c.l.b16 %v6732
        %v6946 = vunpack.c.h.b16 %v6732
        %v6947 = vunpack.c.l.b16 %v6733
        %v6948 = vunpack.c.h.b16 %v6733
        %v6949 = vunpack.c.l.b16 %v6734
        %v6950 = vunpack.c.h.b16 %v6734
        %v6951 = vunpack.c.l.b16 %v6735
        %v6952 = vunpack.c.h.b16 %v6735
        %v6953 = vunpack.c.l.b16 %v6736
        %v6954 = vunpack.c.h.b16 %v6736
        %v6955 = vunpack.c.l.b16 %v6737
        %v6956 = vunpack.c.h.b16 %v6737
        %v6957 = vunpack.c.l.b16 %v6738
        %v6958 = vunpack.c.h.b16 %v6738
        %v6959 = vunpack.c.l.b16 %v6739
        %v6960 = vunpack.c.h.b16 %v6739
        %v6961 = vunpack.c.l.b16 %v6740
        %v6962 = vunpack.c.h.b16 %v6740
        %v6963 = vunpack.c.l.b16 %v6741
        %v6964 = vunpack.c.h.b16 %v6741
        %v6965 = vunpack.c.l.b16 %v6742
        %v6966 = vunpack.c.h.b16 %v6742
        %v6967 = vunpack.c.l.b16 %v6743
        %v6968 = vunpack.c.h.b16 %v6743
        %v6969 = vunpack.c.l.b16 %v6744
        %v6970 = vunpack.c.h.b16 %v6744
        %v6971 = vunpack.c.l.b16 %v6745
        %v6972 = vunpack.c.h.b16 %v6745
        %v6973 = vunpack.c.l.b16 %v6746
        %v6974 = vunpack.c.h.b16 %v6746
        %v6975 = vunpack.c.l.b16 %v6747
        %v6976 = vunpack.c.h.b16 %v6747
        %v6977 = vunpack.c.l.b16 %v6748
        %v6978 = vunpack.c.h.b16 %v6748
        %v6979 = vunpack.c.l.b16 %v6749
        %v6980 = vunpack.c.h.b16 %v6749
        %v6981 = vunpack.c.l.b16 %v6750
        %v6982 = vunpack.c.h.b16 %v6750
        %v6983 = vunpack.c.l.b16 %v6751
        %v6984 = vunpack.c.h.b16 %v6751
        %v6985 = vunpack.c.l.b16 %v6752
        %v6986 = vunpack.c.h.b16 %v6752
        %v6987 = vunpack.c.l.b16 %v6753
        %v6988 = vunpack.c.h.b16 %v6753
        %v6989 = vunpack.c.l.b16 %v6754
        %v6990 = vunpack.c.h.b16 %v6754
        %v6991 = vunpack.c.l.b16 %v6755
        %v6992 = vunpack.c.h.b16 %v6755
        %v6993 = vunpack.c.l.b16 %v6756
        %v6994 = vunpack.c.h.b16 %v6756
        %v6995 = vunpack.c.l.b16 %v6757
        %v6996 = vunpack.c.h.b16 %v6757
        %v6997 = vunpack.c.l.b16 %v6758
        %v6998 = vunpack.c.h.b16 %v6758
        %v6999 = vunpack.c.l.b16 %v6759
        %v7000 = vunpack.c.h.b16 %v6759
        %v7001 = vunpack.c.l.b16 %v6760
        %v7002 = vunpack.c.h.b16 %v6760
        %v7003 = vunpack.c.l.b16 %v6761
        %v7004 = vunpack.c.h.b16 %v6761
        %v7005 = vunpack.c.l.b16 %v6762
        %v7006 = vunpack.c.h.b16 %v6762
        %v7007 = vunpack.c.l.b16 %v6763
        %v7008 = vunpack.c.h.b16 %v6763
        %v7009 = vunpack.c.l.b16 %v6764
        %v7010 = vunpack.c.h.b16 %v6764
        %v7011 = vunpack.c.l.b16 %v6765
        %v7012 = vunpack.c.h.b16 %v6765
        %v7013 = vunpack.c.l.b16 %v6766
        %v7014 = vunpack.c.h.b16 %v6766
        %v7015 = vunpack.c.l.b16 %v6767
        %v7016 = vunpack.c.h.b16 %v6767
        %v7017 = vunpack.c.l.b16 %v6768
        %v7018 = vunpack.c.h.b16 %v6768
        %v7019 = vunpack.c.l.b16 %v6769
        %v7020 = vunpack.c.h.b16 %v6769
        %v7021 = vunpack.c.l.b16 %v6770
        %v7022 = vunpack.c.h.b16 %v6770
        %v7023 = vunpack.c.l.b16 %v6771
        %v7024 = vunpack.c.h.b16 %v6771
        %v7025 = vunpack.c.l.b16 %v6772
        %v7026 = vunpack.c.h.b16 %v6772
        %v7027 = vunpack.c.l.b16 %v6773
        %v7028 = vunpack.c.h.b16 %v6773
        %v7029 = vunpack.c.l.b16 %v6774
        %v7030 = vunpack.c.h.b16 %v6774
        %v7031 = vunpack.c.l.b16 %v6775
        %v7032 = vunpack.c.h.b16 %v6775
        %v7033 = vunpack.c.l.b16 %v6776
        %v7034 = vunpack.c.h.b16 %v6776
        %v7035 = vunpack.c.l.b16 %v6777
        %v7036 = vunpack.c.h.b16 %v6777
        %v7037 = vunpack.c.l.b16 %v6778
        %v7038 = vunpack.c.h.b16 %v6778
        %v7039 = vunpack.c.l.b16 %v6779
        %v7040 = vunpack.c.h.b16 %v6779
        %v7041 = vunpack.c.l.b16 %v6780
        %v7042 = vunpack.c.h.b16 %v6780
        %v7043 = vunpack.c.l.b16 %v6781
        %v7044 = vunpack.c.h.b16 %v6781
        %v7045 = vunpack.c.l.b16 %v6782
        %v7046 = vunpack.c.h.b16 %v6782
        %v7047 = vunpack.c.l.b16 %v6783
        %v7048 = vunpack.c.h.b16 %v6783
        %v7049 = vunpack.c.l.b16 %v6784
        %v7050 = vunpack.c.h.b16 %v6784
        %v7051 = vunpack.c.l.b16 %v6785
        %v7052 = vunpack.c.h.b16 %v6785
        %v7053 = vunpack.c.l.b16 %v6786
        %v7054 = vunpack.c.h.b16 %v6786
        %v7055 = vunpack.c.l.b16 %v6787
        %v7056 = vunpack.c.h.b16 %v6787
        %v7057 = vunpack.c.l.b16 %v6788
        %v7058 = vunpack.c.h.b16 %v6788
        %v7059 = vunpack.c.l.b16 %v6789
        %v7060 = vunpack.c.h.b16 %v6789
        %v7061 = vunpack.c.l.b16 %v6790
        %v7062 = vunpack.c.h.b16 %v6790
        %v7063 = vunpack.c.l.b16 %v6791
        %v7064 = vunpack.c.h.b16 %v6791
        %v7065 = vunpack.c.l.b16 %v6792
        %v7066 = vunpack.c.h.b16 %v6792
        %v7067 = vunpack.c.l.b16 %v6793
        %v7068 = vunpack.c.h.b16 %v6793
        %v7069 = vunpack.c.l.b16 %v6794
        %v7070 = vunpack.c.h.b16 %v6794
        %v7071 = vunpack.c.l.b16 %v6795
        %v7072 = vunpack.c.h.b16 %v6795
        %v7073 = vunpack.c.l.b16 %v6796
        %v7074 = vunpack.c.h.b16 %v6796
        %v7075 = vunpack.c.l.b16 %v6797
        %v7076 = vunpack.c.h.b16 %v6797
        %v7077 = vunpack.c.l.b16 %v6798
        %v7078 = vunpack.c.h.b16 %v6798
        %v7079 = vunpack.c.l.b16 %v6799
        %v7080 = vunpack.c.h.b16 %v6799
        %v7081 = vunpack.c.l.b16 %v6800
        %v7082 = vunpack.c.h.b16 %v6800
        %v7083 = vunpack.c.l.b16 %v6801
        %v7084 = vunpack.c.h.b16 %v6801
        %v7085 = vunpack.c.l.b16 %v6802
        %v7086 = vunpack.c.h.b16 %v6802
        %v7087 = vunpack.c.l.b16 %v6803
        %v7088 = vunpack.c.h.b16 %v6803
        %v7089 = vunpack.c.l.b16 %v6804
        %v7090 = vunpack.c.h.b16 %v6804
        %v7091 = vunpack.c.l.b16 %v6805
        %v7092 = vunpack.c.h.b16 %v6805
        %v7093 = vunpack.c.l.b16 %v6806
        %v7094 = vunpack.c.h.b16 %v6806
        %v7095 = vpack.c.b16 %v6915, %v6903
        %v7096 = vpack.c.b16 %v6916, %v6904
        %v7097 = vpack.c.b16 %v6917, %v6905
        %v7098 = vpack.c.b16 %v6918, %v6906
        %v7099 = vpack.c.b16 %v6919, %v6907
        %v7100 = vpack.c.b16 %v6920, %v6908
        %v7101 = vpack.c.b16 %v6921, %v6909
        %v7102 = vpack.c.b16 %v6922, %v6910
        %v7103 = vpack.c.b16 %v6923, %v6911
        %v7104 = vpack.c.b16 %v6924, %v6912
        %v7105 = vpack.c.b16 %v6925, %v6913
        %v7106 = vpack.c.b16 %v6926, %v6914
        %v7107 = vpack.c.b16 %v6939, %v6927
        %v7108 = vpack.c.b16 %v6940, %v6928
        %v7109 = vpack.c.b16 %v6941, %v6929
        %v7110 = vpack.c.b16 %v6942, %v6930
        %v7111 = vpack.c.b16 %v6943, %v6931
        %v7112 = vpack.c.b16 %v6944, %v6932
        %v7113 = vpack.c.b16 %v6945, %v6933
        %v7114 = vpack.c.b16 %v6946, %v6934
        %v7115 = vpack.c.b16 %v6947, %v6935
        %v7116 = vpack.c.b16 %v6948, %v6936
        %v7117 = vpack.c.b16 %v6949, %v6937
        %v7118 = vpack.c.b16 %v6950, %v6938
        %v7119 = vpack.c.b16 %v6963, %v6951
        %v7120 = vpack.c.b16 %v6964, %v6952
        %v7121 = vpack.c.b16 %v6965, %v6953
        %v7122 = vpack.c.b16 %v6966, %v6954
        %v7123 = vpack.c.b16 %v6967, %v6955
        %v7124 = vpack.c.b16 %v6968, %v6956
        %v7125 = vpack.c.b16 %v6969, %v6957
        %v7126 = vpack.c.b16 %v6970, %v6958
        %v7127 = vpack.c.b16 %v6971, %v6959
        %v7128 = vpack.c.b16 %v6972, %v6960
        %v7129 = vpack.c.b16 %v6973, %v6961
        %v7130 = vpack.c.b16 %v6974, %v6962
        %v7131 = vpack.c.b16 %v6987, %v6975
        %v7132 = vpack.c.b16 %v6988, %v6976
        %v7133 = vpack.c.b16 %v6989, %v6977
        %v7134 = vpack.c.b16 %v6990, %v6978
        %v7135 = vpack.c.b16 %v6991, %v6979
        %v7136 = vpack.c.b16 %v6992, %v6980
        %v7137 = vpack.c.b16 %v6993, %v6981
        %v7138 = vpack.c.b16 %v6994, %v6982
        %v7139 = vpack.c.b16 %v6995, %v6983
        %v7140 = vpack.c.b16 %v6996, %v6984
        %v7141 = vpack.c.b16 %v6997, %v6985
        %v7142 = vpack.c.b16 %v6998, %v6986
        %v7143 = vpack.c.b16 %v7011, %v6999
        %v7144 = vpack.c.b16 %v7012, %v7000
        %v7145 = vpack.c.b16 %v7013, %v7001
        %v7146 = vpack.c.b16 %v7014, %v7002
        %v7147 = vpack.c.b16 %v7015, %v7003
        %v7148 = vpack.c.b16 %v7016, %v7004
        %v7149 = vpack.c.b16 %v7017, %v7005
        %v7150 = vpack.c.b16 %v7018, %v7006
        %v7151 = vpack.c.b16 %v7019, %v7007
        %v7152 = vpack.c.b16 %v7020, %v7008
        %v7153 = vpack.c.b16 %v7021, %v7009
        %v7154 = vpack.c.b16 %v7022, %v7010
        %v7155 = vpack.c.b16 %v7035, %v7023
        %v7156 = vpack.c.b16 %v7036, %v7024
        %v7157 = vpack.c.b16 %v7037, %v7025
        %v7158 = vpack.c.b16 %v7038, %v7026
        %v7159 = vpack.c.b16 %v7039, %v7027
        %v7160 = vpack.c.b16 %v7040, %v7028
        %v7161 = vpack.c.b16 %v7041, %v7029
        %v7162 = vpack.c.b16 %v7042, %v7030
        %v7163 = vpack.c.b16 %v7043, %v7031
        %v7164 = vpack.c.b16 %v7044, %v7032
        %v7165 = vpack.c.b16 %v7045, %v7033
        %v7166 = vpack.c.b16 %v7046, %v7034
        %v7167 = vpack.c.b16 %v7059, %v7047
        %v7168 = vpack.c.b16 %v7060, %v7048
        %v7169 = vpack.c.b16 %v7061, %v7049
        %v7170 = vpack.c.b16 %v7062, %v7050
        %v7171 = vpack.c.b16 %v7063, %v7051
        %v7172 = vpack.c.b16 %v7064, %v7052
        %v7173 = vpack.c.b16 %v7065, %v7053
        %v7174 = vpack.c.b16 %v7066, %v7054
        %v7175 = vpack.c.b16 %v7067, %v7055
        %v7176 = vpack.c.b16 %v7068, %v7056
        %v7177 = vpack.c.b16 %v7069, %v7057
        %v7178 = vpack.c.b16 %v7070, %v7058
        %v7179 = vpack.c.b16 %v7083, %v7071
        %v7180 = vpack.c.b16 %v7084, %v7072
        %v7181 = vpack.c.b16 %v7085, %v7073
        %v7182 = vpack.c.b16 %v7086, %v7074
        %v7183 = vpack.c.b16 %v7087, %v7075
        %v7184 = vpack.c.b16 %v7088, %v7076
        %v7185 = vpack.c.b16 %v7089, %v7077
        %v7186 = vpack.c.b16 %v7090, %v7078
        %v7187 = vpack.c.b16 %v7091, %v7079
        %v7188 = vpack.c.b16 %v7092, %v7080
        %v7189 = vpack.c.b16 %v7093, %v7081
        %v7190 = vpack.c.b16 %v7094, %v7082
        %7287 = vmatprep.subr.bf16.mxu0 0
        %7288 = vmatpush1.bf16.msra.mxu0 %v6615
        %7289 = vmatprep.subr.bf16.mxu0 0
        %7290 = vmatpush1.bf16.msra.mxu0 %v6616
        %7291 = vmatprep.subr.bf16.mxu0 0
        %7292 = vmatpush1.bf16.msra.mxu0 %v6617
        %7293 = vmatprep.subr.bf16.mxu0 0
        %7294 = vmatpush1.bf16.msra.mxu0 %v6618
        %7295 = vmatprep.subr.bf16.mxu0 0
        %7296 = vmatpush1.bf16.msra.mxu0 %v6619
        %7297 = vmatprep.subr.bf16.mxu0 0
        %7298 = vmatpush1.bf16.msra.mxu0 %v6620
        %7299 = vmatprep.subr.bf16.mxu0 0
        %7300 = vmatpush1.bf16.msra.mxu0 %v6621
        %7301 = vmatprep.subr.bf16.mxu0 0
        %7302 = vmatpush1.bf16.msra.mxu0 %v6622
        %7303 = vmatprep.subr.bf16.mxu0 0
        %7304 = vmatpush1.bf16.msra.mxu0 %v6623
        %7305 = vmatprep.subr.bf16.mxu0 0
        %7306 = vmatpush1.bf16.msra.mxu0 %v6624
        %7307 = vmatprep.subr.bf16.mxu0 0
        %7308 = vmatpush1.bf16.msra.mxu0 %v6625
        %7309 = vmatprep.subr.bf16.mxu0 0
        %7310 = vmatpush1.bf16.msra.mxu0 %v6626
        %7311 = vmatprep.subr.bf16.mxu0 0
        %7312 = vmatpush1.bf16.msra.mxu0 %v6627
        %7313 = vmatprep.subr.bf16.mxu0 0
        %7314 = vmatpush1.bf16.msra.mxu0 %v6628
        %7315 = vmatprep.subr.bf16.mxu0 0
        %7316 = vmatpush1.bf16.msra.mxu0 %v6629
        %7317 = vmatprep.subr.bf16.mxu0 0
        %7318 = vmatpush1.bf16.msra.mxu0 %v6630
        %7319 = vmatprep.mubr.bf16.mxu0 %v7096
        %7320 = vmatmul.mubr.bf16.gmra.mrb[0].mxu0 %v7095
        %v7321 = vpop.f32.mrb[0].mxu0
        %v7322 = vadd.f32 0.0, %v7321
        %v7323 = vpop.f32.mrb[0].mxu0
        %v7324 = vpop.f32.mrb[0].mxu0
        %v7325 = vadd.f32 0.0, %v7324
        %v7326 = vpop.f32.mrb[0].mxu0
        %7327 = vmatprep.mubr.bf16.mxu0 %v7108
        %7328 = vmatmul.mubr.bf16.gmra.mrb[0].mxu0 %v7107
        %v7329 = vpop.f32.mrb[0].mxu0
        %v7330 = vadd.f32 0.0, %v7329
        %v7331 = vpop.f32.mrb[0].mxu0
        %v7332 = vpop.f32.mrb[0].mxu0
        %v7333 = vadd.f32 0.0, %v7332
        %v7334 = vpop.f32.mrb[0].mxu0
        %7335 = vmatprep.mubr.bf16.mxu0 %v7120
        %7336 = vmatmul.mubr.bf16.gmra.mrb[0].mxu0 %v7119
        %v7337 = vpop.f32.mrb[0].mxu0
        %v7338 = vadd.f32 0.0, %v7337
        %v7339 = vpop.f32.mrb[0].mxu0
        %v7340 = vpop.f32.mrb[0].mxu0
        %v7341 = vadd.f32 0.0, %v7340
        %v7342 = vpop.f32.mrb[0].mxu0
        %7343 = vmatprep.mubr.bf16.mxu0 %v7132
        %7344 = vmatmul.mubr.bf16.gmra.mrb[0].mxu0 %v7131
        %v7345 = vpop.f32.mrb[0].mxu0
        %v7346 = vadd.f32 0.0, %v7345
        %v7347 = vpop.f32.mrb[0].mxu0
        %v7348 = vpop.f32.mrb[0].mxu0
        %v7349 = vadd.f32 0.0, %v7348
        %v7350 = vpop.f32.mrb[0].mxu0
        %7351 = vmatprep.mubr.bf16.mxu0 %v7144
        %7352 = vmatmul.mubr.bf16.gmra.mrb[0].mxu0 %v7143
        %v7353 = vpop.f32.mrb[0].mxu0
        %v7354 = vadd.f32 0.0, %v7353
        %v7355 = vpop.f32.mrb[0].mxu0
        %v7356 = vpop.f32.mrb[0].mxu0
        %v7357 = vadd.f32 0.0, %v7356
        %v7358 = vpop.f32.mrb[0].mxu0
        %7359 = vmatprep.mubr.bf16.mxu0 %v7156
        %7360 = vmatmul.mubr.bf16.gmra.mrb[0].mxu0 %v7155
        %v7361 = vpop.f32.mrb[0].mxu0
        %v7362 = vadd.f32 0.0, %v7361
        %v7363 = vpop.f32.mrb[0].mxu0
        %v7364 = vpop.f32.mrb[0].mxu0
        %v7365 = vadd.f32 0.0, %v7364
        %v7366 = vpop.f32.mrb[0].mxu0
        %7367 = vmatprep.mubr.bf16.mxu0 %v7168
        %7368 = vmatmul.mubr.bf16.gmra.mrb[0].mxu0 %v7167
        %v7369 = vpop.f32.mrb[0].mxu0
        %v7370 = vadd.f32 0.0, %v7369
        %v7371 = vpop.f32.mrb[0].mxu0
        %v7372 = vpop.f32.mrb[0].mxu0
        %v7373 = vadd.f32 0.0, %v7372
        %v7374 = vpop.f32.mrb[0].mxu0
        %7375 = vmatprep.mubr.bf16.mxu0 %v7180
        %7376 = vmatmul.mubr.bf16.gmra.mrb[0].mxu0 %v7179
        %v7377 = vpop.f32.mrb[0].mxu0
        %v7378 = vadd.f32 0.0, %v7377
        %v7379 = vpop.f32.mrb[0].mxu0
        %v7380 = vpop.f32.mrb[0].mxu0
        %v7381 = vadd.f32 0.0, %v7380
        %v7382 = vpop.f32.mrb[0].mxu0
        %7383 = vdwg.mxu0
        %7384 = vmatprep.subr.bf16.mxu0 0
        %7385 = vmatpush1.bf16.msra.mxu0 %v6631
        %7386 = vmatprep.subr.bf16.mxu0 0
        %7387 = vmatpush1.bf16.msra.mxu0 %v6632
        %7388 = vmatprep.subr.bf16.mxu0 0
        %7389 = vmatpush1.bf16.msra.mxu0 %v6633
        %7390 = vmatprep.subr.bf16.mxu0 0
        %7391 = vmatpush1.bf16.msra.mxu0 %v6634
        %7392 = vmatprep.subr.bf16.mxu0 0
        %7393 = vmatpush1.bf16.msra.mxu0 %v6635
        %7394 = vmatprep.subr.bf16.mxu0 0
        %7395 = vmatpush1.bf16.msra.mxu0 %v6636
        %7396 = vmatprep.subr.bf16.mxu0 0
        %7397 = vmatpush1.bf16.msra.mxu0 %v6637
        %7398 = vmatprep.subr.bf16.mxu0 0
        %7399 = vmatpush1.bf16.msra.mxu0 %v6638
        %7400 = vmatprep.subr.bf16.mxu0 0
        %7401 = vmatpush1.bf16.msra.mxu0 %v6639
        %7402 = vmatprep.subr.bf16.mxu0 0
        %7403 = vmatpush1.bf16.msra.mxu0 %v6640
        %7404 = vmatprep.subr.bf16.mxu0 0
        %7405 = vmatpush1.bf16.msra.mxu0 %v6641
        %7406 = vmatprep.subr.bf16.mxu0 0
        %7407 = vmatpush1.bf16.msra.mxu0 %v6642
        %7408 = vmatprep.subr.bf16.mxu0 0
        %7409 = vmatpush1.bf16.msra.mxu0 %v6643
        %7410 = vmatprep.subr.bf16.mxu0 0
        %7411 = vmatpush1.bf16.msra.mxu0 %v6644
        %7412 = vmatprep.subr.bf16.mxu0 0
        %7413 = vmatpush1.bf16.msra.mxu0 %v6645
        %7414 = vmatprep.subr.bf16.mxu0 0
        %7415 = vmatpush1.bf16.msra.mxu0 %v6646
        %7416 = vmatprep.mubr.bf16.mxu0 %v7098
        %7417 = vmatmul.mubr.bf16.gmra.mrb[0].mxu0 %v7097
        %v7418 = vpop.f32.mrb[0].mxu0
        %v7419 = vadd.f32 %v7322, %v7418
        %v7420 = vpop.f32.mrb[0].mxu0
        %v7421 = vpop.f32.mrb[0].mxu0
        %v7422 = vadd.f32 %v7325, %v7421
        %v7423 = vpop.f32.mrb[0].mxu0
        %7424 = vmatprep.mubr.bf16.mxu0 %v7110
        %7425 = vmatmul.mubr.bf16.gmra.mrb[0].mxu0 %v7109
        %v7426 = vpop.f32.mrb[0].mxu0
        %v7427 = vadd.f32 %v7330, %v7426
        %v7428 = vpop.f32.mrb[0].mxu0
        %v7429 = vpop.f32.mrb[0].mxu0
        %v7430 = vadd.f32 %v7333, %v7429
        %v7431 = vpop.f32.mrb[0].mxu0
        %7432 = vmatprep.mubr.bf16.mxu0 %v7122
        %7433 = vmatmul.mubr.bf16.gmra.mrb[0].mxu0 %v7121
        %v7434 = vpop.f32.mrb[0].mxu0
        %v7435 = vadd.f32 %v7338, %v7434
        %v7436 = vpop.f32.mrb[0].mxu0
        %v7437 = vpop.f32.mrb[0].mxu0
        %v7438 = vadd.f32 %v7341, %v7437
        %v7439 = vpop.f32.mrb[0].mxu0
        %7440 = vmatprep.mubr.bf16.mxu0 %v7134
        %7441 = vmatmul.mubr.bf16.gmra.mrb[0].mxu0 %v7133
        %v7442 = vpop.f32.mrb[0].mxu0
        %v7443 = vadd.f32 %v7346, %v7442
        %v7444 = vpop.f32.mrb[0].mxu0
        %v7445 = vpop.f32.mrb[0].mxu0
        %v7446 = vadd.f32 %v7349, %v7445
        %v7447 = vpop.f32.mrb[0].mxu0
        %7448 = vmatprep.mubr.bf16.mxu0 %v7146
        %7449 = vmatmul.mubr.bf16.gmra.mrb[0].mxu0 %v7145
        %v7450 = vpop.f32.mrb[0].mxu0
        %v7451 = vadd.f32 %v7354, %v7450
        %v7452 = vpop.f32.mrb[0].mxu0
        %v7453 = vpop.f32.mrb[0].mxu0
        %v7454 = vadd.f32 %v7357, %v7453
        %v7455 = vpop.f32.mrb[0].mxu0
        %7456 = vmatprep.mubr.bf16.mxu0 %v7158
        %7457 = vmatmul.mubr.bf16.gmra.mrb[0].mxu0 %v7157
        %v7458 = vpop.f32.mrb[0].mxu0
        %v7459 = vadd.f32 %v7362, %v7458
        %v7460 = vpop.f32.mrb[0].mxu0
        %v7461 = vpop.f32.mrb[0].mxu0
        %v7462 = vadd.f32 %v7365, %v7461
        %v7463 = vpop.f32.mrb[0].mxu0
        %7464 = vmatprep.mubr.bf16.mxu0 %v7170
        %7465 = vmatmul.mubr.bf16.gmra.mrb[0].mxu0 %v7169
        %v7466 = vpop.f32.mrb[0].mxu0
        %v7467 = vadd.f32 %v7370, %v7466
        %v7468 = vpop.f32.mrb[0].mxu0
        %v7469 = vpop.f32.mrb[0].mxu0
        %v7470 = vadd.f32 %v7373, %v7469
        %v7471 = vpop.f32.mrb[0].mxu0
        %7472 = vmatprep.mubr.bf16.mxu0 %v7182
        %7473 = vmatmul.mubr.bf16.gmra.mrb[0].mxu0 %v7181
        %v7474 = vpop.f32.mrb[0].mxu0
        %v7475 = vadd.f32 %v7378, %v7474
        %v7476 = vpop.f32.mrb[0].mxu0
        %v7477 = vpop.f32.mrb[0].mxu0
        %v7478 = vadd.f32 %v7381, %v7477
        %v7479 = vpop.f32.mrb[0].mxu0
        %7480 = vdwg.mxu0
        %7481 = vmatprep.subr.bf16.mxu0 0
        %7482 = vmatpush1.bf16.msra.mxu0 %v6647
        %7483 = vmatprep.subr.bf16.mxu0 0
        %7484 = vmatpush1.bf16.msra.mxu0 %v6648
        %7485 = vmatprep.subr.bf16.mxu0 0
        %7486 = vmatpush1.bf16.msra.mxu0 %v6649
        %7487 = vmatprep.subr.bf16.mxu0 0
        %7488 = vmatpush1.bf16.msra.mxu0 %v6650
        %7489 = vmatprep.subr.bf16.mxu0 0
        %7490 = vmatpush1.bf16.msra.mxu0 %v6651
        %7491 = vmatprep.subr.bf16.mxu0 0
        %7492 = vmatpush1.bf16.msra.mxu0 %v6652
        %7493 = vmatprep.subr.bf16.mxu0 0
        %7494 = vmatpush1.bf16.msra.mxu0 %v6653
        %7495 = vmatprep.subr.bf16.mxu0 0
        %7496 = vmatpush1.bf16.msra.mxu0 %v6654
        %7497 = vmatprep.subr.bf16.mxu0 0
        %7498 = vmatpush1.bf16.msra.mxu0 %v6655
        %7499 = vmatprep.subr.bf16.mxu0 0
        %7500 = vmatpush1.bf16.msra.mxu0 %v6656
        %7501 = vmatprep.subr.bf16.mxu0 0
        %7502 = vmatpush1.bf16.msra.mxu0 %v6657
        %7503 = vmatprep.subr.bf16.mxu0 0
        %7504 = vmatpush1.bf16.msra.mxu0 %v6658
        %7505 = vmatprep.subr.bf16.mxu0 0
        %7506 = vmatpush1.bf16.msra.mxu0 %v6659
        %7507 = vmatprep.subr.bf16.mxu0 0
        %7508 = vmatpush1.bf16.msra.mxu0 %v6660
        %7509 = vmatprep.subr.bf16.mxu0 0
        %7510 = vmatpush1.bf16.msra.mxu0 %v6661
        %7511 = vmatprep.subr.bf16.mxu0 0
        %7512 = vmatpush1.bf16.msra.mxu0 %v6662
        %7513 = vmatprep.mubr.bf16.mxu0 %v7100
        %7514 = vmatmul.mubr.bf16.gmra.mrb[0].mxu0 %v7099
        %v7515 = vpop.f32.mrb[0].mxu0
        %v7516 = vadd.f32 %v7419, %v7515
        %v7517 = vpop.f32.mrb[0].mxu0
        %v7518 = vpop.f32.mrb[0].mxu0
        %v7519 = vadd.f32 %v7422, %v7518
        %v7520 = vpop.f32.mrb[0].mxu0
        %7521 = vmatprep.mubr.bf16.mxu0 %v7112
        %7522 = vmatmul.mubr.bf16.gmra.mrb[0].mxu0 %v7111
        %v7523 = vpop.f32.mrb[0].mxu0
        %v7524 = vadd.f32 %v7427, %v7523
        %v7525 = vpop.f32.mrb[0].mxu0
        %v7526 = vpop.f32.mrb[0].mxu0
        %v7527 = vadd.f32 %v7430, %v7526
        %v7528 = vpop.f32.mrb[0].mxu0
        %7529 = vmatprep.mubr.bf16.mxu0 %v7124
        %7530 = vmatmul.mubr.bf16.gmra.mrb[0].mxu0 %v7123
        %v7531 = vpop.f32.mrb[0].mxu0
        %v7532 = vadd.f32 %v7435, %v7531
        %v7533 = vpop.f32.mrb[0].mxu0
        %v7534 = vpop.f32.mrb[0].mxu0
        %v7535 = vadd.f32 %v7438, %v7534
        %v7536 = vpop.f32.mrb[0].mxu0
        %7537 = vmatprep.mubr.bf16.mxu0 %v7136
        %7538 = vmatmul.mubr.bf16.gmra.mrb[0].mxu0 %v7135
        %v7539 = vpop.f32.mrb[0].mxu0
        %v7540 = vadd.f32 %v7443, %v7539
        %v7541 = vpop.f32.mrb[0].mxu0
        %v7542 = vpop.f32.mrb[0].mxu0
        %v7543 = vadd.f32 %v7446, %v7542
        %v7544 = vpop.f32.mrb[0].mxu0
        %7545 = vmatprep.mubr.bf16.mxu0 %v7148
        %7546 = vmatmul.mubr.bf16.gmra.mrb[0].mxu0 %v7147
        %v7547 = vpop.f32.mrb[0].mxu0
        %v7548 = vadd.f32 %v7451, %v7547
        %v7549 = vpop.f32.mrb[0].mxu0
        %v7550 = vpop.f32.mrb[0].mxu0
        %v7551 = vadd.f32 %v7454, %v7550
        %v7552 = vpop.f32.mrb[0].mxu0
        %7553 = vmatprep.mubr.bf16.mxu0 %v7160
        %7554 = vmatmul.mubr.bf16.gmra.mrb[0].mxu0 %v7159
        %v7555 = vpop.f32.mrb[0].mxu0
        %v7556 = vadd.f32 %v7459, %v7555
        %v7557 = vpop.f32.mrb[0].mxu0
        %v7558 = vpop.f32.mrb[0].mxu0
        %v7559 = vadd.f32 %v7462, %v7558
        %v7560 = vpop.f32.mrb[0].mxu0
        %7561 = vmatprep.mubr.bf16.mxu0 %v7172
        %7562 = vmatmul.mubr.bf16.gmra.mrb[0].mxu0 %v7171
        %v7563 = vpop.f32.mrb[0].mxu0
        %v7564 = vadd.f32 %v7467, %v7563
        %v7565 = vpop.f32.mrb[0].mxu0
        %v7566 = vpop.f32.mrb[0].mxu0
        %v7567 = vadd.f32 %v7470, %v7566
        %v7568 = vpop.f32.mrb[0].mxu0
        %7569 = vmatprep.mubr.bf16.mxu0 %v7184
        %7570 = vmatmul.mubr.bf16.gmra.mrb[0].mxu0 %v7183
        %v7571 = vpop.f32.mrb[0].mxu0
        %v7572 = vadd.f32 %v7475, %v7571
        %v7573 = vpop.f32.mrb[0].mxu0
        %v7574 = vpop.f32.mrb[0].mxu0
        %v7575 = vadd.f32 %v7478, %v7574
        %v7576 = vpop.f32.mrb[0].mxu0
        %7577 = vdwg.mxu0
        %7578 = vmatprep.subr.bf16.mxu0 0
        %7579 = vmatpush1.bf16.msra.mxu0 %v6663
        %7580 = vmatprep.subr.bf16.mxu0 0
        %7581 = vmatpush1.bf16.msra.mxu0 %v6664
        %7582 = vmatprep.subr.bf16.mxu0 0
        %7583 = vmatpush1.bf16.msra.mxu0 %v6665
        %7584 = vmatprep.subr.bf16.mxu0 0
        %7585 = vmatpush1.bf16.msra.mxu0 %v6666
        %7586 = vmatprep.subr.bf16.mxu0 0
        %7587 = vmatpush1.bf16.msra.mxu0 %v6667
        %7588 = vmatprep.subr.bf16.mxu0 0
        %7589 = vmatpush1.bf16.msra.mxu0 %v6668
        %7590 = vmatprep.subr.bf16.mxu0 0
        %7591 = vmatpush1.bf16.msra.mxu0 %v6669
        %7592 = vmatprep.subr.bf16.mxu0 0
        %7593 = vmatpush1.bf16.msra.mxu0 %v6670
        %7594 = vmatprep.subr.bf16.mxu0 0
        %7595 = vmatpush1.bf16.msra.mxu0 %v6671
        %7596 = vmatprep.subr.bf16.mxu0 0
        %7597 = vmatpush1.bf16.msra.mxu0 %v6672
        %7598 = vmatprep.subr.bf16.mxu0 0
        %7599 = vmatpush1.bf16.msra.mxu0 %v6673
        %7600 = vmatprep.subr.bf16.mxu0 0
        %7601 = vmatpush1.bf16.msra.mxu0 %v6674
        %7602 = vmatprep.subr.bf16.mxu0 0
        %7603 = vmatpush1.bf16.msra.mxu0 %v6675
        %7604 = vmatprep.subr.bf16.mxu0 0
        %7605 = vmatpush1.bf16.msra.mxu0 %v6676
        %7606 = vmatprep.subr.bf16.mxu0 0
        %7607 = vmatpush1.bf16.msra.mxu0 %v6677
        %7608 = vmatprep.subr.bf16.mxu0 0
        %7609 = vmatpush1.bf16.msra.mxu0 %v6678
        %7610 = vmatprep.mubr.bf16.mxu0 %v7102
        %7611 = vmatmul.mubr.bf16.gmra.mrb[0].mxu0 %v7101
        %v7612 = vpop.f32.mrb[0].mxu0
        %v7613 = vadd.f32 %v7516, %v7612
        %v7614 = vpop.f32.mrb[0].mxu0
        %v7615 = vpop.f32.mrb[0].mxu0
        %v7616 = vadd.f32 %v7519, %v7615
        %v7617 = vpop.f32.mrb[0].mxu0
        %7618 = vmatprep.mubr.bf16.mxu0 %v7114
        %7619 = vmatmul.mubr.bf16.gmra.mrb[0].mxu0 %v7113
        %v7620 = vpop.f32.mrb[0].mxu0
        %v7621 = vadd.f32 %v7524, %v7620
        %v7622 = vpop.f32.mrb[0].mxu0
        %v7623 = vpop.f32.mrb[0].mxu0
        %v7624 = vadd.f32 %v7527, %v7623
        %v7625 = vpop.f32.mrb[0].mxu0
        %7626 = vmatprep.mubr.bf16.mxu0 %v7126
        %7627 = vmatmul.mubr.bf16.gmra.mrb[0].mxu0 %v7125
        %v7628 = vpop.f32.mrb[0].mxu0
        %v7629 = vadd.f32 %v7532, %v7628
        %v7630 = vpop.f32.mrb[0].mxu0
        %v7631 = vpop.f32.mrb[0].mxu0
        %v7632 = vadd.f32 %v7535, %v7631
        %v7633 = vpop.f32.mrb[0].mxu0
        %7634 = vmatprep.mubr.bf16.mxu0 %v7138
        %7635 = vmatmul.mubr.bf16.gmra.mrb[0].mxu0 %v7137
        %v7636 = vpop.f32.mrb[0].mxu0
        %v7637 = vadd.f32 %v7540, %v7636
        %v7638 = vpop.f32.mrb[0].mxu0
        %v7639 = vpop.f32.mrb[0].mxu0
        %v7640 = vadd.f32 %v7543, %v7639
        %v7641 = vpop.f32.mrb[0].mxu0
        %7642 = vmatprep.mubr.bf16.mxu0 %v7150
        %7643 = vmatmul.mubr.bf16.gmra.mrb[0].mxu0 %v7149
        %v7644 = vpop.f32.mrb[0].mxu0
        %v7645 = vadd.f32 %v7548, %v7644
        %v7646 = vpop.f32.mrb[0].mxu0
        %v7647 = vpop.f32.mrb[0].mxu0
        %v7648 = vadd.f32 %v7551, %v7647
        %v7649 = vpop.f32.mrb[0].mxu0
        %7650 = vmatprep.mubr.bf16.mxu0 %v7162
        %7651 = vmatmul.mubr.bf16.gmra.mrb[0].mxu0 %v7161
        %v7652 = vpop.f32.mrb[0].mxu0
        %v7653 = vadd.f32 %v7556, %v7652
        %v7654 = vpop.f32.mrb[0].mxu0
        %v7655 = vpop.f32.mrb[0].mxu0
        %v7656 = vadd.f32 %v7559, %v7655
        %v7657 = vpop.f32.mrb[0].mxu0
        %7658 = vmatprep.mubr.bf16.mxu0 %v7174
        %7659 = vmatmul.mubr.bf16.gmra.mrb[0].mxu0 %v7173
        %v7660 = vpop.f32.mrb[0].mxu0
        %v7661 = vadd.f32 %v7564, %v7660
        %v7662 = vpop.f32.mrb[0].mxu0
        %v7663 = vpop.f32.mrb[0].mxu0
        %v7664 = vadd.f32 %v7567, %v7663
        %v7665 = vpop.f32.mrb[0].mxu0
        %7666 = vmatprep.mubr.bf16.mxu0 %v7186
        %7667 = vmatmul.mubr.bf16.gmra.mrb[0].mxu0 %v7185
        %v7668 = vpop.f32.mrb[0].mxu0
        %v7669 = vadd.f32 %v7572, %v7668
        %v7670 = vpop.f32.mrb[0].mxu0
        %v7671 = vpop.f32.mrb[0].mxu0
        %v7672 = vadd.f32 %v7575, %v7671
        %v7673 = vpop.f32.mrb[0].mxu0
        %7674 = vdwg.mxu0
        %7675 = vmatprep.subr.bf16.mxu0 0
        %7676 = vmatpush1.bf16.msra.mxu0 %v6679
        %7677 = vmatprep.subr.bf16.mxu0 0
        %7678 = vmatpush1.bf16.msra.mxu0 %v6680
        %7679 = vmatprep.subr.bf16.mxu0 0
        %7680 = vmatpush1.bf16.msra.mxu0 %v6681
        %7681 = vmatprep.subr.bf16.mxu0 0
        %7682 = vmatpush1.bf16.msra.mxu0 %v6682
        %7683 = vmatprep.subr.bf16.mxu0 0
        %7684 = vmatpush1.bf16.msra.mxu0 %v6683
        %7685 = vmatprep.subr.bf16.mxu0 0
        %7686 = vmatpush1.bf16.msra.mxu0 %v6684
        %7687 = vmatprep.subr.bf16.mxu0 0
        %7688 = vmatpush1.bf16.msra.mxu0 %v6685
        %7689 = vmatprep.subr.bf16.mxu0 0
        %7690 = vmatpush1.bf16.msra.mxu0 %v6686
        %7691 = vmatprep.subr.bf16.mxu0 0
        %7692 = vmatpush1.bf16.msra.mxu0 %v6687
        %7693 = vmatprep.subr.bf16.mxu0 0
        %7694 = vmatpush1.bf16.msra.mxu0 %v6688
        %7695 = vmatprep.subr.bf16.mxu0 0
        %7696 = vmatpush1.bf16.msra.mxu0 %v6689
        %7697 = vmatprep.subr.bf16.mxu0 0
        %7698 = vmatpush1.bf16.msra.mxu0 %v6690
        %7699 = vmatprep.subr.bf16.mxu0 0
        %7700 = vmatpush1.bf16.msra.mxu0 %v6691
        %7701 = vmatprep.subr.bf16.mxu0 0
        %7702 = vmatpush1.bf16.msra.mxu0 %v6692
        %7703 = vmatprep.subr.bf16.mxu0 0
        %7704 = vmatpush1.bf16.msra.mxu0 %v6693
        %7705 = vmatprep.subr.bf16.mxu0 0
        %7706 = vmatpush1.bf16.msra.mxu0 %v6694
        %7707 = vmatprep.mubr.bf16.mxu0 %v7104
        %7708 = vmatmul.mubr.bf16.gmra.mrb[0].mxu0 %v7103
        %v7709 = vpop.f32.mrb[0].mxu0
        %v7710 = vadd.f32 %v7613, %v7709
        %v7711 = vpop.f32.mrb[0].mxu0
        %v7712 = vpop.f32.mrb[0].mxu0
        %v7713 = vadd.f32 %v7616, %v7712
        %v7714 = vpop.f32.mrb[0].mxu0
        %7715 = vmatprep.mubr.bf16.mxu0 %v7116
        %7716 = vmatmul.mubr.bf16.gmra.mrb[0].mxu0 %v7115
        %v7717 = vpop.f32.mrb[0].mxu0
        %v7718 = vadd.f32 %v7621, %v7717
        %v7719 = vpop.f32.mrb[0].mxu0
        %v7720 = vpop.f32.mrb[0].mxu0
        %v7721 = vadd.f32 %v7624, %v7720
        %v7722 = vpop.f32.mrb[0].mxu0
        %7723 = vmatprep.mubr.bf16.mxu0 %v7128
        %7724 = vmatmul.mubr.bf16.gmra.mrb[0].mxu0 %v7127
        %v7725 = vpop.f32.mrb[0].mxu0
        %v7726 = vadd.f32 %v7629, %v7725
        %v7727 = vpop.f32.mrb[0].mxu0
        %v7728 = vpop.f32.mrb[0].mxu0
        %v7729 = vadd.f32 %v7632, %v7728
        %v7730 = vpop.f32.mrb[0].mxu0
        %7731 = vmatprep.mubr.bf16.mxu0 %v7140
        %7732 = vmatmul.mubr.bf16.gmra.mrb[0].mxu0 %v7139
        %v7733 = vpop.f32.mrb[0].mxu0
        %v7734 = vadd.f32 %v7637, %v7733
        %v7735 = vpop.f32.mrb[0].mxu0
        %v7736 = vpop.f32.mrb[0].mxu0
        %v7737 = vadd.f32 %v7640, %v7736
        %v7738 = vpop.f32.mrb[0].mxu0
        %7739 = vmatprep.mubr.bf16.mxu0 %v7152
        %7740 = vmatmul.mubr.bf16.gmra.mrb[0].mxu0 %v7151
        %v7741 = vpop.f32.mrb[0].mxu0
        %v7742 = vadd.f32 %v7645, %v7741
        %v7743 = vpop.f32.mrb[0].mxu0
        %v7744 = vpop.f32.mrb[0].mxu0
        %v7745 = vadd.f32 %v7648, %v7744
        %v7746 = vpop.f32.mrb[0].mxu0
        %7747 = vmatprep.mubr.bf16.mxu0 %v7164
        %7748 = vmatmul.mubr.bf16.gmra.mrb[0].mxu0 %v7163
        %v7749 = vpop.f32.mrb[0].mxu0
        %v7750 = vadd.f32 %v7653, %v7749
        %v7751 = vpop.f32.mrb[0].mxu0
        %v7752 = vpop.f32.mrb[0].mxu0
        %v7753 = vadd.f32 %v7656, %v7752
        %v7754 = vpop.f32.mrb[0].mxu0
        %7755 = vmatprep.mubr.bf16.mxu0 %v7176
        %7756 = vmatmul.mubr.bf16.gmra.mrb[0].mxu0 %v7175
        %v7757 = vpop.f32.mrb[0].mxu0
        %v7758 = vadd.f32 %v7661, %v7757
        %v7759 = vpop.f32.mrb[0].mxu0
        %v7760 = vpop.f32.mrb[0].mxu0
        %v7761 = vadd.f32 %v7664, %v7760
        %v7762 = vpop.f32.mrb[0].mxu0
        %7763 = vmatprep.mubr.bf16.mxu0 %v7188
        %7764 = vmatmul.mubr.bf16.gmra.mrb[0].mxu0 %v7187
        %v7765 = vpop.f32.mrb[0].mxu0
        %v7766 = vadd.f32 %v7669, %v7765
        %v7767 = vpop.f32.mrb[0].mxu0
        %v7768 = vpop.f32.mrb[0].mxu0
        %v7769 = vadd.f32 %v7672, %v7768
        %v7770 = vpop.f32.mrb[0].mxu0
        %7771 = vdwg.mxu0
        %7772 = vmatprep.subr.bf16.mxu0 0
        %7773 = vmatpush1.bf16.msra.mxu0 %v6695
        %7774 = vmatprep.subr.bf16.mxu0 0
        %7775 = vmatpush1.bf16.msra.mxu0 %v6696
        %7776 = vmatprep.subr.bf16.mxu0 0
        %7777 = vmatpush1.bf16.msra.mxu0 %v6697
        %7778 = vmatprep.subr.bf16.mxu0 0
        %7779 = vmatpush1.bf16.msra.mxu0 %v6698
        %7780 = vmatprep.subr.bf16.mxu0 0
        %7781 = vmatpush1.bf16.msra.mxu0 %v6699
        %7782 = vmatprep.subr.bf16.mxu0 0
        %7783 = vmatpush1.bf16.msra.mxu0 %v6700
        %7784 = vmatprep.subr.bf16.mxu0 0
        %7785 = vmatpush1.bf16.msra.mxu0 %v6701
        %7786 = vmatprep.subr.bf16.mxu0 0
        %7787 = vmatpush1.bf16.msra.mxu0 %v6702
        %7788 = vmatprep.subr.bf16.mxu0 0
        %7789 = vmatpush1.bf16.msra.mxu0 %v6703
        %7790 = vmatprep.subr.bf16.mxu0 0
        %7791 = vmatpush1.bf16.msra.mxu0 %v6704
        %7792 = vmatprep.subr.bf16.mxu0 0
        %7793 = vmatpush1.bf16.msra.mxu0 %v6705
        %7794 = vmatprep.subr.bf16.mxu0 0
        %7795 = vmatpush1.bf16.msra.mxu0 %v6706
        %7796 = vmatprep.subr.bf16.mxu0 0
        %7797 = vmatpush1.bf16.msra.mxu0 %v6707
        %7798 = vmatprep.subr.bf16.mxu0 0
        %7799 = vmatpush1.bf16.msra.mxu0 %v6708
        %7800 = vmatprep.subr.bf16.mxu0 0
        %7801 = vmatpush1.bf16.msra.mxu0 %v6709
        %7802 = vmatprep.subr.bf16.mxu0 0
        %7803 = vmatpush1.bf16.msra.mxu0 %v6710
        %7804 = vmatprep.mubr.bf16.mxu0 %v7106
        %7805 = vmatmul.mubr.bf16.gmra.mrb[0].mxu0 %v7105
        %v7806 = vpop.f32.mrb[0].mxu0
        %v7807 = vadd.f32 %v7710, %v7806
        %v7808 = vpop.f32.mrb[0].mxu0
        %v7809 = vpop.f32.mrb[0].mxu0
        %v7810 = vadd.f32 %v7713, %v7809
        %v7811 = vpop.f32.mrb[0].mxu0
        %7812 = vmatprep.mubr.bf16.mxu0 %v7118
        %7813 = vmatmul.mubr.bf16.gmra.mrb[0].mxu0 %v7117
        %v7814 = vpop.f32.mrb[0].mxu0
        %v7815 = vadd.f32 %v7718, %v7814
        %v7816 = vpop.f32.mrb[0].mxu0
        %v7817 = vpop.f32.mrb[0].mxu0
        %v7818 = vadd.f32 %v7721, %v7817
        %v7819 = vpop.f32.mrb[0].mxu0
        %7820 = vmatprep.mubr.bf16.mxu0 %v7130
        %7821 = vmatmul.mubr.bf16.gmra.mrb[0].mxu0 %v7129
        %v7822 = vpop.f32.mrb[0].mxu0
        %v7823 = vadd.f32 %v7726, %v7822
        %v7824 = vpop.f32.mrb[0].mxu0
        %v7825 = vpop.f32.mrb[0].mxu0
        %v7826 = vadd.f32 %v7729, %v7825
        %v7827 = vpop.f32.mrb[0].mxu0
        %7828 = vmatprep.mubr.bf16.mxu0 %v7142
        %7829 = vmatmul.mubr.bf16.gmra.mrb[0].mxu0 %v7141
        %v7830 = vpop.f32.mrb[0].mxu0
        %v7831 = vadd.f32 %v7734, %v7830
        %v7832 = vpop.f32.mrb[0].mxu0
        %v7833 = vpop.f32.mrb[0].mxu0
        %v7834 = vadd.f32 %v7737, %v7833
        %v7835 = vpop.f32.mrb[0].mxu0
        %7836 = vmatprep.mubr.bf16.mxu0 %v7154
        %7837 = vmatmul.mubr.bf16.gmra.mrb[0].mxu0 %v7153
        %v7838 = vpop.f32.mrb[0].mxu0
        %v7839 = vadd.f32 %v7742, %v7838
        %v7840 = vpop.f32.mrb[0].mxu0
        %v7841 = vpop.f32.mrb[0].mxu0
        %v7842 = vadd.f32 %v7745, %v7841
        %v7843 = vpop.f32.mrb[0].mxu0
        %7844 = vmatprep.mubr.bf16.mxu0 %v7166
        %7845 = vmatmul.mubr.bf16.gmra.mrb[0].mxu0 %v7165
        %v7846 = vpop.f32.mrb[0].mxu0
        %v7847 = vadd.f32 %v7750, %v7846
        %v7848 = vpop.f32.mrb[0].mxu0
        %v7849 = vpop.f32.mrb[0].mxu0
        %v7850 = vadd.f32 %v7753, %v7849
        %v7851 = vpop.f32.mrb[0].mxu0
        %7852 = vmatprep.mubr.bf16.mxu0 %v7178
        %7853 = vmatmul.mubr.bf16.gmra.mrb[0].mxu0 %v7177
        %v7854 = vpop.f32.mrb[0].mxu0
        %v7855 = vadd.f32 %v7758, %v7854
        %v7856 = vpop.f32.mrb[0].mxu0
        %v7857 = vpop.f32.mrb[0].mxu0
        %v7858 = vadd.f32 %v7761, %v7857
        %v7859 = vpop.f32.mrb[0].mxu0
        %7860 = vmatprep.mubr.bf16.mxu0 %v7190
        %7861 = vmatmul.mubr.bf16.gmra.mrb[0].mxu0 %v7189
        %v7862 = vpop.f32.mrb[0].mxu0
        %v7863 = vadd.f32 %v7766, %v7862
        %v7864 = vpop.f32.mrb[0].mxu0
        %v7865 = vpop.f32.mrb[0].mxu0
        %v7866 = vadd.f32 %v7769, %v7865
        %v7867 = vpop.f32.mrb[0].mxu0
        %7868 = vdwg.mxu0
        %7869 = vst.msk [vmem:[%s274] sm:$0xff] %vm1550, %v7807
        %7870 = vst.msk [vmem:[%s274 + $0x8] sm:$0xff] %vm1550, %v7810
        %7871 = vst.msk [vmem:[%s274 + $0x10] sm:$0xff] %vm1550, %v7815
        %7872 = vst.msk [vmem:[%s274 + $0x18] sm:$0xff] %vm1550, %v7818
        %7873 = vst.msk [vmem:[%s274 + $0x20] sm:$0xff] %vm1550, %v7823
        %7874 = vst.msk [vmem:[%s274 + $0x28] sm:$0xff] %vm1550, %v7826
        %7875 = vst.msk [vmem:[%s274 + $0x30] sm:$0xff] %vm1550, %v7831
        %7876 = vst.msk [vmem:[%s274 + $0x38] sm:$0xff] %vm1550, %v7834
        %7877 = vst.msk [vmem:[%s274 + $0x40] sm:$0xff] %vm1550, %v7839
        %7878 = vst.msk [vmem:[%s274 + $0x48] sm:$0xff] %vm1550, %v7842
        %7879 = vst.msk [vmem:[%s274 + $0x50] sm:$0xff] %vm1550, %v7847
        %7880 = vst.msk [vmem:[%s274 + $0x58] sm:$0xff] %vm1550, %v7850
        %7881 = vst.msk [vmem:[%s274 + $0x60] sm:$0xff] %vm1550, %v7855
        %7882 = vst.msk [vmem:[%s274 + $0x68] sm:$0xff] %vm1550, %v7858
        %7883 = vst.msk [vmem:[%s274 + $0x70] sm:$0xff] %vm1550, %v7863
        %7884 = vst.msk [vmem:[%s274 + $0x78] sm:$0xff] %vm1550, %v7866
      $region52: #{eff_b3_lstm_forward.2} parent=43 // pred_fallthru
        _
      %p7885 = scmp.lt.s32.totalorder %s21, 7
      %s7886 = scalar_select %p7885, %s21, 7
      %s7887 = smul.addr %s7886, 16
      %s7888 = smul.addr %s7887, 8
      %s7889 = scalar_lea.vmem %s6, %s7888
      // Predicated region
      $region53: #{eff_b3_lstm_forward.2} parent=43 // pred_check
        %p7890 = pneg %p180
      $region54: #{eff_b3_lstm_forward.2} parent=43 // pred_check_branch
        %7892 = sbr.rel (%p7890) target = $region56
      $region55: #{eff_b3_lstm_forward.2} parent=43 // pred_region
        _
      $region56: #{eff_b3_lstm_forward.2} parent=43 // pred_fallthru
        _
    $region44: #{eff_b3_lstm_forward.2} parent=5 // pred_fallthru
      _
    %p7893 = scmp.le.s32.totalorder 2, %s12
    // Predicated region
    $region57: #{eff_b3_lstm_forward.2} parent=5 // pred_check
      %p7894 = pneg %p7893
    $region58: #{eff_b3_lstm_forward.2} parent=5 // pred_check_branch
      %7896 = sbr.rel (%p7894) target = $region60
    $region59: #{eff_b3_lstm_forward.2} parent=5 // pred_region
      %s7897 = ssub.s32 %s12, 2
      // Predicated region
      $region61: #{eff_b3_lstm_forward.2} parent=59 // pred_check
        %p7898 = pneg %p186
      $region62: #{eff_b3_lstm_forward.2} parent=59 // pred_check_branch
        %7900 = sbr.rel (%p7898) target = $region64
      $region63: #{eff_b3_lstm_forward.2} parent=59 // pred_region
        %p7901 = scmp.lt.s32.totalorder %s23, 7
        %s7902 = scalar_select %p7901, %s23, 7
        %s7903 = smul.addr %s7902, 16
        %s7904 = smul.addr %s7903, 8
        %s7905 = scalar_lea.vmem %s6, %s7904
      $region64: #{eff_b3_lstm_forward.2} parent=59 // pred_fallthru
        _
    $region60: #{eff_b3_lstm_forward.2} parent=5 // pred_fallthru
      _
  $region6: #{eff_b3_lstm_forward.2} parent=0 // loop_footer
    %s16 = sadd.s32 1, %s12
  $region7: #{eff_b3_lstm_forward.2} parent=0 // loop_footer_branch
    %11 = sbr.rel target = $region3
  $region8: #{eff_b3_lstm_forward.2} parent=0 // loop_exit
    _

</llo_original>
